<compile_context>
chip_gen: v7x
topology: tpu7x:2x2x1
jax: 0.10.0
libtpu: 0.0.40
codegen_flags: <defaults>
</compile_context>

<pallas_src>
import functools
import math

import numpy as np

import jax
import jax.numpy as jnp
from jax import lax
from jax.experimental import pallas as pl
from jax.experimental.pallas import tpu as pltpu

C_PAD = 128            # every channel dim is zero-padded to this lane width
_F32 = jnp.float32
_BF16 = jnp.bfloat16


def _embed(a, shape, r0=0, c0=0, dtype=_F32):
    """Place 2-D array `a` into a zero array of `shape` at offset (r0, c0)."""
    out = jnp.zeros(shape, dtype)
    return out.at[r0:r0 + a.shape[0], c0:c0 + a.shape[1]].set(a.astype(dtype))


# --------------------------------------------------------------------------- #
# In-kernel exact-spirit GELU (Abramowitz & Stegun 7.1.26 erf, |err| <= 1.5e-7)
# --------------------------------------------------------------------------- #
def _erf(x):
    a1, a2, a3, a4, a5 = 0.254829592, -0.284496736, 1.421413741, -1.453152027, 1.061405429
    pp = 0.3275911
    s = jnp.where(x >= 0, 1.0, -1.0)
    z = jnp.abs(x)
    t = 1.0 / (1.0 + pp * z)
    poly = ((((a5 * t + a4) * t + a3) * t + a2) * t + a1) * t
    return s * (1.0 - poly * jnp.exp(-z * z))


def _gelu(x):
    # nn.GELU default (exact erf); gelu(0) == 0 exactly so padded lanes stay zero.
    return 0.5 * x * (1.0 + _erf(x * 0.7071067811865476))


# --------------------------------------------------------------------------- #
# Single fused kernel: GAT -> gelu residual -> 3x FPSSAB (6 MABs) -> pred head
# --------------------------------------------------------------------------- #
def _fused_kernel(x_ref, adj_ref, sel_ref, mask_ix_ref, mask_xi_ref,
                  gw_ref, gasrc_ref, gadst_ref, gbias_ref, ghm_ref,
                  hm_ref, wq_ref, wkv_ref, wo_ref, bkv_ref, vec_ref,
                  pw_ref, pb_ref, o_ref, *, num_heads, dim_v, ln):
    n_tot = x_ref.shape[0]
    scale = 1.0 / math.sqrt(dim_v)            # Set-Transformer scales by sqrt(dim_V)

    hm_gat = [ghm_ref[h] for h in range(num_heads)]     # (1, C) GAT output-column masks
    hm_st = [hm_ref[h] for h in range(num_heads)]       # (1, C) ST head-column masks
    valid = hm_st[0]
    for h in range(1, num_heads):
        valid = valid + hm_st[h]                         # 1.0 on the dim_v real columns

    # -------------------- GATConv (heads stacked along rows) --------------------
    x = x_ref[...]                                                       # (N, C) f32
    xp = jnp.dot(x.astype(_BF16), gw_ref[...], preferred_element_type=_F32)   # (N, C)
    xpb = xp.astype(_BF16)
    s_src = lax.dot_general(gasrc_ref[...], xpb, (((1,), (1,)), ((), ())),
                            preferred_element_type=_F32)                # (H, N)
    s_dst = jnp.dot(xpb, gadst_ref[...], preferred_element_type=_F32)   # (N, H)
    # e[h*N + q, k] = leakyrelu(att_dst_h.x'_q + att_src_h.x'_k), masked by adjacency.
    e = jnp.concatenate(
        [s_dst[:, h:h + 1] + s_src[h:h + 1, :] for h in range(num_heads)], axis=0)
    e = jnp.where(e >= 0, e, 0.2 * e)                                    # LeakyReLU(0.2)
    adj_s = jnp.concatenate([adj_ref[...]] * num_heads, axis=0)          # (H*N, N)
    e = jnp.where(adj_s > 0, e, -1e30)
    e = e - jnp.max(e, axis=-1, keepdims=True)
    p = jnp.exp(e)
    p = p / jnp.sum(p, axis=-1, keepdims=True)                           # one softmax for all heads
    av = jnp.dot(p.astype(_BF16), xpb, preferred_element_type=_F32)      # (H*N, C) single AV matmul
    gat = gbias_ref[...]
    for h in range(num_heads):
        gat = gat + av[h * n_tot:(h + 1) * n_tot, :] * hm_gat[h]
    x1 = x + _gelu(gat)           # == concat([x, gelu(gat_out)]) in the padded layout

    # -------------------- Set-Transformer helpers --------------------
    def layer_norm(t, g, beta):
        # LayerNorm over the dim_v real channels; g/beta are zero on padded lanes.
        mu = jnp.sum(t * valid, axis=-1, keepdims=True) * (1.0 / dim_v)
        d = (t - mu) * valid
        var = jnp.sum(d * d, axis=-1, keepdims=True) * (1.0 / dim_v)
        return (t - mu) * lax.rsqrt(var + 1e-5) * g + beta

    def mha(q, kb, vb, mask):
        # q (nq, C) f32 projected queries, kb/vb (nk, C) bf16, mask (nq, nk) batch mask.
        nq = q.shape[0]
        qs = jnp.concatenate(
            [q * hm_st[h] for h in range(num_heads)], axis=0).astype(_BF16)   # (H*nq, C)
        s = lax.dot_general(qs, kb, (((1,), (1,)), ((), ())),
                            preferred_element_type=_F32) * scale              # (H*nq, nk)
        msk = jnp.concatenate([mask] * num_heads, axis=0)
        s = jnp.where(msk > 0, s, -1e30)
        s = s - jnp.max(s, axis=-1, keepdims=True)
        ps = jnp.exp(s)
        ps = ps / jnp.sum(ps, axis=-1, keepdims=True)
        avh = jnp.dot(ps.astype(_BF16), vb, preferred_element_type=_F32)      # (H*nq, C)
        out = avh[0:nq, :] * hm_st[0]
        for h in range(1, num_heads):
            out = out + avh[h * nq:(h + 1) * nq, :] * hm_st[h]                # concat-equivalent
        return out

    def mab(q_in, k_in, mask, idx):
        bq, bo, g0, be0, g1, be1 = (vec_ref[idx, j] for j in range(6))
        q = jnp.dot(q_in.astype(_BF16), wq_ref[idx], preferred_element_type=_F32) + bq
        kv = jnp.dot(k_in.astype(_BF16), wkv_ref[idx],
                     preferred_element_type=_F32) + bkv_ref[idx]               # (nk, 2C)
        k = kv[:, :C_PAD].astype(_BF16)
        v = kv[:, C_PAD:].astype(_BF16)
        o = q + mha(q, k, v, mask)
        if ln:
            o = layer_norm(o, g0, be0)
        o = o + jnp.maximum(
            jnp.dot(o.astype(_BF16), wo_ref[idx], preferred_element_type=_F32) + bo, 0.0)
        if ln:
            o = layer_norm(o, g1, be1)
        return o

    sel = sel_ref[...]            # (B*m, N) one-hot FPS gather matrix
    m_ix = mask_ix_ref[...]       # (B*m, B*n) block-diag batch mask (inducing attends X)
    m_xi = mask_xi_ref[...]       # (B*n, B*m) block-diag batch mask (X attends inducing)

    cur = x1
    for layer in range(3):
        inducing = jnp.dot(sel, cur, preferred_element_type=_F32)   # exact FPS gather (f32)
        mid = mab(inducing, cur, m_ix, 2 * layer)                   # MAB(I_fps, X)
        cur = mab(cur, mid, m_xi, 2 * layer + 1)                    # MAB(X, H)

    pred = jnp.dot(cur.astype(_BF16), pw_ref[...],
                   preferred_element_type=_F32) + pb_ref[...]
    o_ref[...] = pred.astype(o_ref.dtype)                            # lane-dense (N, 128) store


def gatfpsst_fused(x_pad, adj, sel, mask_ix, mask_xi, params, *, num_heads, dim_v, ln):
    gat = params["gat"]
    st = params["st"]
    n_tot = x_pad.shape[0]
    kernel = functools.partial(_fused_kernel, num_heads=num_heads, dim_v=dim_v, ln=ln)
    # No grid: whole model in one invocation, everything resident in VMEM (<1 MiB).
    return pl.pallas_call(
        kernel,
        out_shape=jax.ShapeDtypeStruct((n_tot, C_PAD), _F32),
    )(x_pad, adj, sel, mask_ix, mask_xi,
      gat["w"], gat["a_src"], gat["a_dst"], gat["bias"], gat["hmask"],
      st["hmask"], st["w_q"], st["w_kv"], st["w_o"], st["b_kv"], st["vec"],
      st["pred_w"], st["pred_b"])


# --------------------------------------------------------------------------- #
# Farthest-point sampling (sequential, data-dependent -> plain JAX glue)
# --------------------------------------------------------------------------- #
def _fps_single(xb, m):
    # TODO(synk): inherently sequential argmax chain; kept in plain JAX (lax.fori_loop),
    # start point fixed at index 0 (torch_cluster fps uses a random start).
    n = xb.shape[0]

    def body(i, carry):
        idxs, mind = carry
        last = idxs[i - 1]
        d = jnp.sum((xb - xb[last]) ** 2, axis=-1)
        mind = jnp.minimum(mind, d)
        nxt = jnp.argmax(mind).astype(jnp.int32)
        idxs = idxs.at[i].set(nxt)
        return idxs, mind

    idxs0 = jnp.zeros((m,), jnp.int32)
    mind0 = jnp.full((n,), jnp.inf, _F32)
    idxs, _ = lax.fori_loop(1, m, body, (idxs0, mind0))
    return idxs


# --------------------------------------------------------------------------- #
# Dense adjacency (hoisted out of the forward: the graph is static per dataset)
# --------------------------------------------------------------------------- #
def build_dense_adj(edge_index, n_total):
    # row = target node, col = source node, self-loops added (add_self_loops=True).
    # TODO(synk): PyG GATConv uses a sparse scatter softmax; densified here (small N).
    adj = jnp.zeros((n_total, n_total), _F32)
    adj = adj.at[edge_index[1], edge_index[0]].set(1.0)
    diag = jnp.arange(n_total)
    return adj.at[diag, diag].set(1.0)


# --------------------------------------------------------------------------- #
# Parameter init (deterministic, synthetic, pre-padded / pre-packed)
# --------------------------------------------------------------------------- #
def _init_linear(key, din, dout, scale=0.1):
    kw, kb = jax.random.split(key)
    w = jax.random.normal(kw, (din, dout), _F32) * scale
    b = jax.random.normal(kb, (1, dout), _F32) * scale
    return w, b


def _init_gat(key, dim_input, dim_hidden, num_heads):
    head_dim = dim_hidden // num_heads
    k1, k2, k3, k4 = jax.random.split(key, 4)
    w = jax.random.normal(k1, (dim_input, dim_hidden), _F32) * 0.1
    att_src = jax.random.normal(k2, (dim_hidden,), _F32) * 0.1
    att_dst = jax.random.normal(k3, (dim_hidden,), _F32) * 0.1
    bias = jax.random.normal(k4, (1, dim_hidden), _F32) * 0.1
    off = dim_input                    # GAT output lives in cols [off, off + dim_hidden)
    a_src = jnp.zeros((num_heads, C_PAD), _F32)   # per-head src coefficients (block rows)
    a_dst = jnp.zeros((C_PAD, num_heads), _F32)   # per-head dst coefficients (block cols)
    hmask = jnp.zeros((num_heads, 1, C_PAD), _F32)
    for h in range(num_heads):
        lo, hi = off + h * head_dim, off + (h + 1) * head_dim
        a_src = a_src.at[h, lo:hi].set(att_src[h * head_dim:(h + 1) * head_dim])
        a_dst = a_dst.at[lo:hi, h].set(att_dst[h * head_dim:(h + 1) * head_dim])
        hmask = hmask.at[h, 0, lo:hi].set(1.0)
    return dict(
        w=_embed(w, (C_PAD, C_PAD), 0, off, _BF16),
        a_src=a_src.astype(_BF16),
        a_dst=a_dst.astype(_BF16),
        # bias embedded only at the GAT output columns so gelu(bias) cannot leak
        # into the raw-feature columns of the concat trick.
        bias=_embed(bias, (1, C_PAD), 0, off, _F32),
        hmask=hmask,
    )


def _init_mab(key, dq, dk, dv):
    ks = jax.random.split(key, 4)
    wq, bq = _init_linear(ks[0], dq, dv)
    wk, bk = _init_linear(ks[1], dk, dv)
    wv, bv = _init_linear(ks[2], dk, dv)
    wo, bo = _init_linear(ks[3], dv, dv)
    w_q = _embed(wq, (C_PAD, C_PAD), 0, 0, _BF16)
    w_o = _embed(wo, (C_PAD, C_PAD), 0, 0, _BF16)
    # Wk | Wv packed side-by-side -> one 256-lane-wide matmul per MAB key input.
    w_kv = jnp.zeros((C_PAD, 2 * C_PAD), _BF16)
    w_kv = w_kv.at[:dk, :dv].set(wk.astype(_BF16))
    w_kv = w_kv.at[:dk, C_PAD:C_PAD + dv].set(wv.astype(_BF16))
    b_kv = jnp.zeros((1, 2 * C_PAD), _F32)
    b_kv = b_kv.at[:, :dv].set(bk).at[:, C_PAD:C_PAD + dv].set(bv)
    ones = jnp.ones((1, dv), _F32)
    zeros = jnp.zeros((1, dv), _F32)
    vec = jnp.stack([_embed(t, (1, C_PAD)) for t in (bq, bo, ones, zeros, ones, zeros)])
    return w_q, w_kv, w_o, b_kv, vec


def init_params(key, dim_input, dim_hidden, dim_output, num_heads):
    assert dim_hidden % num_heads == 0
    assert dim_hidden + dim_input <= C_PAD
    ks = jax.random.split(key, 8)
    gat = _init_gat(ks[0], dim_input, dim_hidden, num_heads)
    d1 = dim_hidden + dim_input
    # (dq, dk, dv) for the 6 MABs: st1.mab0, st1.mab1, st2.mab0, st2.mab1, st3.mab0, st3.mab1
    dims = [(d1, d1, dim_hidden), (d1, dim_hidden, dim_hidden),
            (dim_hidden, dim_hidden, dim_hidden), (dim_hidden, dim_hidden, dim_hidden),
            (dim_hidden, dim_hidden, dim_hidden), (dim_hidden, dim_hidden, dim_hidden)]
    w_q, w_kv, w_o, b_kv, vec = [], [], [], [], []
    for i, (dq, dk, dv) in enumerate(dims):
        a, b, c, d, e = _init_mab(ks[1 + i], dq, dk, dv)
        w_q.append(a); w_kv.append(b); w_o.append(c); b_kv.append(d); vec.append(e)
    head_dim = dim_hidden // num_heads
    hmask = jnp.zeros((num_heads, 1, C_PAD), _F32)
    for h in range(num_heads):
        hmask = hmask.at[h, 0, h * head_dim:(h + 1) * head_dim].set(1.0)
    pred_w, pred_b = _init_linear(ks[7], dim_hidden, dim_output)
    st = dict(
        w_q=jnp.stack(w_q),          # (6, C, C)   bf16
        w_kv=jnp.stack(w_kv),        # (6, C, 2C)  bf16
        w_o=jnp.stack(w_o),          # (6, C, C)   bf16
        b_kv=jnp.stack(b_kv),        # (6, 1, 2C)  f32
        vec=jnp.stack(vec),          # (6, 6, 1, C) f32: bq, bo, g0, beta0, g1, beta1
        hmask=hmask,                 # (H, 1, C)
        pred_w=_embed(pred_w, (C_PAD, C_PAD), 0, 0, _BF16),
        pred_b=_embed(pred_b, (1, C_PAD), 0, 0, _F32),
    )
    return dict(gat=gat, st=st)


# --------------------------------------------------------------------------- #
# Model forward (GATFPSST.forward); adj is precomputed (graph is static).
# --------------------------------------------------------------------------- #
def gatfpsst_forward(params, x, adj, batch_size, *, num_heads, fps_ratio, ln,
                     dim_hidden, dim_output):
    n_total, n_marker = x.shape
    n_events = n_total // batch_size
    m = int(math.ceil(fps_ratio * n_events))

    x_pad = jnp.zeros((n_total, C_PAD), _F32).at[:, :n_marker].set(x)

    # FPS on raw marker features per batch -> dense one-hot gather matrix (B*m, N)
    # consumed inside the fused kernel (layers 2/3 re-gather from VMEM intermediates).
    x_b = x.reshape(batch_size, n_events, n_marker)
    fps_idx = jax.vmap(lambda xb: _fps_single(xb, m))(x_b).astype(jnp.int32)   # (B, m)
    fps_global = (fps_idx
                  + jnp.arange(batch_size, dtype=jnp.int32)[:, None] * n_events).reshape(-1)
    sel = (fps_global[:, None] == jnp.arange(n_total, dtype=jnp.int32)[None, :]).astype(_F32)

    # Static block-diagonal batch masks (all batch elements run in one kernel step;
    # masks keep the attention per-batch).  Multiples of 8 rows for aligned slicing.
    qb = np.repeat(np.arange(batch_size), m)
    kb = np.repeat(np.arange(batch_size), n_events)
    mask_ix = jnp.asarray((qb[:, None] == kb[None, :]).astype(np.float32))   # (B*m, B*n)
    mask_xi = jnp.asarray((kb[:, None] == qb[None, :]).astype(np.float32))   # (B*n, B*m)

    out_pad = gatfpsst_fused(x_pad, adj, sel, mask_ix, mask_xi, params,
                             num_heads=num_heads, dim_v=dim_hidden, ln=ln)
    return out_pad[:, :dim_output]


# --------------------------------------------------------------------------- #
if __name__ == "__main__":
    batch_size = 2
    n_events = 8
    dim_input = 4          # = n_marker
    dim_hidden = 32
    dim_output = 3
    num_heads = 4
    fps_ratio = 0.5
    layer_norm = True

    key = jax.random.PRNGKey(0)
    k_x, k_p = jax.random.split(key)
    n_total = batch_size * n_events
    x = jax.random.normal(k_x, (n_total, dim_input), _F32)

    # deterministic ring graph inside each batch block (both directions)
    src, dst = [], []
    for b in range(batch_size):
        for i in range(n_events):
            a = b * n_events + i
            c = b * n_events + (i + 1) % n_events
            src += [a, c]
            dst += [c, a]
    edge_index = jnp.array([src, dst], dtype=jnp.int32)

    params = init_params(k_p, dim_input, dim_hidden, dim_output, num_heads)
    adj = build_dense_adj(edge_index, n_total)     # hoisted: graph is static

    fwd = jax.jit(
        functools.partial(gatfpsst_forward, num_heads=num_heads, fps_ratio=fps_ratio,
                          ln=layer_norm, dim_hidden=dim_hidden, dim_output=dim_output),
        static_argnums=(3,))

    out = fwd(params, x, adj, batch_size)
    out = jax.block_until_ready(out)
    assert out.shape == (n_total, dim_output), out.shape
    assert bool(jnp.all(jnp.isfinite(out)))
    print("KERNEL_OK")
</pallas_src>

<mosaic_0001>
module attributes {stable_mosaic.version = 11 : i64} {
  func.func @_fused_kernel(%arg0: memref<16x128xf32, #tpu.memory_space<vmem>>, %arg1: memref<16x16xf32, #tpu.memory_space<vmem>>, %arg2: memref<8x16xf32, #tpu.memory_space<vmem>>, %arg3: memref<8x16xf32, #tpu.memory_space<vmem>>, %arg4: memref<16x8xf32, #tpu.memory_space<vmem>>, %arg5: memref<128x128xbf16, #tpu.memory_space<vmem>>, %arg6: memref<4x128xbf16, #tpu.memory_space<vmem>>, %arg7: memref<128x4xbf16, #tpu.memory_space<vmem>>, %arg8: memref<1x128xf32, #tpu.memory_space<vmem>>, %arg9: memref<4x1x128xf32, #tpu.memory_space<vmem>>, %arg10: memref<4x1x128xf32, #tpu.memory_space<vmem>>, %arg11: memref<6x128x128xbf16, #tpu.memory_space<vmem>>, %arg12: memref<6x128x256xbf16, #tpu.memory_space<vmem>>, %arg13: memref<6x128x128xbf16, #tpu.memory_space<vmem>>, %arg14: memref<6x1x256xf32, #tpu.memory_space<vmem>>, %arg15: memref<6x6x1x128xf32, #tpu.memory_space<vmem>>, %arg16: memref<128x128xbf16, #tpu.memory_space<vmem>>, %arg17: memref<1x128xf32, #tpu.memory_space<vmem>>, %arg18: memref<16x128xf32, #tpu.memory_space<vmem>>) attributes {dimension_semantics = [], scalar_prefetch = 0 : i64, scratch_operands = 0 : i64, tpu.core_type = #tpu.core_type<tc>} {
    %c0 = arith.constant 0 : index
    %c0_0 = arith.constant 0 : index
    %c0_1 = arith.constant 0 : index
    %0 = vector.load %arg9[%c0, %c0_0, %c0_1] : memref<4x1x128xf32, #tpu.memory_space<vmem>>, vector<1x1x128xf32>
    %1 = vector.shape_cast %0 : vector<1x1x128xf32> to vector<1x128xf32>
    %c1 = arith.constant 1 : index
    %c0_2 = arith.constant 0 : index
    %c0_3 = arith.constant 0 : index
    %2 = vector.load %arg9[%c1, %c0_2, %c0_3] : memref<4x1x128xf32, #tpu.memory_space<vmem>>, vector<1x1x128xf32>
    %3 = vector.shape_cast %2 : vector<1x1x128xf32> to vector<1x128xf32>
    %c2 = arith.constant 2 : index
    %c0_4 = arith.constant 0 : index
    %c0_5 = arith.constant 0 : index
    %4 = vector.load %arg9[%c2, %c0_4, %c0_5] : memref<4x1x128xf32, #tpu.memory_space<vmem>>, vector<1x1x128xf32>
    %5 = vector.shape_cast %4 : vector<1x1x128xf32> to vector<1x128xf32>
    %c3 = arith.constant 3 : index
    %c0_6 = arith.constant 0 : index
    %c0_7 = arith.constant 0 : index
    %6 = vector.load %arg9[%c3, %c0_6, %c0_7] : memref<4x1x128xf32, #tpu.memory_space<vmem>>, vector<1x1x128xf32>
    %7 = vector.shape_cast %6 : vector<1x1x128xf32> to vector<1x128xf32>
    %c0_8 = arith.constant 0 : index
    %c0_9 = arith.constant 0 : index
    %c0_10 = arith.constant 0 : index
    %8 = vector.load %arg10[%c0_8, %c0_9, %c0_10] : memref<4x1x128xf32, #tpu.memory_space<vmem>>, vector<1x1x128xf32>
    %9 = vector.shape_cast %8 : vector<1x1x128xf32> to vector<1x128xf32>
    %c1_11 = arith.constant 1 : index
    %c0_12 = arith.constant 0 : index
    %c0_13 = arith.constant 0 : index
    %10 = vector.load %arg10[%c1_11, %c0_12, %c0_13] : memref<4x1x128xf32, #tpu.memory_space<vmem>>, vector<1x1x128xf32>
    %11 = vector.shape_cast %10 : vector<1x1x128xf32> to vector<1x128xf32>
    %c2_14 = arith.constant 2 : index
    %c0_15 = arith.constant 0 : index
    %c0_16 = arith.constant 0 : index
    %12 = vector.load %arg10[%c2_14, %c0_15, %c0_16] : memref<4x1x128xf32, #tpu.memory_space<vmem>>, vector<1x1x128xf32>
    %13 = vector.shape_cast %12 : vector<1x1x128xf32> to vector<1x128xf32>
    %c3_17 = arith.constant 3 : index
    %c0_18 = arith.constant 0 : index
    %c0_19 = arith.constant 0 : index
    %14 = vector.load %arg10[%c3_17, %c0_18, %c0_19] : memref<4x1x128xf32, #tpu.memory_space<vmem>>, vector<1x1x128xf32>
    %15 = vector.shape_cast %14 : vector<1x1x128xf32> to vector<1x128xf32>
    %16 = arith.addf %9, %11 : vector<1x128xf32>
    %17 = arith.addf %16, %13 : vector<1x128xf32>
    %18 = arith.addf %17, %15 : vector<1x128xf32>
    %c0_20 = arith.constant 0 : index
    %c0_21 = arith.constant 0 : index
    %19 = vector.load %arg0[%c0_20, %c0_21] : memref<16x128xf32, #tpu.memory_space<vmem>>, vector<16x128xf32>
    %20 = arith.truncf %19 : vector<16x128xf32> to vector<16x128xbf16>
    %c0_22 = arith.constant 0 : index
    %c0_23 = arith.constant 0 : index
    %21 = vector.load %arg5[%c0_22, %c0_23] : memref<128x128xbf16, #tpu.memory_space<vmem>>, vector<128x128xbf16>
    %cst = arith.constant dense<0.000000e+00> : vector<16x128xf32>
    %22 = tpu.matmul %20, %21, %cst {dimension_numbers = #tpu.dot_dimension_numbers<[1], [0], [0], [1], [0, 0, 1, 1], [], []>} : vector<16x128xbf16>, vector<128x128xbf16>, vector<16x128xf32> -> vector<16x128xf32>
    %23 = arith.truncf %22 : vector<16x128xf32> to vector<16x128xbf16>
    %c0_24 = arith.constant 0 : index
    %c0_25 = arith.constant 0 : index
    %24 = vector.load %arg6[%c0_24, %c0_25] : memref<4x128xbf16, #tpu.memory_space<vmem>>, vector<4x128xbf16>
    %cst_26 = arith.constant dense<0.000000e+00> : vector<4x16xf32>
    %25 = tpu.matmul %24, %23, %cst_26 {dimension_numbers = #tpu.dot_dimension_numbers<[1], [1], [0], [0], [0, 0, 1, 0], [], []>} : vector<4x128xbf16>, vector<16x128xbf16>, vector<4x16xf32> -> vector<4x16xf32>
    %c0_27 = arith.constant 0 : index
    %c0_28 = arith.constant 0 : index
    %26 = vector.load %arg7[%c0_27, %c0_28] : memref<128x4xbf16, #tpu.memory_space<vmem>>, vector<128x4xbf16>
    %cst_29 = arith.constant dense<0.000000e+00> : vector<16x4xf32>
    %27 = tpu.matmul %23, %26, %cst_29 {dimension_numbers = #tpu.dot_dimension_numbers<[1], [0], [0], [1], [0, 0, 1, 1], [], []>} : vector<16x128xbf16>, vector<128x4xbf16>, vector<16x4xf32> -> vector<16x4xf32>
    %28 = vector.extract_strided_slice %27 {offsets = [0, 0], sizes = [16, 1], strides = [1, 1]} : vector<16x4xf32> to vector<16x1xf32>
    %29 = vector.extract_strided_slice %25 {offsets = [0, 0], sizes = [1, 16], strides = [1, 1]} : vector<4x16xf32> to vector<1x16xf32>
    %30 = vector.broadcast %28 : vector<16x1xf32> to vector<16x16xf32>
    %31 = vector.broadcast %29 : vector<1x16xf32> to vector<16x16xf32>
    %32 = arith.addf %30, %31 : vector<16x16xf32>
    %33 = vector.extract_strided_slice %27 {offsets = [0, 1], sizes = [16, 1], strides = [1, 1]} : vector<16x4xf32> to vector<16x1xf32>
    %34 = vector.extract_strided_slice %25 {offsets = [1, 0], sizes = [1, 16], strides = [1, 1]} : vector<4x16xf32> to vector<1x16xf32>
    %35 = vector.broadcast %33 : vector<16x1xf32> to vector<16x16xf32>
    %36 = vector.broadcast %34 : vector<1x16xf32> to vector<16x16xf32>
    %37 = arith.addf %35, %36 : vector<16x16xf32>
    %38 = vector.extract_strided_slice %27 {offsets = [0, 2], sizes = [16, 1], strides = [1, 1]} : vector<16x4xf32> to vector<16x1xf32>
    %39 = vector.extract_strided_slice %25 {offsets = [2, 0], sizes = [1, 16], strides = [1, 1]} : vector<4x16xf32> to vector<1x16xf32>
    %40 = vector.broadcast %38 : vector<16x1xf32> to vector<16x16xf32>
    %41 = vector.broadcast %39 : vector<1x16xf32> to vector<16x16xf32>
    %42 = arith.addf %40, %41 : vector<16x16xf32>
    %43 = vector.extract_strided_slice %27 {offsets = [0, 3], sizes = [16, 1], strides = [1, 1]} : vector<16x4xf32> to vector<16x1xf32>
    %44 = vector.extract_strided_slice %25 {offsets = [3, 0], sizes = [1, 16], strides = [1, 1]} : vector<4x16xf32> to vector<1x16xf32>
    %45 = vector.broadcast %43 : vector<16x1xf32> to vector<16x16xf32>
    %46 = vector.broadcast %44 : vector<1x16xf32> to vector<16x16xf32>
    %47 = arith.addf %45, %46 : vector<16x16xf32>
    %48 = tpu.concatenate %32, %37, %42, %47 in 0 : vector<16x16xf32>, vector<16x16xf32>, vector<16x16xf32>, vector<16x16xf32> -> vector<64x16xf32>
    %cst_30 = arith.constant 0.000000e+00 : f32
    %49 = vector.broadcast %cst_30 : f32 to vector<64x16xf32>
    %50 = arith.cmpf oge, %48, %49 : vector<64x16xf32>
    %cst_31 = arith.constant 2.000000e-01 : f32
    %51 = vector.broadcast %cst_31 : f32 to vector<64x16xf32>
    %52 = arith.mulf %51, %48 : vector<64x16xf32>
    %53 = arith.select %50, %48, %52 : vector<64x16xi1>, vector<64x16xf32>
    %c0_32 = arith.constant 0 : index
    %c0_33 = arith.constant 0 : index
    %54 = vector.load %arg1[%c0_32, %c0_33] : memref<16x16xf32, #tpu.memory_space<vmem>>, vector<16x16xf32>
    %55 = tpu.concatenate %54, %54, %54, %54 in 0 : vector<16x16xf32>, vector<16x16xf32>, vector<16x16xf32>, vector<16x16xf32> -> vector<64x16xf32>
    %cst_34 = arith.constant 0.000000e+00 : f32
    %56 = vector.broadcast %cst_34 : f32 to vector<64x16xf32>
    %57 = arith.cmpf ogt, %55, %56 : vector<64x16xf32>
    %cst_35 = arith.constant -1.000000e+30 : f32
    %58 = vector.broadcast %cst_35 : f32 to vector<64x16xf32>
    %59 = arith.select %57, %53, %58 : vector<64x16xi1>, vector<64x16xf32>
    %cst_36 = arith.constant dense<0xFF800000> : vector<64xf32>
    %60 = vector.multi_reduction <maximumf>, %59, %cst_36 [1] : vector<64x16xf32> to vector<64xf32>
    %61 = vector.shape_cast %60 : vector<64xf32> to vector<64x1xf32>
    %62 = vector.broadcast %61 : vector<64x1xf32> to vector<64x16xf32>
    %63 = arith.subf %59, %62 : vector<64x16xf32>
    %64 = math.exp %63 : vector<64x16xf32>
    %cst_37 = arith.constant dense<0.000000e+00> : vector<64xf32>
    %65 = vector.multi_reduction <add>, %64, %cst_37 [1] : vector<64x16xf32> to vector<64xf32>
    %66 = vector.shape_cast %65 : vector<64xf32> to vector<64x1xf32>
    %67 = vector.broadcast %66 : vector<64x1xf32> to vector<64x16xf32>
    %68 = arith.divf %64, %67 : vector<64x16xf32>
    %69 = arith.truncf %68 : vector<64x16xf32> to vector<64x16xbf16>
    %cst_38 = arith.constant dense<0.000000e+00> : vector<64x128xf32>
    %70 = tpu.matmul %69, %23, %cst_38 {dimension_numbers = #tpu.dot_dimension_numbers<[1], [0], [0], [1], [0, 0, 1, 1], [], []>} : vector<64x16xbf16>, vector<16x128xbf16>, vector<64x128xf32> -> vector<64x128xf32>
    %c0_39 = arith.constant 0 : index
    %c0_40 = arith.constant 0 : index
    %71 = vector.load %arg8[%c0_39, %c0_40] : memref<1x128xf32, #tpu.memory_space<vmem>>, vector<1x128xf32>
    %72 = vector.extract_strided_slice %70 {offsets = [0, 0], sizes = [16, 128], strides = [1, 1]} : vector<64x128xf32> to vector<16x128xf32>
    %73 = vector.broadcast %1 : vector<1x128xf32> to vector<16x128xf32>
    %74 = arith.mulf %72, %73 : vector<16x128xf32>
    %75 = vector.broadcast %71 : vector<1x128xf32> to vector<16x128xf32>
    %76 = arith.addf %75, %74 : vector<16x128xf32>
    %77 = vector.extract_strided_slice %70 {offsets = [16, 0], sizes = [16, 128], strides = [1, 1]} : vector<64x128xf32> to vector<16x128xf32>
    %78 = vector.broadcast %3 : vector<1x128xf32> to vector<16x128xf32>
    %79 = arith.mulf %77, %78 : vector<16x128xf32>
    %80 = arith.addf %76, %79 : vector<16x128xf32>
    %81 = vector.extract_strided_slice %70 {offsets = [32, 0], sizes = [16, 128], strides = [1, 1]} : vector<64x128xf32> to vector<16x128xf32>
    %82 = vector.broadcast %5 : vector<1x128xf32> to vector<16x128xf32>
    %83 = arith.mulf %81, %82 : vector<16x128xf32>
    %84 = arith.addf %80, %83 : vector<16x128xf32>
    %85 = vector.extract_strided_slice %70 {offsets = [48, 0], sizes = [16, 128], strides = [1, 1]} : vector<64x128xf32> to vector<16x128xf32>
    %86 = vector.broadcast %7 : vector<1x128xf32> to vector<16x128xf32>
    %87 = arith.mulf %85, %86 : vector<16x128xf32>
    %88 = arith.addf %84, %87 : vector<16x128xf32>
    %cst_41 = arith.constant 5.000000e-01 : f32
    %89 = vector.broadcast %cst_41 : f32 to vector<16x128xf32>
    %90 = arith.mulf %89, %88 : vector<16x128xf32>
    %cst_42 = arith.constant 0.707106769 : f32
    %91 = vector.broadcast %cst_42 : f32 to vector<16x128xf32>
    %92 = arith.mulf %88, %91 : vector<16x128xf32>
    %cst_43 = arith.constant 0.000000e+00 : f32
    %93 = vector.broadcast %cst_43 : f32 to vector<16x128xf32>
    %94 = arith.cmpf oge, %92, %93 : vector<16x128xf32>
    %cst_44 = arith.constant 1.000000e+00 : f32
    %cst_45 = arith.constant -1.000000e+00 : f32
    %95 = vector.broadcast %cst_44 : f32 to vector<16x128xf32>
    %96 = vector.broadcast %cst_45 : f32 to vector<16x128xf32>
    %97 = arith.select %94, %95, %96 : vector<16x128xi1>, vector<16x128xf32>
    %98 = math.absf %92 : vector<16x128xf32>
    %cst_46 = arith.constant 0.327591091 : f32
    %99 = vector.broadcast %cst_46 : f32 to vector<16x128xf32>
    %100 = arith.mulf %99, %98 : vector<16x128xf32>
    %cst_47 = arith.constant 1.000000e+00 : f32
    %101 = vector.broadcast %cst_47 : f32 to vector<16x128xf32>
    %102 = arith.addf %101, %100 : vector<16x128xf32>
    %cst_48 = arith.constant 1.000000e+00 : f32
    %103 = vector.broadcast %cst_48 : f32 to vector<16x128xf32>
    %104 = arith.divf %103, %102 : vector<16x128xf32>
    %cst_49 = arith.constant 1.06140542 : f32
    %105 = vector.broadcast %cst_49 : f32 to vector<16x128xf32>
    %106 = arith.mulf %105, %104 : vector<16x128xf32>
    %cst_50 = arith.constant -1.45315206 : f32
    %107 = vector.broadcast %cst_50 : f32 to vector<16x128xf32>
    %108 = arith.addf %106, %107 : vector<16x128xf32>
    %109 = arith.mulf %108, %104 : vector<16x128xf32>
    %cst_51 = arith.constant 1.42141378 : f32
    %110 = vector.broadcast %cst_51 : f32 to vector<16x128xf32>
    %111 = arith.addf %109, %110 : vector<16x128xf32>
    %112 = arith.mulf %111, %104 : vector<16x128xf32>
    %cst_52 = arith.constant -0.284496725 : f32
    %113 = vector.broadcast %cst_52 : f32 to vector<16x128xf32>
    %114 = arith.addf %112, %113 : vector<16x128xf32>
    %115 = arith.mulf %114, %104 : vector<16x128xf32>
    %cst_53 = arith.constant 0.254829586 : f32
    %116 = vector.broadcast %cst_53 : f32 to vector<16x128xf32>
    %117 = arith.addf %115, %116 : vector<16x128xf32>
    %118 = arith.mulf %117, %104 : vector<16x128xf32>
    %cst_54 = arith.constant 0.000000e+00 : f32
    %119 = vector.broadcast %cst_54 : f32 to vector<16x128xf32>
    %120 = arith.subf %119, %98 : vector<16x128xf32>
    %121 = arith.mulf %120, %98 : vector<16x128xf32>
    %122 = math.exp %121 : vector<16x128xf32>
    %123 = arith.mulf %118, %122 : vector<16x128xf32>
    %cst_55 = arith.constant 1.000000e+00 : f32
    %124 = vector.broadcast %cst_55 : f32 to vector<16x128xf32>
    %125 = arith.subf %124, %123 : vector<16x128xf32>
    %126 = arith.mulf %97, %125 : vector<16x128xf32>
    %cst_56 = arith.constant 1.000000e+00 : f32
    %127 = vector.broadcast %cst_56 : f32 to vector<16x128xf32>
    %128 = arith.addf %127, %126 : vector<16x128xf32>
    %129 = arith.mulf %90, %128 : vector<16x128xf32>
    %130 = arith.addf %19, %129 : vector<16x128xf32>
    %c0_57 = arith.constant 0 : index
    %c0_58 = arith.constant 0 : index
    %131 = vector.load %arg2[%c0_57, %c0_58] : memref<8x16xf32, #tpu.memory_space<vmem>>, vector<8x16xf32>
    %c0_59 = arith.constant 0 : index
    %c0_60 = arith.constant 0 : index
    %132 = vector.load %arg3[%c0_59, %c0_60] : memref<8x16xf32, #tpu.memory_space<vmem>>, vector<8x16xf32>
    %c0_61 = arith.constant 0 : index
    %c0_62 = arith.constant 0 : index
    %133 = vector.load %arg4[%c0_61, %c0_62] : memref<16x8xf32, #tpu.memory_space<vmem>>, vector<16x8xf32>
    %cst_63 = arith.constant dense<0.000000e+00> : vector<8x128xf32>
    %134 = tpu.matmul %131, %130, %cst_63 {dimension_numbers = #tpu.dot_dimension_numbers<[1], [0], [0], [1], [0, 0, 1, 1], [], []>} : vector<8x16xf32>, vector<16x128xf32>, vector<8x128xf32> -> vector<8x128xf32>
    %c0_64 = arith.constant 0 : index
    %c0_65 = arith.constant 0 : index
    %c0_66 = arith.constant 0 : index
    %c0_67 = arith.constant 0 : index
    %135 = vector.load %arg15[%c0_64, %c0_65, %c0_66, %c0_67] : memref<6x6x1x128xf32, #tpu.memory_space<vmem>>, vector<1x1x1x128xf32>
    %136 = vector.shape_cast %135 : vector<1x1x1x128xf32> to vector<1x128xf32>
    %c0_68 = arith.constant 0 : index
    %c1_69 = arith.constant 1 : index
    %c0_70 = arith.constant 0 : index
    %c0_71 = arith.constant 0 : index
    %137 = vector.load %arg15[%c0_68, %c1_69, %c0_70, %c0_71] : memref<6x6x1x128xf32, #tpu.memory_space<vmem>>, vector<1x1x1x128xf32>
    %138 = vector.shape_cast %137 : vector<1x1x1x128xf32> to vector<1x128xf32>
    %c0_72 = arith.constant 0 : index
    %c2_73 = arith.constant 2 : index
    %c0_74 = arith.constant 0 : index
    %c0_75 = arith.constant 0 : index
    %139 = vector.load %arg15[%c0_72, %c2_73, %c0_74, %c0_75] : memref<6x6x1x128xf32, #tpu.memory_space<vmem>>, vector<1x1x1x128xf32>
    %140 = vector.shape_cast %139 : vector<1x1x1x128xf32> to vector<1x128xf32>
    %c0_76 = arith.constant 0 : index
    %c3_77 = arith.constant 3 : index
    %c0_78 = arith.constant 0 : index
    %c0_79 = arith.constant 0 : index
    %141 = vector.load %arg15[%c0_76, %c3_77, %c0_78, %c0_79] : memref<6x6x1x128xf32, #tpu.memory_space<vmem>>, vector<1x1x1x128xf32>
    %142 = vector.shape_cast %141 : vector<1x1x1x128xf32> to vector<1x128xf32>
    %c0_80 = arith.constant 0 : index
    %c4 = arith.constant 4 : index
    %c0_81 = arith.constant 0 : index
    %c0_82 = arith.constant 0 : index
    %143 = vector.load %arg15[%c0_80, %c4, %c0_81, %c0_82] : memref<6x6x1x128xf32, #tpu.memory_space<vmem>>, vector<1x1x1x128xf32>
    %144 = vector.shape_cast %143 : vector<1x1x1x128xf32> to vector<1x128xf32>
    %c0_83 = arith.constant 0 : index
    %c5 = arith.constant 5 : index
    %c0_84 = arith.constant 0 : index
    %c0_85 = arith.constant 0 : index
    %145 = vector.load %arg15[%c0_83, %c5, %c0_84, %c0_85] : memref<6x6x1x128xf32, #tpu.memory_space<vmem>>, vector<1x1x1x128xf32>
    %146 = vector.shape_cast %145 : vector<1x1x1x128xf32> to vector<1x128xf32>
    %147 = arith.truncf %134 : vector<8x128xf32> to vector<8x128xbf16>
    %c0_86 = arith.constant 0 : index
    %c0_87 = arith.constant 0 : index
    %c0_88 = arith.constant 0 : index
    %148 = vector.load %arg11[%c0_86, %c0_87, %c0_88] : memref<6x128x128xbf16, #tpu.memory_space<vmem>>, vector<1x128x128xbf16>
    %149 = vector.shape_cast %148 : vector<1x128x128xbf16> to vector<128x128xbf16>
    %cst_89 = arith.constant dense<0.000000e+00> : vector<8x128xf32>
    %150 = tpu.matmul %147, %149, %cst_89 {dimension_numbers = #tpu.dot_dimension_numbers<[1], [0], [0], [1], [0, 0, 1, 1], [], []>} : vector<8x128xbf16>, vector<128x128xbf16>, vector<8x128xf32> -> vector<8x128xf32>
    %151 = vector.broadcast %136 : vector<1x128xf32> to vector<8x128xf32>
    %152 = arith.addf %150, %151 : vector<8x128xf32>
    %153 = arith.truncf %130 : vector<16x128xf32> to vector<16x128xbf16>
    %c0_90 = arith.constant 0 : index
    %c0_91 = arith.constant 0 : index
    %c0_92 = arith.constant 0 : index
    %154 = vector.load %arg12[%c0_90, %c0_91, %c0_92] : memref<6x128x256xbf16, #tpu.memory_space<vmem>>, vector<1x128x256xbf16>
    %155 = vector.shape_cast %154 : vector<1x128x256xbf16> to vector<128x256xbf16>
    %cst_93 = arith.constant dense<0.000000e+00> : vector<16x256xf32>
    %156 = tpu.matmul %153, %155, %cst_93 {dimension_numbers = #tpu.dot_dimension_numbers<[1], [0], [0], [1], [0, 0, 1, 1], [], []>} : vector<16x128xbf16>, vector<128x256xbf16>, vector<16x256xf32> -> vector<16x256xf32>
    %c0_94 = arith.constant 0 : index
    %c0_95 = arith.constant 0 : index
    %c0_96 = arith.constant 0 : index
    %157 = vector.load %arg14[%c0_94, %c0_95, %c0_96] : memref<6x1x256xf32, #tpu.memory_space<vmem>>, vector<1x1x256xf32>
    %158 = vector.shape_cast %157 : vector<1x1x256xf32> to vector<1x256xf32>
    %159 = vector.broadcast %158 : vector<1x256xf32> to vector<16x256xf32>
    %160 = arith.addf %156, %159 : vector<16x256xf32>
    %161 = vector.extract_strided_slice %160 {offsets = [0, 0], sizes = [16, 128], strides = [1, 1]} : vector<16x256xf32> to vector<16x128xf32>
    %162 = arith.truncf %161 : vector<16x128xf32> to vector<16x128xbf16>
    %163 = vector.extract_strided_slice %160 {offsets = [0, 128], sizes = [16, 128], strides = [1, 1]} : vector<16x256xf32> to vector<16x128xf32>
    %164 = arith.truncf %163 : vector<16x128xf32> to vector<16x128xbf16>
    %165 = vector.broadcast %9 : vector<1x128xf32> to vector<8x128xf32>
    %166 = arith.mulf %152, %165 : vector<8x128xf32>
    %167 = vector.broadcast %11 : vector<1x128xf32> to vector<8x128xf32>
    %168 = arith.mulf %152, %167 : vector<8x128xf32>
    %169 = vector.broadcast %13 : vector<1x128xf32> to vector<8x128xf32>
    %170 = arith.mulf %152, %169 : vector<8x128xf32>
    %171 = vector.broadcast %15 : vector<1x128xf32> to vector<8x128xf32>
    %172 = arith.mulf %152, %171 : vector<8x128xf32>
    %173 = tpu.concatenate %166, %168, %170, %172 in 0 : vector<8x128xf32>, vector<8x128xf32>, vector<8x128xf32>, vector<8x128xf32> -> vector<32x128xf32>
    %174 = arith.truncf %173 : vector<32x128xf32> to vector<32x128xbf16>
    %cst_97 = arith.constant dense<0.000000e+00> : vector<32x16xf32>
    %175 = tpu.matmul %174, %162, %cst_97 {dimension_numbers = #tpu.dot_dimension_numbers<[1], [1], [0], [0], [0, 0, 1, 0], [], []>} : vector<32x128xbf16>, vector<16x128xbf16>, vector<32x16xf32> -> vector<32x16xf32>
    %cst_98 = arith.constant 0.176776692 : f32
    %176 = vector.broadcast %cst_98 : f32 to vector<32x16xf32>
    %177 = arith.mulf %175, %176 : vector<32x16xf32>
    %178 = tpu.concatenate %132, %132, %132, %132 in 0 : vector<8x16xf32>, vector<8x16xf32>, vector<8x16xf32>, vector<8x16xf32> -> vector<32x16xf32>
    %cst_99 = arith.constant 0.000000e+00 : f32
    %179 = vector.broadcast %cst_99 : f32 to vector<32x16xf32>
    %180 = arith.cmpf ogt, %178, %179 : vector<32x16xf32>
    %cst_100 = arith.constant -1.000000e+30 : f32
    %181 = vector.broadcast %cst_100 : f32 to vector<32x16xf32>
    %182 = arith.select %180, %177, %181 : vector<32x16xi1>, vector<32x16xf32>
    %cst_101 = arith.constant dense<0xFF800000> : vector<32xf32>
    %183 = vector.multi_reduction <maximumf>, %182, %cst_101 [1] : vector<32x16xf32> to vector<32xf32>
    %184 = vector.shape_cast %183 : vector<32xf32> to vector<32x1xf32>
    %185 = vector.broadcast %184 : vector<32x1xf32> to vector<32x16xf32>
    %186 = arith.subf %182, %185 : vector<32x16xf32>
    %187 = math.exp %186 : vector<32x16xf32>
    %cst_102 = arith.constant dense<0.000000e+00> : vector<32xf32>
    %188 = vector.multi_reduction <add>, %187, %cst_102 [1] : vector<32x16xf32> to vector<32xf32>
    %189 = vector.shape_cast %188 : vector<32xf32> to vector<32x1xf32>
    %190 = vector.broadcast %189 : vector<32x1xf32> to vector<32x16xf32>
    %191 = arith.divf %187, %190 : vector<32x16xf32>
    %192 = arith.truncf %191 : vector<32x16xf32> to vector<32x16xbf16>
    %cst_103 = arith.constant dense<0.000000e+00> : vector<32x128xf32>
    %193 = tpu.matmul %192, %164, %cst_103 {dimension_numbers = #tpu.dot_dimension_numbers<[1], [0], [0], [1], [0, 0, 1, 1], [], []>} : vector<32x16xbf16>, vector<16x128xbf16>, vector<32x128xf32> -> vector<32x128xf32>
    %194 = vector.extract_strided_slice %193 {offsets = [0, 0], sizes = [8, 128], strides = [1, 1]} : vector<32x128xf32> to vector<8x128xf32>
    %195 = vector.broadcast %9 : vector<1x128xf32> to vector<8x128xf32>
    %196 = arith.mulf %194, %195 : vector<8x128xf32>
    %197 = vector.extract_strided_slice %193 {offsets = [8, 0], sizes = [8, 128], strides = [1, 1]} : vector<32x128xf32> to vector<8x128xf32>
    %198 = vector.broadcast %11 : vector<1x128xf32> to vector<8x128xf32>
    %199 = arith.mulf %197, %198 : vector<8x128xf32>
    %200 = arith.addf %196, %199 : vector<8x128xf32>
    %201 = vector.extract_strided_slice %193 {offsets = [16, 0], sizes = [8, 128], strides = [1, 1]} : vector<32x128xf32> to vector<8x128xf32>
    %202 = vector.broadcast %13 : vector<1x128xf32> to vector<8x128xf32>
    %203 = arith.mulf %201, %202 : vector<8x128xf32>
    %204 = arith.addf %200, %203 : vector<8x128xf32>
    %205 = vector.extract_strided_slice %193 {offsets = [24, 0], sizes = [8, 128], strides = [1, 1]} : vector<32x128xf32> to vector<8x128xf32>
    %206 = vector.broadcast %15 : vector<1x128xf32> to vector<8x128xf32>
    %207 = arith.mulf %205, %206 : vector<8x128xf32>
    %208 = arith.addf %204, %207 : vector<8x128xf32>
    %209 = arith.addf %152, %208 : vector<8x128xf32>
    %210 = vector.broadcast %18 : vector<1x128xf32> to vector<8x128xf32>
    %211 = arith.mulf %209, %210 : vector<8x128xf32>
    %cst_104 = arith.constant dense<0.000000e+00> : vector<8xf32>
    %212 = vector.multi_reduction <add>, %211, %cst_104 [1] : vector<8x128xf32> to vector<8xf32>
    %213 = vector.shape_cast %212 : vector<8xf32> to vector<8x1xf32>
    %cst_105 = arith.constant 3.125000e-02 : f32
    %214 = vector.broadcast %cst_105 : f32 to vector<8x1xf32>
    %215 = arith.mulf %213, %214 : vector<8x1xf32>
    %216 = vector.broadcast %215 : vector<8x1xf32> to vector<8x128xf32>
    %217 = arith.subf %209, %216 : vector<8x128xf32>
    %218 = vector.broadcast %18 : vector<1x128xf32> to vector<8x128xf32>
    %219 = arith.mulf %217, %218 : vector<8x128xf32>
    %220 = arith.mulf %219, %219 : vector<8x128xf32>
    %cst_106 = arith.constant dense<0.000000e+00> : vector<8xf32>
    %221 = vector.multi_reduction <add>, %220, %cst_106 [1] : vector<8x128xf32> to vector<8xf32>
    %222 = vector.shape_cast %221 : vector<8xf32> to vector<8x1xf32>
    %cst_107 = arith.constant 3.125000e-02 : f32
    %223 = vector.broadcast %cst_107 : f32 to vector<8x1xf32>
    %224 = arith.mulf %222, %223 : vector<8x1xf32>
    %225 = vector.broadcast %215 : vector<8x1xf32> to vector<8x128xf32>
    %226 = arith.subf %209, %225 : vector<8x128xf32>
    %cst_108 = arith.constant 9.99999974E-6 : f32
    %227 = vector.broadcast %cst_108 : f32 to vector<8x1xf32>
    %228 = arith.addf %224, %227 : vector<8x1xf32>
    %229 = math.rsqrt %228 : vector<8x1xf32>
    %230 = vector.broadcast %229 : vector<8x1xf32> to vector<8x128xf32>
    %231 = arith.mulf %226, %230 : vector<8x128xf32>
    %232 = vector.broadcast %140 : vector<1x128xf32> to vector<8x128xf32>
    %233 = arith.mulf %231, %232 : vector<8x128xf32>
    %234 = vector.broadcast %142 : vector<1x128xf32> to vector<8x128xf32>
    %235 = arith.addf %233, %234 : vector<8x128xf32>
    %236 = arith.truncf %235 : vector<8x128xf32> to vector<8x128xbf16>
    %c0_109 = arith.constant 0 : index
    %c0_110 = arith.constant 0 : index
    %c0_111 = arith.constant 0 : index
    %237 = vector.load %arg13[%c0_109, %c0_110, %c0_111] : memref<6x128x128xbf16, #tpu.memory_space<vmem>>, vector<1x128x128xbf16>
    %238 = vector.shape_cast %237 : vector<1x128x128xbf16> to vector<128x128xbf16>
    %cst_112 = arith.constant dense<0.000000e+00> : vector<8x128xf32>
    %239 = tpu.matmul %236, %238, %cst_112 {dimension_numbers = #tpu.dot_dimension_numbers<[1], [0], [0], [1], [0, 0, 1, 1], [], []>} : vector<8x128xbf16>, vector<128x128xbf16>, vector<8x128xf32> -> vector<8x128xf32>
    %240 = vector.broadcast %138 : vector<1x128xf32> to vector<8x128xf32>
    %241 = arith.addf %239, %240 : vector<8x128xf32>
    %cst_113 = arith.constant 0.000000e+00 : f32
    %242 = vector.broadcast %cst_113 : f32 to vector<8x128xf32>
    %243 = arith.maximumf %241, %242 : vector<8x128xf32>
    %244 = arith.addf %235, %243 : vector<8x128xf32>
    %245 = vector.broadcast %18 : vector<1x128xf32> to vector<8x128xf32>
    %246 = arith.mulf %244, %245 : vector<8x128xf32>
    %cst_114 = arith.constant dense<0.000000e+00> : vector<8xf32>
    %247 = vector.multi_reduction <add>, %246, %cst_114 [1] : vector<8x128xf32> to vector<8xf32>
    %248 = vector.shape_cast %247 : vector<8xf32> to vector<8x1xf32>
    %cst_115 = arith.constant 3.125000e-02 : f32
    %249 = vector.broadcast %cst_115 : f32 to vector<8x1xf32>
    %250 = arith.mulf %248, %249 : vector<8x1xf32>
    %251 = vector.broadcast %250 : vector<8x1xf32> to vector<8x128xf32>
    %252 = arith.subf %244, %251 : vector<8x128xf32>
    %253 = vector.broadcast %18 : vector<1x128xf32> to vector<8x128xf32>
    %254 = arith.mulf %252, %253 : vector<8x128xf32>
    %255 = arith.mulf %254, %254 : vector<8x128xf32>
    %cst_116 = arith.constant dense<0.000000e+00> : vector<8xf32>
    %256 = vector.multi_reduction <add>, %255, %cst_116 [1] : vector<8x128xf32> to vector<8xf32>
    %257 = vector.shape_cast %256 : vector<8xf32> to vector<8x1xf32>
    %cst_117 = arith.constant 3.125000e-02 : f32
    %258 = vector.broadcast %cst_117 : f32 to vector<8x1xf32>
    %259 = arith.mulf %257, %258 : vector<8x1xf32>
    %260 = vector.broadcast %250 : vector<8x1xf32> to vector<8x128xf32>
    %261 = arith.subf %244, %260 : vector<8x128xf32>
    %cst_118 = arith.constant 9.99999974E-6 : f32
    %262 = vector.broadcast %cst_118 : f32 to vector<8x1xf32>
    %263 = arith.addf %259, %262 : vector<8x1xf32>
    %264 = math.rsqrt %263 : vector<8x1xf32>
    %265 = vector.broadcast %264 : vector<8x1xf32> to vector<8x128xf32>
    %266 = arith.mulf %261, %265 : vector<8x128xf32>
    %267 = vector.broadcast %144 : vector<1x128xf32> to vector<8x128xf32>
    %268 = arith.mulf %266, %267 : vector<8x128xf32>
    %269 = vector.broadcast %146 : vector<1x128xf32> to vector<8x128xf32>
    %270 = arith.addf %268, %269 : vector<8x128xf32>
    %c1_119 = arith.constant 1 : index
    %c0_120 = arith.constant 0 : index
    %c0_121 = arith.constant 0 : index
    %c0_122 = arith.constant 0 : index
    %271 = vector.load %arg15[%c1_119, %c0_120, %c0_121, %c0_122] : memref<6x6x1x128xf32, #tpu.memory_space<vmem>>, vector<1x1x1x128xf32>
    %272 = vector.shape_cast %271 : vector<1x1x1x128xf32> to vector<1x128xf32>
    %c1_123 = arith.constant 1 : index
    %c1_124 = arith.constant 1 : index
    %c0_125 = arith.constant 0 : index
    %c0_126 = arith.constant 0 : index
    %273 = vector.load %arg15[%c1_123, %c1_124, %c0_125, %c0_126] : memref<6x6x1x128xf32, #tpu.memory_space<vmem>>, vector<1x1x1x128xf32>
    %274 = vector.shape_cast %273 : vector<1x1x1x128xf32> to vector<1x128xf32>
    %c1_127 = arith.constant 1 : index
    %c2_128 = arith.constant 2 : index
    %c0_129 = arith.constant 0 : index
    %c0_130 = arith.constant 0 : index
    %275 = vector.load %arg15[%c1_127, %c2_128, %c0_129, %c0_130] : memref<6x6x1x128xf32, #tpu.memory_space<vmem>>, vector<1x1x1x128xf32>
    %276 = vector.shape_cast %275 : vector<1x1x1x128xf32> to vector<1x128xf32>
    %c1_131 = arith.constant 1 : index
    %c3_132 = arith.constant 3 : index
    %c0_133 = arith.constant 0 : index
    %c0_134 = arith.constant 0 : index
    %277 = vector.load %arg15[%c1_131, %c3_132, %c0_133, %c0_134] : memref<6x6x1x128xf32, #tpu.memory_space<vmem>>, vector<1x1x1x128xf32>
    %278 = vector.shape_cast %277 : vector<1x1x1x128xf32> to vector<1x128xf32>
    %c1_135 = arith.constant 1 : index
    %c4_136 = arith.constant 4 : index
    %c0_137 = arith.constant 0 : index
    %c0_138 = arith.constant 0 : index
    %279 = vector.load %arg15[%c1_135, %c4_136, %c0_137, %c0_138] : memref<6x6x1x128xf32, #tpu.memory_space<vmem>>, vector<1x1x1x128xf32>
    %280 = vector.shape_cast %279 : vector<1x1x1x128xf32> to vector<1x128xf32>
    %c1_139 = arith.constant 1 : index
    %c5_140 = arith.constant 5 : index
    %c0_141 = arith.constant 0 : index
    %c0_142 = arith.constant 0 : index
    %281 = vector.load %arg15[%c1_139, %c5_140, %c0_141, %c0_142] : memref<6x6x1x128xf32, #tpu.memory_space<vmem>>, vector<1x1x1x128xf32>
    %282 = vector.shape_cast %281 : vector<1x1x1x128xf32> to vector<1x128xf32>
    %283 = arith.truncf %130 : vector<16x128xf32> to vector<16x128xbf16>
    %c1_143 = arith.constant 1 : index
    %c0_144 = arith.constant 0 : index
    %c0_145 = arith.constant 0 : index
    %284 = vector.load %arg11[%c1_143, %c0_144, %c0_145] : memref<6x128x128xbf16, #tpu.memory_space<vmem>>, vector<1x128x128xbf16>
    %285 = vector.shape_cast %284 : vector<1x128x128xbf16> to vector<128x128xbf16>
    %cst_146 = arith.constant dense<0.000000e+00> : vector<16x128xf32>
    %286 = tpu.matmul %283, %285, %cst_146 {dimension_numbers = #tpu.dot_dimension_numbers<[1], [0], [0], [1], [0, 0, 1, 1], [], []>} : vector<16x128xbf16>, vector<128x128xbf16>, vector<16x128xf32> -> vector<16x128xf32>
    %287 = vector.broadcast %272 : vector<1x128xf32> to vector<16x128xf32>
    %288 = arith.addf %286, %287 : vector<16x128xf32>
    %289 = arith.truncf %270 : vector<8x128xf32> to vector<8x128xbf16>
    %c1_147 = arith.constant 1 : index
    %c0_148 = arith.constant 0 : index
    %c0_149 = arith.constant 0 : index
    %290 = vector.load %arg12[%c1_147, %c0_148, %c0_149] : memref<6x128x256xbf16, #tpu.memory_space<vmem>>, vector<1x128x256xbf16>
    %291 = vector.shape_cast %290 : vector<1x128x256xbf16> to vector<128x256xbf16>
    %cst_150 = arith.constant dense<0.000000e+00> : vector<8x256xf32>
    %292 = tpu.matmul %289, %291, %cst_150 {dimension_numbers = #tpu.dot_dimension_numbers<[1], [0], [0], [1], [0, 0, 1, 1], [], []>} : vector<8x128xbf16>, vector<128x256xbf16>, vector<8x256xf32> -> vector<8x256xf32>
    %c1_151 = arith.constant 1 : index
    %c0_152 = arith.constant 0 : index
    %c0_153 = arith.constant 0 : index
    %293 = vector.load %arg14[%c1_151, %c0_152, %c0_153] : memref<6x1x256xf32, #tpu.memory_space<vmem>>, vector<1x1x256xf32>
    %294 = vector.shape_cast %293 : vector<1x1x256xf32> to vector<1x256xf32>
    %295 = vector.broadcast %294 : vector<1x256xf32> to vector<8x256xf32>
    %296 = arith.addf %292, %295 : vector<8x256xf32>
    %297 = vector.extract_strided_slice %296 {offsets = [0, 0], sizes = [8, 128], strides = [1, 1]} : vector<8x256xf32> to vector<8x128xf32>
    %298 = arith.truncf %297 : vector<8x128xf32> to vector<8x128xbf16>
    %299 = vector.extract_strided_slice %296 {offsets = [0, 128], sizes = [8, 128], strides = [1, 1]} : vector<8x256xf32> to vector<8x128xf32>
    %300 = arith.truncf %299 : vector<8x128xf32> to vector<8x128xbf16>
    %301 = vector.broadcast %9 : vector<1x128xf32> to vector<16x128xf32>
    %302 = arith.mulf %288, %301 : vector<16x128xf32>
    %303 = vector.broadcast %11 : vector<1x128xf32> to vector<16x128xf32>
    %304 = arith.mulf %288, %303 : vector<16x128xf32>
    %305 = vector.broadcast %13 : vector<1x128xf32> to vector<16x128xf32>
    %306 = arith.mulf %288, %305 : vector<16x128xf32>
    %307 = vector.broadcast %15 : vector<1x128xf32> to vector<16x128xf32>
    %308 = arith.mulf %288, %307 : vector<16x128xf32>
    %309 = tpu.concatenate %302, %304, %306, %308 in 0 : vector<16x128xf32>, vector<16x128xf32>, vector<16x128xf32>, vector<16x128xf32> -> vector<64x128xf32>
    %310 = arith.truncf %309 : vector<64x128xf32> to vector<64x128xbf16>
    %cst_154 = arith.constant dense<0.000000e+00> : vector<64x8xf32>
    %311 = tpu.matmul %310, %298, %cst_154 {dimension_numbers = #tpu.dot_dimension_numbers<[1], [1], [0], [0], [0, 0, 1, 0], [], []>} : vector<64x128xbf16>, vector<8x128xbf16>, vector<64x8xf32> -> vector<64x8xf32>
    %cst_155 = arith.constant 0.176776692 : f32
    %312 = vector.broadcast %cst_155 : f32 to vector<64x8xf32>
    %313 = arith.mulf %311, %312 : vector<64x8xf32>
    %314 = tpu.concatenate %133, %133, %133, %133 in 0 : vector<16x8xf32>, vector<16x8xf32>, vector<16x8xf32>, vector<16x8xf32> -> vector<64x8xf32>
    %cst_156 = arith.constant 0.000000e+00 : f32
    %315 = vector.broadcast %cst_156 : f32 to vector<64x8xf32>
    %316 = arith.cmpf ogt, %314, %315 : vector<64x8xf32>
    %cst_157 = arith.constant -1.000000e+30 : f32
    %317 = vector.broadcast %cst_157 : f32 to vector<64x8xf32>
    %318 = arith.select %316, %313, %317 : vector<64x8xi1>, vector<64x8xf32>
    %cst_158 = arith.constant dense<0xFF800000> : vector<64xf32>
    %319 = vector.multi_reduction <maximumf>, %318, %cst_158 [1] : vector<64x8xf32> to vector<64xf32>
    %320 = vector.shape_cast %319 : vector<64xf32> to vector<64x1xf32>
    %321 = vector.broadcast %320 : vector<64x1xf32> to vector<64x8xf32>
    %322 = arith.subf %318, %321 : vector<64x8xf32>
    %323 = math.exp %322 : vector<64x8xf32>
    %cst_159 = arith.constant dense<0.000000e+00> : vector<64xf32>
    %324 = vector.multi_reduction <add>, %323, %cst_159 [1] : vector<64x8xf32> to vector<64xf32>
    %325 = vector.shape_cast %324 : vector<64xf32> to vector<64x1xf32>
    %326 = vector.broadcast %325 : vector<64x1xf32> to vector<64x8xf32>
    %327 = arith.divf %323, %326 : vector<64x8xf32>
    %328 = arith.truncf %327 : vector<64x8xf32> to vector<64x8xbf16>
    %cst_160 = arith.constant dense<0.000000e+00> : vector<64x128xf32>
    %329 = tpu.matmul %328, %300, %cst_160 {dimension_numbers = #tpu.dot_dimension_numbers<[1], [0], [0], [1], [0, 0, 1, 1], [], []>} : vector<64x8xbf16>, vector<8x128xbf16>, vector<64x128xf32> -> vector<64x128xf32>
    %330 = vector.extract_strided_slice %329 {offsets = [0, 0], sizes = [16, 128], strides = [1, 1]} : vector<64x128xf32> to vector<16x128xf32>
    %331 = vector.broadcast %9 : vector<1x128xf32> to vector<16x128xf32>
    %332 = arith.mulf %330, %331 : vector<16x128xf32>
    %333 = vector.extract_strided_slice %329 {offsets = [16, 0], sizes = [16, 128], strides = [1, 1]} : vector<64x128xf32> to vector<16x128xf32>
    %334 = vector.broadcast %11 : vector<1x128xf32> to vector<16x128xf32>
    %335 = arith.mulf %333, %334 : vector<16x128xf32>
    %336 = arith.addf %332, %335 : vector<16x128xf32>
    %337 = vector.extract_strided_slice %329 {offsets = [32, 0], sizes = [16, 128], strides = [1, 1]} : vector<64x128xf32> to vector<16x128xf32>
    %338 = vector.broadcast %13 : vector<1x128xf32> to vector<16x128xf32>
    %339 = arith.mulf %337, %338 : vector<16x128xf32>
    %340 = arith.addf %336, %339 : vector<16x128xf32>
    %341 = vector.extract_strided_slice %329 {offsets = [48, 0], sizes = [16, 128], strides = [1, 1]} : vector<64x128xf32> to vector<16x128xf32>
    %342 = vector.broadcast %15 : vector<1x128xf32> to vector<16x128xf32>
    %343 = arith.mulf %341, %342 : vector<16x128xf32>
    %344 = arith.addf %340, %343 : vector<16x128xf32>
    %345 = arith.addf %288, %344 : vector<16x128xf32>
    %346 = vector.broadcast %18 : vector<1x128xf32> to vector<16x128xf32>
    %347 = arith.mulf %345, %346 : vector<16x128xf32>
    %cst_161 = arith.constant dense<0.000000e+00> : vector<16xf32>
    %348 = vector.multi_reduction <add>, %347, %cst_161 [1] : vector<16x128xf32> to vector<16xf32>
    %349 = vector.shape_cast %348 : vector<16xf32> to vector<16x1xf32>
    %cst_162 = arith.constant 3.125000e-02 : f32
    %350 = vector.broadcast %cst_162 : f32 to vector<16x1xf32>
    %351 = arith.mulf %349, %350 : vector<16x1xf32>
    %352 = vector.broadcast %351 : vector<16x1xf32> to vector<16x128xf32>
    %353 = arith.subf %345, %352 : vector<16x128xf32>
    %354 = vector.broadcast %18 : vector<1x128xf32> to vector<16x128xf32>
    %355 = arith.mulf %353, %354 : vector<16x128xf32>
    %356 = arith.mulf %355, %355 : vector<16x128xf32>
    %cst_163 = arith.constant dense<0.000000e+00> : vector<16xf32>
    %357 = vector.multi_reduction <add>, %356, %cst_163 [1] : vector<16x128xf32> to vector<16xf32>
    %358 = vector.shape_cast %357 : vector<16xf32> to vector<16x1xf32>
    %cst_164 = arith.constant 3.125000e-02 : f32
    %359 = vector.broadcast %cst_164 : f32 to vector<16x1xf32>
    %360 = arith.mulf %358, %359 : vector<16x1xf32>
    %361 = vector.broadcast %351 : vector<16x1xf32> to vector<16x128xf32>
    %362 = arith.subf %345, %361 : vector<16x128xf32>
    %cst_165 = arith.constant 9.99999974E-6 : f32
    %363 = vector.broadcast %cst_165 : f32 to vector<16x1xf32>
    %364 = arith.addf %360, %363 : vector<16x1xf32>
    %365 = math.rsqrt %364 : vector<16x1xf32>
    %366 = vector.broadcast %365 : vector<16x1xf32> to vector<16x128xf32>
    %367 = arith.mulf %362, %366 : vector<16x128xf32>
    %368 = vector.broadcast %276 : vector<1x128xf32> to vector<16x128xf32>
    %369 = arith.mulf %367, %368 : vector<16x128xf32>
    %370 = vector.broadcast %278 : vector<1x128xf32> to vector<16x128xf32>
    %371 = arith.addf %369, %370 : vector<16x128xf32>
    %372 = arith.truncf %371 : vector<16x128xf32> to vector<16x128xbf16>
    %c1_166 = arith.constant 1 : index
    %c0_167 = arith.constant 0 : index
    %c0_168 = arith.constant 0 : index
    %373 = vector.load %arg13[%c1_166, %c0_167, %c0_168] : memref<6x128x128xbf16, #tpu.memory_space<vmem>>, vector<1x128x128xbf16>
    %374 = vector.shape_cast %373 : vector<1x128x128xbf16> to vector<128x128xbf16>
    %cst_169 = arith.constant dense<0.000000e+00> : vector<16x128xf32>
    %375 = tpu.matmul %372, %374, %cst_169 {dimension_numbers = #tpu.dot_dimension_numbers<[1], [0], [0], [1], [0, 0, 1, 1], [], []>} : vector<16x128xbf16>, vector<128x128xbf16>, vector<16x128xf32> -> vector<16x128xf32>
    %376 = vector.broadcast %274 : vector<1x128xf32> to vector<16x128xf32>
    %377 = arith.addf %375, %376 : vector<16x128xf32>
    %cst_170 = arith.constant 0.000000e+00 : f32
    %378 = vector.broadcast %cst_170 : f32 to vector<16x128xf32>
    %379 = arith.maximumf %377, %378 : vector<16x128xf32>
    %380 = arith.addf %371, %379 : vector<16x128xf32>
    %381 = vector.broadcast %18 : vector<1x128xf32> to vector<16x128xf32>
    %382 = arith.mulf %380, %381 : vector<16x128xf32>
    %cst_171 = arith.constant dense<0.000000e+00> : vector<16xf32>
    %383 = vector.multi_reduction <add>, %382, %cst_171 [1] : vector<16x128xf32> to vector<16xf32>
    %384 = vector.shape_cast %383 : vector<16xf32> to vector<16x1xf32>
    %cst_172 = arith.constant 3.125000e-02 : f32
    %385 = vector.broadcast %cst_172 : f32 to vector<16x1xf32>
    %386 = arith.mulf %384, %385 : vector<16x1xf32>
    %387 = vector.broadcast %386 : vector<16x1xf32> to vector<16x128xf32>
    %388 = arith.subf %380, %387 : vector<16x128xf32>
    %389 = vector.broadcast %18 : vector<1x128xf32> to vector<16x128xf32>
    %390 = arith.mulf %388, %389 : vector<16x128xf32>
    %391 = arith.mulf %390, %390 : vector<16x128xf32>
    %cst_173 = arith.constant dense<0.000000e+00> : vector<16xf32>
    %392 = vector.multi_reduction <add>, %391, %cst_173 [1] : vector<16x128xf32> to vector<16xf32>
    %393 = vector.shape_cast %392 : vector<16xf32> to vector<16x1xf32>
    %cst_174 = arith.constant 3.125000e-02 : f32
    %394 = vector.broadcast %cst_174 : f32 to vector<16x1xf32>
    %395 = arith.mulf %393, %394 : vector<16x1xf32>
    %396 = vector.broadcast %386 : vector<16x1xf32> to vector<16x128xf32>
    %397 = arith.subf %380, %396 : vector<16x128xf32>
    %cst_175 = arith.constant 9.99999974E-6 : f32
    %398 = vector.broadcast %cst_175 : f32 to vector<16x1xf32>
    %399 = arith.addf %395, %398 : vector<16x1xf32>
    %400 = math.rsqrt %399 : vector<16x1xf32>
    %401 = vector.broadcast %400 : vector<16x1xf32> to vector<16x128xf32>
    %402 = arith.mulf %397, %401 : vector<16x128xf32>
    %403 = vector.broadcast %280 : vector<1x128xf32> to vector<16x128xf32>
    %404 = arith.mulf %402, %403 : vector<16x128xf32>
    %405 = vector.broadcast %282 : vector<1x128xf32> to vector<16x128xf32>
    %406 = arith.addf %404, %405 : vector<16x128xf32>
    %cst_176 = arith.constant dense<0.000000e+00> : vector<8x128xf32>
    %407 = tpu.matmul %131, %406, %cst_176 {dimension_numbers = #tpu.dot_dimension_numbers<[1], [0], [0], [1], [0, 0, 1, 1], [], []>} : vector<8x16xf32>, vector<16x128xf32>, vector<8x128xf32> -> vector<8x128xf32>
    %c2_177 = arith.constant 2 : index
    %c0_178 = arith.constant 0 : index
    %c0_179 = arith.constant 0 : index
    %c0_180 = arith.constant 0 : index
    %408 = vector.load %arg15[%c2_177, %c0_178, %c0_179, %c0_180] : memref<6x6x1x128xf32, #tpu.memory_space<vmem>>, vector<1x1x1x128xf32>
    %409 = vector.shape_cast %408 : vector<1x1x1x128xf32> to vector<1x128xf32>
    %c2_181 = arith.constant 2 : index
    %c1_182 = arith.constant 1 : index
    %c0_183 = arith.constant 0 : index
    %c0_184 = arith.constant 0 : index
    %410 = vector.load %arg15[%c2_181, %c1_182, %c0_183, %c0_184] : memref<6x6x1x128xf32, #tpu.memory_space<vmem>>, vector<1x1x1x128xf32>
    %411 = vector.shape_cast %410 : vector<1x1x1x128xf32> to vector<1x128xf32>
    %c2_185 = arith.constant 2 : index
    %c2_186 = arith.constant 2 : index
    %c0_187 = arith.constant 0 : index
    %c0_188 = arith.constant 0 : index
    %412 = vector.load %arg15[%c2_185, %c2_186, %c0_187, %c0_188] : memref<6x6x1x128xf32, #tpu.memory_space<vmem>>, vector<1x1x1x128xf32>
    %413 = vector.shape_cast %412 : vector<1x1x1x128xf32> to vector<1x128xf32>
    %c2_189 = arith.constant 2 : index
    %c3_190 = arith.constant 3 : index
    %c0_191 = arith.constant 0 : index
    %c0_192 = arith.constant 0 : index
    %414 = vector.load %arg15[%c2_189, %c3_190, %c0_191, %c0_192] : memref<6x6x1x128xf32, #tpu.memory_space<vmem>>, vector<1x1x1x128xf32>
    %415 = vector.shape_cast %414 : vector<1x1x1x128xf32> to vector<1x128xf32>
    %c2_193 = arith.constant 2 : index
    %c4_194 = arith.constant 4 : index
    %c0_195 = arith.constant 0 : index
    %c0_196 = arith.constant 0 : index
    %416 = vector.load %arg15[%c2_193, %c4_194, %c0_195, %c0_196] : memref<6x6x1x128xf32, #tpu.memory_space<vmem>>, vector<1x1x1x128xf32>
    %417 = vector.shape_cast %416 : vector<1x1x1x128xf32> to vector<1x128xf32>
    %c2_197 = arith.constant 2 : index
    %c5_198 = arith.constant 5 : index
    %c0_199 = arith.constant 0 : index
    %c0_200 = arith.constant 0 : index
    %418 = vector.load %arg15[%c2_197, %c5_198, %c0_199, %c0_200] : memref<6x6x1x128xf32, #tpu.memory_space<vmem>>, vector<1x1x1x128xf32>
    %419 = vector.shape_cast %418 : vector<1x1x1x128xf32> to vector<1x128xf32>
    %420 = arith.truncf %407 : vector<8x128xf32> to vector<8x128xbf16>
    %c2_201 = arith.constant 2 : index
    %c0_202 = arith.constant 0 : index
    %c0_203 = arith.constant 0 : index
    %421 = vector.load %arg11[%c2_201, %c0_202, %c0_203] : memref<6x128x128xbf16, #tpu.memory_space<vmem>>, vector<1x128x128xbf16>
    %422 = vector.shape_cast %421 : vector<1x128x128xbf16> to vector<128x128xbf16>
    %cst_204 = arith.constant dense<0.000000e+00> : vector<8x128xf32>
    %423 = tpu.matmul %420, %422, %cst_204 {dimension_numbers = #tpu.dot_dimension_numbers<[1], [0], [0], [1], [0, 0, 1, 1], [], []>} : vector<8x128xbf16>, vector<128x128xbf16>, vector<8x128xf32> -> vector<8x128xf32>
    %424 = vector.broadcast %409 : vector<1x128xf32> to vector<8x128xf32>
    %425 = arith.addf %423, %424 : vector<8x128xf32>
    %426 = arith.truncf %406 : vector<16x128xf32> to vector<16x128xbf16>
    %c2_205 = arith.constant 2 : index
    %c0_206 = arith.constant 0 : index
    %c0_207 = arith.constant 0 : index
    %427 = vector.load %arg12[%c2_205, %c0_206, %c0_207] : memref<6x128x256xbf16, #tpu.memory_space<vmem>>, vector<1x128x256xbf16>
    %428 = vector.shape_cast %427 : vector<1x128x256xbf16> to vector<128x256xbf16>
    %cst_208 = arith.constant dense<0.000000e+00> : vector<16x256xf32>
    %429 = tpu.matmul %426, %428, %cst_208 {dimension_numbers = #tpu.dot_dimension_numbers<[1], [0], [0], [1], [0, 0, 1, 1], [], []>} : vector<16x128xbf16>, vector<128x256xbf16>, vector<16x256xf32> -> vector<16x256xf32>
    %c2_209 = arith.constant 2 : index
    %c0_210 = arith.constant 0 : index
    %c0_211 = arith.constant 0 : index
    %430 = vector.load %arg14[%c2_209, %c0_210, %c0_211] : memref<6x1x256xf32, #tpu.memory_space<vmem>>, vector<1x1x256xf32>
    %431 = vector.shape_cast %430 : vector<1x1x256xf32> to vector<1x256xf32>
    %432 = vector.broadcast %431 : vector<1x256xf32> to vector<16x256xf32>
    %433 = arith.addf %429, %432 : vector<16x256xf32>
    %434 = vector.extract_strided_slice %433 {offsets = [0, 0], sizes = [16, 128], strides = [1, 1]} : vector<16x256xf32> to vector<16x128xf32>
    %435 = arith.truncf %434 : vector<16x128xf32> to vector<16x128xbf16>
    %436 = vector.extract_strided_slice %433 {offsets = [0, 128], sizes = [16, 128], strides = [1, 1]} : vector<16x256xf32> to vector<16x128xf32>
    %437 = arith.truncf %436 : vector<16x128xf32> to vector<16x128xbf16>
    %438 = vector.broadcast %9 : vector<1x128xf32> to vector<8x128xf32>
    %439 = arith.mulf %425, %438 : vector<8x128xf32>
    %440 = vector.broadcast %11 : vector<1x128xf32> to vector<8x128xf32>
    %441 = arith.mulf %425, %440 : vector<8x128xf32>
    %442 = vector.broadcast %13 : vector<1x128xf32> to vector<8x128xf32>
    %443 = arith.mulf %425, %442 : vector<8x128xf32>
    %444 = vector.broadcast %15 : vector<1x128xf32> to vector<8x128xf32>
    %445 = arith.mulf %425, %444 : vector<8x128xf32>
    %446 = tpu.concatenate %439, %441, %443, %445 in 0 : vector<8x128xf32>, vector<8x128xf32>, vector<8x128xf32>, vector<8x128xf32> -> vector<32x128xf32>
    %447 = arith.truncf %446 : vector<32x128xf32> to vector<32x128xbf16>
    %cst_212 = arith.constant dense<0.000000e+00> : vector<32x16xf32>
    %448 = tpu.matmul %447, %435, %cst_212 {dimension_numbers = #tpu.dot_dimension_numbers<[1], [1], [0], [0], [0, 0, 1, 0], [], []>} : vector<32x128xbf16>, vector<16x128xbf16>, vector<32x16xf32> -> vector<32x16xf32>
    %cst_213 = arith.constant 0.176776692 : f32
    %449 = vector.broadcast %cst_213 : f32 to vector<32x16xf32>
    %450 = arith.mulf %448, %449 : vector<32x16xf32>
    %451 = tpu.concatenate %132, %132, %132, %132 in 0 : vector<8x16xf32>, vector<8x16xf32>, vector<8x16xf32>, vector<8x16xf32> -> vector<32x16xf32>
    %cst_214 = arith.constant 0.000000e+00 : f32
    %452 = vector.broadcast %cst_214 : f32 to vector<32x16xf32>
    %453 = arith.cmpf ogt, %451, %452 : vector<32x16xf32>
    %cst_215 = arith.constant -1.000000e+30 : f32
    %454 = vector.broadcast %cst_215 : f32 to vector<32x16xf32>
    %455 = arith.select %453, %450, %454 : vector<32x16xi1>, vector<32x16xf32>
    %cst_216 = arith.constant dense<0xFF800000> : vector<32xf32>
    %456 = vector.multi_reduction <maximumf>, %455, %cst_216 [1] : vector<32x16xf32> to vector<32xf32>
    %457 = vector.shape_cast %456 : vector<32xf32> to vector<32x1xf32>
    %458 = vector.broadcast %457 : vector<32x1xf32> to vector<32x16xf32>
    %459 = arith.subf %455, %458 : vector<32x16xf32>
    %460 = math.exp %459 : vector<32x16xf32>
    %cst_217 = arith.constant dense<0.000000e+00> : vector<32xf32>
    %461 = vector.multi_reduction <add>, %460, %cst_217 [1] : vector<32x16xf32> to vector<32xf32>
    %462 = vector.shape_cast %461 : vector<32xf32> to vector<32x1xf32>
    %463 = vector.broadcast %462 : vector<32x1xf32> to vector<32x16xf32>
    %464 = arith.divf %460, %463 : vector<32x16xf32>
    %465 = arith.truncf %464 : vector<32x16xf32> to vector<32x16xbf16>
    %cst_218 = arith.constant dense<0.000000e+00> : vector<32x128xf32>
    %466 = tpu.matmul %465, %437, %cst_218 {dimension_numbers = #tpu.dot_dimension_numbers<[1], [0], [0], [1], [0, 0, 1, 1], [], []>} : vector<32x16xbf16>, vector<16x128xbf16>, vector<32x128xf32> -> vector<32x128xf32>
    %467 = vector.extract_strided_slice %466 {offsets = [0, 0], sizes = [8, 128], strides = [1, 1]} : vector<32x128xf32> to vector<8x128xf32>
    %468 = vector.broadcast %9 : vector<1x128xf32> to vector<8x128xf32>
    %469 = arith.mulf %467, %468 : vector<8x128xf32>
    %470 = vector.extract_strided_slice %466 {offsets = [8, 0], sizes = [8, 128], strides = [1, 1]} : vector<32x128xf32> to vector<8x128xf32>
    %471 = vector.broadcast %11 : vector<1x128xf32> to vector<8x128xf32>
    %472 = arith.mulf %470, %471 : vector<8x128xf32>
    %473 = arith.addf %469, %472 : vector<8x128xf32>
    %474 = vector.extract_strided_slice %466 {offsets = [16, 0], sizes = [8, 128], strides = [1, 1]} : vector<32x128xf32> to vector<8x128xf32>
    %475 = vector.broadcast %13 : vector<1x128xf32> to vector<8x128xf32>
    %476 = arith.mulf %474, %475 : vector<8x128xf32>
    %477 = arith.addf %473, %476 : vector<8x128xf32>
    %478 = vector.extract_strided_slice %466 {offsets = [24, 0], sizes = [8, 128], strides = [1, 1]} : vector<32x128xf32> to vector<8x128xf32>
    %479 = vector.broadcast %15 : vector<1x128xf32> to vector<8x128xf32>
    %480 = arith.mulf %478, %479 : vector<8x128xf32>
    %481 = arith.addf %477, %480 : vector<8x128xf32>
    %482 = arith.addf %425, %481 : vector<8x128xf32>
    %483 = vector.broadcast %18 : vector<1x128xf32> to vector<8x128xf32>
    %484 = arith.mulf %482, %483 : vector<8x128xf32>
    %cst_219 = arith.constant dense<0.000000e+00> : vector<8xf32>
    %485 = vector.multi_reduction <add>, %484, %cst_219 [1] : vector<8x128xf32> to vector<8xf32>
    %486 = vector.shape_cast %485 : vector<8xf32> to vector<8x1xf32>
    %cst_220 = arith.constant 3.125000e-02 : f32
    %487 = vector.broadcast %cst_220 : f32 to vector<8x1xf32>
    %488 = arith.mulf %486, %487 : vector<8x1xf32>
    %489 = vector.broadcast %488 : vector<8x1xf32> to vector<8x128xf32>
    %490 = arith.subf %482, %489 : vector<8x128xf32>
    %491 = vector.broadcast %18 : vector<1x128xf32> to vector<8x128xf32>
    %492 = arith.mulf %490, %491 : vector<8x128xf32>
    %493 = arith.mulf %492, %492 : vector<8x128xf32>
    %cst_221 = arith.constant dense<0.000000e+00> : vector<8xf32>
    %494 = vector.multi_reduction <add>, %493, %cst_221 [1] : vector<8x128xf32> to vector<8xf32>
    %495 = vector.shape_cast %494 : vector<8xf32> to vector<8x1xf32>
    %cst_222 = arith.constant 3.125000e-02 : f32
    %496 = vector.broadcast %cst_222 : f32 to vector<8x1xf32>
    %497 = arith.mulf %495, %496 : vector<8x1xf32>
    %498 = vector.broadcast %488 : vector<8x1xf32> to vector<8x128xf32>
    %499 = arith.subf %482, %498 : vector<8x128xf32>
    %cst_223 = arith.constant 9.99999974E-6 : f32
    %500 = vector.broadcast %cst_223 : f32 to vector<8x1xf32>
    %501 = arith.addf %497, %500 : vector<8x1xf32>
    %502 = math.rsqrt %501 : vector<8x1xf32>
    %503 = vector.broadcast %502 : vector<8x1xf32> to vector<8x128xf32>
    %504 = arith.mulf %499, %503 : vector<8x128xf32>
    %505 = vector.broadcast %413 : vector<1x128xf32> to vector<8x128xf32>
    %506 = arith.mulf %504, %505 : vector<8x128xf32>
    %507 = vector.broadcast %415 : vector<1x128xf32> to vector<8x128xf32>
    %508 = arith.addf %506, %507 : vector<8x128xf32>
    %509 = arith.truncf %508 : vector<8x128xf32> to vector<8x128xbf16>
    %c2_224 = arith.constant 2 : index
    %c0_225 = arith.constant 0 : index
    %c0_226 = arith.constant 0 : index
    %510 = vector.load %arg13[%c2_224, %c0_225, %c0_226] : memref<6x128x128xbf16, #tpu.memory_space<vmem>>, vector<1x128x128xbf16>
    %511 = vector.shape_cast %510 : vector<1x128x128xbf16> to vector<128x128xbf16>
    %cst_227 = arith.constant dense<0.000000e+00> : vector<8x128xf32>
    %512 = tpu.matmul %509, %511, %cst_227 {dimension_numbers = #tpu.dot_dimension_numbers<[1], [0], [0], [1], [0, 0, 1, 1], [], []>} : vector<8x128xbf16>, vector<128x128xbf16>, vector<8x128xf32> -> vector<8x128xf32>
    %513 = vector.broadcast %411 : vector<1x128xf32> to vector<8x128xf32>
    %514 = arith.addf %512, %513 : vector<8x128xf32>
    %cst_228 = arith.constant 0.000000e+00 : f32
    %515 = vector.broadcast %cst_228 : f32 to vector<8x128xf32>
    %516 = arith.maximumf %514, %515 : vector<8x128xf32>
    %517 = arith.addf %508, %516 : vector<8x128xf32>
    %518 = vector.broadcast %18 : vector<1x128xf32> to vector<8x128xf32>
    %519 = arith.mulf %517, %518 : vector<8x128xf32>
    %cst_229 = arith.constant dense<0.000000e+00> : vector<8xf32>
    %520 = vector.multi_reduction <add>, %519, %cst_229 [1] : vector<8x128xf32> to vector<8xf32>
    %521 = vector.shape_cast %520 : vector<8xf32> to vector<8x1xf32>
    %cst_230 = arith.constant 3.125000e-02 : f32
    %522 = vector.broadcast %cst_230 : f32 to vector<8x1xf32>
    %523 = arith.mulf %521, %522 : vector<8x1xf32>
    %524 = vector.broadcast %523 : vector<8x1xf32> to vector<8x128xf32>
    %525 = arith.subf %517, %524 : vector<8x128xf32>
    %526 = vector.broadcast %18 : vector<1x128xf32> to vector<8x128xf32>
    %527 = arith.mulf %525, %526 : vector<8x128xf32>
    %528 = arith.mulf %527, %527 : vector<8x128xf32>
    %cst_231 = arith.constant dense<0.000000e+00> : vector<8xf32>
    %529 = vector.multi_reduction <add>, %528, %cst_231 [1] : vector<8x128xf32> to vector<8xf32>
    %530 = vector.shape_cast %529 : vector<8xf32> to vector<8x1xf32>
    %cst_232 = arith.constant 3.125000e-02 : f32
    %531 = vector.broadcast %cst_232 : f32 to vector<8x1xf32>
    %532 = arith.mulf %530, %531 : vector<8x1xf32>
    %533 = vector.broadcast %523 : vector<8x1xf32> to vector<8x128xf32>
    %534 = arith.subf %517, %533 : vector<8x128xf32>
    %cst_233 = arith.constant 9.99999974E-6 : f32
    %535 = vector.broadcast %cst_233 : f32 to vector<8x1xf32>
    %536 = arith.addf %532, %535 : vector<8x1xf32>
    %537 = math.rsqrt %536 : vector<8x1xf32>
    %538 = vector.broadcast %537 : vector<8x1xf32> to vector<8x128xf32>
    %539 = arith.mulf %534, %538 : vector<8x128xf32>
    %540 = vector.broadcast %417 : vector<1x128xf32> to vector<8x128xf32>
    %541 = arith.mulf %539, %540 : vector<8x128xf32>
    %542 = vector.broadcast %419 : vector<1x128xf32> to vector<8x128xf32>
    %543 = arith.addf %541, %542 : vector<8x128xf32>
    %c3_234 = arith.constant 3 : index
    %c0_235 = arith.constant 0 : index
    %c0_236 = arith.constant 0 : index
    %c0_237 = arith.constant 0 : index
    %544 = vector.load %arg15[%c3_234, %c0_235, %c0_236, %c0_237] : memref<6x6x1x128xf32, #tpu.memory_space<vmem>>, vector<1x1x1x128xf32>
    %545 = vector.shape_cast %544 : vector<1x1x1x128xf32> to vector<1x128xf32>
    %c3_238 = arith.constant 3 : index
    %c1_239 = arith.constant 1 : index
    %c0_240 = arith.constant 0 : index
    %c0_241 = arith.constant 0 : index
    %546 = vector.load %arg15[%c3_238, %c1_239, %c0_240, %c0_241] : memref<6x6x1x128xf32, #tpu.memory_space<vmem>>, vector<1x1x1x128xf32>
    %547 = vector.shape_cast %546 : vector<1x1x1x128xf32> to vector<1x128xf32>
    %c3_242 = arith.constant 3 : index
    %c2_243 = arith.constant 2 : index
    %c0_244 = arith.constant 0 : index
    %c0_245 = arith.constant 0 : index
    %548 = vector.load %arg15[%c3_242, %c2_243, %c0_244, %c0_245] : memref<6x6x1x128xf32, #tpu.memory_space<vmem>>, vector<1x1x1x128xf32>
    %549 = vector.shape_cast %548 : vector<1x1x1x128xf32> to vector<1x128xf32>
    %c3_246 = arith.constant 3 : index
    %c3_247 = arith.constant 3 : index
    %c0_248 = arith.constant 0 : index
    %c0_249 = arith.constant 0 : index
    %550 = vector.load %arg15[%c3_246, %c3_247, %c0_248, %c0_249] : memref<6x6x1x128xf32, #tpu.memory_space<vmem>>, vector<1x1x1x128xf32>
    %551 = vector.shape_cast %550 : vector<1x1x1x128xf32> to vector<1x128xf32>
    %c3_250 = arith.constant 3 : index
    %c4_251 = arith.constant 4 : index
    %c0_252 = arith.constant 0 : index
    %c0_253 = arith.constant 0 : index
    %552 = vector.load %arg15[%c3_250, %c4_251, %c0_252, %c0_253] : memref<6x6x1x128xf32, #tpu.memory_space<vmem>>, vector<1x1x1x128xf32>
    %553 = vector.shape_cast %552 : vector<1x1x1x128xf32> to vector<1x128xf32>
    %c3_254 = arith.constant 3 : index
    %c5_255 = arith.constant 5 : index
    %c0_256 = arith.constant 0 : index
    %c0_257 = arith.constant 0 : index
    %554 = vector.load %arg15[%c3_254, %c5_255, %c0_256, %c0_257] : memref<6x6x1x128xf32, #tpu.memory_space<vmem>>, vector<1x1x1x128xf32>
    %555 = vector.shape_cast %554 : vector<1x1x1x128xf32> to vector<1x128xf32>
    %556 = arith.truncf %406 : vector<16x128xf32> to vector<16x128xbf16>
    %c3_258 = arith.constant 3 : index
    %c0_259 = arith.constant 0 : index
    %c0_260 = arith.constant 0 : index
    %557 = vector.load %arg11[%c3_258, %c0_259, %c0_260] : memref<6x128x128xbf16, #tpu.memory_space<vmem>>, vector<1x128x128xbf16>
    %558 = vector.shape_cast %557 : vector<1x128x128xbf16> to vector<128x128xbf16>
    %cst_261 = arith.constant dense<0.000000e+00> : vector<16x128xf32>
    %559 = tpu.matmul %556, %558, %cst_261 {dimension_numbers = #tpu.dot_dimension_numbers<[1], [0], [0], [1], [0, 0, 1, 1], [], []>} : vector<16x128xbf16>, vector<128x128xbf16>, vector<16x128xf32> -> vector<16x128xf32>
    %560 = vector.broadcast %545 : vector<1x128xf32> to vector<16x128xf32>
    %561 = arith.addf %559, %560 : vector<16x128xf32>
    %562 = arith.truncf %543 : vector<8x128xf32> to vector<8x128xbf16>
    %c3_262 = arith.constant 3 : index
    %c0_263 = arith.constant 0 : index
    %c0_264 = arith.constant 0 : index
    %563 = vector.load %arg12[%c3_262, %c0_263, %c0_264] : memref<6x128x256xbf16, #tpu.memory_space<vmem>>, vector<1x128x256xbf16>
    %564 = vector.shape_cast %563 : vector<1x128x256xbf16> to vector<128x256xbf16>
    %cst_265 = arith.constant dense<0.000000e+00> : vector<8x256xf32>
    %565 = tpu.matmul %562, %564, %cst_265 {dimension_numbers = #tpu.dot_dimension_numbers<[1], [0], [0], [1], [0, 0, 1, 1], [], []>} : vector<8x128xbf16>, vector<128x256xbf16>, vector<8x256xf32> -> vector<8x256xf32>
    %c3_266 = arith.constant 3 : index
    %c0_267 = arith.constant 0 : index
    %c0_268 = arith.constant 0 : index
    %566 = vector.load %arg14[%c3_266, %c0_267, %c0_268] : memref<6x1x256xf32, #tpu.memory_space<vmem>>, vector<1x1x256xf32>
    %567 = vector.shape_cast %566 : vector<1x1x256xf32> to vector<1x256xf32>
    %568 = vector.broadcast %567 : vector<1x256xf32> to vector<8x256xf32>
    %569 = arith.addf %565, %568 : vector<8x256xf32>
    %570 = vector.extract_strided_slice %569 {offsets = [0, 0], sizes = [8, 128], strides = [1, 1]} : vector<8x256xf32> to vector<8x128xf32>
    %571 = arith.truncf %570 : vector<8x128xf32> to vector<8x128xbf16>
    %572 = vector.extract_strided_slice %569 {offsets = [0, 128], sizes = [8, 128], strides = [1, 1]} : vector<8x256xf32> to vector<8x128xf32>
    %573 = arith.truncf %572 : vector<8x128xf32> to vector<8x128xbf16>
    %574 = vector.broadcast %9 : vector<1x128xf32> to vector<16x128xf32>
    %575 = arith.mulf %561, %574 : vector<16x128xf32>
    %576 = vector.broadcast %11 : vector<1x128xf32> to vector<16x128xf32>
    %577 = arith.mulf %561, %576 : vector<16x128xf32>
    %578 = vector.broadcast %13 : vector<1x128xf32> to vector<16x128xf32>
    %579 = arith.mulf %561, %578 : vector<16x128xf32>
    %580 = vector.broadcast %15 : vector<1x128xf32> to vector<16x128xf32>
    %581 = arith.mulf %561, %580 : vector<16x128xf32>
    %582 = tpu.concatenate %575, %577, %579, %581 in 0 : vector<16x128xf32>, vector<16x128xf32>, vector<16x128xf32>, vector<16x128xf32> -> vector<64x128xf32>
    %583 = arith.truncf %582 : vector<64x128xf32> to vector<64x128xbf16>
    %cst_269 = arith.constant dense<0.000000e+00> : vector<64x8xf32>
    %584 = tpu.matmul %583, %571, %cst_269 {dimension_numbers = #tpu.dot_dimension_numbers<[1], [1], [0], [0], [0, 0, 1, 0], [], []>} : vector<64x128xbf16>, vector<8x128xbf16>, vector<64x8xf32> -> vector<64x8xf32>
    %cst_270 = arith.constant 0.176776692 : f32
    %585 = vector.broadcast %cst_270 : f32 to vector<64x8xf32>
    %586 = arith.mulf %584, %585 : vector<64x8xf32>
    %587 = tpu.concatenate %133, %133, %133, %133 in 0 : vector<16x8xf32>, vector<16x8xf32>, vector<16x8xf32>, vector<16x8xf32> -> vector<64x8xf32>
    %cst_271 = arith.constant 0.000000e+00 : f32
    %588 = vector.broadcast %cst_271 : f32 to vector<64x8xf32>
    %589 = arith.cmpf ogt, %587, %588 : vector<64x8xf32>
    %cst_272 = arith.constant -1.000000e+30 : f32
    %590 = vector.broadcast %cst_272 : f32 to vector<64x8xf32>
    %591 = arith.select %589, %586, %590 : vector<64x8xi1>, vector<64x8xf32>
    %cst_273 = arith.constant dense<0xFF800000> : vector<64xf32>
    %592 = vector.multi_reduction <maximumf>, %591, %cst_273 [1] : vector<64x8xf32> to vector<64xf32>
    %593 = vector.shape_cast %592 : vector<64xf32> to vector<64x1xf32>
    %594 = vector.broadcast %593 : vector<64x1xf32> to vector<64x8xf32>
    %595 = arith.subf %591, %594 : vector<64x8xf32>
    %596 = math.exp %595 : vector<64x8xf32>
    %cst_274 = arith.constant dense<0.000000e+00> : vector<64xf32>
    %597 = vector.multi_reduction <add>, %596, %cst_274 [1] : vector<64x8xf32> to vector<64xf32>
    %598 = vector.shape_cast %597 : vector<64xf32> to vector<64x1xf32>
    %599 = vector.broadcast %598 : vector<64x1xf32> to vector<64x8xf32>
    %600 = arith.divf %596, %599 : vector<64x8xf32>
    %601 = arith.truncf %600 : vector<64x8xf32> to vector<64x8xbf16>
    %cst_275 = arith.constant dense<0.000000e+00> : vector<64x128xf32>
    %602 = tpu.matmul %601, %573, %cst_275 {dimension_numbers = #tpu.dot_dimension_numbers<[1], [0], [0], [1], [0, 0, 1, 1], [], []>} : vector<64x8xbf16>, vector<8x128xbf16>, vector<64x128xf32> -> vector<64x128xf32>
    %603 = vector.extract_strided_slice %602 {offsets = [0, 0], sizes = [16, 128], strides = [1, 1]} : vector<64x128xf32> to vector<16x128xf32>
    %604 = vector.broadcast %9 : vector<1x128xf32> to vector<16x128xf32>
    %605 = arith.mulf %603, %604 : vector<16x128xf32>
    %606 = vector.extract_strided_slice %602 {offsets = [16, 0], sizes = [16, 128], strides = [1, 1]} : vector<64x128xf32> to vector<16x128xf32>
    %607 = vector.broadcast %11 : vector<1x128xf32> to vector<16x128xf32>
    %608 = arith.mulf %606, %607 : vector<16x128xf32>
    %609 = arith.addf %605, %608 : vector<16x128xf32>
    %610 = vector.extract_strided_slice %602 {offsets = [32, 0], sizes = [16, 128], strides = [1, 1]} : vector<64x128xf32> to vector<16x128xf32>
    %611 = vector.broadcast %13 : vector<1x128xf32> to vector<16x128xf32>
    %612 = arith.mulf %610, %611 : vector<16x128xf32>
    %613 = arith.addf %609, %612 : vector<16x128xf32>
    %614 = vector.extract_strided_slice %602 {offsets = [48, 0], sizes = [16, 128], strides = [1, 1]} : vector<64x128xf32> to vector<16x128xf32>
    %615 = vector.broadcast %15 : vector<1x128xf32> to vector<16x128xf32>
    %616 = arith.mulf %614, %615 : vector<16x128xf32>
    %617 = arith.addf %613, %616 : vector<16x128xf32>
    %618 = arith.addf %561, %617 : vector<16x128xf32>
    %619 = vector.broadcast %18 : vector<1x128xf32> to vector<16x128xf32>
    %620 = arith.mulf %618, %619 : vector<16x128xf32>
    %cst_276 = arith.constant dense<0.000000e+00> : vector<16xf32>
    %621 = vector.multi_reduction <add>, %620, %cst_276 [1] : vector<16x128xf32> to vector<16xf32>
    %622 = vector.shape_cast %621 : vector<16xf32> to vector<16x1xf32>
    %cst_277 = arith.constant 3.125000e-02 : f32
    %623 = vector.broadcast %cst_277 : f32 to vector<16x1xf32>
    %624 = arith.mulf %622, %623 : vector<16x1xf32>
    %625 = vector.broadcast %624 : vector<16x1xf32> to vector<16x128xf32>
    %626 = arith.subf %618, %625 : vector<16x128xf32>
    %627 = vector.broadcast %18 : vector<1x128xf32> to vector<16x128xf32>
    %628 = arith.mulf %626, %627 : vector<16x128xf32>
    %629 = arith.mulf %628, %628 : vector<16x128xf32>
    %cst_278 = arith.constant dense<0.000000e+00> : vector<16xf32>
    %630 = vector.multi_reduction <add>, %629, %cst_278 [1] : vector<16x128xf32> to vector<16xf32>
    %631 = vector.shape_cast %630 : vector<16xf32> to vector<16x1xf32>
    %cst_279 = arith.constant 3.125000e-02 : f32
    %632 = vector.broadcast %cst_279 : f32 to vector<16x1xf32>
    %633 = arith.mulf %631, %632 : vector<16x1xf32>
    %634 = vector.broadcast %624 : vector<16x1xf32> to vector<16x128xf32>
    %635 = arith.subf %618, %634 : vector<16x128xf32>
    %cst_280 = arith.constant 9.99999974E-6 : f32
    %636 = vector.broadcast %cst_280 : f32 to vector<16x1xf32>
    %637 = arith.addf %633, %636 : vector<16x1xf32>
    %638 = math.rsqrt %637 : vector<16x1xf32>
    %639 = vector.broadcast %638 : vector<16x1xf32> to vector<16x128xf32>
    %640 = arith.mulf %635, %639 : vector<16x128xf32>
    %641 = vector.broadcast %549 : vector<1x128xf32> to vector<16x128xf32>
    %642 = arith.mulf %640, %641 : vector<16x128xf32>
    %643 = vector.broadcast %551 : vector<1x128xf32> to vector<16x128xf32>
    %644 = arith.addf %642, %643 : vector<16x128xf32>
    %645 = arith.truncf %644 : vector<16x128xf32> to vector<16x128xbf16>
    %c3_281 = arith.constant 3 : index
    %c0_282 = arith.constant 0 : index
    %c0_283 = arith.constant 0 : index
    %646 = vector.load %arg13[%c3_281, %c0_282, %c0_283] : memref<6x128x128xbf16, #tpu.memory_space<vmem>>, vector<1x128x128xbf16>
    %647 = vector.shape_cast %646 : vector<1x128x128xbf16> to vector<128x128xbf16>
    %cst_284 = arith.constant dense<0.000000e+00> : vector<16x128xf32>
    %648 = tpu.matmul %645, %647, %cst_284 {dimension_numbers = #tpu.dot_dimension_numbers<[1], [0], [0], [1], [0, 0, 1, 1], [], []>} : vector<16x128xbf16>, vector<128x128xbf16>, vector<16x128xf32> -> vector<16x128xf32>
    %649 = vector.broadcast %547 : vector<1x128xf32> to vector<16x128xf32>
    %650 = arith.addf %648, %649 : vector<16x128xf32>
    %cst_285 = arith.constant 0.000000e+00 : f32
    %651 = vector.broadcast %cst_285 : f32 to vector<16x128xf32>
    %652 = arith.maximumf %650, %651 : vector<16x128xf32>
    %653 = arith.addf %644, %652 : vector<16x128xf32>
    %654 = vector.broadcast %18 : vector<1x128xf32> to vector<16x128xf32>
    %655 = arith.mulf %653, %654 : vector<16x128xf32>
    %cst_286 = arith.constant dense<0.000000e+00> : vector<16xf32>
    %656 = vector.multi_reduction <add>, %655, %cst_286 [1] : vector<16x128xf32> to vector<16xf32>
    %657 = vector.shape_cast %656 : vector<16xf32> to vector<16x1xf32>
    %cst_287 = arith.constant 3.125000e-02 : f32
    %658 = vector.broadcast %cst_287 : f32 to vector<16x1xf32>
    %659 = arith.mulf %657, %658 : vector<16x1xf32>
    %660 = vector.broadcast %659 : vector<16x1xf32> to vector<16x128xf32>
    %661 = arith.subf %653, %660 : vector<16x128xf32>
    %662 = vector.broadcast %18 : vector<1x128xf32> to vector<16x128xf32>
    %663 = arith.mulf %661, %662 : vector<16x128xf32>
    %664 = arith.mulf %663, %663 : vector<16x128xf32>
    %cst_288 = arith.constant dense<0.000000e+00> : vector<16xf32>
    %665 = vector.multi_reduction <add>, %664, %cst_288 [1] : vector<16x128xf32> to vector<16xf32>
    %666 = vector.shape_cast %665 : vector<16xf32> to vector<16x1xf32>
    %cst_289 = arith.constant 3.125000e-02 : f32
    %667 = vector.broadcast %cst_289 : f32 to vector<16x1xf32>
    %668 = arith.mulf %666, %667 : vector<16x1xf32>
    %669 = vector.broadcast %659 : vector<16x1xf32> to vector<16x128xf32>
    %670 = arith.subf %653, %669 : vector<16x128xf32>
    %cst_290 = arith.constant 9.99999974E-6 : f32
    %671 = vector.broadcast %cst_290 : f32 to vector<16x1xf32>
    %672 = arith.addf %668, %671 : vector<16x1xf32>
    %673 = math.rsqrt %672 : vector<16x1xf32>
    %674 = vector.broadcast %673 : vector<16x1xf32> to vector<16x128xf32>
    %675 = arith.mulf %670, %674 : vector<16x128xf32>
    %676 = vector.broadcast %553 : vector<1x128xf32> to vector<16x128xf32>
    %677 = arith.mulf %675, %676 : vector<16x128xf32>
    %678 = vector.broadcast %555 : vector<1x128xf32> to vector<16x128xf32>
    %679 = arith.addf %677, %678 : vector<16x128xf32>
    %cst_291 = arith.constant dense<0.000000e+00> : vector<8x128xf32>
    %680 = tpu.matmul %131, %679, %cst_291 {dimension_numbers = #tpu.dot_dimension_numbers<[1], [0], [0], [1], [0, 0, 1, 1], [], []>} : vector<8x16xf32>, vector<16x128xf32>, vector<8x128xf32> -> vector<8x128xf32>
    %c4_292 = arith.constant 4 : index
    %c0_293 = arith.constant 0 : index
    %c0_294 = arith.constant 0 : index
    %c0_295 = arith.constant 0 : index
    %681 = vector.load %arg15[%c4_292, %c0_293, %c0_294, %c0_295] : memref<6x6x1x128xf32, #tpu.memory_space<vmem>>, vector<1x1x1x128xf32>
    %682 = vector.shape_cast %681 : vector<1x1x1x128xf32> to vector<1x128xf32>
    %c4_296 = arith.constant 4 : index
    %c1_297 = arith.constant 1 : index
    %c0_298 = arith.constant 0 : index
    %c0_299 = arith.constant 0 : index
    %683 = vector.load %arg15[%c4_296, %c1_297, %c0_298, %c0_299] : memref<6x6x1x128xf32, #tpu.memory_space<vmem>>, vector<1x1x1x128xf32>
    %684 = vector.shape_cast %683 : vector<1x1x1x128xf32> to vector<1x128xf32>
    %c4_300 = arith.constant 4 : index
    %c2_301 = arith.constant 2 : index
    %c0_302 = arith.constant 0 : index
    %c0_303 = arith.constant 0 : index
    %685 = vector.load %arg15[%c4_300, %c2_301, %c0_302, %c0_303] : memref<6x6x1x128xf32, #tpu.memory_space<vmem>>, vector<1x1x1x128xf32>
    %686 = vector.shape_cast %685 : vector<1x1x1x128xf32> to vector<1x128xf32>
    %c4_304 = arith.constant 4 : index
    %c3_305 = arith.constant 3 : index
    %c0_306 = arith.constant 0 : index
    %c0_307 = arith.constant 0 : index
    %687 = vector.load %arg15[%c4_304, %c3_305, %c0_306, %c0_307] : memref<6x6x1x128xf32, #tpu.memory_space<vmem>>, vector<1x1x1x128xf32>
    %688 = vector.shape_cast %687 : vector<1x1x1x128xf32> to vector<1x128xf32>
    %c4_308 = arith.constant 4 : index
    %c4_309 = arith.constant 4 : index
    %c0_310 = arith.constant 0 : index
    %c0_311 = arith.constant 0 : index
    %689 = vector.load %arg15[%c4_308, %c4_309, %c0_310, %c0_311] : memref<6x6x1x128xf32, #tpu.memory_space<vmem>>, vector<1x1x1x128xf32>
    %690 = vector.shape_cast %689 : vector<1x1x1x128xf32> to vector<1x128xf32>
    %c4_312 = arith.constant 4 : index
    %c5_313 = arith.constant 5 : index
    %c0_314 = arith.constant 0 : index
    %c0_315 = arith.constant 0 : index
    %691 = vector.load %arg15[%c4_312, %c5_313, %c0_314, %c0_315] : memref<6x6x1x128xf32, #tpu.memory_space<vmem>>, vector<1x1x1x128xf32>
    %692 = vector.shape_cast %691 : vector<1x1x1x128xf32> to vector<1x128xf32>
    %693 = arith.truncf %680 : vector<8x128xf32> to vector<8x128xbf16>
    %c4_316 = arith.constant 4 : index
    %c0_317 = arith.constant 0 : index
    %c0_318 = arith.constant 0 : index
    %694 = vector.load %arg11[%c4_316, %c0_317, %c0_318] : memref<6x128x128xbf16, #tpu.memory_space<vmem>>, vector<1x128x128xbf16>
    %695 = vector.shape_cast %694 : vector<1x128x128xbf16> to vector<128x128xbf16>
    %cst_319 = arith.constant dense<0.000000e+00> : vector<8x128xf32>
    %696 = tpu.matmul %693, %695, %cst_319 {dimension_numbers = #tpu.dot_dimension_numbers<[1], [0], [0], [1], [0, 0, 1, 1], [], []>} : vector<8x128xbf16>, vector<128x128xbf16>, vector<8x128xf32> -> vector<8x128xf32>
    %697 = vector.broadcast %682 : vector<1x128xf32> to vector<8x128xf32>
    %698 = arith.addf %696, %697 : vector<8x128xf32>
    %699 = arith.truncf %679 : vector<16x128xf32> to vector<16x128xbf16>
    %c4_320 = arith.constant 4 : index
    %c0_321 = arith.constant 0 : index
    %c0_322 = arith.constant 0 : index
    %700 = vector.load %arg12[%c4_320, %c0_321, %c0_322] : memref<6x128x256xbf16, #tpu.memory_space<vmem>>, vector<1x128x256xbf16>
    %701 = vector.shape_cast %700 : vector<1x128x256xbf16> to vector<128x256xbf16>
    %cst_323 = arith.constant dense<0.000000e+00> : vector<16x256xf32>
    %702 = tpu.matmul %699, %701, %cst_323 {dimension_numbers = #tpu.dot_dimension_numbers<[1], [0], [0], [1], [0, 0, 1, 1], [], []>} : vector<16x128xbf16>, vector<128x256xbf16>, vector<16x256xf32> -> vector<16x256xf32>
    %c4_324 = arith.constant 4 : index
    %c0_325 = arith.constant 0 : index
    %c0_326 = arith.constant 0 : index
    %703 = vector.load %arg14[%c4_324, %c0_325, %c0_326] : memref<6x1x256xf32, #tpu.memory_space<vmem>>, vector<1x1x256xf32>
    %704 = vector.shape_cast %703 : vector<1x1x256xf32> to vector<1x256xf32>
    %705 = vector.broadcast %704 : vector<1x256xf32> to vector<16x256xf32>
    %706 = arith.addf %702, %705 : vector<16x256xf32>
    %707 = vector.extract_strided_slice %706 {offsets = [0, 0], sizes = [16, 128], strides = [1, 1]} : vector<16x256xf32> to vector<16x128xf32>
    %708 = arith.truncf %707 : vector<16x128xf32> to vector<16x128xbf16>
    %709 = vector.extract_strided_slice %706 {offsets = [0, 128], sizes = [16, 128], strides = [1, 1]} : vector<16x256xf32> to vector<16x128xf32>
    %710 = arith.truncf %709 : vector<16x128xf32> to vector<16x128xbf16>
    %711 = vector.broadcast %9 : vector<1x128xf32> to vector<8x128xf32>
    %712 = arith.mulf %698, %711 : vector<8x128xf32>
    %713 = vector.broadcast %11 : vector<1x128xf32> to vector<8x128xf32>
    %714 = arith.mulf %698, %713 : vector<8x128xf32>
    %715 = vector.broadcast %13 : vector<1x128xf32> to vector<8x128xf32>
    %716 = arith.mulf %698, %715 : vector<8x128xf32>
    %717 = vector.broadcast %15 : vector<1x128xf32> to vector<8x128xf32>
    %718 = arith.mulf %698, %717 : vector<8x128xf32>
    %719 = tpu.concatenate %712, %714, %716, %718 in 0 : vector<8x128xf32>, vector<8x128xf32>, vector<8x128xf32>, vector<8x128xf32> -> vector<32x128xf32>
    %720 = arith.truncf %719 : vector<32x128xf32> to vector<32x128xbf16>
    %cst_327 = arith.constant dense<0.000000e+00> : vector<32x16xf32>
    %721 = tpu.matmul %720, %708, %cst_327 {dimension_numbers = #tpu.dot_dimension_numbers<[1], [1], [0], [0], [0, 0, 1, 0], [], []>} : vector<32x128xbf16>, vector<16x128xbf16>, vector<32x16xf32> -> vector<32x16xf32>
    %cst_328 = arith.constant 0.176776692 : f32
    %722 = vector.broadcast %cst_328 : f32 to vector<32x16xf32>
    %723 = arith.mulf %721, %722 : vector<32x16xf32>
    %724 = tpu.concatenate %132, %132, %132, %132 in 0 : vector<8x16xf32>, vector<8x16xf32>, vector<8x16xf32>, vector<8x16xf32> -> vector<32x16xf32>
    %cst_329 = arith.constant 0.000000e+00 : f32
    %725 = vector.broadcast %cst_329 : f32 to vector<32x16xf32>
    %726 = arith.cmpf ogt, %724, %725 : vector<32x16xf32>
    %cst_330 = arith.constant -1.000000e+30 : f32
    %727 = vector.broadcast %cst_330 : f32 to vector<32x16xf32>
    %728 = arith.select %726, %723, %727 : vector<32x16xi1>, vector<32x16xf32>
    %cst_331 = arith.constant dense<0xFF800000> : vector<32xf32>
    %729 = vector.multi_reduction <maximumf>, %728, %cst_331 [1] : vector<32x16xf32> to vector<32xf32>
    %730 = vector.shape_cast %729 : vector<32xf32> to vector<32x1xf32>
    %731 = vector.broadcast %730 : vector<32x1xf32> to vector<32x16xf32>
    %732 = arith.subf %728, %731 : vector<32x16xf32>
    %733 = math.exp %732 : vector<32x16xf32>
    %cst_332 = arith.constant dense<0.000000e+00> : vector<32xf32>
    %734 = vector.multi_reduction <add>, %733, %cst_332 [1] : vector<32x16xf32> to vector<32xf32>
    %735 = vector.shape_cast %734 : vector<32xf32> to vector<32x1xf32>
    %736 = vector.broadcast %735 : vector<32x1xf32> to vector<32x16xf32>
    %737 = arith.divf %733, %736 : vector<32x16xf32>
    %738 = arith.truncf %737 : vector<32x16xf32> to vector<32x16xbf16>
    %cst_333 = arith.constant dense<0.000000e+00> : vector<32x128xf32>
    %739 = tpu.matmul %738, %710, %cst_333 {dimension_numbers = #tpu.dot_dimension_numbers<[1], [0], [0], [1], [0, 0, 1, 1], [], []>} : vector<32x16xbf16>, vector<16x128xbf16>, vector<32x128xf32> -> vector<32x128xf32>
    %740 = vector.extract_strided_slice %739 {offsets = [0, 0], sizes = [8, 128], strides = [1, 1]} : vector<32x128xf32> to vector<8x128xf32>
    %741 = vector.broadcast %9 : vector<1x128xf32> to vector<8x128xf32>
    %742 = arith.mulf %740, %741 : vector<8x128xf32>
    %743 = vector.extract_strided_slice %739 {offsets = [8, 0], sizes = [8, 128], strides = [1, 1]} : vector<32x128xf32> to vector<8x128xf32>
    %744 = vector.broadcast %11 : vector<1x128xf32> to vector<8x128xf32>
    %745 = arith.mulf %743, %744 : vector<8x128xf32>
    %746 = arith.addf %742, %745 : vector<8x128xf32>
    %747 = vector.extract_strided_slice %739 {offsets = [16, 0], sizes = [8, 128], strides = [1, 1]} : vector<32x128xf32> to vector<8x128xf32>
    %748 = vector.broadcast %13 : vector<1x128xf32> to vector<8x128xf32>
    %749 = arith.mulf %747, %748 : vector<8x128xf32>
    %750 = arith.addf %746, %749 : vector<8x128xf32>
    %751 = vector.extract_strided_slice %739 {offsets = [24, 0], sizes = [8, 128], strides = [1, 1]} : vector<32x128xf32> to vector<8x128xf32>
    %752 = vector.broadcast %15 : vector<1x128xf32> to vector<8x128xf32>
    %753 = arith.mulf %751, %752 : vector<8x128xf32>
    %754 = arith.addf %750, %753 : vector<8x128xf32>
    %755 = arith.addf %698, %754 : vector<8x128xf32>
    %756 = vector.broadcast %18 : vector<1x128xf32> to vector<8x128xf32>
    %757 = arith.mulf %755, %756 : vector<8x128xf32>
    %cst_334 = arith.constant dense<0.000000e+00> : vector<8xf32>
    %758 = vector.multi_reduction <add>, %757, %cst_334 [1] : vector<8x128xf32> to vector<8xf32>
    %759 = vector.shape_cast %758 : vector<8xf32> to vector<8x1xf32>
    %cst_335 = arith.constant 3.125000e-02 : f32
    %760 = vector.broadcast %cst_335 : f32 to vector<8x1xf32>
    %761 = arith.mulf %759, %760 : vector<8x1xf32>
    %762 = vector.broadcast %761 : vector<8x1xf32> to vector<8x128xf32>
    %763 = arith.subf %755, %762 : vector<8x128xf32>
    %764 = vector.broadcast %18 : vector<1x128xf32> to vector<8x128xf32>
    %765 = arith.mulf %763, %764 : vector<8x128xf32>
    %766 = arith.mulf %765, %765 : vector<8x128xf32>
    %cst_336 = arith.constant dense<0.000000e+00> : vector<8xf32>
    %767 = vector.multi_reduction <add>, %766, %cst_336 [1] : vector<8x128xf32> to vector<8xf32>
    %768 = vector.shape_cast %767 : vector<8xf32> to vector<8x1xf32>
    %cst_337 = arith.constant 3.125000e-02 : f32
    %769 = vector.broadcast %cst_337 : f32 to vector<8x1xf32>
    %770 = arith.mulf %768, %769 : vector<8x1xf32>
    %771 = vector.broadcast %761 : vector<8x1xf32> to vector<8x128xf32>
    %772 = arith.subf %755, %771 : vector<8x128xf32>
    %cst_338 = arith.constant 9.99999974E-6 : f32
    %773 = vector.broadcast %cst_338 : f32 to vector<8x1xf32>
    %774 = arith.addf %770, %773 : vector<8x1xf32>
    %775 = math.rsqrt %774 : vector<8x1xf32>
    %776 = vector.broadcast %775 : vector<8x1xf32> to vector<8x128xf32>
    %777 = arith.mulf %772, %776 : vector<8x128xf32>
    %778 = vector.broadcast %686 : vector<1x128xf32> to vector<8x128xf32>
    %779 = arith.mulf %777, %778 : vector<8x128xf32>
    %780 = vector.broadcast %688 : vector<1x128xf32> to vector<8x128xf32>
    %781 = arith.addf %779, %780 : vector<8x128xf32>
    %782 = arith.truncf %781 : vector<8x128xf32> to vector<8x128xbf16>
    %c4_339 = arith.constant 4 : index
    %c0_340 = arith.constant 0 : index
    %c0_341 = arith.constant 0 : index
    %783 = vector.load %arg13[%c4_339, %c0_340, %c0_341] : memref<6x128x128xbf16, #tpu.memory_space<vmem>>, vector<1x128x128xbf16>
    %784 = vector.shape_cast %783 : vector<1x128x128xbf16> to vector<128x128xbf16>
    %cst_342 = arith.constant dense<0.000000e+00> : vector<8x128xf32>
    %785 = tpu.matmul %782, %784, %cst_342 {dimension_numbers = #tpu.dot_dimension_numbers<[1], [0], [0], [1], [0, 0, 1, 1], [], []>} : vector<8x128xbf16>, vector<128x128xbf16>, vector<8x128xf32> -> vector<8x128xf32>
    %786 = vector.broadcast %684 : vector<1x128xf32> to vector<8x128xf32>
    %787 = arith.addf %785, %786 : vector<8x128xf32>
    %cst_343 = arith.constant 0.000000e+00 : f32
    %788 = vector.broadcast %cst_343 : f32 to vector<8x128xf32>
    %789 = arith.maximumf %787, %788 : vector<8x128xf32>
    %790 = arith.addf %781, %789 : vector<8x128xf32>
    %791 = vector.broadcast %18 : vector<1x128xf32> to vector<8x128xf32>
    %792 = arith.mulf %790, %791 : vector<8x128xf32>
    %cst_344 = arith.constant dense<0.000000e+00> : vector<8xf32>
    %793 = vector.multi_reduction <add>, %792, %cst_344 [1] : vector<8x128xf32> to vector<8xf32>
    %794 = vector.shape_cast %793 : vector<8xf32> to vector<8x1xf32>
    %cst_345 = arith.constant 3.125000e-02 : f32
    %795 = vector.broadcast %cst_345 : f32 to vector<8x1xf32>
    %796 = arith.mulf %794, %795 : vector<8x1xf32>
    %797 = vector.broadcast %796 : vector<8x1xf32> to vector<8x128xf32>
    %798 = arith.subf %790, %797 : vector<8x128xf32>
    %799 = vector.broadcast %18 : vector<1x128xf32> to vector<8x128xf32>
    %800 = arith.mulf %798, %799 : vector<8x128xf32>
    %801 = arith.mulf %800, %800 : vector<8x128xf32>
    %cst_346 = arith.constant dense<0.000000e+00> : vector<8xf32>
    %802 = vector.multi_reduction <add>, %801, %cst_346 [1] : vector<8x128xf32> to vector<8xf32>
    %803 = vector.shape_cast %802 : vector<8xf32> to vector<8x1xf32>
    %cst_347 = arith.constant 3.125000e-02 : f32
    %804 = vector.broadcast %cst_347 : f32 to vector<8x1xf32>
    %805 = arith.mulf %803, %804 : vector<8x1xf32>
    %806 = vector.broadcast %796 : vector<8x1xf32> to vector<8x128xf32>
    %807 = arith.subf %790, %806 : vector<8x128xf32>
    %cst_348 = arith.constant 9.99999974E-6 : f32
    %808 = vector.broadcast %cst_348 : f32 to vector<8x1xf32>
    %809 = arith.addf %805, %808 : vector<8x1xf32>
    %810 = math.rsqrt %809 : vector<8x1xf32>
    %811 = vector.broadcast %810 : vector<8x1xf32> to vector<8x128xf32>
    %812 = arith.mulf %807, %811 : vector<8x128xf32>
    %813 = vector.broadcast %690 : vector<1x128xf32> to vector<8x128xf32>
    %814 = arith.mulf %812, %813 : vector<8x128xf32>
    %815 = vector.broadcast %692 : vector<1x128xf32> to vector<8x128xf32>
    %816 = arith.addf %814, %815 : vector<8x128xf32>
    %c5_349 = arith.constant 5 : index
    %c0_350 = arith.constant 0 : index
    %c0_351 = arith.constant 0 : index
    %c0_352 = arith.constant 0 : index
    %817 = vector.load %arg15[%c5_349, %c0_350, %c0_351, %c0_352] : memref<6x6x1x128xf32, #tpu.memory_space<vmem>>, vector<1x1x1x128xf32>
    %818 = vector.shape_cast %817 : vector<1x1x1x128xf32> to vector<1x128xf32>
    %c5_353 = arith.constant 5 : index
    %c1_354 = arith.constant 1 : index
    %c0_355 = arith.constant 0 : index
    %c0_356 = arith.constant 0 : index
    %819 = vector.load %arg15[%c5_353, %c1_354, %c0_355, %c0_356] : memref<6x6x1x128xf32, #tpu.memory_space<vmem>>, vector<1x1x1x128xf32>
    %820 = vector.shape_cast %819 : vector<1x1x1x128xf32> to vector<1x128xf32>
    %c5_357 = arith.constant 5 : index
    %c2_358 = arith.constant 2 : index
    %c0_359 = arith.constant 0 : index
    %c0_360 = arith.constant 0 : index
    %821 = vector.load %arg15[%c5_357, %c2_358, %c0_359, %c0_360] : memref<6x6x1x128xf32, #tpu.memory_space<vmem>>, vector<1x1x1x128xf32>
    %822 = vector.shape_cast %821 : vector<1x1x1x128xf32> to vector<1x128xf32>
    %c5_361 = arith.constant 5 : index
    %c3_362 = arith.constant 3 : index
    %c0_363 = arith.constant 0 : index
    %c0_364 = arith.constant 0 : index
    %823 = vector.load %arg15[%c5_361, %c3_362, %c0_363, %c0_364] : memref<6x6x1x128xf32, #tpu.memory_space<vmem>>, vector<1x1x1x128xf32>
    %824 = vector.shape_cast %823 : vector<1x1x1x128xf32> to vector<1x128xf32>
    %c5_365 = arith.constant 5 : index
    %c4_366 = arith.constant 4 : index
    %c0_367 = arith.constant 0 : index
    %c0_368 = arith.constant 0 : index
    %825 = vector.load %arg15[%c5_365, %c4_366, %c0_367, %c0_368] : memref<6x6x1x128xf32, #tpu.memory_space<vmem>>, vector<1x1x1x128xf32>
    %826 = vector.shape_cast %825 : vector<1x1x1x128xf32> to vector<1x128xf32>
    %c5_369 = arith.constant 5 : index
    %c5_370 = arith.constant 5 : index
    %c0_371 = arith.constant 0 : index
    %c0_372 = arith.constant 0 : index
    %827 = vector.load %arg15[%c5_369, %c5_370, %c0_371, %c0_372] : memref<6x6x1x128xf32, #tpu.memory_space<vmem>>, vector<1x1x1x128xf32>
    %828 = vector.shape_cast %827 : vector<1x1x1x128xf32> to vector<1x128xf32>
    %829 = arith.truncf %679 : vector<16x128xf32> to vector<16x128xbf16>
    %c5_373 = arith.constant 5 : index
    %c0_374 = arith.constant 0 : index
    %c0_375 = arith.constant 0 : index
    %830 = vector.load %arg11[%c5_373, %c0_374, %c0_375] : memref<6x128x128xbf16, #tpu.memory_space<vmem>>, vector<1x128x128xbf16>
    %831 = vector.shape_cast %830 : vector<1x128x128xbf16> to vector<128x128xbf16>
    %cst_376 = arith.constant dense<0.000000e+00> : vector<16x128xf32>
    %832 = tpu.matmul %829, %831, %cst_376 {dimension_numbers = #tpu.dot_dimension_numbers<[1], [0], [0], [1], [0, 0, 1, 1], [], []>} : vector<16x128xbf16>, vector<128x128xbf16>, vector<16x128xf32> -> vector<16x128xf32>
    %833 = vector.broadcast %818 : vector<1x128xf32> to vector<16x128xf32>
    %834 = arith.addf %832, %833 : vector<16x128xf32>
    %835 = arith.truncf %816 : vector<8x128xf32> to vector<8x128xbf16>
    %c5_377 = arith.constant 5 : index
    %c0_378 = arith.constant 0 : index
    %c0_379 = arith.constant 0 : index
    %836 = vector.load %arg12[%c5_377, %c0_378, %c0_379] : memref<6x128x256xbf16, #tpu.memory_space<vmem>>, vector<1x128x256xbf16>
    %837 = vector.shape_cast %836 : vector<1x128x256xbf16> to vector<128x256xbf16>
    %cst_380 = arith.constant dense<0.000000e+00> : vector<8x256xf32>
    %838 = tpu.matmul %835, %837, %cst_380 {dimension_numbers = #tpu.dot_dimension_numbers<[1], [0], [0], [1], [0, 0, 1, 1], [], []>} : vector<8x128xbf16>, vector<128x256xbf16>, vector<8x256xf32> -> vector<8x256xf32>
    %c5_381 = arith.constant 5 : index
    %c0_382 = arith.constant 0 : index
    %c0_383 = arith.constant 0 : index
    %839 = vector.load %arg14[%c5_381, %c0_382, %c0_383] : memref<6x1x256xf32, #tpu.memory_space<vmem>>, vector<1x1x256xf32>
    %840 = vector.shape_cast %839 : vector<1x1x256xf32> to vector<1x256xf32>
    %841 = vector.broadcast %840 : vector<1x256xf32> to vector<8x256xf32>
    %842 = arith.addf %838, %841 : vector<8x256xf32>
    %843 = vector.extract_strided_slice %842 {offsets = [0, 0], sizes = [8, 128], strides = [1, 1]} : vector<8x256xf32> to vector<8x128xf32>
    %844 = arith.truncf %843 : vector<8x128xf32> to vector<8x128xbf16>
    %845 = vector.extract_strided_slice %842 {offsets = [0, 128], sizes = [8, 128], strides = [1, 1]} : vector<8x256xf32> to vector<8x128xf32>
    %846 = arith.truncf %845 : vector<8x128xf32> to vector<8x128xbf16>
    %847 = vector.broadcast %9 : vector<1x128xf32> to vector<16x128xf32>
    %848 = arith.mulf %834, %847 : vector<16x128xf32>
    %849 = vector.broadcast %11 : vector<1x128xf32> to vector<16x128xf32>
    %850 = arith.mulf %834, %849 : vector<16x128xf32>
    %851 = vector.broadcast %13 : vector<1x128xf32> to vector<16x128xf32>
    %852 = arith.mulf %834, %851 : vector<16x128xf32>
    %853 = vector.broadcast %15 : vector<1x128xf32> to vector<16x128xf32>
    %854 = arith.mulf %834, %853 : vector<16x128xf32>
    %855 = tpu.concatenate %848, %850, %852, %854 in 0 : vector<16x128xf32>, vector<16x128xf32>, vector<16x128xf32>, vector<16x128xf32> -> vector<64x128xf32>
    %856 = arith.truncf %855 : vector<64x128xf32> to vector<64x128xbf16>
    %cst_384 = arith.constant dense<0.000000e+00> : vector<64x8xf32>
    %857 = tpu.matmul %856, %844, %cst_384 {dimension_numbers = #tpu.dot_dimension_numbers<[1], [1], [0], [0], [0, 0, 1, 0], [], []>} : vector<64x128xbf16>, vector<8x128xbf16>, vector<64x8xf32> -> vector<64x8xf32>
    %cst_385 = arith.constant 0.176776692 : f32
    %858 = vector.broadcast %cst_385 : f32 to vector<64x8xf32>
    %859 = arith.mulf %857, %858 : vector<64x8xf32>
    %860 = tpu.concatenate %133, %133, %133, %133 in 0 : vector<16x8xf32>, vector<16x8xf32>, vector<16x8xf32>, vector<16x8xf32> -> vector<64x8xf32>
    %cst_386 = arith.constant 0.000000e+00 : f32
    %861 = vector.broadcast %cst_386 : f32 to vector<64x8xf32>
    %862 = arith.cmpf ogt, %860, %861 : vector<64x8xf32>
    %cst_387 = arith.constant -1.000000e+30 : f32
    %863 = vector.broadcast %cst_387 : f32 to vector<64x8xf32>
    %864 = arith.select %862, %859, %863 : vector<64x8xi1>, vector<64x8xf32>
    %cst_388 = arith.constant dense<0xFF800000> : vector<64xf32>
    %865 = vector.multi_reduction <maximumf>, %864, %cst_388 [1] : vector<64x8xf32> to vector<64xf32>
    %866 = vector.shape_cast %865 : vector<64xf32> to vector<64x1xf32>
    %867 = vector.broadcast %866 : vector<64x1xf32> to vector<64x8xf32>
    %868 = arith.subf %864, %867 : vector<64x8xf32>
    %869 = math.exp %868 : vector<64x8xf32>
    %cst_389 = arith.constant dense<0.000000e+00> : vector<64xf32>
    %870 = vector.multi_reduction <add>, %869, %cst_389 [1] : vector<64x8xf32> to vector<64xf32>
    %871 = vector.shape_cast %870 : vector<64xf32> to vector<64x1xf32>
    %872 = vector.broadcast %871 : vector<64x1xf32> to vector<64x8xf32>
    %873 = arith.divf %869, %872 : vector<64x8xf32>
    %874 = arith.truncf %873 : vector<64x8xf32> to vector<64x8xbf16>
    %cst_390 = arith.constant dense<0.000000e+00> : vector<64x128xf32>
    %875 = tpu.matmul %874, %846, %cst_390 {dimension_numbers = #tpu.dot_dimension_numbers<[1], [0], [0], [1], [0, 0, 1, 1], [], []>} : vector<64x8xbf16>, vector<8x128xbf16>, vector<64x128xf32> -> vector<64x128xf32>
    %876 = vector.extract_strided_slice %875 {offsets = [0, 0], sizes = [16, 128], strides = [1, 1]} : vector<64x128xf32> to vector<16x128xf32>
    %877 = vector.broadcast %9 : vector<1x128xf32> to vector<16x128xf32>
    %878 = arith.mulf %876, %877 : vector<16x128xf32>
    %879 = vector.extract_strided_slice %875 {offsets = [16, 0], sizes = [16, 128], strides = [1, 1]} : vector<64x128xf32> to vector<16x128xf32>
    %880 = vector.broadcast %11 : vector<1x128xf32> to vector<16x128xf32>
    %881 = arith.mulf %879, %880 : vector<16x128xf32>
    %882 = arith.addf %878, %881 : vector<16x128xf32>
    %883 = vector.extract_strided_slice %875 {offsets = [32, 0], sizes = [16, 128], strides = [1, 1]} : vector<64x128xf32> to vector<16x128xf32>
    %884 = vector.broadcast %13 : vector<1x128xf32> to vector<16x128xf32>
    %885 = arith.mulf %883, %884 : vector<16x128xf32>
    %886 = arith.addf %882, %885 : vector<16x128xf32>
    %887 = vector.extract_strided_slice %875 {offsets = [48, 0], sizes = [16, 128], strides = [1, 1]} : vector<64x128xf32> to vector<16x128xf32>
    %888 = vector.broadcast %15 : vector<1x128xf32> to vector<16x128xf32>
    %889 = arith.mulf %887, %888 : vector<16x128xf32>
    %890 = arith.addf %886, %889 : vector<16x128xf32>
    %891 = arith.addf %834, %890 : vector<16x128xf32>
    %892 = vector.broadcast %18 : vector<1x128xf32> to vector<16x128xf32>
    %893 = arith.mulf %891, %892 : vector<16x128xf32>
    %cst_391 = arith.constant dense<0.000000e+00> : vector<16xf32>
    %894 = vector.multi_reduction <add>, %893, %cst_391 [1] : vector<16x128xf32> to vector<16xf32>
    %895 = vector.shape_cast %894 : vector<16xf32> to vector<16x1xf32>
    %cst_392 = arith.constant 3.125000e-02 : f32
    %896 = vector.broadcast %cst_392 : f32 to vector<16x1xf32>
    %897 = arith.mulf %895, %896 : vector<16x1xf32>
    %898 = vector.broadcast %897 : vector<16x1xf32> to vector<16x128xf32>
    %899 = arith.subf %891, %898 : vector<16x128xf32>
    %900 = vector.broadcast %18 : vector<1x128xf32> to vector<16x128xf32>
    %901 = arith.mulf %899, %900 : vector<16x128xf32>
    %902 = arith.mulf %901, %901 : vector<16x128xf32>
    %cst_393 = arith.constant dense<0.000000e+00> : vector<16xf32>
    %903 = vector.multi_reduction <add>, %902, %cst_393 [1] : vector<16x128xf32> to vector<16xf32>
    %904 = vector.shape_cast %903 : vector<16xf32> to vector<16x1xf32>
    %cst_394 = arith.constant 3.125000e-02 : f32
    %905 = vector.broadcast %cst_394 : f32 to vector<16x1xf32>
    %906 = arith.mulf %904, %905 : vector<16x1xf32>
    %907 = vector.broadcast %897 : vector<16x1xf32> to vector<16x128xf32>
    %908 = arith.subf %891, %907 : vector<16x128xf32>
    %cst_395 = arith.constant 9.99999974E-6 : f32
    %909 = vector.broadcast %cst_395 : f32 to vector<16x1xf32>
    %910 = arith.addf %906, %909 : vector<16x1xf32>
    %911 = math.rsqrt %910 : vector<16x1xf32>
    %912 = vector.broadcast %911 : vector<16x1xf32> to vector<16x128xf32>
    %913 = arith.mulf %908, %912 : vector<16x128xf32>
    %914 = vector.broadcast %822 : vector<1x128xf32> to vector<16x128xf32>
    %915 = arith.mulf %913, %914 : vector<16x128xf32>
    %916 = vector.broadcast %824 : vector<1x128xf32> to vector<16x128xf32>
    %917 = arith.addf %915, %916 : vector<16x128xf32>
    %918 = arith.truncf %917 : vector<16x128xf32> to vector<16x128xbf16>
    %c5_396 = arith.constant 5 : index
    %c0_397 = arith.constant 0 : index
    %c0_398 = arith.constant 0 : index
    %919 = vector.load %arg13[%c5_396, %c0_397, %c0_398] : memref<6x128x128xbf16, #tpu.memory_space<vmem>>, vector<1x128x128xbf16>
    %920 = vector.shape_cast %919 : vector<1x128x128xbf16> to vector<128x128xbf16>
    %cst_399 = arith.constant dense<0.000000e+00> : vector<16x128xf32>
    %921 = tpu.matmul %918, %920, %cst_399 {dimension_numbers = #tpu.dot_dimension_numbers<[1], [0], [0], [1], [0, 0, 1, 1], [], []>} : vector<16x128xbf16>, vector<128x128xbf16>, vector<16x128xf32> -> vector<16x128xf32>
    %922 = vector.broadcast %820 : vector<1x128xf32> to vector<16x128xf32>
    %923 = arith.addf %921, %922 : vector<16x128xf32>
    %cst_400 = arith.constant 0.000000e+00 : f32
    %924 = vector.broadcast %cst_400 : f32 to vector<16x128xf32>
    %925 = arith.maximumf %923, %924 : vector<16x128xf32>
    %926 = arith.addf %917, %925 : vector<16x128xf32>
    %927 = vector.broadcast %18 : vector<1x128xf32> to vector<16x128xf32>
    %928 = arith.mulf %926, %927 : vector<16x128xf32>
    %cst_401 = arith.constant dense<0.000000e+00> : vector<16xf32>
    %929 = vector.multi_reduction <add>, %928, %cst_401 [1] : vector<16x128xf32> to vector<16xf32>
    %930 = vector.shape_cast %929 : vector<16xf32> to vector<16x1xf32>
    %cst_402 = arith.constant 3.125000e-02 : f32
    %931 = vector.broadcast %cst_402 : f32 to vector<16x1xf32>
    %932 = arith.mulf %930, %931 : vector<16x1xf32>
    %933 = vector.broadcast %932 : vector<16x1xf32> to vector<16x128xf32>
    %934 = arith.subf %926, %933 : vector<16x128xf32>
    %935 = vector.broadcast %18 : vector<1x128xf32> to vector<16x128xf32>
    %936 = arith.mulf %934, %935 : vector<16x128xf32>
    %937 = arith.mulf %936, %936 : vector<16x128xf32>
    %cst_403 = arith.constant dense<0.000000e+00> : vector<16xf32>
    %938 = vector.multi_reduction <add>, %937, %cst_403 [1] : vector<16x128xf32> to vector<16xf32>
    %939 = vector.shape_cast %938 : vector<16xf32> to vector<16x1xf32>
    %cst_404 = arith.constant 3.125000e-02 : f32
    %940 = vector.broadcast %cst_404 : f32 to vector<16x1xf32>
    %941 = arith.mulf %939, %940 : vector<16x1xf32>
    %942 = vector.broadcast %932 : vector<16x1xf32> to vector<16x128xf32>
    %943 = arith.subf %926, %942 : vector<16x128xf32>
    %cst_405 = arith.constant 9.99999974E-6 : f32
    %944 = vector.broadcast %cst_405 : f32 to vector<16x1xf32>
    %945 = arith.addf %941, %944 : vector<16x1xf32>
    %946 = math.rsqrt %945 : vector<16x1xf32>
    %947 = vector.broadcast %946 : vector<16x1xf32> to vector<16x128xf32>
    %948 = arith.mulf %943, %947 : vector<16x128xf32>
    %949 = vector.broadcast %826 : vector<1x128xf32> to vector<16x128xf32>
    %950 = arith.mulf %948, %949 : vector<16x128xf32>
    %951 = vector.broadcast %828 : vector<1x128xf32> to vector<16x128xf32>
    %952 = arith.addf %950, %951 : vector<16x128xf32>
    %953 = arith.truncf %952 : vector<16x128xf32> to vector<16x128xbf16>
    %c0_406 = arith.constant 0 : index
    %c0_407 = arith.constant 0 : index
    %954 = vector.load %arg16[%c0_406, %c0_407] : memref<128x128xbf16, #tpu.memory_space<vmem>>, vector<128x128xbf16>
    %cst_408 = arith.constant dense<0.000000e+00> : vector<16x128xf32>
    %955 = tpu.matmul %953, %954, %cst_408 {dimension_numbers = #tpu.dot_dimension_numbers<[1], [0], [0], [1], [0, 0, 1, 1], [], []>} : vector<16x128xbf16>, vector<128x128xbf16>, vector<16x128xf32> -> vector<16x128xf32>
    %c0_409 = arith.constant 0 : index
    %c0_410 = arith.constant 0 : index
    %956 = vector.load %arg17[%c0_409, %c0_410] : memref<1x128xf32, #tpu.memory_space<vmem>>, vector<1x128xf32>
    %957 = vector.broadcast %956 : vector<1x128xf32> to vector<16x128xf32>
    %958 = arith.addf %955, %957 : vector<16x128xf32>
    %c0_411 = arith.constant 0 : index
    %c0_412 = arith.constant 0 : index
    %959 = vector.load %arg18[%c0_411, %c0_412] : memref<16x128xf32, #tpu.memory_space<vmem>>, vector<16x128xf32>
    tpu.vector_store %arg18[%c0_411, %c0_412], %958 {strides = array<i32>} : memref<16x128xf32, #tpu.memory_space<vmem>>, vector<16x128xf32>,
    return
  }
}

</mosaic_0001>

<llo_original>
// kernel: custom-call.2
$region0: #{custom-call.2}
  %s0 = inlined_call_operand.vmem [shape: f32[2,8], index: 0, kind: output, shape index: {}]

// kernel: eq.10
$region0: #{eq.10}
  %s0 = inlined_call_operand.vmem [shape: s32[2,4], index: 0, kind: input, shape index: {}]
  %s1 = inlined_call_operand.vmem [shape: s32[8], index: 1, kind: output, shape index: {}]
  $region1: #{eq.10} parent=0
    #allocation0 [shape = 'u8[4096]{0}', space=vmem, size = 0x1000, scoped, tag = 'scoped mem for output reshape']
    #allocation1 [shape = 'u8[4096]{0}', space=vmem, size = 0x1000, scoped, tag = 'scoped mem for input reshape']
    %s3 = sshllo.u32 0, 2
    %v4 = vld [vmem:[%s0] sm:%s3]
    %5 = vst [vmem:[#allocation1] sm:%s3] %v4
    %v6 = vld [vmem:[#allocation1] sm:$0x1]
    %vm7 = vcmask 31744
    %8 = vst.msk [vmem:[#allocation0] sm:$0x1] %vm7, %v6
    %s9 = scalar_lea.vmem [#allocation1], 1
    %v10 = vld [vmem:[%s9] sm:$0x1]
    %11 = vrot.lane.b32.xlu0 %v10, 4
    %v12 = vpop.permute.xlu0 %11
    %vm13 = vcmask 64544
    %14 = vst.msk [vmem:[#allocation0] sm:$0x1] %vm13, %v12
    %s16 = sshllo.u32 0, 1
    %v18 = vld [vmem:[#allocation0] sm:%s16]
    %s19 = sshllo.u32 0, 1
    %20 = vst [vmem:[%s1] sm:%s19] %v18

// kernel: gatfpsst_forward.1
$region0: #{gatfpsst_forward.1}
  #allocation0 [shape = 'u32[]', space=smem, size = 0x4, offset = 0x4, fixed_abs, tag = 'smem constant byte address 0x4 - core index']
  #allocation1 [shape = 'u32[144,128]{1,0:T(1,128)}', space=vmem, size = 0x12000, scoped, tag = 'internal scratch']
  %s0 = inlined_call_operand.vmem [shape: f32[16,128], index: 0, kind: input, shape index: {}]
  %s1 = inlined_call_operand.hbm [shape: f32[16,16], index: 1, kind: input, shape index: {}]
  %s2 = inlined_call_operand.vmem [shape: f32[8,16], index: 2, kind: input, shape index: {}]
  %s3 = inlined_call_operand.hbm [shape: f32[8,16], index: 3, kind: input, shape index: {}]
  %s4 = inlined_call_operand.vmem [shape: f32[16,8], index: 4, kind: input, shape index: {}]
  %s5 = inlined_call_operand.hbm [shape: bf16[128,128], index: 5, kind: input, shape index: {}]
  %s6 = inlined_call_operand.vmem [shape: bf16[4,128], index: 6, kind: input, shape index: {}]
  %s7 = inlined_call_operand.vmem [shape: bf16[128,4], index: 7, kind: input, shape index: {}]
  %s8 = inlined_call_operand.vmem [shape: f32[1,128], index: 8, kind: input, shape index: {}]
  %s9 = inlined_call_operand.hbm [shape: f32[4,1,128], index: 9, kind: input, shape index: {}]
  %s10 = inlined_call_operand.hbm [shape: f32[4,1,128], index: 10, kind: input, shape index: {}]
  %s11 = inlined_call_operand.vmem [shape: bf16[6,128,128], index: 11, kind: input, shape index: {}]
  %s12 = inlined_call_operand.hbm [shape: bf16[6,128,256], index: 12, kind: input, shape index: {}]
  %s13 = inlined_call_operand.hbm [shape: bf16[6,128,128], index: 13, kind: input, shape index: {}]
  %s14 = inlined_call_operand.hbm [shape: f32[6,1,256], index: 14, kind: input, shape index: {}]
  %s15 = inlined_call_operand.vmem [shape: f32[6,6,1,128], index: 15, kind: input, shape index: {}]
  %s16 = inlined_call_operand.hbm [shape: bf16[128,128], index: 16, kind: input, shape index: {}]
  %s17 = inlined_call_operand.hbm [shape: f32[1,128], index: 17, kind: input, shape index: {}]
  %s18 = inlined_call_operand.vmem [shape: f32[16,128], index: 18, kind: output, shape index: {}]
  %s19 = sld [smem:[#allocation0]]
  $region122: #{gatfpsst_forward.1} parent=0
    _
  %s21 = ssub.s32 1, %s19
  %s22 = scalar_select 0, %s21, %s19
  $region1: #{gatfpsst_forward.1} parent=0
    #allocation2 [shape = 'u8[8192]{0}', space=vmem, size = 0x2000, scoped, tag = 'input window, operand 1, single buffered']
    #allocation3 [shape = 's32[1]{0}', space=sflag, size = 0x4, scoped, tag = 'scoped memory for gatfpsst_forward.1']
    #allocation4 [shape = 'u8[4096]{0}', space=vmem, size = 0x1000, scoped, tag = 'input window, operand 3, single buffered']
    #allocation5 [shape = 's32[1]{0}', space=sflag, size = 0x4, scoped, tag = 'scoped memory for gatfpsst_forward.1']
    #allocation6 [shape = 'u8[32768]{0}', space=vmem, size = 0x8000, scoped, tag = 'input window, operand 5, single buffered']
    #allocation7 [shape = 'u8[2048]{0}', space=vmem, size = 0x800, scoped, tag = 'input window, operand 9, single buffered']
    #allocation8 [shape = 's32[1]{0}', space=sflag, size = 0x4, scoped, tag = 'scoped memory for gatfpsst_forward.1']
    #allocation9 [shape = 'u8[2048]{0}', space=vmem, size = 0x800, scoped, tag = 'input window, operand 10, single buffered']
    #allocation10 [shape = 'u8[393216]{0}', space=vmem, size = 0x60000, scoped, tag = 'input window, operand 12, single buffered']
    #allocation11 [shape = 's32[1]{0}', space=sflag, size = 0x4, scoped, tag = 'scoped memory for gatfpsst_forward.1']
    #allocation12 [shape = 'u8[196608]{0}', space=vmem, size = 0x30000, scoped, tag = 'input window, operand 13, single buffered']
    #allocation13 [shape = 'u8[6144]{0}', space=vmem, size = 0x1800, scoped, tag = 'input window, operand 14, single buffered']
    #allocation14 [shape = 's32[1]{0}', space=sflag, size = 0x4, scoped, tag = 'scoped memory for gatfpsst_forward.1']
    #allocation15 [shape = 'u8[32768]{0}', space=vmem, size = 0x8000, scoped, tag = 'input window, operand 16, single buffered']
    #allocation16 [shape = 'u8[512]{0}', space=vmem, size = 0x400, scoped, tag = 'input window, operand 17, single buffered']
    #allocation17 [shape = 's32[1]{0}', space=sflag, size = 0x4, scoped, tag = 'scoped memory for gatfpsst_forward.1']
    %23 = vsyncpa [#allocation3], 0
    %24 = vsyncpa [#allocation5], 0
    %25 = vsyncpa [#allocation8], 0
    %26 = vsyncpa [#allocation11], 0
    %27 = vsyncpa [#allocation14], 0
    %28 = vsyncpa [#allocation17], 0
    // Predicated region
    $region2: #{gatfpsst_forward.1} parent=1 // pred_check
      _
    $region3: #{gatfpsst_forward.1} parent=1 // pred_check_branch
      %30 = sbr.rel (0) target = $region5
    $region4: #{gatfpsst_forward.1} parent=1 // pred_region
      _
    $region5: #{gatfpsst_forward.1} parent=1 // pred_fallthru
      _
    // Predicated region
    $region6: #{gatfpsst_forward.1} parent=1 // pred_check
      _
    $region7: #{gatfpsst_forward.1} parent=1 // pred_check_branch
      %32 = sbr.rel (0) target = $region9
    $region8: #{gatfpsst_forward.1} parent=1 // pred_region
      %s34 = ssub.s32 256, 256
      %35 = vsyncadd [#allocation3], %s34
      %s36 = sshll.u32 [#allocation2], 4
      %s37 = int_to_ptr.vmem [resolvable:$true] %s36
      %42 = dma.hbm_to_vmem [thread:$0]  %s1, 256, %s37, [#allocation3], 128, 128, 8
    $region9: #{gatfpsst_forward.1} parent=1 // pred_fallthru
      _
    // Predicated region
    $region10: #{gatfpsst_forward.1} parent=1 // pred_check
      _
    $region11: #{gatfpsst_forward.1} parent=1 // pred_check_branch
      %44 = sbr.rel (0) target = $region13
    $region12: #{gatfpsst_forward.1} parent=1 // pred_region
      _
    $region13: #{gatfpsst_forward.1} parent=1 // pred_fallthru
      _
    // Predicated region
    $region14: #{gatfpsst_forward.1} parent=1 // pred_check
      _
    $region15: #{gatfpsst_forward.1} parent=1 // pred_check_branch
      %46 = sbr.rel (0) target = $region17
    $region16: #{gatfpsst_forward.1} parent=1 // pred_region
      %s48 = ssub.s32 128, 128
      %49 = vsyncadd [#allocation5], %s48
      %s51 = sshll.u32 [#allocation4], 4
      %s52 = int_to_ptr.vmem [resolvable:$true] %s51
      %54 = dma.hbm_to_vmem [thread:$0]  %s3, 128, %s52, [#allocation5]
    $region17: #{gatfpsst_forward.1} parent=1 // pred_fallthru
      _
    // Predicated region
    $region18: #{gatfpsst_forward.1} parent=1 // pred_check
      _
    $region19: #{gatfpsst_forward.1} parent=1 // pred_check_branch
      %56 = sbr.rel (0) target = $region21
    $region20: #{gatfpsst_forward.1} parent=1 // pred_region
      _
    $region21: #{gatfpsst_forward.1} parent=1 // pred_fallthru
      _
    // Predicated region
    $region22: #{gatfpsst_forward.1} parent=1 // pred_check
      _
    $region23: #{gatfpsst_forward.1} parent=1 // pred_check_branch
      %58 = sbr.rel (0) target = $region25
    $region24: #{gatfpsst_forward.1} parent=1 // pred_region
      %s60 = ssub.s32 1024, 1024
      %61 = vsyncadd [#allocation5], %s60
      %s62 = sshll.u32 [#allocation6], 4
      %s63 = int_to_ptr.vmem [resolvable:$true] %s62
      %68 = dma.hbm_to_vmem [thread:$0]  %s5, 1024, %s63, [#allocation5], 64, 64, 4
    $region25: #{gatfpsst_forward.1} parent=1 // pred_fallthru
      _
    // Predicated region
    $region26: #{gatfpsst_forward.1} parent=1 // pred_check
      _
    $region27: #{gatfpsst_forward.1} parent=1 // pred_check_branch
      %70 = sbr.rel (0) target = $region29
    $region28: #{gatfpsst_forward.1} parent=1 // pred_region
      _
    $region29: #{gatfpsst_forward.1} parent=1 // pred_fallthru
      _
    // Predicated region
    $region30: #{gatfpsst_forward.1} parent=1 // pred_check
      _
    $region31: #{gatfpsst_forward.1} parent=1 // pred_check_branch
      %72 = sbr.rel (0) target = $region33
    $region32: #{gatfpsst_forward.1} parent=1 // pred_region
      _
    $region33: #{gatfpsst_forward.1} parent=1 // pred_fallthru
      _
    // Predicated region
    $region34: #{gatfpsst_forward.1} parent=1 // pred_check
      _
    $region35: #{gatfpsst_forward.1} parent=1 // pred_check_branch
      %74 = sbr.rel (0) target = $region37
    $region36: #{gatfpsst_forward.1} parent=1 // pred_region
      _
    $region37: #{gatfpsst_forward.1} parent=1 // pred_fallthru
      _
    // Predicated region
    $region38: #{gatfpsst_forward.1} parent=1 // pred_check
      _
    $region39: #{gatfpsst_forward.1} parent=1 // pred_check_branch
      %76 = sbr.rel (0) target = $region41
    $region40: #{gatfpsst_forward.1} parent=1 // pred_region
      %s78 = ssub.s32 64, 64
      %79 = vsyncadd [#allocation8], %s78
      %s80 = sshll.u32 [#allocation7], 4
      %s81 = int_to_ptr.vmem [resolvable:$true] %s80
      %86 = dma.hbm_to_vmem [thread:$0]  %s9, 64, %s81, [#allocation8], 16, 16, 1
    $region41: #{gatfpsst_forward.1} parent=1 // pred_fallthru
      _
    // Predicated region
    $region42: #{gatfpsst_forward.1} parent=1 // pred_check
      _
    $region43: #{gatfpsst_forward.1} parent=1 // pred_check_branch
      %88 = sbr.rel (0) target = $region45
    $region44: #{gatfpsst_forward.1} parent=1 // pred_region
      %s90 = ssub.s32 64, 64
      %91 = vsyncadd [#allocation8], %s90
      %s92 = sshll.u32 [#allocation9], 4
      %s93 = int_to_ptr.vmem [resolvable:$true] %s92
      %98 = dma.hbm_to_vmem [thread:$0]  %s10, 64, %s93, [#allocation8], 16, 16, 1
    $region45: #{gatfpsst_forward.1} parent=1 // pred_fallthru
      _
    // Predicated region
    $region46: #{gatfpsst_forward.1} parent=1 // pred_check
      _
    $region47: #{gatfpsst_forward.1} parent=1 // pred_check_branch
      %100 = sbr.rel (0) target = $region49
    $region48: #{gatfpsst_forward.1} parent=1 // pred_region
      _
    $region49: #{gatfpsst_forward.1} parent=1 // pred_fallthru
      _
    // Predicated region
    $region50: #{gatfpsst_forward.1} parent=1 // pred_check
      _
    $region51: #{gatfpsst_forward.1} parent=1 // pred_check_branch
      %102 = sbr.rel (0) target = $region53
    $region52: #{gatfpsst_forward.1} parent=1 // pred_region
      %s104 = ssub.s32 12288, 12288
      %105 = vsyncadd [#allocation11], %s104
      %s106 = sshll.u32 [#allocation10], 4
      %s107 = int_to_ptr.vmem [resolvable:$true] %s106
      %112 = dma.hbm_to_vmem [thread:$0]  %s12, 12288, %s107, [#allocation11], 128, 128, 8
    $region53: #{gatfpsst_forward.1} parent=1 // pred_fallthru
      _
    // Predicated region
    $region54: #{gatfpsst_forward.1} parent=1 // pred_check
      _
    $region55: #{gatfpsst_forward.1} parent=1 // pred_check_branch
      %114 = sbr.rel (0) target = $region57
    $region56: #{gatfpsst_forward.1} parent=1 // pred_region
      %s116 = ssub.s32 6144, 6144
      %117 = vsyncadd [#allocation11], %s116
      %s118 = sshll.u32 [#allocation12], 4
      %s119 = int_to_ptr.vmem [resolvable:$true] %s118
      %124 = dma.hbm_to_vmem [thread:$0]  %s13, 6144, %s119, [#allocation11], 64, 64, 4
    $region57: #{gatfpsst_forward.1} parent=1 // pred_fallthru
      _
    // Predicated region
    $region58: #{gatfpsst_forward.1} parent=1 // pred_check
      _
    $region59: #{gatfpsst_forward.1} parent=1 // pred_check_branch
      %126 = sbr.rel (0) target = $region61
    $region60: #{gatfpsst_forward.1} parent=1 // pred_region
      %s128 = ssub.s32 192, 192
      %129 = vsyncadd [#allocation14], %s128
      %s130 = sshll.u32 [#allocation13], 4
      %s131 = int_to_ptr.vmem [resolvable:$true] %s130
      %136 = dma.hbm_to_vmem [thread:$0]  %s14, 192, %s131, [#allocation14], 32, 32, 2
    $region61: #{gatfpsst_forward.1} parent=1 // pred_fallthru
      _
    // Predicated region
    $region62: #{gatfpsst_forward.1} parent=1 // pred_check
      _
    $region63: #{gatfpsst_forward.1} parent=1 // pred_check_branch
      %138 = sbr.rel (0) target = $region65
    $region64: #{gatfpsst_forward.1} parent=1 // pred_region
      _
    $region65: #{gatfpsst_forward.1} parent=1 // pred_fallthru
      _
    // Predicated region
    $region66: #{gatfpsst_forward.1} parent=1 // pred_check
      _
    $region67: #{gatfpsst_forward.1} parent=1 // pred_check_branch
      %140 = sbr.rel (0) target = $region69
    $region68: #{gatfpsst_forward.1} parent=1 // pred_region
      %s142 = ssub.s32 1024, 1024
      %143 = vsyncadd [#allocation14], %s142
      %s144 = sshll.u32 [#allocation15], 4
      %s145 = int_to_ptr.vmem [resolvable:$true] %s144
      %150 = dma.hbm_to_vmem [thread:$0]  %s16, 1024, %s145, [#allocation14], 64, 64, 4
    $region69: #{gatfpsst_forward.1} parent=1 // pred_fallthru
      _
    // Predicated region
    $region70: #{gatfpsst_forward.1} parent=1 // pred_check
      _
    $region71: #{gatfpsst_forward.1} parent=1 // pred_check_branch
      %152 = sbr.rel (0) target = $region73
    $region72: #{gatfpsst_forward.1} parent=1 // pred_region
      %s154 = ssub.s32 16, 16
      %155 = vsyncadd [#allocation17], %s154
      %s157 = sshll.u32 [#allocation16], 4
      %s158 = int_to_ptr.vmem [resolvable:$true] %s157
      %160 = dma.hbm_to_vmem [thread:$0]  %s17, 16, %s158, [#allocation17]
    $region73: #{gatfpsst_forward.1} parent=1 // pred_fallthru
      _
    // Predicated region
    $region74: #{gatfpsst_forward.1} parent=1 // pred_check
      _
    $region75: #{gatfpsst_forward.1} parent=1 // pred_check_branch
      %162 = sbr.rel (0) target = $region77
    $region76: #{gatfpsst_forward.1} parent=1 // pred_region
      %163 = dma.done [#allocation3], 256
    $region77: #{gatfpsst_forward.1} parent=1 // pred_fallthru
      _
    // Predicated region
    $region78: #{gatfpsst_forward.1} parent=1 // pred_check
      _
    $region79: #{gatfpsst_forward.1} parent=1 // pred_check_branch
      %165 = sbr.rel (0) target = $region81
    $region80: #{gatfpsst_forward.1} parent=1 // pred_region
      %166 = dma.done [#allocation5], 128
    $region81: #{gatfpsst_forward.1} parent=1 // pred_fallthru
      _
    // Predicated region
    $region82: #{gatfpsst_forward.1} parent=1 // pred_check
      _
    $region83: #{gatfpsst_forward.1} parent=1 // pred_check_branch
      %168 = sbr.rel (0) target = $region85
    $region84: #{gatfpsst_forward.1} parent=1 // pred_region
      %169 = dma.done [#allocation5], 1024
    $region85: #{gatfpsst_forward.1} parent=1 // pred_fallthru
      _
    // Predicated region
    $region86: #{gatfpsst_forward.1} parent=1 // pred_check
      _
    $region87: #{gatfpsst_forward.1} parent=1 // pred_check_branch
      %171 = sbr.rel (0) target = $region89
    $region88: #{gatfpsst_forward.1} parent=1 // pred_region
      %172 = dma.done [#allocation8], 64
    $region89: #{gatfpsst_forward.1} parent=1 // pred_fallthru
      _
    // Predicated region
    $region90: #{gatfpsst_forward.1} parent=1 // pred_check
      _
    $region91: #{gatfpsst_forward.1} parent=1 // pred_check_branch
      %174 = sbr.rel (0) target = $region93
    $region92: #{gatfpsst_forward.1} parent=1 // pred_region
      %175 = dma.done [#allocation8], 64
    $region93: #{gatfpsst_forward.1} parent=1 // pred_fallthru
      _
    // Predicated region
    $region94: #{gatfpsst_forward.1} parent=1 // pred_check
      _
    $region95: #{gatfpsst_forward.1} parent=1 // pred_check_branch
      %177 = sbr.rel (0) target = $region97
    $region96: #{gatfpsst_forward.1} parent=1 // pred_region
      %178 = dma.done [#allocation11], 12288
    $region97: #{gatfpsst_forward.1} parent=1 // pred_fallthru
      _
    // Predicated region
    $region98: #{gatfpsst_forward.1} parent=1 // pred_check
      _
    $region99: #{gatfpsst_forward.1} parent=1 // pred_check_branch
      %180 = sbr.rel (0) target = $region101
    $region100: #{gatfpsst_forward.1} parent=1 // pred_region
      %181 = dma.done [#allocation11], 6144
    $region101: #{gatfpsst_forward.1} parent=1 // pred_fallthru
      _
    // Predicated region
    $region102: #{gatfpsst_forward.1} parent=1 // pred_check
      _
    $region103: #{gatfpsst_forward.1} parent=1 // pred_check_branch
      %183 = sbr.rel (0) target = $region105
    $region104: #{gatfpsst_forward.1} parent=1 // pred_region
      %184 = dma.done [#allocation14], 192
    $region105: #{gatfpsst_forward.1} parent=1 // pred_fallthru
      _
    // Predicated region
    $region106: #{gatfpsst_forward.1} parent=1 // pred_check
      _
    $region107: #{gatfpsst_forward.1} parent=1 // pred_check_branch
      %186 = sbr.rel (0) target = $region109
    $region108: #{gatfpsst_forward.1} parent=1 // pred_region
      %187 = dma.done [#allocation14], 1024
    $region109: #{gatfpsst_forward.1} parent=1 // pred_fallthru
      _
    // Predicated region
    $region110: #{gatfpsst_forward.1} parent=1 // pred_check
      _
    $region111: #{gatfpsst_forward.1} parent=1 // pred_check_branch
      %189 = sbr.rel (0) target = $region113
    $region112: #{gatfpsst_forward.1} parent=1 // pred_region
      %190 = dma.done [#allocation17], 16
    $region113: #{gatfpsst_forward.1} parent=1 // pred_fallthru
      _
    %v192 = vld [vmem:[#allocation7] sm:$0x1]
    %s193 = scalar_lea.vmem [#allocation7], 1
    %v194 = vld [vmem:[%s193] sm:$0x1]
    %s195 = scalar_lea.vmem [#allocation7], 2
    %v196 = vld [vmem:[%s195] sm:$0x1]
    %s197 = scalar_lea.vmem [#allocation7], 3
    %v198 = vld [vmem:[%s197] sm:$0x1]
    %v199 = vld [vmem:[#allocation9] sm:$0x1]
    %s200 = scalar_lea.vmem [#allocation9], 1
    %v201 = vld [vmem:[%s200] sm:$0x1]
    %s202 = scalar_lea.vmem [#allocation9], 2
    %v203 = vld [vmem:[%s202] sm:$0x1]
    %s204 = scalar_lea.vmem [#allocation9], 3
    %v205 = vld [vmem:[%s204] sm:$0x1]
    %v206 = vadd.f32 %v199, %v201
    %v207 = vadd.f32 %v206, %v203
    %v208 = vadd.f32 %v207, %v205
    %v209 = vld [vmem:[%s0] sm:$0xff]
    %v210 = vld [vmem:[%s0 + $0x8] sm:$0xff]
    %v211 = vpack.c.bf16 %v210, %v209
    %v212 = vld [vmem:[#allocation6] sm:$0xf]
    %v213 = vld [vmem:[#allocation6 + $0x4] sm:$0xf]
    %v214 = vld [vmem:[#allocation6 + $0x8] sm:$0xf]
    %v215 = vld [vmem:[#allocation6 + $0xc] sm:$0xf]
    %v216 = vld [vmem:[#allocation6 + $0x10] sm:$0xf]
    %v217 = vld [vmem:[#allocation6 + $0x14] sm:$0xf]
    %v218 = vld [vmem:[#allocation6 + $0x18] sm:$0xf]
    %v219 = vld [vmem:[#allocation6 + $0x1c] sm:$0xf]
    %v220 = vld [vmem:[#allocation6 + $0x20] sm:$0xf]
    %v221 = vld [vmem:[#allocation6 + $0x24] sm:$0xf]
    %v222 = vld [vmem:[#allocation6 + $0x28] sm:$0xf]
    %v223 = vld [vmem:[#allocation6 + $0x2c] sm:$0xf]
    %v224 = vld [vmem:[#allocation6 + $0x30] sm:$0xf]
    %v225 = vld [vmem:[#allocation6 + $0x34] sm:$0xf]
    %v226 = vld [vmem:[#allocation6 + $0x38] sm:$0xf]
    %v227 = vld [vmem:[#allocation6 + $0x3c] sm:$0xf]
    %v244 = vunpack.c.l.b16 %v212
    %v245 = vunpack.c.l.b16 %v213
    %v246 = vunpack.c.l.b16 %v214
    %v247 = vunpack.c.l.b16 %v215
    %v248 = vunpack.c.l.b16 %v216
    %v249 = vunpack.c.l.b16 %v217
    %v250 = vunpack.c.l.b16 %v218
    %v251 = vunpack.c.l.b16 %v219
    %v252 = vunpack.c.l.b16 %v220
    %v253 = vunpack.c.l.b16 %v221
    %v254 = vunpack.c.l.b16 %v222
    %v255 = vunpack.c.l.b16 %v223
    %v256 = vunpack.c.l.b16 %v224
    %v257 = vunpack.c.l.b16 %v225
    %v258 = vunpack.c.l.b16 %v226
    %v259 = vunpack.c.l.b16 %v227
    %v260 = vpack.c.b16 %v245, %v244
    %v261 = vpack.c.b16 %v247, %v246
    %v262 = vpack.c.b16 %v249, %v248
    %v263 = vpack.c.b16 %v251, %v250
    %v264 = vpack.c.b16 %v253, %v252
    %v265 = vpack.c.b16 %v255, %v254
    %v266 = vpack.c.b16 %v257, %v256
    %v267 = vpack.c.b16 %v259, %v258
    %276 = vmatprep.subr.bf16.mxu0 0
    %277 = vmatpush1.bf16.msra.mxu0 %v260
    %278 = vmatprep.subr.bf16.mxu0 0
    %279 = vmatpush1.bf16.msra.mxu0 %v261
    %280 = vmatprep.subr.bf16.mxu0 0
    %281 = vmatpush1.bf16.msra.mxu0 %v262
    %282 = vmatprep.subr.bf16.mxu0 0
    %283 = vmatpush1.bf16.msra.mxu0 %v263
    %284 = vmatprep.subr.bf16.mxu0 0
    %285 = vmatpush1.bf16.msra.mxu0 %v264
    %286 = vmatprep.subr.bf16.mxu0 0
    %287 = vmatpush1.bf16.msra.mxu0 %v265
    %288 = vmatprep.subr.bf16.mxu0 0
    %289 = vmatpush1.bf16.msra.mxu0 %v266
    %290 = vmatprep.subr.bf16.mxu0 0
    %291 = vmatpush1.bf16.msra.mxu0 %v267
    %292 = vmatprep.subr.bf16.mxu0 0
    %293 = vmatpush1.bf16.msra.mxu0 0
    %294 = vmatprep.subr.bf16.mxu0 0
    %295 = vmatpush1.bf16.msra.mxu0 0
    %296 = vmatprep.subr.bf16.mxu0 0
    %297 = vmatpush1.bf16.msra.mxu0 0
    %298 = vmatprep.subr.bf16.mxu0 0
    %299 = vmatpush1.bf16.msra.mxu0 0
    %300 = vmatprep.subr.bf16.mxu0 0
    %301 = vmatpush1.bf16.msra.mxu0 0
    %302 = vmatprep.subr.bf16.mxu0 0
    %303 = vmatpush1.bf16.msra.mxu0 0
    %304 = vmatprep.subr.bf16.mxu0 0
    %305 = vmatpush1.bf16.msra.mxu0 0
    %306 = vmatprep.subr.bf16.mxu0 0
    %307 = vmatpush1.bf16.msra.mxu0 0
    %308 = vmatprep.mubr.bf16.mxu0 0
    %309 = vmatmul.mubr.bf16.gmra.mrb[0].mxu0 %v211
    %v310 = vpop.f32.mrb[0].mxu0
    %v311 = vadd.f32 0.0, %v310
    %v312 = vpop.f32.mrb[0].mxu0
    %v313 = vpop.f32.mrb[0].mxu0
    %v314 = vadd.f32 0.0, %v313
    %v315 = vpop.f32.mrb[0].mxu0
    %316 = vdwg.mxu0
    %v317 = vpack.c.bf16 %v314, %v311
    %v318 = vld [vmem:[%s6] sm:$0x3]
    %319 = vmatprep.subr.bf16.mxu0 0
    %320 = vmatpush1.bf16.xpose.msra.mxu0 %v317
    %321 = vmatprep.subr.bf16.mxu0 0
    %322 = vmatpush1.bf16.xpose.msra.mxu0 0
    %323 = vmatprep.subr.bf16.mxu0 0
    %324 = vmatpush1.bf16.xpose.msra.mxu0 0
    %325 = vmatprep.subr.bf16.mxu0 0
    %326 = vmatpush1.bf16.xpose.msra.mxu0 0
    %327 = vmatprep.subr.bf16.mxu0 0
    %328 = vmatpush1.bf16.xpose.msra.mxu0 0
    %329 = vmatprep.subr.bf16.mxu0 0
    %330 = vmatpush1.bf16.xpose.msra.mxu0 0
    %331 = vmatprep.subr.bf16.mxu0 0
    %332 = vmatpush1.bf16.xpose.msra.mxu0 0
    %333 = vmatprep.subr.bf16.mxu0 0
    %334 = vmatpush1.bf16.xpose.msra.mxu0 0
    %335 = vmatprep.subr.bf16.mxu0 0
    %336 = vmatpush1.bf16.xpose.msra.mxu0 0
    %337 = vmatprep.subr.bf16.mxu0 0
    %338 = vmatpush1.bf16.xpose.msra.mxu0 0
    %339 = vmatprep.subr.bf16.mxu0 0
    %340 = vmatpush1.bf16.xpose.msra.mxu0 0
    %341 = vmatprep.subr.bf16.mxu0 0
    %342 = vmatpush1.bf16.xpose.msra.mxu0 0
    %343 = vmatprep.subr.bf16.mxu0 0
    %344 = vmatpush1.bf16.xpose.msra.mxu0 0
    %345 = vmatprep.subr.bf16.mxu0 0
    %346 = vmatpush1.bf16.xpose.msra.mxu0 0
    %347 = vmatprep.subr.bf16.mxu0 0
    %348 = vmatpush1.bf16.xpose.msra.mxu0 0
    %349 = vmatprep.subr.bf16.mxu0 0
    %350 = vmatpush1.bf16.xpose.msra.mxu0 0
    %351 = vmatprep.mubr.bf16.mxu0 0
    %352 = vmatmul.mubr.bf16.gmra.mrb[0].mxu0 %v318
    %v353 = vpop.f32.mrb[0].mxu0
    %v354 = vadd.f32 0.0, %v353
    %v355 = vpop.f32.mrb[0].mxu0
    %v356 = vpop.f32.mrb[0].mxu0
    %v357 = vpop.f32.mrb[0].mxu0
    %358 = vdwg.mxu0
    %v359 = vld [vmem:[%s7] sm:$0xf]
    %v360 = vld [vmem:[%s7 + $0x4] sm:$0xf]
    %v361 = vld [vmem:[%s7 + $0x8] sm:$0xf]
    %v362 = vld [vmem:[%s7 + $0xc] sm:$0xf]
    %v363 = vld [vmem:[%s7 + $0x10] sm:$0xf]
    %v364 = vld [vmem:[%s7 + $0x14] sm:$0xf]
    %v365 = vld [vmem:[%s7 + $0x18] sm:$0xf]
    %v366 = vld [vmem:[%s7 + $0x1c] sm:$0xf]
    %v367 = vld [vmem:[%s7 + $0x20] sm:$0xf]
    %v368 = vld [vmem:[%s7 + $0x24] sm:$0xf]
    %v369 = vld [vmem:[%s7 + $0x28] sm:$0xf]
    %v370 = vld [vmem:[%s7 + $0x2c] sm:$0xf]
    %v371 = vld [vmem:[%s7 + $0x30] sm:$0xf]
    %v372 = vld [vmem:[%s7 + $0x34] sm:$0xf]
    %v373 = vld [vmem:[%s7 + $0x38] sm:$0xf]
    %v374 = vld [vmem:[%s7 + $0x3c] sm:$0xf]
    %v391 = vunpack.c.l.b16 %v359
    %v392 = vunpack.c.l.b16 %v360
    %v393 = vunpack.c.l.b16 %v361
    %v394 = vunpack.c.l.b16 %v362
    %v395 = vunpack.c.l.b16 %v363
    %v396 = vunpack.c.l.b16 %v364
    %v397 = vunpack.c.l.b16 %v365
    %v398 = vunpack.c.l.b16 %v366
    %v399 = vunpack.c.l.b16 %v367
    %v400 = vunpack.c.l.b16 %v368
    %v401 = vunpack.c.l.b16 %v369
    %v402 = vunpack.c.l.b16 %v370
    %v403 = vunpack.c.l.b16 %v371
    %v404 = vunpack.c.l.b16 %v372
    %v405 = vunpack.c.l.b16 %v373
    %v406 = vunpack.c.l.b16 %v374
    %v407 = vpack.c.b16 %v392, %v391
    %v408 = vpack.c.b16 %v394, %v393
    %v409 = vpack.c.b16 %v396, %v395
    %v410 = vpack.c.b16 %v398, %v397
    %v411 = vpack.c.b16 %v400, %v399
    %v412 = vpack.c.b16 %v402, %v401
    %v413 = vpack.c.b16 %v404, %v403
    %v414 = vpack.c.b16 %v406, %v405
    %423 = vmatprep.subr.bf16.mxu0 0
    %424 = vmatpush1.bf16.msra.mxu0 %v407
    %425 = vmatprep.subr.bf16.mxu0 0
    %426 = vmatpush1.bf16.msra.mxu0 %v408
    %427 = vmatprep.subr.bf16.mxu0 0
    %428 = vmatpush1.bf16.msra.mxu0 %v409
    %429 = vmatprep.subr.bf16.mxu0 0
    %430 = vmatpush1.bf16.msra.mxu0 %v410
    %431 = vmatprep.subr.bf16.mxu0 0
    %432 = vmatpush1.bf16.msra.mxu0 %v411
    %433 = vmatprep.subr.bf16.mxu0 0
    %434 = vmatpush1.bf16.msra.mxu0 %v412
    %435 = vmatprep.subr.bf16.mxu0 0
    %436 = vmatpush1.bf16.msra.mxu0 %v413
    %437 = vmatprep.subr.bf16.mxu0 0
    %438 = vmatpush1.bf16.msra.mxu0 %v414
    %439 = vmatprep.subr.bf16.mxu0 0
    %440 = vmatpush1.bf16.msra.mxu0 0
    %441 = vmatprep.subr.bf16.mxu0 0
    %442 = vmatpush1.bf16.msra.mxu0 0
    %443 = vmatprep.subr.bf16.mxu0 0
    %444 = vmatpush1.bf16.msra.mxu0 0
    %445 = vmatprep.subr.bf16.mxu0 0
    %446 = vmatpush1.bf16.msra.mxu0 0
    %447 = vmatprep.subr.bf16.mxu0 0
    %448 = vmatpush1.bf16.msra.mxu0 0
    %449 = vmatprep.subr.bf16.mxu0 0
    %450 = vmatpush1.bf16.msra.mxu0 0
    %451 = vmatprep.subr.bf16.mxu0 0
    %452 = vmatpush1.bf16.msra.mxu0 0
    %453 = vmatprep.subr.bf16.mxu0 0
    %454 = vmatpush1.bf16.msra.mxu0 0
    %455 = vmatprep.mubr.bf16.mxu0 0
    %456 = vmatmul.mubr.bf16.gmra.mrb[0].mxu0 %v317
    %v457 = vpop.f32.mrb[0].mxu0
    %v458 = vadd.f32 0.0, %v457
    %v459 = vpop.f32.mrb[0].mxu0
    %v460 = vpop.f32.mrb[0].mxu0
    %v461 = vadd.f32 0.0, %v460
    %v462 = vpop.f32.mrb[0].mxu0
    %463 = vdwg.mxu0
    %465 = vset.pattern.permute.xlu0 0
    %466 = vperm.xlu0 %465, %v458
    %v467 = vpop.permute.xlu0 %466
    %470 = vset.pattern.permute.xlu0 0
    %471 = vperm.xlu0 %470, %v461
    %v472 = vpop.permute.xlu0 %471
    %v474 = vlaneseq
    %v475 = vshrl.u32 %v474, 7
    %v476 = vsub.s32 0, %v475
    %v477 = vrot.slane %v354, %v476
    %v478 = vadd.f32 %v467, %v477
    %v479 = vadd.f32 %v472, %v477
    %480 = vset.pattern.permute.xlu0 1
    %481 = vperm.xlu0 %480, %v458
    %v482 = vpop.permute.xlu0 %481
    %484 = vset.pattern.permute.xlu0 1
    %485 = vperm.xlu0 %484, %v461
    %v486 = vpop.permute.xlu0 %485
    %v488 = vlaneseq
    %v489 = vshrl.u32 %v488, 7
    %v490 = vsub.s32 1, %v489
    %v491 = vrot.slane %v354, %v490
    %v492 = vadd.f32 %v482, %v491
    %v493 = vadd.f32 %v486, %v491
    %494 = vset.pattern.permute.xlu0 2
    %495 = vperm.xlu0 %494, %v458
    %v496 = vpop.permute.xlu0 %495
    %498 = vset.pattern.permute.xlu0 2
    %499 = vperm.xlu0 %498, %v461
    %v500 = vpop.permute.xlu0 %499
    %v502 = vlaneseq
    %v503 = vshrl.u32 %v502, 7
    %v504 = vsub.s32 2, %v503
    %v505 = vrot.slane %v354, %v504
    %v506 = vadd.f32 %v496, %v505
    %v507 = vadd.f32 %v500, %v505
    %508 = vset.pattern.permute.xlu0 3
    %509 = vperm.xlu0 %508, %v458
    %v510 = vpop.permute.xlu0 %509
    %512 = vset.pattern.permute.xlu0 3
    %513 = vperm.xlu0 %512, %v461
    %v514 = vpop.permute.xlu0 %513
    %v516 = vlaneseq
    %v517 = vshrl.u32 %v516, 7
    %v518 = vsub.s32 3, %v517
    %v519 = vrot.slane %v354, %v518
    %v520 = vadd.f32 %v510, %v519
    %v521 = vadd.f32 %v514, %v519
    %vm522 = vcmp.ge.f32.partialorder %v478, 0.0
    %vm523 = vcmp.ge.f32.partialorder %v479, 0.0
    %vm524 = vcmp.ge.f32.partialorder %v492, 0.0
    %vm525 = vcmp.ge.f32.partialorder %v493, 0.0
    %vm526 = vcmp.ge.f32.partialorder %v506, 0.0
    %vm527 = vcmp.ge.f32.partialorder %v507, 0.0
    %vm528 = vcmp.ge.f32.partialorder %v520, 0.0
    %vm529 = vcmp.ge.f32.partialorder %v521, 0.0
    %v530 = vmul.f32 %v478, 0.2
    %v531 = vmul.f32 %v479, 0.2
    %v532 = vmul.f32 %v492, 0.2
    %v533 = vmul.f32 %v493, 0.2
    %v534 = vmul.f32 %v506, 0.2
    %v535 = vmul.f32 %v507, 0.2
    %v536 = vmul.f32 %v520, 0.2
    %v537 = vmul.f32 %v521, 0.2
    %v538 = vsel %vm522, %v478, %v530
    %v539 = vsel %vm523, %v479, %v531
    %v540 = vsel %vm524, %v492, %v532
    %v541 = vsel %vm525, %v493, %v533
    %v542 = vsel %vm526, %v506, %v534
    %v543 = vsel %vm527, %v507, %v535
    %v544 = vsel %vm528, %v520, %v536
    %v545 = vsel %vm529, %v521, %v537
    %v546 = vld [vmem:[#allocation2] sm:$0xff]
    %v547 = vld [vmem:[#allocation2 + $0x8] sm:$0xff]
    %vm548 = vcmp.gt.f32.partialorder %v546, 0.0
    %vm549 = vcmp.gt.f32.partialorder %v547, 0.0
    %v550 = vsel %vm548, %v538, -1e+30
    %v551 = vsel %vm549, %v539, -1e+30
    %v552 = vsel %vm548, %v540, -1e+30
    %v553 = vsel %vm549, %v541, -1e+30
    %v554 = vsel %vm548, %v542, -1e+30
    %v555 = vsel %vm549, %v543, -1e+30
    %v556 = vsel %vm548, %v544, -1e+30
    %v557 = vsel %vm549, %v545, -1e+30
    %vm558 = vcmask 130048
    %v559 = vsel %vm558, %v550, -inf
    %560 = vmax.xlane.f32.xlu0 %v559
    %v561 = vpop.xlane.xlu0 %560
    %v562 = vsel %vm558, %v551, -inf
    %563 = vmax.xlane.f32.xlu0 %v562
    %v564 = vpop.xlane.xlu0 %563
    %v565 = vsel %vm558, %v552, -inf
    %566 = vmax.xlane.f32.xlu0 %v565
    %v567 = vpop.xlane.xlu0 %566
    %v568 = vsel %vm558, %v553, -inf
    %569 = vmax.xlane.f32.xlu0 %v568
    %v570 = vpop.xlane.xlu0 %569
    %v571 = vsel %vm558, %v554, -inf
    %572 = vmax.xlane.f32.xlu0 %v571
    %v573 = vpop.xlane.xlu0 %572
    %v574 = vsel %vm558, %v555, -inf
    %575 = vmax.xlane.f32.xlu0 %v574
    %v576 = vpop.xlane.xlu0 %575
    %v577 = vsel %vm558, %v556, -inf
    %578 = vmax.xlane.f32.xlu0 %v577
    %v579 = vpop.xlane.xlu0 %578
    %v580 = vsel %vm558, %v557, -inf
    %581 = vmax.xlane.f32.xlu0 %v580
    %v582 = vpop.xlane.xlu0 %581
    %v583 = vsub.f32 %v550, %v561
    %v584 = vsub.f32 %v551, %v564
    %v585 = vsub.f32 %v552, %v567
    %v586 = vsub.f32 %v553, %v570
    %v587 = vsub.f32 %v554, %v573
    %v588 = vsub.f32 %v555, %v576
    %v589 = vsub.f32 %v556, %v579
    %v590 = vsub.f32 %v557, %v582
    %v591 = vmul.f32 %v583, 1.442695
    %v592 = vpow.pop %v591
    %v593 = vmul.f32 %v584, 1.442695
    %v594 = vpow.pop %v593
    %v595 = vmul.f32 %v585, 1.442695
    %v596 = vpow.pop %v595
    %v597 = vmul.f32 %v586, 1.442695
    %v598 = vpow.pop %v597
    %v599 = vmul.f32 %v587, 1.442695
    %v600 = vpow.pop %v599
    %v601 = vmul.f32 %v588, 1.442695
    %v602 = vpow.pop %v601
    %v603 = vmul.f32 %v589, 1.442695
    %v604 = vpow.pop %v603
    %v605 = vmul.f32 %v590, 1.442695
    %v606 = vpow.pop %v605
    %v607 = vsel %vm558, %v592, 0.0
    %608 = vadd.xlane.f32.xlu0 %v607
    %v609 = vpop.xlane.xlu0 %608
    %v610 = vsel %vm558, %v594, 0.0
    %611 = vadd.xlane.f32.xlu0 %v610
    %v612 = vpop.xlane.xlu0 %611
    %v613 = vsel %vm558, %v596, 0.0
    %614 = vadd.xlane.f32.xlu0 %v613
    %v615 = vpop.xlane.xlu0 %614
    %v616 = vsel %vm558, %v598, 0.0
    %617 = vadd.xlane.f32.xlu0 %v616
    %v618 = vpop.xlane.xlu0 %617
    %v619 = vsel %vm558, %v600, 0.0
    %620 = vadd.xlane.f32.xlu0 %v619
    %v621 = vpop.xlane.xlu0 %620
    %v622 = vsel %vm558, %v602, 0.0
    %623 = vadd.xlane.f32.xlu0 %v622
    %v624 = vpop.xlane.xlu0 %623
    %v625 = vsel %vm558, %v604, 0.0
    %626 = vadd.xlane.f32.xlu0 %v625
    %v627 = vpop.xlane.xlu0 %626
    %v628 = vsel %vm558, %v606, 0.0
    %629 = vadd.xlane.f32.xlu0 %v628
    %v630 = vpop.xlane.xlu0 %629
    %v631 = vrcp.pop %v609
    %v632 = vmul.f32 %v592, %v631
    %v633 = vrcp.pop %v612
    %v634 = vmul.f32 %v594, %v633
    %v635 = vrcp.pop %v615
    %v636 = vmul.f32 %v596, %v635
    %v637 = vrcp.pop %v618
    %v638 = vmul.f32 %v598, %v637
    %v639 = vrcp.pop %v621
    %v640 = vmul.f32 %v600, %v639
    %v641 = vrcp.pop %v624
    %v642 = vmul.f32 %v602, %v641
    %v643 = vrcp.pop %v627
    %v644 = vmul.f32 %v604, %v643
    %v645 = vrcp.pop %v630
    %v646 = vmul.f32 %v606, %v645
    %v647 = vpack.c.bf16 %v634, %v632
    %v648 = vpack.c.bf16 %v638, %v636
    %v649 = vpack.c.bf16 %v642, %v640
    %v650 = vpack.c.bf16 %v646, %v644
    %v652 = vsel %vm558, %v647, 0
    %v655 = vsel %vm558, %v648, 0
    %v658 = vsel %vm558, %v649, 0
    %v661 = vsel %vm558, %v650, 0
    %663 = vmatprep.subr.bf16.mxu0 0
    %664 = vmatpush1.bf16.msra.mxu0 %v317
    %665 = vmatprep.subr.bf16.mxu0 0
    %666 = vmatpush1.bf16.msra.mxu0 0
    %667 = vmatprep.subr.bf16.mxu0 0
    %668 = vmatpush1.bf16.msra.mxu0 0
    %669 = vmatprep.subr.bf16.mxu0 0
    %670 = vmatpush1.bf16.msra.mxu0 0
    %671 = vmatprep.subr.bf16.mxu0 0
    %672 = vmatpush1.bf16.msra.mxu0 0
    %673 = vmatprep.subr.bf16.mxu0 0
    %674 = vmatpush1.bf16.msra.mxu0 0
    %675 = vmatprep.subr.bf16.mxu0 0
    %676 = vmatpush1.bf16.msra.mxu0 0
    %677 = vmatprep.subr.bf16.mxu0 0
    %678 = vmatpush1.bf16.msra.mxu0 0
    %679 = vmatprep.subr.bf16.mxu0 0
    %680 = vmatpush1.bf16.msra.mxu0 0
    %681 = vmatprep.subr.bf16.mxu0 0
    %682 = vmatpush1.bf16.msra.mxu0 0
    %683 = vmatprep.subr.bf16.mxu0 0
    %684 = vmatpush1.bf16.msra.mxu0 0
    %685 = vmatprep.subr.bf16.mxu0 0
    %686 = vmatpush1.bf16.msra.mxu0 0
    %687 = vmatprep.subr.bf16.mxu0 0
    %688 = vmatpush1.bf16.msra.mxu0 0
    %689 = vmatprep.subr.bf16.mxu0 0
    %690 = vmatpush1.bf16.msra.mxu0 0
    %691 = vmatprep.subr.bf16.mxu0 0
    %692 = vmatpush1.bf16.msra.mxu0 0
    %693 = vmatprep.subr.bf16.mxu0 0
    %694 = vmatpush1.bf16.msra.mxu0 0
    %695 = vmatprep.mubr.bf16.mxu0 0
    %696 = vmatmul.mubr.bf16.gmra.mrb[0].mxu0 %v652
    %v697 = vpop.f32.mrb[0].mxu0
    %v698 = vadd.f32 0.0, %v697
    %v699 = vpop.f32.mrb[0].mxu0
    %v700 = vpop.f32.mrb[0].mxu0
    %v701 = vadd.f32 0.0, %v700
    %v702 = vpop.f32.mrb[0].mxu0
    %703 = vmatprep.mubr.bf16.mxu0 0
    %704 = vmatmul.mubr.bf16.gmra.mrb[0].mxu0 %v655
    %v705 = vpop.f32.mrb[0].mxu0
    %v706 = vadd.f32 0.0, %v705
    %v707 = vpop.f32.mrb[0].mxu0
    %v708 = vpop.f32.mrb[0].mxu0
    %v709 = vadd.f32 0.0, %v708
    %v710 = vpop.f32.mrb[0].mxu0
    %711 = vmatprep.mubr.bf16.mxu0 0
    %712 = vmatmul.mubr.bf16.gmra.mrb[0].mxu0 %v658
    %v713 = vpop.f32.mrb[0].mxu0
    %v714 = vadd.f32 0.0, %v713
    %v715 = vpop.f32.mrb[0].mxu0
    %v716 = vpop.f32.mrb[0].mxu0
    %v717 = vadd.f32 0.0, %v716
    %v718 = vpop.f32.mrb[0].mxu0
    %719 = vmatprep.mubr.bf16.mxu0 0
    %720 = vmatmul.mubr.bf16.gmra.mrb[0].mxu0 %v661
    %v721 = vpop.f32.mrb[0].mxu0
    %v722 = vadd.f32 0.0, %v721
    %v723 = vpop.f32.mrb[0].mxu0
    %v724 = vpop.f32.mrb[0].mxu0
    %v725 = vadd.f32 0.0, %v724
    %v726 = vpop.f32.mrb[0].mxu0
    %727 = vdwg.mxu0
    %v728 = vld [vmem:[%s8] sm:$0x1]
    %v730 = vlaneseq
    %v731 = vshrl.u32 %v730, 7
    %v732 = vsub.s32 0, %v731
    %v733 = vrot.slane %v192, %v732
    %v735 = vmul.f32 %v698, %v733
    %v736 = vmul.f32 %v701, %v733
    %v738 = vlaneseq
    %v739 = vshrl.u32 %v738, 7
    %v740 = vsub.s32 0, %v739
    %v741 = vrot.slane %v728, %v740
    %v743 = vadd.f32 %v741, %v735
    %v744 = vadd.f32 %v741, %v736
    %v746 = vlaneseq
    %v747 = vshrl.u32 %v746, 7
    %v748 = vsub.s32 0, %v747
    %v749 = vrot.slane %v194, %v748
    %v751 = vmul.f32 %v706, %v749
    %v752 = vmul.f32 %v709, %v749
    %v753 = vadd.f32 %v743, %v751
    %v754 = vadd.f32 %v744, %v752
    %v756 = vlaneseq
    %v757 = vshrl.u32 %v756, 7
    %v758 = vsub.s32 0, %v757
    %v759 = vrot.slane %v196, %v758
    %v761 = vmul.f32 %v714, %v759
    %v762 = vmul.f32 %v717, %v759
    %v763 = vadd.f32 %v753, %v761
    %v764 = vadd.f32 %v754, %v762
    %v766 = vlaneseq
    %v767 = vshrl.u32 %v766, 7
    %v768 = vsub.s32 0, %v767
    %v769 = vrot.slane %v198, %v768
    %v771 = vmul.f32 %v722, %v769
    %v772 = vmul.f32 %v725, %v769
    %v773 = vadd.f32 %v763, %v771
    %v774 = vadd.f32 %v764, %v772
    %v775 = vmul.f32 %v773, 0.5
    %v776 = vmul.f32 %v774, 0.5
    %v777 = vmul.f32 %v773, 0.70710677
    %v778 = vmul.f32 %v774, 0.70710677
    %vm779 = vcmp.ge.f32.partialorder %v777, 0.0
    %vm780 = vcmp.ge.f32.partialorder %v778, 0.0
    %v781 = vsel %vm779, 1.0, -1.0
    %v782 = vsel %vm780, 1.0, -1.0
    %v783 = vand.u32 2147483647, %v777
    %v784 = vand.u32 2147483647, %v778
    %v785 = vmul.f32 %v783, 0.3275911
    %v786 = vmul.f32 %v784, 0.3275911
    %v787 = vadd.f32 %v785, 1.0
    %v788 = vadd.f32 %v786, 1.0
    %v789 = vrcp.pop %v787
    %v790 = vmul.f32 1.0, %v789
    %v791 = vrcp.pop %v788
    %v792 = vmul.f32 1.0, %v791
    %v793 = vmul.f32 %v790, 1.0614054
    %v794 = vmul.f32 %v792, 1.0614054
    %v795 = vadd.f32 %v793, -1.4531521
    %v796 = vadd.f32 %v794, -1.4531521
    %v797 = vmul.f32 %v795, %v790
    %v798 = vmul.f32 %v796, %v792
    %v799 = vadd.f32 %v797, 1.4214138
    %v800 = vadd.f32 %v798, 1.4214138
    %v801 = vmul.f32 %v799, %v790
    %v802 = vmul.f32 %v800, %v792
    %v803 = vadd.f32 %v801, -0.28449672
    %v804 = vadd.f32 %v802, -0.28449672
    %v805 = vmul.f32 %v803, %v790
    %v806 = vmul.f32 %v804, %v792
    %v807 = vadd.f32 %v805, 0.2548296
    %v808 = vadd.f32 %v806, 0.2548296
    %v809 = vmul.f32 %v807, %v790
    %v810 = vmul.f32 %v808, %v792
    %v811 = vsub.f32 0.0, %v783
    %v812 = vsub.f32 0.0, %v784
    %v813 = vmul.f32 %v811, %v783
    %v814 = vmul.f32 %v812, %v784
    %v815 = vmul.f32 %v813, 1.442695
    %v816 = vpow.pop %v815
    %v817 = vmul.f32 %v814, 1.442695
    %v818 = vpow.pop %v817
    %v819 = vmul.f32 %v809, %v816
    %v820 = vmul.f32 %v810, %v818
    %v821 = vsub.f32 1.0, %v819
    %v822 = vsub.f32 1.0, %v820
    %v823 = vmul.f32 %v781, %v821
    %v824 = vmul.f32 %v782, %v822
    %v825 = vadd.f32 %v823, 1.0
    %v826 = vadd.f32 %v824, 1.0
    %v827 = vmul.f32 %v775, %v825
    %v828 = vmul.f32 %v776, %v826
    %v829 = vadd.f32 %v209, %v827
    %v830 = vadd.f32 %v210, %v828
    %v831 = vld [vmem:[%s2] sm:$0xff]
    %v832 = vld [vmem:[#allocation4] sm:$0xff]
    %v833 = vld [vmem:[%s4] sm:$0xff]
    %v834 = vld [vmem:[%s4 + $0x8] sm:$0xff]
    %v836 = vsel %vm558, %v831, 0
    %838 = vmatprep.subr.mxu0 0.0
    %839 = vmatpush1.msra.mxu0 %v829
    %840 = vmatprep.subr.mxu0 0.0
    %841 = vmatpush1.msra.mxu0 %v830
    %842 = vmatprep.subr.mxu0 0.0
    %843 = vmatpush1.msra.mxu0 0.0
    %844 = vmatprep.subr.mxu0 0.0
    %845 = vmatpush1.msra.mxu0 0.0
    %846 = vmatprep.subr.mxu0 0.0
    %847 = vmatpush1.msra.mxu0 0.0
    %848 = vmatprep.subr.mxu0 0.0
    %849 = vmatpush1.msra.mxu0 0.0
    %850 = vmatprep.subr.mxu0 0.0
    %851 = vmatpush1.msra.mxu0 0.0
    %852 = vmatprep.subr.mxu0 0.0
    %853 = vmatpush1.msra.mxu0 0.0
    %854 = vmatprep.subr.mxu0 0.0
    %855 = vmatpush1.msra.mxu0 0.0
    %856 = vmatprep.subr.mxu0 0.0
    %857 = vmatpush1.msra.mxu0 0.0
    %858 = vmatprep.subr.mxu0 0.0
    %859 = vmatpush1.msra.mxu0 0.0
    %860 = vmatprep.subr.mxu0 0.0
    %861 = vmatpush1.msra.mxu0 0.0
    %862 = vmatprep.subr.mxu0 0.0
    %863 = vmatpush1.msra.mxu0 0.0
    %864 = vmatprep.subr.mxu0 0.0
    %865 = vmatpush1.msra.mxu0 0.0
    %866 = vmatprep.subr.mxu0 0.0
    %867 = vmatpush1.msra.mxu0 0.0
    %868 = vmatprep.subr.mxu0 0.0
    %869 = vmatpush1.msra.mxu0 0.0
    %870 = vmatprep.subr.mxu0 0.0
    %871 = vmatpush1.msra.mxu0 0.0
    %872 = vmatprep.subr.mxu0 0.0
    %873 = vmatpush1.msra.mxu0 0.0
    %874 = vmatprep.subr.mxu0 0.0
    %875 = vmatpush1.msra.mxu0 0.0
    %876 = vmatprep.subr.mxu0 0.0
    %877 = vmatpush1.msra.mxu0 0.0
    %878 = vmatprep.subr.mxu0 0.0
    %879 = vmatpush1.msra.mxu0 0.0
    %880 = vmatprep.subr.mxu0 0.0
    %881 = vmatpush1.msra.mxu0 0.0
    %882 = vmatprep.subr.mxu0 0.0
    %883 = vmatpush1.msra.mxu0 0.0
    %884 = vmatprep.subr.mxu0 0.0
    %885 = vmatpush1.msra.mxu0 0.0
    %886 = vmatprep.subr.mxu0 0.0
    %887 = vmatpush1.msra.mxu0 0.0
    %888 = vmatprep.subr.mxu0 0.0
    %889 = vmatpush1.msra.mxu0 0.0
    %890 = vmatprep.subr.mxu0 0.0
    %891 = vmatpush1.msra.mxu0 0.0
    %892 = vmatprep.subr.mxu0 0.0
    %893 = vmatpush1.msra.mxu0 0.0
    %894 = vmatprep.subr.mxu0 0.0
    %895 = vmatpush1.msra.mxu0 0.0
    %896 = vmatprep.subr.mxu0 0.0
    %897 = vmatpush1.msra.mxu0 0.0
    %898 = vmatprep.subr.mxu0 0.0
    %899 = vmatpush1.msra.mxu0 0.0
    %900 = vmatprep.subr.mxu0 0.0
    %901 = vmatpush1.msra.mxu0 0.0
    %902 = vmatprep.mubr.f32.mxu0 0.0
    %903 = vmatmul.mubr.f32.gmra.mrb[0].mxu0 %v836
    %v904 = vpop.f32.mrb[0].mxu0
    %v905 = vadd.f32 0.0, %v904
    %v906 = vpop.f32.mrb[0].mxu0
    %907 = vdwg.mxu0
    %v908 = vld [vmem:[%s15] sm:$0x1]
    %s909 = scalar_lea.vmem %s15, 1
    %v910 = vld [vmem:[%s909] sm:$0x1]
    %s911 = scalar_lea.vmem %s15, 2
    %v912 = vld [vmem:[%s911] sm:$0x1]
    %s913 = scalar_lea.vmem %s15, 3
    %v914 = vld [vmem:[%s913] sm:$0x1]
    %s915 = scalar_lea.vmem %s15, 4
    %v916 = vld [vmem:[%s915] sm:$0x1]
    %s917 = scalar_lea.vmem %s15, 5
    %v918 = vld [vmem:[%s917] sm:$0x1]
    %v919 = vpack.c.bf16 %v905, %v905
    %v920 = vld [vmem:[%s11] sm:$0xf]
    %v921 = vld [vmem:[%s11 + $0x4] sm:$0xf]
    %v922 = vld [vmem:[%s11 + $0x8] sm:$0xf]
    %v923 = vld [vmem:[%s11 + $0xc] sm:$0xf]
    %v924 = vld [vmem:[%s11 + $0x10] sm:$0xf]
    %v925 = vld [vmem:[%s11 + $0x14] sm:$0xf]
    %v926 = vld [vmem:[%s11 + $0x18] sm:$0xf]
    %v927 = vld [vmem:[%s11 + $0x1c] sm:$0xf]
    %v928 = vld [vmem:[%s11 + $0x20] sm:$0xf]
    %v929 = vld [vmem:[%s11 + $0x24] sm:$0xf]
    %v930 = vld [vmem:[%s11 + $0x28] sm:$0xf]
    %v931 = vld [vmem:[%s11 + $0x2c] sm:$0xf]
    %v932 = vld [vmem:[%s11 + $0x30] sm:$0xf]
    %v933 = vld [vmem:[%s11 + $0x34] sm:$0xf]
    %v934 = vld [vmem:[%s11 + $0x38] sm:$0xf]
    %v935 = vld [vmem:[%s11 + $0x3c] sm:$0xf]
    %v937 = vlaneseq
    %v938 = vshrl.u32 %v937, 7
    %v939 = vsub.s32 0, %v938
    %v940 = vrot.slane %v908, %v939
    %v958 = vunpack.c.l.b16 %v920
    %v959 = vunpack.c.l.b16 %v921
    %v960 = vunpack.c.l.b16 %v922
    %v961 = vunpack.c.l.b16 %v923
    %v962 = vunpack.c.l.b16 %v924
    %v963 = vunpack.c.l.b16 %v925
    %v964 = vunpack.c.l.b16 %v926
    %v965 = vunpack.c.l.b16 %v927
    %v966 = vunpack.c.l.b16 %v928
    %v967 = vunpack.c.l.b16 %v929
    %v968 = vunpack.c.l.b16 %v930
    %v969 = vunpack.c.l.b16 %v931
    %v970 = vunpack.c.l.b16 %v932
    %v971 = vunpack.c.l.b16 %v933
    %v972 = vunpack.c.l.b16 %v934
    %v973 = vunpack.c.l.b16 %v935
    %v974 = vpack.c.b16 %v959, %v958
    %v975 = vpack.c.b16 %v961, %v960
    %v976 = vpack.c.b16 %v963, %v962
    %v977 = vpack.c.b16 %v965, %v964
    %v978 = vpack.c.b16 %v967, %v966
    %v979 = vpack.c.b16 %v969, %v968
    %v980 = vpack.c.b16 %v971, %v970
    %v981 = vpack.c.b16 %v973, %v972
    %990 = vmatprep.subr.bf16.mxu0 0
    %991 = vmatpush1.bf16.msra.mxu0 %v974
    %992 = vmatprep.subr.bf16.mxu0 0
    %993 = vmatpush1.bf16.msra.mxu0 %v975
    %994 = vmatprep.subr.bf16.mxu0 0
    %995 = vmatpush1.bf16.msra.mxu0 %v976
    %996 = vmatprep.subr.bf16.mxu0 0
    %997 = vmatpush1.bf16.msra.mxu0 %v977
    %998 = vmatprep.subr.bf16.mxu0 0
    %999 = vmatpush1.bf16.msra.mxu0 %v978
    %1000 = vmatprep.subr.bf16.mxu0 0
    %1001 = vmatpush1.bf16.msra.mxu0 %v979
    %1002 = vmatprep.subr.bf16.mxu0 0
    %1003 = vmatpush1.bf16.msra.mxu0 %v980
    %1004 = vmatprep.subr.bf16.mxu0 0
    %1005 = vmatpush1.bf16.msra.mxu0 %v981
    %1006 = vmatprep.subr.bf16.mxu0 0
    %1007 = vmatpush1.bf16.msra.mxu0 0
    %1008 = vmatprep.subr.bf16.mxu0 0
    %1009 = vmatpush1.bf16.msra.mxu0 0
    %1010 = vmatprep.subr.bf16.mxu0 0
    %1011 = vmatpush1.bf16.msra.mxu0 0
    %1012 = vmatprep.subr.bf16.mxu0 0
    %1013 = vmatpush1.bf16.msra.mxu0 0
    %1014 = vmatprep.subr.bf16.mxu0 0
    %1015 = vmatpush1.bf16.msra.mxu0 0
    %1016 = vmatprep.subr.bf16.mxu0 0
    %1017 = vmatpush1.bf16.msra.mxu0 0
    %1018 = vmatprep.subr.bf16.mxu0 0
    %1019 = vmatpush1.bf16.msra.mxu0 0
    %1020 = vmatprep.subr.bf16.mxu0 0
    %1021 = vmatpush1.bf16.msra.mxu0 0
    %1022 = vmatprep.mubr.bf16.mxu0 0
    %1023 = vmatmul.mubr.bf16.gmra.mrb[0].mxu0 %v919
    %v1024 = vpop.f32.mrb[0].mxu0
    %v1025 = vadd.f32 %v940, %v1024
    %v1026 = vpop.f32.mrb[0].mxu0
    %v1027 = vpop.f32.mrb[0].mxu0
    %v1028 = vpop.f32.mrb[0].mxu0
    %1029 = vdwg.mxu0
    %v1030 = vpack.c.bf16 %v830, %v829
    %v1031 = vld [vmem:[#allocation10] sm:$0xff]
    %v1032 = vld [vmem:[#allocation10 + $0x8] sm:$0xff]
    %v1033 = vld [vmem:[#allocation10 + $0x10] sm:$0xff]
    %v1034 = vld [vmem:[#allocation10 + $0x18] sm:$0xff]
    %v1035 = vld [vmem:[#allocation10 + $0x20] sm:$0xff]
    %v1036 = vld [vmem:[#allocation10 + $0x28] sm:$0xff]
    %v1037 = vld [vmem:[#allocation10 + $0x30] sm:$0xff]
    %v1038 = vld [vmem:[#allocation10 + $0x38] sm:$0xff]
    %v1039 = vld [vmem:[#allocation10 + $0x40] sm:$0xff]
    %v1040 = vld [vmem:[#allocation10 + $0x48] sm:$0xff]
    %v1041 = vld [vmem:[#allocation10 + $0x50] sm:$0xff]
    %v1042 = vld [vmem:[#allocation10 + $0x58] sm:$0xff]
    %v1043 = vld [vmem:[#allocation10 + $0x60] sm:$0xff]
    %v1044 = vld [vmem:[#allocation10 + $0x68] sm:$0xff]
    %v1045 = vld [vmem:[#allocation10 + $0x70] sm:$0xff]
    %v1046 = vld [vmem:[#allocation10 + $0x78] sm:$0xff]
    %v1047 = vld [vmem:[#allocation13] sm:$0x3]
    %v1049 = vlaneseq
    %v1050 = vshrl.u32 %v1049, 7
    %v1051 = vsub.s32 0, %v1050
    %v1052 = vrot.slane %v1047, %v1051
    %v1053 = vlaneseq
    %v1054 = vshrl.u32 %v1053, 7
    %v1055 = vsub.s32 1, %v1054
    %v1056 = vrot.slane %v1047, %v1055
    %v1075 = vunpack.c.l.b16 %v1031
    %v1076 = vunpack.c.h.b16 %v1031
    %v1077 = vunpack.c.l.b16 %v1032
    %v1078 = vunpack.c.h.b16 %v1032
    %v1079 = vunpack.c.l.b16 %v1033
    %v1080 = vunpack.c.h.b16 %v1033
    %v1081 = vunpack.c.l.b16 %v1034
    %v1082 = vunpack.c.h.b16 %v1034
    %v1083 = vunpack.c.l.b16 %v1035
    %v1084 = vunpack.c.h.b16 %v1035
    %v1085 = vunpack.c.l.b16 %v1036
    %v1086 = vunpack.c.h.b16 %v1036
    %v1087 = vunpack.c.l.b16 %v1037
    %v1088 = vunpack.c.h.b16 %v1037
    %v1089 = vunpack.c.l.b16 %v1038
    %v1090 = vunpack.c.h.b16 %v1038
    %v1091 = vunpack.c.l.b16 %v1039
    %v1092 = vunpack.c.h.b16 %v1039
    %v1093 = vunpack.c.l.b16 %v1040
    %v1094 = vunpack.c.h.b16 %v1040
    %v1095 = vunpack.c.l.b16 %v1041
    %v1096 = vunpack.c.h.b16 %v1041
    %v1097 = vunpack.c.l.b16 %v1042
    %v1098 = vunpack.c.h.b16 %v1042
    %v1099 = vunpack.c.l.b16 %v1043
    %v1100 = vunpack.c.h.b16 %v1043
    %v1101 = vunpack.c.l.b16 %v1044
    %v1102 = vunpack.c.h.b16 %v1044
    %v1103 = vunpack.c.l.b16 %v1045
    %v1104 = vunpack.c.h.b16 %v1045
    %v1105 = vunpack.c.l.b16 %v1046
    %v1106 = vunpack.c.h.b16 %v1046
    %v1107 = vpack.c.b16 %v1077, %v1075
    %v1108 = vpack.c.b16 %v1078, %v1076
    %v1109 = vpack.c.b16 %v1081, %v1079
    %v1110 = vpack.c.b16 %v1082, %v1080
    %v1111 = vpack.c.b16 %v1085, %v1083
    %v1112 = vpack.c.b16 %v1086, %v1084
    %v1113 = vpack.c.b16 %v1089, %v1087
    %v1114 = vpack.c.b16 %v1090, %v1088
    %v1115 = vpack.c.b16 %v1093, %v1091
    %v1116 = vpack.c.b16 %v1094, %v1092
    %v1117 = vpack.c.b16 %v1097, %v1095
    %v1118 = vpack.c.b16 %v1098, %v1096
    %v1119 = vpack.c.b16 %v1101, %v1099
    %v1120 = vpack.c.b16 %v1102, %v1100
    %v1121 = vpack.c.b16 %v1105, %v1103
    %v1122 = vpack.c.b16 %v1106, %v1104
    %1139 = vmatprep.subr.bf16.mxu0 %v1108
    %1140 = vmatpush1.bf16.msra.mxu0 %v1107
    %1141 = vmatprep.subr.bf16.mxu0 %v1110
    %1142 = vmatpush1.bf16.msra.mxu0 %v1109
    %1143 = vmatprep.subr.bf16.mxu0 %v1112
    %1144 = vmatpush1.bf16.msra.mxu0 %v1111
    %1145 = vmatprep.subr.bf16.mxu0 %v1114
    %1146 = vmatpush1.bf16.msra.mxu0 %v1113
    %1147 = vmatprep.subr.bf16.mxu0 %v1116
    %1148 = vmatpush1.bf16.msra.mxu0 %v1115
    %1149 = vmatprep.subr.bf16.mxu0 %v1118
    %1150 = vmatpush1.bf16.msra.mxu0 %v1117
    %1151 = vmatprep.subr.bf16.mxu0 %v1120
    %1152 = vmatpush1.bf16.msra.mxu0 %v1119
    %1153 = vmatprep.subr.bf16.mxu0 %v1122
    %1154 = vmatpush1.bf16.msra.mxu0 %v1121
    %1155 = vmatprep.subr.bf16.mxu0 0
    %1156 = vmatpush1.bf16.msra.mxu0 0
    %1157 = vmatprep.subr.bf16.mxu0 0
    %1158 = vmatpush1.bf16.msra.mxu0 0
    %1159 = vmatprep.subr.bf16.mxu0 0
    %1160 = vmatpush1.bf16.msra.mxu0 0
    %1161 = vmatprep.subr.bf16.mxu0 0
    %1162 = vmatpush1.bf16.msra.mxu0 0
    %1163 = vmatprep.subr.bf16.mxu0 0
    %1164 = vmatpush1.bf16.msra.mxu0 0
    %1165 = vmatprep.subr.bf16.mxu0 0
    %1166 = vmatpush1.bf16.msra.mxu0 0
    %1167 = vmatprep.subr.bf16.mxu0 0
    %1168 = vmatpush1.bf16.msra.mxu0 0
    %1169 = vmatprep.subr.bf16.mxu0 0
    %1170 = vmatpush1.bf16.msra.mxu0 0
    %1171 = vmatprep.mubr.bf16.mxu0 0
    %1172 = vmatmul.mubr.bf16.gmra.mrb[0].mxu0 %v1030
    %v1173 = vpop.f32.mrb[0].mxu0
    %v1174 = vadd.f32 %v1052, %v1173
    %v1175 = vpop.f32.mrb[0].mxu0
    %v1176 = vadd.f32 %v1056, %v1175
    %v1177 = vpop.f32.mrb[0].mxu0
    %v1178 = vadd.f32 %v1052, %v1177
    %v1179 = vpop.f32.mrb[0].mxu0
    %v1180 = vadd.f32 %v1056, %v1179
    %1181 = vdwg.mxu0
    %v1182 = vpack.c.bf16 %v1178, %v1174
    %v1183 = vpack.c.bf16 %v1180, %v1176
    %v1185 = vlaneseq
    %v1186 = vshrl.u32 %v1185, 7
    %v1187 = vsub.s32 0, %v1186
    %v1188 = vrot.slane %v199, %v1187
    %v1190 = vmul.f32 %v1025, %v1188
    %v1192 = vlaneseq
    %v1193 = vshrl.u32 %v1192, 7
    %v1194 = vsub.s32 0, %v1193
    %v1195 = vrot.slane %v201, %v1194
    %v1197 = vmul.f32 %v1025, %v1195
    %v1199 = vlaneseq
    %v1200 = vshrl.u32 %v1199, 7
    %v1201 = vsub.s32 0, %v1200
    %v1202 = vrot.slane %v203, %v1201
    %v1204 = vmul.f32 %v1025, %v1202
    %v1206 = vlaneseq
    %v1207 = vshrl.u32 %v1206, 7
    %v1208 = vsub.s32 0, %v1207
    %v1209 = vrot.slane %v205, %v1208
    %v1211 = vmul.f32 %v1025, %v1209
    %v1212 = vpack.c.bf16 %v1197, %v1190
    %v1213 = vpack.c.bf16 %v1211, %v1204
    %1214 = vmatprep.subr.bf16.mxu0 0
    %1215 = vmatpush1.bf16.xpose.msra.mxu0 %v1182
    %1216 = vmatprep.subr.bf16.mxu0 0
    %1217 = vmatpush1.bf16.xpose.msra.mxu0 0
    %1218 = vmatprep.subr.bf16.mxu0 0
    %1219 = vmatpush1.bf16.xpose.msra.mxu0 0
    %1220 = vmatprep.subr.bf16.mxu0 0
    %1221 = vmatpush1.bf16.xpose.msra.mxu0 0
    %1222 = vmatprep.subr.bf16.mxu0 0
    %1223 = vmatpush1.bf16.xpose.msra.mxu0 0
    %1224 = vmatprep.subr.bf16.mxu0 0
    %1225 = vmatpush1.bf16.xpose.msra.mxu0 0
    %1226 = vmatprep.subr.bf16.mxu0 0
    %1227 = vmatpush1.bf16.xpose.msra.mxu0 0
    %1228 = vmatprep.subr.bf16.mxu0 0
    %1229 = vmatpush1.bf16.xpose.msra.mxu0 0
    %1230 = vmatprep.subr.bf16.mxu0 0
    %1231 = vmatpush1.bf16.xpose.msra.mxu0 0
    %1232 = vmatprep.subr.bf16.mxu0 0
    %1233 = vmatpush1.bf16.xpose.msra.mxu0 0
    %1234 = vmatprep.subr.bf16.mxu0 0
    %1235 = vmatpush1.bf16.xpose.msra.mxu0 0
    %1236 = vmatprep.subr.bf16.mxu0 0
    %1237 = vmatpush1.bf16.xpose.msra.mxu0 0
    %1238 = vmatprep.subr.bf16.mxu0 0
    %1239 = vmatpush1.bf16.xpose.msra.mxu0 0
    %1240 = vmatprep.subr.bf16.mxu0 0
    %1241 = vmatpush1.bf16.xpose.msra.mxu0 0
    %1242 = vmatprep.subr.bf16.mxu0 0
    %1243 = vmatpush1.bf16.xpose.msra.mxu0 0
    %1244 = vmatprep.subr.bf16.mxu0 0
    %1245 = vmatpush1.bf16.xpose.msra.mxu0 0
    %1246 = vmatprep.mubr.bf16.mxu0 0
    %1247 = vmatmul.mubr.bf16.gmra.mrb[0].mxu0 %v1212
    %v1248 = vpop.f32.mrb[0].mxu0
    %v1249 = vadd.f32 0.0, %v1248
    %v1250 = vpop.f32.mrb[0].mxu0
    %v1251 = vpop.f32.mrb[0].mxu0
    %v1252 = vadd.f32 0.0, %v1251
    %v1253 = vpop.f32.mrb[0].mxu0
    %1254 = vmatprep.mubr.bf16.mxu0 0
    %1255 = vmatmul.mubr.bf16.gmra.mrb[0].mxu0 %v1213
    %v1256 = vpop.f32.mrb[0].mxu0
    %v1257 = vadd.f32 0.0, %v1256
    %v1258 = vpop.f32.mrb[0].mxu0
    %v1259 = vpop.f32.mrb[0].mxu0
    %v1260 = vadd.f32 0.0, %v1259
    %v1261 = vpop.f32.mrb[0].mxu0
    %1262 = vdwg.mxu0
    %v1263 = vmul.f32 %v1249, 0.17677669
    %v1264 = vmul.f32 %v1252, 0.17677669
    %v1265 = vmul.f32 %v1257, 0.17677669
    %v1266 = vmul.f32 %v1260, 0.17677669
    %vm1267 = vcmp.gt.f32.partialorder %v832, 0.0
    %v1268 = vsel %vm1267, %v1263, -1e+30
    %v1269 = vsel %vm1267, %v1264, -1e+30
    %v1270 = vsel %vm1267, %v1265, -1e+30
    %v1271 = vsel %vm1267, %v1266, -1e+30
    %v1272 = vsel %vm558, %v1268, -inf
    %1273 = vmax.xlane.f32.xlu0 %v1272
    %v1274 = vpop.xlane.xlu0 %1273
    %v1275 = vsel %vm558, %v1269, -inf
    %1276 = vmax.xlane.f32.xlu0 %v1275
    %v1277 = vpop.xlane.xlu0 %1276
    %v1278 = vsel %vm558, %v1270, -inf
    %1279 = vmax.xlane.f32.xlu0 %v1278
    %v1280 = vpop.xlane.xlu0 %1279
    %v1281 = vsel %vm558, %v1271, -inf
    %1282 = vmax.xlane.f32.xlu0 %v1281
    %v1283 = vpop.xlane.xlu0 %1282
    %v1284 = vsub.f32 %v1268, %v1274
    %v1285 = vsub.f32 %v1269, %v1277
    %v1286 = vsub.f32 %v1270, %v1280
    %v1287 = vsub.f32 %v1271, %v1283
    %v1288 = vmul.f32 %v1284, 1.442695
    %v1289 = vpow.pop %v1288
    %v1290 = vmul.f32 %v1285, 1.442695
    %v1291 = vpow.pop %v1290
    %v1292 = vmul.f32 %v1286, 1.442695
    %v1293 = vpow.pop %v1292
    %v1294 = vmul.f32 %v1287, 1.442695
    %v1295 = vpow.pop %v1294
    %v1296 = vsel %vm558, %v1289, 0.0
    %1297 = vadd.xlane.f32.xlu0 %v1296
    %v1298 = vpop.xlane.xlu0 %1297
    %v1299 = vsel %vm558, %v1291, 0.0
    %1300 = vadd.xlane.f32.xlu0 %v1299
    %v1301 = vpop.xlane.xlu0 %1300
    %v1302 = vsel %vm558, %v1293, 0.0
    %1303 = vadd.xlane.f32.xlu0 %v1302
    %v1304 = vpop.xlane.xlu0 %1303
    %v1305 = vsel %vm558, %v1295, 0.0
    %1306 = vadd.xlane.f32.xlu0 %v1305
    %v1307 = vpop.xlane.xlu0 %1306
    %v1308 = vrcp.pop %v1298
    %v1309 = vmul.f32 %v1289, %v1308
    %v1310 = vrcp.pop %v1301
    %v1311 = vmul.f32 %v1291, %v1310
    %v1312 = vrcp.pop %v1304
    %v1313 = vmul.f32 %v1293, %v1312
    %v1314 = vrcp.pop %v1307
    %v1315 = vmul.f32 %v1295, %v1314
    %v1316 = vpack.c.bf16 %v1311, %v1309
    %v1317 = vpack.c.bf16 %v1315, %v1313
    %v1319 = vsel %vm558, %v1316, 0
    %v1322 = vsel %vm558, %v1317, 0
    %1324 = vmatprep.subr.bf16.mxu0 0
    %1325 = vmatpush1.bf16.msra.mxu0 %v1183
    %1326 = vmatprep.subr.bf16.mxu0 0
    %1327 = vmatpush1.bf16.msra.mxu0 0
    %1328 = vmatprep.subr.bf16.mxu0 0
    %1329 = vmatpush1.bf16.msra.mxu0 0
    %1330 = vmatprep.subr.bf16.mxu0 0
    %1331 = vmatpush1.bf16.msra.mxu0 0
    %1332 = vmatprep.subr.bf16.mxu0 0
    %1333 = vmatpush1.bf16.msra.mxu0 0
    %1334 = vmatprep.subr.bf16.mxu0 0
    %1335 = vmatpush1.bf16.msra.mxu0 0
    %1336 = vmatprep.subr.bf16.mxu0 0
    %1337 = vmatpush1.bf16.msra.mxu0 0
    %1338 = vmatprep.subr.bf16.mxu0 0
    %1339 = vmatpush1.bf16.msra.mxu0 0
    %1340 = vmatprep.subr.bf16.mxu0 0
    %1341 = vmatpush1.bf16.msra.mxu0 0
    %1342 = vmatprep.subr.bf16.mxu0 0
    %1343 = vmatpush1.bf16.msra.mxu0 0
    %1344 = vmatprep.subr.bf16.mxu0 0
    %1345 = vmatpush1.bf16.msra.mxu0 0
    %1346 = vmatprep.subr.bf16.mxu0 0
    %1347 = vmatpush1.bf16.msra.mxu0 0
    %1348 = vmatprep.subr.bf16.mxu0 0
    %1349 = vmatpush1.bf16.msra.mxu0 0
    %1350 = vmatprep.subr.bf16.mxu0 0
    %1351 = vmatpush1.bf16.msra.mxu0 0
    %1352 = vmatprep.subr.bf16.mxu0 0
    %1353 = vmatpush1.bf16.msra.mxu0 0
    %1354 = vmatprep.subr.bf16.mxu0 0
    %1355 = vmatpush1.bf16.msra.mxu0 0
    %1356 = vmatprep.mubr.bf16.mxu0 0
    %1357 = vmatmul.mubr.bf16.gmra.mrb[0].mxu0 %v1319
    %v1358 = vpop.f32.mrb[0].mxu0
    %v1359 = vadd.f32 0.0, %v1358
    %v1360 = vpop.f32.mrb[0].mxu0
    %v1361 = vpop.f32.mrb[0].mxu0
    %v1362 = vadd.f32 0.0, %v1361
    %v1363 = vpop.f32.mrb[0].mxu0
    %1364 = vmatprep.mubr.bf16.mxu0 0
    %1365 = vmatmul.mubr.bf16.gmra.mrb[0].mxu0 %v1322
    %v1366 = vpop.f32.mrb[0].mxu0
    %v1367 = vadd.f32 0.0, %v1366
    %v1368 = vpop.f32.mrb[0].mxu0
    %v1369 = vpop.f32.mrb[0].mxu0
    %v1370 = vadd.f32 0.0, %v1369
    %v1371 = vpop.f32.mrb[0].mxu0
    %1372 = vdwg.mxu0
    %v1373 = vmul.f32 %v1359, %v1188
    %v1374 = vmul.f32 %v1362, %v1195
    %v1375 = vadd.f32 %v1373, %v1374
    %v1376 = vmul.f32 %v1367, %v1202
    %v1377 = vadd.f32 %v1375, %v1376
    %v1378 = vmul.f32 %v1370, %v1209
    %v1379 = vadd.f32 %v1377, %v1378
    %v1380 = vadd.f32 %v1025, %v1379
    %v1382 = vlaneseq
    %v1383 = vshrl.u32 %v1382, 7
    %v1384 = vsub.s32 0, %v1383
    %v1385 = vrot.slane %v208, %v1384
    %v1387 = vmul.f32 %v1380, %v1385
    %1388 = vadd.xlane.f32.xlu0 %v1387
    %v1389 = vpop.xlane.xlu0 %1388
    %v1390 = vmul.f32 %v1389, 0.03125
    %v1391 = vsub.f32 %v1380, %v1390
    %v1392 = vmul.f32 %v1391, %v1385
    %v1393 = vmul.f32 %v1392, %v1392
    %1394 = vadd.xlane.f32.xlu0 %v1393
    %v1395 = vpop.xlane.xlu0 %1394
    %v1396 = vmul.f32 %v1395, 0.03125
    %v1397 = vadd.f32 %v1396, 1e-05
    %v1398 = vrsqrt.pop %v1397
    %v1399 = vmul.f32 %v1391, %v1398
    %v1401 = vlaneseq
    %v1402 = vshrl.u32 %v1401, 7
    %v1403 = vsub.s32 0, %v1402
    %v1404 = vrot.slane %v912, %v1403
    %v1406 = vmul.f32 %v1399, %v1404
    %v1408 = vlaneseq
    %v1409 = vshrl.u32 %v1408, 7
    %v1410 = vsub.s32 0, %v1409
    %v1411 = vrot.slane %v914, %v1410
    %v1413 = vadd.f32 %v1406, %v1411
    %v1414 = vpack.c.bf16 %v1413, %v1413
    %v1415 = vld [vmem:[#allocation12] sm:$0xf]
    %v1416 = vld [vmem:[#allocation12 + $0x4] sm:$0xf]
    %v1417 = vld [vmem:[#allocation12 + $0x8] sm:$0xf]
    %v1418 = vld [vmem:[#allocation12 + $0xc] sm:$0xf]
    %v1419 = vld [vmem:[#allocation12 + $0x10] sm:$0xf]
    %v1420 = vld [vmem:[#allocation12 + $0x14] sm:$0xf]
    %v1421 = vld [vmem:[#allocation12 + $0x18] sm:$0xf]
    %v1422 = vld [vmem:[#allocation12 + $0x1c] sm:$0xf]
    %v1423 = vld [vmem:[#allocation12 + $0x20] sm:$0xf]
    %v1424 = vld [vmem:[#allocation12 + $0x24] sm:$0xf]
    %v1425 = vld [vmem:[#allocation12 + $0x28] sm:$0xf]
    %v1426 = vld [vmem:[#allocation12 + $0x2c] sm:$0xf]
    %v1427 = vld [vmem:[#allocation12 + $0x30] sm:$0xf]
    %v1428 = vld [vmem:[#allocation12 + $0x34] sm:$0xf]
    %v1429 = vld [vmem:[#allocation12 + $0x38] sm:$0xf]
    %v1430 = vld [vmem:[#allocation12 + $0x3c] sm:$0xf]
    %v1432 = vlaneseq
    %v1433 = vshrl.u32 %v1432, 7
    %v1434 = vsub.s32 0, %v1433
    %v1435 = vrot.slane %v910, %v1434
    %v1453 = vunpack.c.l.b16 %v1415
    %v1454 = vunpack.c.l.b16 %v1416
    %v1455 = vunpack.c.l.b16 %v1417
    %v1456 = vunpack.c.l.b16 %v1418
    %v1457 = vunpack.c.l.b16 %v1419
    %v1458 = vunpack.c.l.b16 %v1420
    %v1459 = vunpack.c.l.b16 %v1421
    %v1460 = vunpack.c.l.b16 %v1422
    %v1461 = vunpack.c.l.b16 %v1423
    %v1462 = vunpack.c.l.b16 %v1424
    %v1463 = vunpack.c.l.b16 %v1425
    %v1464 = vunpack.c.l.b16 %v1426
    %v1465 = vunpack.c.l.b16 %v1427
    %v1466 = vunpack.c.l.b16 %v1428
    %v1467 = vunpack.c.l.b16 %v1429
    %v1468 = vunpack.c.l.b16 %v1430
    %v1469 = vpack.c.b16 %v1454, %v1453
    %v1470 = vpack.c.b16 %v1456, %v1455
    %v1471 = vpack.c.b16 %v1458, %v1457
    %v1472 = vpack.c.b16 %v1460, %v1459
    %v1473 = vpack.c.b16 %v1462, %v1461
    %v1474 = vpack.c.b16 %v1464, %v1463
    %v1475 = vpack.c.b16 %v1466, %v1465
    %v1476 = vpack.c.b16 %v1468, %v1467
    %1485 = vmatprep.subr.bf16.mxu0 0
    %1486 = vmatpush1.bf16.msra.mxu0 %v1469
    %1487 = vmatprep.subr.bf16.mxu0 0
    %1488 = vmatpush1.bf16.msra.mxu0 %v1470
    %1489 = vmatprep.subr.bf16.mxu0 0
    %1490 = vmatpush1.bf16.msra.mxu0 %v1471
    %1491 = vmatprep.subr.bf16.mxu0 0
    %1492 = vmatpush1.bf16.msra.mxu0 %v1472
    %1493 = vmatprep.subr.bf16.mxu0 0
    %1494 = vmatpush1.bf16.msra.mxu0 %v1473
    %1495 = vmatprep.subr.bf16.mxu0 0
    %1496 = vmatpush1.bf16.msra.mxu0 %v1474
    %1497 = vmatprep.subr.bf16.mxu0 0
    %1498 = vmatpush1.bf16.msra.mxu0 %v1475
    %1499 = vmatprep.subr.bf16.mxu0 0
    %1500 = vmatpush1.bf16.msra.mxu0 %v1476
    %1501 = vmatprep.subr.bf16.mxu0 0
    %1502 = vmatpush1.bf16.msra.mxu0 0
    %1503 = vmatprep.subr.bf16.mxu0 0
    %1504 = vmatpush1.bf16.msra.mxu0 0
    %1505 = vmatprep.subr.bf16.mxu0 0
    %1506 = vmatpush1.bf16.msra.mxu0 0
    %1507 = vmatprep.subr.bf16.mxu0 0
    %1508 = vmatpush1.bf16.msra.mxu0 0
    %1509 = vmatprep.subr.bf16.mxu0 0
    %1510 = vmatpush1.bf16.msra.mxu0 0
    %1511 = vmatprep.subr.bf16.mxu0 0
    %1512 = vmatpush1.bf16.msra.mxu0 0
    %1513 = vmatprep.subr.bf16.mxu0 0
    %1514 = vmatpush1.bf16.msra.mxu0 0
    %1515 = vmatprep.subr.bf16.mxu0 0
    %1516 = vmatpush1.bf16.msra.mxu0 0
    %1517 = vmatprep.mubr.bf16.mxu0 0
    %1518 = vmatmul.mubr.bf16.gmra.mrb[0].mxu0 %v1414
    %v1519 = vpop.f32.mrb[0].mxu0
    %v1520 = vadd.f32 %v1435, %v1519
    %v1521 = vpop.f32.mrb[0].mxu0
    %v1522 = vpop.f32.mrb[0].mxu0
    %v1523 = vpop.f32.mrb[0].mxu0
    %1524 = vdwg.mxu0
    %v1525 = vmax.f32 %v1520, 0.0
    %v1526 = vadd.f32 %v1413, %v1525
    %v1527 = vmul.f32 %v1526, %v1385
    %1528 = vadd.xlane.f32.xlu0 %v1527
    %v1529 = vpop.xlane.xlu0 %1528
    %v1530 = vmul.f32 %v1529, 0.03125
    %v1531 = vsub.f32 %v1526, %v1530
    %v1532 = vmul.f32 %v1531, %v1385
    %v1533 = vmul.f32 %v1532, %v1532
    %1534 = vadd.xlane.f32.xlu0 %v1533
    %v1535 = vpop.xlane.xlu0 %1534
    %v1536 = vmul.f32 %v1535, 0.03125
    %v1537 = vadd.f32 %v1536, 1e-05
    %v1538 = vrsqrt.pop %v1537
    %v1539 = vmul.f32 %v1531, %v1538
    %v1541 = vlaneseq
    %v1542 = vshrl.u32 %v1541, 7
    %v1543 = vsub.s32 0, %v1542
    %v1544 = vrot.slane %v916, %v1543
    %v1546 = vmul.f32 %v1539, %v1544
    %v1548 = vlaneseq
    %v1549 = vshrl.u32 %v1548, 7
    %v1550 = vsub.s32 0, %v1549
    %v1551 = vrot.slane %v918, %v1550
    %v1553 = vadd.f32 %v1546, %v1551
    %s1554 = scalar_lea.vmem %s15, 6
    %v1555 = vld [vmem:[%s1554] sm:$0x1]
    %s1556 = scalar_lea.vmem %s15, 7
    %v1557 = vld [vmem:[%s1556] sm:$0x1]
    %s1558 = scalar_lea.vmem %s15, 8
    %v1559 = vld [vmem:[%s1558] sm:$0x1]
    %s1560 = scalar_lea.vmem %s15, 9
    %v1561 = vld [vmem:[%s1560] sm:$0x1]
    %s1562 = scalar_lea.vmem %s15, 10
    %v1563 = vld [vmem:[%s1562] sm:$0x1]
    %s1564 = scalar_lea.vmem %s15, 11
    %v1565 = vld [vmem:[%s1564] sm:$0x1]
    %s1566 = scalar_lea.vmem %s11, 64
    %v1567 = vld [vmem:[%s1566] sm:$0xf]
    %v1568 = vld [vmem:[%s1566 + $0x4] sm:$0xf]
    %v1569 = vld [vmem:[%s1566 + $0x8] sm:$0xf]
    %v1570 = vld [vmem:[%s1566 + $0xc] sm:$0xf]
    %v1571 = vld [vmem:[%s1566 + $0x10] sm:$0xf]
    %v1572 = vld [vmem:[%s1566 + $0x14] sm:$0xf]
    %v1573 = vld [vmem:[%s1566 + $0x18] sm:$0xf]
    %v1574 = vld [vmem:[%s1566 + $0x1c] sm:$0xf]
    %v1575 = vld [vmem:[%s1566 + $0x20] sm:$0xf]
    %v1576 = vld [vmem:[%s1566 + $0x24] sm:$0xf]
    %v1577 = vld [vmem:[%s1566 + $0x28] sm:$0xf]
    %v1578 = vld [vmem:[%s1566 + $0x2c] sm:$0xf]
    %v1579 = vld [vmem:[%s1566 + $0x30] sm:$0xf]
    %v1580 = vld [vmem:[%s1566 + $0x34] sm:$0xf]
    %v1581 = vld [vmem:[%s1566 + $0x38] sm:$0xf]
    %v1582 = vld [vmem:[%s1566 + $0x3c] sm:$0xf]
    %v1584 = vlaneseq
    %v1585 = vshrl.u32 %v1584, 7
    %v1586 = vsub.s32 0, %v1585
    %v1587 = vrot.slane %v1555, %v1586
    %v1605 = vunpack.c.l.b16 %v1567
    %v1606 = vunpack.c.l.b16 %v1568
    %v1607 = vunpack.c.l.b16 %v1569
    %v1608 = vunpack.c.l.b16 %v1570
    %v1609 = vunpack.c.l.b16 %v1571
    %v1610 = vunpack.c.l.b16 %v1572
    %v1611 = vunpack.c.l.b16 %v1573
    %v1612 = vunpack.c.l.b16 %v1574
    %v1613 = vunpack.c.l.b16 %v1575
    %v1614 = vunpack.c.l.b16 %v1576
    %v1615 = vunpack.c.l.b16 %v1577
    %v1616 = vunpack.c.l.b16 %v1578
    %v1617 = vunpack.c.l.b16 %v1579
    %v1618 = vunpack.c.l.b16 %v1580
    %v1619 = vunpack.c.l.b16 %v1581
    %v1620 = vunpack.c.l.b16 %v1582
    %v1621 = vpack.c.b16 %v1606, %v1605
    %v1622 = vpack.c.b16 %v1608, %v1607
    %v1623 = vpack.c.b16 %v1610, %v1609
    %v1624 = vpack.c.b16 %v1612, %v1611
    %v1625 = vpack.c.b16 %v1614, %v1613
    %v1626 = vpack.c.b16 %v1616, %v1615
    %v1627 = vpack.c.b16 %v1618, %v1617
    %v1628 = vpack.c.b16 %v1620, %v1619
    %1637 = vmatprep.subr.bf16.mxu0 0
    %1638 = vmatpush1.bf16.msra.mxu0 %v1621
    %1639 = vmatprep.subr.bf16.mxu0 0
    %1640 = vmatpush1.bf16.msra.mxu0 %v1622
    %1641 = vmatprep.subr.bf16.mxu0 0
    %1642 = vmatpush1.bf16.msra.mxu0 %v1623
    %1643 = vmatprep.subr.bf16.mxu0 0
    %1644 = vmatpush1.bf16.msra.mxu0 %v1624
    %1645 = vmatprep.subr.bf16.mxu0 0
    %1646 = vmatpush1.bf16.msra.mxu0 %v1625
    %1647 = vmatprep.subr.bf16.mxu0 0
    %1648 = vmatpush1.bf16.msra.mxu0 %v1626
    %1649 = vmatprep.subr.bf16.mxu0 0
    %1650 = vmatpush1.bf16.msra.mxu0 %v1627
    %1651 = vmatprep.subr.bf16.mxu0 0
    %1652 = vmatpush1.bf16.msra.mxu0 %v1628
    %1653 = vmatprep.subr.bf16.mxu0 0
    %1654 = vmatpush1.bf16.msra.mxu0 0
    %1655 = vmatprep.subr.bf16.mxu0 0
    %1656 = vmatpush1.bf16.msra.mxu0 0
    %1657 = vmatprep.subr.bf16.mxu0 0
    %1658 = vmatpush1.bf16.msra.mxu0 0
    %1659 = vmatprep.subr.bf16.mxu0 0
    %1660 = vmatpush1.bf16.msra.mxu0 0
    %1661 = vmatprep.subr.bf16.mxu0 0
    %1662 = vmatpush1.bf16.msra.mxu0 0
    %1663 = vmatprep.subr.bf16.mxu0 0
    %1664 = vmatpush1.bf16.msra.mxu0 0
    %1665 = vmatprep.subr.bf16.mxu0 0
    %1666 = vmatpush1.bf16.msra.mxu0 0
    %1667 = vmatprep.subr.bf16.mxu0 0
    %1668 = vmatpush1.bf16.msra.mxu0 0
    %1669 = vmatprep.mubr.bf16.mxu0 0
    %1670 = vmatmul.mubr.bf16.gmra.mrb[0].mxu0 %v1030
    %v1671 = vpop.f32.mrb[0].mxu0
    %v1672 = vadd.f32 %v1587, %v1671
    %v1673 = vpop.f32.mrb[0].mxu0
    %v1674 = vpop.f32.mrb[0].mxu0
    %v1675 = vadd.f32 %v1587, %v1674
    %v1676 = vpop.f32.mrb[0].mxu0
    %1677 = vdwg.mxu0
    %v1678 = vpack.c.bf16 %v1553, %v1553
    %s1679 = scalar_lea.vmem [#allocation10], 128
    %v1680 = vld [vmem:[%s1679] sm:$0xff]
    %v1681 = vld [vmem:[%s1679 + $0x8] sm:$0xff]
    %v1682 = vld [vmem:[%s1679 + $0x10] sm:$0xff]
    %v1683 = vld [vmem:[%s1679 + $0x18] sm:$0xff]
    %v1684 = vld [vmem:[%s1679 + $0x20] sm:$0xff]
    %v1685 = vld [vmem:[%s1679 + $0x28] sm:$0xff]
    %v1686 = vld [vmem:[%s1679 + $0x30] sm:$0xff]
    %v1687 = vld [vmem:[%s1679 + $0x38] sm:$0xff]
    %v1688 = vld [vmem:[%s1679 + $0x40] sm:$0xff]
    %v1689 = vld [vmem:[%s1679 + $0x48] sm:$0xff]
    %v1690 = vld [vmem:[%s1679 + $0x50] sm:$0xff]
    %v1691 = vld [vmem:[%s1679 + $0x58] sm:$0xff]
    %v1692 = vld [vmem:[%s1679 + $0x60] sm:$0xff]
    %v1693 = vld [vmem:[%s1679 + $0x68] sm:$0xff]
    %v1694 = vld [vmem:[%s1679 + $0x70] sm:$0xff]
    %v1695 = vld [vmem:[%s1679 + $0x78] sm:$0xff]
    %s1696 = scalar_lea.vmem [#allocation13], 2
    %v1697 = vld [vmem:[%s1696] sm:$0x3]
    %v1699 = vlaneseq
    %v1700 = vshrl.u32 %v1699, 7
    %v1701 = vsub.s32 0, %v1700
    %v1702 = vrot.slane %v1697, %v1701
    %v1703 = vlaneseq
    %v1704 = vshrl.u32 %v1703, 7
    %v1705 = vsub.s32 1, %v1704
    %v1706 = vrot.slane %v1697, %v1705
    %v1725 = vunpack.c.l.b16 %v1680
    %v1726 = vunpack.c.h.b16 %v1680
    %v1727 = vunpack.c.l.b16 %v1681
    %v1728 = vunpack.c.h.b16 %v1681
    %v1729 = vunpack.c.l.b16 %v1682
    %v1730 = vunpack.c.h.b16 %v1682
    %v1731 = vunpack.c.l.b16 %v1683
    %v1732 = vunpack.c.h.b16 %v1683
    %v1733 = vunpack.c.l.b16 %v1684
    %v1734 = vunpack.c.h.b16 %v1684
    %v1735 = vunpack.c.l.b16 %v1685
    %v1736 = vunpack.c.h.b16 %v1685
    %v1737 = vunpack.c.l.b16 %v1686
    %v1738 = vunpack.c.h.b16 %v1686
    %v1739 = vunpack.c.l.b16 %v1687
    %v1740 = vunpack.c.h.b16 %v1687
    %v1741 = vunpack.c.l.b16 %v1688
    %v1742 = vunpack.c.h.b16 %v1688
    %v1743 = vunpack.c.l.b16 %v1689
    %v1744 = vunpack.c.h.b16 %v1689
    %v1745 = vunpack.c.l.b16 %v1690
    %v1746 = vunpack.c.h.b16 %v1690
    %v1747 = vunpack.c.l.b16 %v1691
    %v1748 = vunpack.c.h.b16 %v1691
    %v1749 = vunpack.c.l.b16 %v1692
    %v1750 = vunpack.c.h.b16 %v1692
    %v1751 = vunpack.c.l.b16 %v1693
    %v1752 = vunpack.c.h.b16 %v1693
    %v1753 = vunpack.c.l.b16 %v1694
    %v1754 = vunpack.c.h.b16 %v1694
    %v1755 = vunpack.c.l.b16 %v1695
    %v1756 = vunpack.c.h.b16 %v1695
    %v1757 = vpack.c.b16 %v1727, %v1725
    %v1758 = vpack.c.b16 %v1728, %v1726
    %v1759 = vpack.c.b16 %v1731, %v1729
    %v1760 = vpack.c.b16 %v1732, %v1730
    %v1761 = vpack.c.b16 %v1735, %v1733
    %v1762 = vpack.c.b16 %v1736, %v1734
    %v1763 = vpack.c.b16 %v1739, %v1737
    %v1764 = vpack.c.b16 %v1740, %v1738
    %v1765 = vpack.c.b16 %v1743, %v1741
    %v1766 = vpack.c.b16 %v1744, %v1742
    %v1767 = vpack.c.b16 %v1747, %v1745
    %v1768 = vpack.c.b16 %v1748, %v1746
    %v1769 = vpack.c.b16 %v1751, %v1749
    %v1770 = vpack.c.b16 %v1752, %v1750
    %v1771 = vpack.c.b16 %v1755, %v1753
    %v1772 = vpack.c.b16 %v1756, %v1754
    %1789 = vmatprep.subr.bf16.mxu0 %v1758
    %1790 = vmatpush1.bf16.msra.mxu0 %v1757
    %1791 = vmatprep.subr.bf16.mxu0 %v1760
    %1792 = vmatpush1.bf16.msra.mxu0 %v1759
    %1793 = vmatprep.subr.bf16.mxu0 %v1762
    %1794 = vmatpush1.bf16.msra.mxu0 %v1761
    %1795 = vmatprep.subr.bf16.mxu0 %v1764
    %1796 = vmatpush1.bf16.msra.mxu0 %v1763
    %1797 = vmatprep.subr.bf16.mxu0 %v1766
    %1798 = vmatpush1.bf16.msra.mxu0 %v1765
    %1799 = vmatprep.subr.bf16.mxu0 %v1768
    %1800 = vmatpush1.bf16.msra.mxu0 %v1767
    %1801 = vmatprep.subr.bf16.mxu0 %v1770
    %1802 = vmatpush1.bf16.msra.mxu0 %v1769
    %1803 = vmatprep.subr.bf16.mxu0 %v1772
    %1804 = vmatpush1.bf16.msra.mxu0 %v1771
    %1805 = vmatprep.subr.bf16.mxu0 0
    %1806 = vmatpush1.bf16.msra.mxu0 0
    %1807 = vmatprep.subr.bf16.mxu0 0
    %1808 = vmatpush1.bf16.msra.mxu0 0
    %1809 = vmatprep.subr.bf16.mxu0 0
    %1810 = vmatpush1.bf16.msra.mxu0 0
    %1811 = vmatprep.subr.bf16.mxu0 0
    %1812 = vmatpush1.bf16.msra.mxu0 0
    %1813 = vmatprep.subr.bf16.mxu0 0
    %1814 = vmatpush1.bf16.msra.mxu0 0
    %1815 = vmatprep.subr.bf16.mxu0 0
    %1816 = vmatpush1.bf16.msra.mxu0 0
    %1817 = vmatprep.subr.bf16.mxu0 0
    %1818 = vmatpush1.bf16.msra.mxu0 0
    %1819 = vmatprep.subr.bf16.mxu0 0
    %1820 = vmatpush1.bf16.msra.mxu0 0
    %1821 = vmatprep.mubr.bf16.mxu0 0
    %1822 = vmatmul.mubr.bf16.gmra.mrb[0].mxu0 %v1678
    %v1823 = vpop.f32.mrb[0].mxu0
    %v1824 = vadd.f32 %v1702, %v1823
    %v1825 = vpop.f32.mrb[0].mxu0
    %v1826 = vadd.f32 %v1706, %v1825
    %v1827 = vpop.f32.mrb[0].mxu0
    %v1828 = vpop.f32.mrb[0].mxu0
    %1829 = vdwg.mxu0
    %v1830 = vpack.c.bf16 %v1824, %v1824
    %v1831 = vpack.c.bf16 %v1826, %v1826
    %v1832 = vmul.f32 %v1672, %v1188
    %v1833 = vmul.f32 %v1675, %v1188
    %v1834 = vmul.f32 %v1672, %v1195
    %v1835 = vmul.f32 %v1675, %v1195
    %v1836 = vmul.f32 %v1672, %v1202
    %v1837 = vmul.f32 %v1675, %v1202
    %v1838 = vmul.f32 %v1672, %v1209
    %v1839 = vmul.f32 %v1675, %v1209
    %v1840 = vpack.c.bf16 %v1833, %v1832
    %v1841 = vpack.c.bf16 %v1835, %v1834
    %v1842 = vpack.c.bf16 %v1837, %v1836
    %v1843 = vpack.c.bf16 %v1839, %v1838
    %1844 = vmatprep.subr.bf16.mxu0 0
    %1845 = vmatpush1.bf16.xpose.msra.mxu0 %v1830
    %1846 = vmatprep.subr.bf16.mxu0 0
    %1847 = vmatpush1.bf16.xpose.msra.mxu0 0
    %1848 = vmatprep.subr.bf16.mxu0 0
    %1849 = vmatpush1.bf16.xpose.msra.mxu0 0
    %1850 = vmatprep.subr.bf16.mxu0 0
    %1851 = vmatpush1.bf16.xpose.msra.mxu0 0
    %1852 = vmatprep.subr.bf16.mxu0 0
    %1853 = vmatpush1.bf16.xpose.msra.mxu0 0
    %1854 = vmatprep.subr.bf16.mxu0 0
    %1855 = vmatpush1.bf16.xpose.msra.mxu0 0
    %1856 = vmatprep.subr.bf16.mxu0 0
    %1857 = vmatpush1.bf16.xpose.msra.mxu0 0
    %1858 = vmatprep.subr.bf16.mxu0 0
    %1859 = vmatpush1.bf16.xpose.msra.mxu0 0
    %1860 = vmatprep.subr.bf16.mxu0 0
    %1861 = vmatpush1.bf16.xpose.msra.mxu0 0
    %1862 = vmatprep.subr.bf16.mxu0 0
    %1863 = vmatpush1.bf16.xpose.msra.mxu0 0
    %1864 = vmatprep.subr.bf16.mxu0 0
    %1865 = vmatpush1.bf16.xpose.msra.mxu0 0
    %1866 = vmatprep.subr.bf16.mxu0 0
    %1867 = vmatpush1.bf16.xpose.msra.mxu0 0
    %1868 = vmatprep.subr.bf16.mxu0 0
    %1869 = vmatpush1.bf16.xpose.msra.mxu0 0
    %1870 = vmatprep.subr.bf16.mxu0 0
    %1871 = vmatpush1.bf16.xpose.msra.mxu0 0
    %1872 = vmatprep.subr.bf16.mxu0 0
    %1873 = vmatpush1.bf16.xpose.msra.mxu0 0
    %1874 = vmatprep.subr.bf16.mxu0 0
    %1875 = vmatpush1.bf16.xpose.msra.mxu0 0
    %1876 = vmatprep.mubr.bf16.mxu0 0
    %1877 = vmatmul.mubr.bf16.gmra.mrb[0].mxu0 %v1840
    %v1878 = vpop.f32.mrb[0].mxu0
    %v1879 = vadd.f32 0.0, %v1878
    %v1880 = vpop.f32.mrb[0].mxu0
    %v1881 = vpop.f32.mrb[0].mxu0
    %v1882 = vadd.f32 0.0, %v1881
    %v1883 = vpop.f32.mrb[0].mxu0
    %1884 = vmatprep.mubr.bf16.mxu0 0
    %1885 = vmatmul.mubr.bf16.gmra.mrb[0].mxu0 %v1841
    %v1886 = vpop.f32.mrb[0].mxu0
    %v1887 = vadd.f32 0.0, %v1886
    %v1888 = vpop.f32.mrb[0].mxu0
    %v1889 = vpop.f32.mrb[0].mxu0
    %v1890 = vadd.f32 0.0, %v1889
    %v1891 = vpop.f32.mrb[0].mxu0
    %1892 = vmatprep.mubr.bf16.mxu0 0
    %1893 = vmatmul.mubr.bf16.gmra.mrb[0].mxu0 %v1842
    %v1894 = vpop.f32.mrb[0].mxu0
    %v1895 = vadd.f32 0.0, %v1894
    %v1896 = vpop.f32.mrb[0].mxu0
    %v1897 = vpop.f32.mrb[0].mxu0
    %v1898 = vadd.f32 0.0, %v1897
    %v1899 = vpop.f32.mrb[0].mxu0
    %1900 = vmatprep.mubr.bf16.mxu0 0
    %1901 = vmatmul.mubr.bf16.gmra.mrb[0].mxu0 %v1843
    %v1902 = vpop.f32.mrb[0].mxu0
    %v1903 = vadd.f32 0.0, %v1902
    %v1904 = vpop.f32.mrb[0].mxu0
    %v1905 = vpop.f32.mrb[0].mxu0
    %v1906 = vadd.f32 0.0, %v1905
    %v1907 = vpop.f32.mrb[0].mxu0
    %1908 = vdwg.mxu0
    %v1909 = vmul.f32 %v1879, 0.17677669
    %v1910 = vmul.f32 %v1882, 0.17677669
    %v1911 = vmul.f32 %v1887, 0.17677669
    %v1912 = vmul.f32 %v1890, 0.17677669
    %v1913 = vmul.f32 %v1895, 0.17677669
    %v1914 = vmul.f32 %v1898, 0.17677669
    %v1915 = vmul.f32 %v1903, 0.17677669
    %v1916 = vmul.f32 %v1906, 0.17677669
    %vm1917 = vcmp.gt.f32.partialorder %v833, 0.0
    %vm1918 = vcmp.gt.f32.partialorder %v834, 0.0
    %v1919 = vsel %vm1917, %v1909, -1e+30
    %v1920 = vsel %vm1918, %v1910, -1e+30
    %v1921 = vsel %vm1917, %v1911, -1e+30
    %v1922 = vsel %vm1918, %v1912, -1e+30
    %v1923 = vsel %vm1917, %v1913, -1e+30
    %v1924 = vsel %vm1918, %v1914, -1e+30
    %v1925 = vsel %vm1917, %v1915, -1e+30
    %v1926 = vsel %vm1918, %v1916, -1e+30
    %vm1927 = vcmask 64512
    %v1928 = vsel %vm1927, %v1919, -inf
    %1929 = vmax.xlane.f32.xlu0 %v1928
    %v1930 = vpop.xlane.xlu0 %1929
    %v1931 = vsel %vm1927, %v1920, -inf
    %1932 = vmax.xlane.f32.xlu0 %v1931
    %v1933 = vpop.xlane.xlu0 %1932
    %v1934 = vsel %vm1927, %v1921, -inf
    %1935 = vmax.xlane.f32.xlu0 %v1934
    %v1936 = vpop.xlane.xlu0 %1935
    %v1937 = vsel %vm1927, %v1922, -inf
    %1938 = vmax.xlane.f32.xlu0 %v1937
    %v1939 = vpop.xlane.xlu0 %1938
    %v1940 = vsel %vm1927, %v1923, -inf
    %1941 = vmax.xlane.f32.xlu0 %v1940
    %v1942 = vpop.xlane.xlu0 %1941
    %v1943 = vsel %vm1927, %v1924, -inf
    %1944 = vmax.xlane.f32.xlu0 %v1943
    %v1945 = vpop.xlane.xlu0 %1944
    %v1946 = vsel %vm1927, %v1925, -inf
    %1947 = vmax.xlane.f32.xlu0 %v1946
    %v1948 = vpop.xlane.xlu0 %1947
    %v1949 = vsel %vm1927, %v1926, -inf
    %1950 = vmax.xlane.f32.xlu0 %v1949
    %v1951 = vpop.xlane.xlu0 %1950
    %v1952 = vsub.f32 %v1919, %v1930
    %v1953 = vsub.f32 %v1920, %v1933
    %v1954 = vsub.f32 %v1921, %v1936
    %v1955 = vsub.f32 %v1922, %v1939
    %v1956 = vsub.f32 %v1923, %v1942
    %v1957 = vsub.f32 %v1924, %v1945
    %v1958 = vsub.f32 %v1925, %v1948
    %v1959 = vsub.f32 %v1926, %v1951
    %v1960 = vmul.f32 %v1952, 1.442695
    %v1961 = vpow.pop %v1960
    %v1962 = vmul.f32 %v1953, 1.442695
    %v1963 = vpow.pop %v1962
    %v1964 = vmul.f32 %v1954, 1.442695
    %v1965 = vpow.pop %v1964
    %v1966 = vmul.f32 %v1955, 1.442695
    %v1967 = vpow.pop %v1966
    %v1968 = vmul.f32 %v1956, 1.442695
    %v1969 = vpow.pop %v1968
    %v1970 = vmul.f32 %v1957, 1.442695
    %v1971 = vpow.pop %v1970
    %v1972 = vmul.f32 %v1958, 1.442695
    %v1973 = vpow.pop %v1972
    %v1974 = vmul.f32 %v1959, 1.442695
    %v1975 = vpow.pop %v1974
    %v1976 = vsel %vm1927, %v1961, 0.0
    %1977 = vadd.xlane.f32.xlu0 %v1976
    %v1978 = vpop.xlane.xlu0 %1977
    %v1979 = vsel %vm1927, %v1963, 0.0
    %1980 = vadd.xlane.f32.xlu0 %v1979
    %v1981 = vpop.xlane.xlu0 %1980
    %v1982 = vsel %vm1927, %v1965, 0.0
    %1983 = vadd.xlane.f32.xlu0 %v1982
    %v1984 = vpop.xlane.xlu0 %1983
    %v1985 = vsel %vm1927, %v1967, 0.0
    %1986 = vadd.xlane.f32.xlu0 %v1985
    %v1987 = vpop.xlane.xlu0 %1986
    %v1988 = vsel %vm1927, %v1969, 0.0
    %1989 = vadd.xlane.f32.xlu0 %v1988
    %v1990 = vpop.xlane.xlu0 %1989
    %v1991 = vsel %vm1927, %v1971, 0.0
    %1992 = vadd.xlane.f32.xlu0 %v1991
    %v1993 = vpop.xlane.xlu0 %1992
    %v1994 = vsel %vm1927, %v1973, 0.0
    %1995 = vadd.xlane.f32.xlu0 %v1994
    %v1996 = vpop.xlane.xlu0 %1995
    %v1997 = vsel %vm1927, %v1975, 0.0
    %1998 = vadd.xlane.f32.xlu0 %v1997
    %v1999 = vpop.xlane.xlu0 %1998
    %v2000 = vrcp.pop %v1978
    %v2001 = vmul.f32 %v1961, %v2000
    %v2002 = vrcp.pop %v1981
    %v2003 = vmul.f32 %v1963, %v2002
    %v2004 = vrcp.pop %v1984
    %v2005 = vmul.f32 %v1965, %v2004
    %v2006 = vrcp.pop %v1987
    %v2007 = vmul.f32 %v1967, %v2006
    %v2008 = vrcp.pop %v1990
    %v2009 = vmul.f32 %v1969, %v2008
    %v2010 = vrcp.pop %v1993
    %v2011 = vmul.f32 %v1971, %v2010
    %v2012 = vrcp.pop %v1996
    %v2013 = vmul.f32 %v1973, %v2012
    %v2014 = vrcp.pop %v1999
    %v2015 = vmul.f32 %v1975, %v2014
    %v2016 = vpack.c.bf16 %v2003, %v2001
    %v2017 = vpack.c.bf16 %v2007, %v2005
    %v2018 = vpack.c.bf16 %v2011, %v2009
    %v2019 = vpack.c.bf16 %v2015, %v2013
    %v2021 = vsel %vm1927, %v2016, 0
    %v2024 = vsel %vm1927, %v2017, 0
    %v2027 = vsel %vm1927, %v2018, 0
    %v2030 = vsel %vm1927, %v2019, 0
    %vm2032 = vcmask 1043456
    %v2034 = vsel %vm2032, %v1831, 0
    %2036 = vmatprep.subr.bf16.mxu0 0
    %2037 = vmatpush1.bf16.msra.mxu0 %v2034
    %2038 = vmatprep.subr.bf16.mxu0 0
    %2039 = vmatpush1.bf16.msra.mxu0 0
    %2040 = vmatprep.subr.bf16.mxu0 0
    %2041 = vmatpush1.bf16.msra.mxu0 0
    %2042 = vmatprep.subr.bf16.mxu0 0
    %2043 = vmatpush1.bf16.msra.mxu0 0
    %2044 = vmatprep.subr.bf16.mxu0 0
    %2045 = vmatpush1.bf16.msra.mxu0 0
    %2046 = vmatprep.subr.bf16.mxu0 0
    %2047 = vmatpush1.bf16.msra.mxu0 0
    %2048 = vmatprep.subr.bf16.mxu0 0
    %2049 = vmatpush1.bf16.msra.mxu0 0
    %2050 = vmatprep.subr.bf16.mxu0 0
    %2051 = vmatpush1.bf16.msra.mxu0 0
    %2052 = vmatprep.subr.bf16.mxu0 0
    %2053 = vmatpush1.bf16.msra.mxu0 0
    %2054 = vmatprep.subr.bf16.mxu0 0
    %2055 = vmatpush1.bf16.msra.mxu0 0
    %2056 = vmatprep.subr.bf16.mxu0 0
    %2057 = vmatpush1.bf16.msra.mxu0 0
    %2058 = vmatprep.subr.bf16.mxu0 0
    %2059 = vmatpush1.bf16.msra.mxu0 0
    %2060 = vmatprep.subr.bf16.mxu0 0
    %2061 = vmatpush1.bf16.msra.mxu0 0
    %2062 = vmatprep.subr.bf16.mxu0 0
    %2063 = vmatpush1.bf16.msra.mxu0 0
    %2064 = vmatprep.subr.bf16.mxu0 0
    %2065 = vmatpush1.bf16.msra.mxu0 0
    %2066 = vmatprep.subr.bf16.mxu0 0
    %2067 = vmatpush1.bf16.msra.mxu0 0
    %2068 = vmatprep.mubr.bf16.mxu0 0
    %2069 = vmatmul.mubr.bf16.gmra.mrb[0].mxu0 %v2021
    %v2070 = vpop.f32.mrb[0].mxu0
    %v2071 = vadd.f32 0.0, %v2070
    %v2072 = vpop.f32.mrb[0].mxu0
    %v2073 = vpop.f32.mrb[0].mxu0
    %v2074 = vadd.f32 0.0, %v2073
    %v2075 = vpop.f32.mrb[0].mxu0
    %2076 = vmatprep.mubr.bf16.mxu0 0
    %2077 = vmatmul.mubr.bf16.gmra.mrb[0].mxu0 %v2024
    %v2078 = vpop.f32.mrb[0].mxu0
    %v2079 = vadd.f32 0.0, %v2078
    %v2080 = vpop.f32.mrb[0].mxu0
    %v2081 = vpop.f32.mrb[0].mxu0
    %v2082 = vadd.f32 0.0, %v2081
    %v2083 = vpop.f32.mrb[0].mxu0
    %2084 = vmatprep.mubr.bf16.mxu0 0
    %2085 = vmatmul.mubr.bf16.gmra.mrb[0].mxu0 %v2027
    %v2086 = vpop.f32.mrb[0].mxu0
    %v2087 = vadd.f32 0.0, %v2086
    %v2088 = vpop.f32.mrb[0].mxu0
    %v2089 = vpop.f32.mrb[0].mxu0
    %v2090 = vadd.f32 0.0, %v2089
    %v2091 = vpop.f32.mrb[0].mxu0
    %2092 = vmatprep.mubr.bf16.mxu0 0
    %2093 = vmatmul.mubr.bf16.gmra.mrb[0].mxu0 %v2030
    %v2094 = vpop.f32.mrb[0].mxu0
    %v2095 = vadd.f32 0.0, %v2094
    %v2096 = vpop.f32.mrb[0].mxu0
    %v2097 = vpop.f32.mrb[0].mxu0
    %v2098 = vadd.f32 0.0, %v2097
    %v2099 = vpop.f32.mrb[0].mxu0
    %2100 = vdwg.mxu0
    %v2101 = vmul.f32 %v2071, %v1188
    %v2102 = vmul.f32 %v2074, %v1188
    %v2103 = vmul.f32 %v2079, %v1195
    %v2104 = vmul.f32 %v2082, %v1195
    %v2105 = vadd.f32 %v2101, %v2103
    %v2106 = vadd.f32 %v2102, %v2104
    %v2107 = vmul.f32 %v2087, %v1202
    %v2108 = vmul.f32 %v2090, %v1202
    %v2109 = vadd.f32 %v2105, %v2107
    %v2110 = vadd.f32 %v2106, %v2108
    %v2111 = vmul.f32 %v2095, %v1209
    %v2112 = vmul.f32 %v2098, %v1209
    %v2113 = vadd.f32 %v2109, %v2111
    %v2114 = vadd.f32 %v2110, %v2112
    %v2115 = vadd.f32 %v1672, %v2113
    %v2116 = vadd.f32 %v1675, %v2114
    %v2117 = vmul.f32 %v2115, %v1385
    %v2118 = vmul.f32 %v2116, %v1385
    %2119 = vadd.xlane.f32.xlu0 %v2117
    %v2120 = vpop.xlane.xlu0 %2119
    %2121 = vadd.xlane.f32.xlu0 %v2118
    %v2122 = vpop.xlane.xlu0 %2121
    %v2123 = vmul.f32 %v2120, 0.03125
    %v2124 = vmul.f32 %v2122, 0.03125
    %v2125 = vsub.f32 %v2115, %v2123
    %v2126 = vsub.f32 %v2116, %v2124
    %v2127 = vmul.f32 %v2125, %v1385
    %v2128 = vmul.f32 %v2126, %v1385
    %v2129 = vmul.f32 %v2127, %v2127
    %v2130 = vmul.f32 %v2128, %v2128
    %2131 = vadd.xlane.f32.xlu0 %v2129
    %v2132 = vpop.xlane.xlu0 %2131
    %2133 = vadd.xlane.f32.xlu0 %v2130
    %v2134 = vpop.xlane.xlu0 %2133
    %v2135 = vmul.f32 %v2132, 0.03125
    %v2136 = vmul.f32 %v2134, 0.03125
    %v2137 = vadd.f32 %v2135, 1e-05
    %v2138 = vadd.f32 %v2136, 1e-05
    %v2139 = vrsqrt.pop %v2137
    %v2140 = vrsqrt.pop %v2138
    %v2141 = vmul.f32 %v2125, %v2139
    %v2142 = vmul.f32 %v2126, %v2140
    %v2144 = vlaneseq
    %v2145 = vshrl.u32 %v2144, 7
    %v2146 = vsub.s32 0, %v2145
    %v2147 = vrot.slane %v1559, %v2146
    %v2149 = vmul.f32 %v2141, %v2147
    %v2150 = vmul.f32 %v2142, %v2147
    %v2152 = vlaneseq
    %v2153 = vshrl.u32 %v2152, 7
    %v2154 = vsub.s32 0, %v2153
    %v2155 = vrot.slane %v1561, %v2154
    %v2157 = vadd.f32 %v2149, %v2155
    %v2158 = vadd.f32 %v2150, %v2155
    %v2159 = vpack.c.bf16 %v2158, %v2157
    %s2160 = scalar_lea.vmem [#allocation12], 64
    %v2161 = vld [vmem:[%s2160] sm:$0xf]
    %v2162 = vld [vmem:[%s2160 + $0x4] sm:$0xf]
    %v2163 = vld [vmem:[%s2160 + $0x8] sm:$0xf]
    %v2164 = vld [vmem:[%s2160 + $0xc] sm:$0xf]
    %v2165 = vld [vmem:[%s2160 + $0x10] sm:$0xf]
    %v2166 = vld [vmem:[%s2160 + $0x14] sm:$0xf]
    %v2167 = vld [vmem:[%s2160 + $0x18] sm:$0xf]
    %v2168 = vld [vmem:[%s2160 + $0x1c] sm:$0xf]
    %v2169 = vld [vmem:[%s2160 + $0x20] sm:$0xf]
    %v2170 = vld [vmem:[%s2160 + $0x24] sm:$0xf]
    %v2171 = vld [vmem:[%s2160 + $0x28] sm:$0xf]
    %v2172 = vld [vmem:[%s2160 + $0x2c] sm:$0xf]
    %v2173 = vld [vmem:[%s2160 + $0x30] sm:$0xf]
    %v2174 = vld [vmem:[%s2160 + $0x34] sm:$0xf]
    %v2175 = vld [vmem:[%s2160 + $0x38] sm:$0xf]
    %v2176 = vld [vmem:[%s2160 + $0x3c] sm:$0xf]
    %v2178 = vlaneseq
    %v2179 = vshrl.u32 %v2178, 7
    %v2180 = vsub.s32 0, %v2179
    %v2181 = vrot.slane %v1557, %v2180
    %v2199 = vunpack.c.l.b16 %v2161
    %v2200 = vunpack.c.l.b16 %v2162
    %v2201 = vunpack.c.l.b16 %v2163
    %v2202 = vunpack.c.l.b16 %v2164
    %v2203 = vunpack.c.l.b16 %v2165
    %v2204 = vunpack.c.l.b16 %v2166
    %v2205 = vunpack.c.l.b16 %v2167
    %v2206 = vunpack.c.l.b16 %v2168
    %v2207 = vunpack.c.l.b16 %v2169
    %v2208 = vunpack.c.l.b16 %v2170
    %v2209 = vunpack.c.l.b16 %v2171
    %v2210 = vunpack.c.l.b16 %v2172
    %v2211 = vunpack.c.l.b16 %v2173
    %v2212 = vunpack.c.l.b16 %v2174
    %v2213 = vunpack.c.l.b16 %v2175
    %v2214 = vunpack.c.l.b16 %v2176
    %v2215 = vpack.c.b16 %v2200, %v2199
    %v2216 = vpack.c.b16 %v2202, %v2201
    %v2217 = vpack.c.b16 %v2204, %v2203
    %v2218 = vpack.c.b16 %v2206, %v2205
    %v2219 = vpack.c.b16 %v2208, %v2207
    %v2220 = vpack.c.b16 %v2210, %v2209
    %v2221 = vpack.c.b16 %v2212, %v2211
    %v2222 = vpack.c.b16 %v2214, %v2213
    %2231 = vmatprep.subr.bf16.mxu0 0
    %2232 = vmatpush1.bf16.msra.mxu0 %v2215
    %2233 = vmatprep.subr.bf16.mxu0 0
    %2234 = vmatpush1.bf16.msra.mxu0 %v2216
    %2235 = vmatprep.subr.bf16.mxu0 0
    %2236 = vmatpush1.bf16.msra.mxu0 %v2217
    %2237 = vmatprep.subr.bf16.mxu0 0
    %2238 = vmatpush1.bf16.msra.mxu0 %v2218
    %2239 = vmatprep.subr.bf16.mxu0 0
    %2240 = vmatpush1.bf16.msra.mxu0 %v2219
    %2241 = vmatprep.subr.bf16.mxu0 0
    %2242 = vmatpush1.bf16.msra.mxu0 %v2220
    %2243 = vmatprep.subr.bf16.mxu0 0
    %2244 = vmatpush1.bf16.msra.mxu0 %v2221
    %2245 = vmatprep.subr.bf16.mxu0 0
    %2246 = vmatpush1.bf16.msra.mxu0 %v2222
    %2247 = vmatprep.subr.bf16.mxu0 0
    %2248 = vmatpush1.bf16.msra.mxu0 0
    %2249 = vmatprep.subr.bf16.mxu0 0
    %2250 = vmatpush1.bf16.msra.mxu0 0
    %2251 = vmatprep.subr.bf16.mxu0 0
    %2252 = vmatpush1.bf16.msra.mxu0 0
    %2253 = vmatprep.subr.bf16.mxu0 0
    %2254 = vmatpush1.bf16.msra.mxu0 0
    %2255 = vmatprep.subr.bf16.mxu0 0
    %2256 = vmatpush1.bf16.msra.mxu0 0
    %2257 = vmatprep.subr.bf16.mxu0 0
    %2258 = vmatpush1.bf16.msra.mxu0 0
    %2259 = vmatprep.subr.bf16.mxu0 0
    %2260 = vmatpush1.bf16.msra.mxu0 0
    %2261 = vmatprep.subr.bf16.mxu0 0
    %2262 = vmatpush1.bf16.msra.mxu0 0
    %2263 = vmatprep.mubr.bf16.mxu0 0
    %2264 = vmatmul.mubr.bf16.gmra.mrb[0].mxu0 %v2159
    %v2265 = vpop.f32.mrb[0].mxu0
    %v2266 = vadd.f32 %v2181, %v2265
    %v2267 = vpop.f32.mrb[0].mxu0
    %v2268 = vpop.f32.mrb[0].mxu0
    %v2269 = vadd.f32 %v2181, %v2268
    %v2270 = vpop.f32.mrb[0].mxu0
    %2271 = vdwg.mxu0
    %v2272 = vmax.f32 %v2266, 0.0
    %v2273 = vmax.f32 %v2269, 0.0
    %v2274 = vadd.f32 %v2157, %v2272
    %v2275 = vadd.f32 %v2158, %v2273
    %v2276 = vmul.f32 %v2274, %v1385
    %v2277 = vmul.f32 %v2275, %v1385
    %2278 = vadd.xlane.f32.xlu0 %v2276
    %v2279 = vpop.xlane.xlu0 %2278
    %2280 = vadd.xlane.f32.xlu0 %v2277
    %v2281 = vpop.xlane.xlu0 %2280
    %v2282 = vmul.f32 %v2279, 0.03125
    %v2283 = vmul.f32 %v2281, 0.03125
    %v2284 = vsub.f32 %v2274, %v2282
    %v2285 = vsub.f32 %v2275, %v2283
    %v2286 = vmul.f32 %v2284, %v1385
    %v2287 = vmul.f32 %v2285, %v1385
    %v2288 = vmul.f32 %v2286, %v2286
    %v2289 = vmul.f32 %v2287, %v2287
    %2290 = vadd.xlane.f32.xlu0 %v2288
    %v2291 = vpop.xlane.xlu0 %2290
    %2292 = vadd.xlane.f32.xlu0 %v2289
    %v2293 = vpop.xlane.xlu0 %2292
    %v2294 = vmul.f32 %v2291, 0.03125
    %v2295 = vmul.f32 %v2293, 0.03125
    %v2296 = vadd.f32 %v2294, 1e-05
    %v2297 = vadd.f32 %v2295, 1e-05
    %v2298 = vrsqrt.pop %v2296
    %v2299 = vrsqrt.pop %v2297
    %v2300 = vmul.f32 %v2284, %v2298
    %v2301 = vmul.f32 %v2285, %v2299
    %v2303 = vlaneseq
    %v2304 = vshrl.u32 %v2303, 7
    %v2305 = vsub.s32 0, %v2304
    %v2306 = vrot.slane %v1563, %v2305
    %v2308 = vmul.f32 %v2300, %v2306
    %v2309 = vmul.f32 %v2301, %v2306
    %v2311 = vlaneseq
    %v2312 = vshrl.u32 %v2311, 7
    %v2313 = vsub.s32 0, %v2312
    %v2314 = vrot.slane %v1565, %v2313
    %v2316 = vadd.f32 %v2308, %v2314
    %v2317 = vadd.f32 %v2309, %v2314
    %2318 = vmatprep.subr.mxu0 0.0
    %2319 = vmatpush1.msra.mxu0 %v2316
    %2320 = vmatprep.subr.mxu0 0.0
    %2321 = vmatpush1.msra.mxu0 %v2317
    %2322 = vmatprep.subr.mxu0 0.0
    %2323 = vmatpush1.msra.mxu0 0.0
    %2324 = vmatprep.subr.mxu0 0.0
    %2325 = vmatpush1.msra.mxu0 0.0
    %2326 = vmatprep.subr.mxu0 0.0
    %2327 = vmatpush1.msra.mxu0 0.0
    %2328 = vmatprep.subr.mxu0 0.0
    %2329 = vmatpush1.msra.mxu0 0.0
    %2330 = vmatprep.subr.mxu0 0.0
    %2331 = vmatpush1.msra.mxu0 0.0
    %2332 = vmatprep.subr.mxu0 0.0
    %2333 = vmatpush1.msra.mxu0 0.0
    %2334 = vmatprep.subr.mxu0 0.0
    %2335 = vmatpush1.msra.mxu0 0.0
    %2336 = vmatprep.subr.mxu0 0.0
    %2337 = vmatpush1.msra.mxu0 0.0
    %2338 = vmatprep.subr.mxu0 0.0
    %2339 = vmatpush1.msra.mxu0 0.0
    %2340 = vmatprep.subr.mxu0 0.0
    %2341 = vmatpush1.msra.mxu0 0.0
    %2342 = vmatprep.subr.mxu0 0.0
    %2343 = vmatpush1.msra.mxu0 0.0
    %2344 = vmatprep.subr.mxu0 0.0
    %2345 = vmatpush1.msra.mxu0 0.0
    %2346 = vmatprep.subr.mxu0 0.0
    %2347 = vmatpush1.msra.mxu0 0.0
    %2348 = vmatprep.subr.mxu0 0.0
    %2349 = vmatpush1.msra.mxu0 0.0
    %2350 = vmatprep.subr.mxu0 0.0
    %2351 = vmatpush1.msra.mxu0 0.0
    %2352 = vmatprep.subr.mxu0 0.0
    %2353 = vmatpush1.msra.mxu0 0.0
    %2354 = vmatprep.subr.mxu0 0.0
    %2355 = vmatpush1.msra.mxu0 0.0
    %2356 = vmatprep.subr.mxu0 0.0
    %2357 = vmatpush1.msra.mxu0 0.0
    %2358 = vmatprep.subr.mxu0 0.0
    %2359 = vmatpush1.msra.mxu0 0.0
    %2360 = vmatprep.subr.mxu0 0.0
    %2361 = vmatpush1.msra.mxu0 0.0
    %2362 = vmatprep.subr.mxu0 0.0
    %2363 = vmatpush1.msra.mxu0 0.0
    %2364 = vmatprep.subr.mxu0 0.0
    %2365 = vmatpush1.msra.mxu0 0.0
    %2366 = vmatprep.subr.mxu0 0.0
    %2367 = vmatpush1.msra.mxu0 0.0
    %2368 = vmatprep.subr.mxu0 0.0
    %2369 = vmatpush1.msra.mxu0 0.0
    %2370 = vmatprep.subr.mxu0 0.0
    %2371 = vmatpush1.msra.mxu0 0.0
    %2372 = vmatprep.subr.mxu0 0.0
    %2373 = vmatpush1.msra.mxu0 0.0
    %2374 = vmatprep.subr.mxu0 0.0
    %2375 = vmatpush1.msra.mxu0 0.0
    %2376 = vmatprep.subr.mxu0 0.0
    %2377 = vmatpush1.msra.mxu0 0.0
    %2378 = vmatprep.subr.mxu0 0.0
    %2379 = vmatpush1.msra.mxu0 0.0
    %2380 = vmatprep.subr.mxu0 0.0
    %2381 = vmatpush1.msra.mxu0 0.0
    %2382 = vmatprep.mubr.f32.mxu0 0.0
    %2383 = vmatmul.mubr.f32.gmra.mrb[0].mxu0 %v836
    %v2384 = vpop.f32.mrb[0].mxu0
    %v2385 = vadd.f32 0.0, %v2384
    %v2386 = vpop.f32.mrb[0].mxu0
    %2387 = vdwg.mxu0
    %s2388 = scalar_lea.vmem %s15, 12
    %v2389 = vld [vmem:[%s2388] sm:$0x1]
    %s2390 = scalar_lea.vmem %s15, 13
    %v2391 = vld [vmem:[%s2390] sm:$0x1]
    %s2392 = scalar_lea.vmem %s15, 14
    %v2393 = vld [vmem:[%s2392] sm:$0x1]
    %s2394 = scalar_lea.vmem %s15, 15
    %v2395 = vld [vmem:[%s2394] sm:$0x1]
    %s2396 = scalar_lea.vmem %s15, 16
    %v2397 = vld [vmem:[%s2396] sm:$0x1]
    %s2398 = scalar_lea.vmem %s15, 17
    %v2399 = vld [vmem:[%s2398] sm:$0x1]
    %v2400 = vpack.c.bf16 %v2385, %v2385
    %s2401 = scalar_lea.vmem %s11, 128
    %v2402 = vld [vmem:[%s2401] sm:$0xf]
    %v2403 = vld [vmem:[%s2401 + $0x4] sm:$0xf]
    %v2404 = vld [vmem:[%s2401 + $0x8] sm:$0xf]
    %v2405 = vld [vmem:[%s2401 + $0xc] sm:$0xf]
    %v2406 = vld [vmem:[%s2401 + $0x10] sm:$0xf]
    %v2407 = vld [vmem:[%s2401 + $0x14] sm:$0xf]
    %v2408 = vld [vmem:[%s2401 + $0x18] sm:$0xf]
    %v2409 = vld [vmem:[%s2401 + $0x1c] sm:$0xf]
    %v2410 = vld [vmem:[%s2401 + $0x20] sm:$0xf]
    %v2411 = vld [vmem:[%s2401 + $0x24] sm:$0xf]
    %v2412 = vld [vmem:[%s2401 + $0x28] sm:$0xf]
    %v2413 = vld [vmem:[%s2401 + $0x2c] sm:$0xf]
    %v2414 = vld [vmem:[%s2401 + $0x30] sm:$0xf]
    %v2415 = vld [vmem:[%s2401 + $0x34] sm:$0xf]
    %v2416 = vld [vmem:[%s2401 + $0x38] sm:$0xf]
    %v2417 = vld [vmem:[%s2401 + $0x3c] sm:$0xf]
    %v2419 = vlaneseq
    %v2420 = vshrl.u32 %v2419, 7
    %v2421 = vsub.s32 0, %v2420
    %v2422 = vrot.slane %v2389, %v2421
    %v2440 = vunpack.c.l.b16 %v2402
    %v2441 = vunpack.c.l.b16 %v2403
    %v2442 = vunpack.c.l.b16 %v2404
    %v2443 = vunpack.c.l.b16 %v2405
    %v2444 = vunpack.c.l.b16 %v2406
    %v2445 = vunpack.c.l.b16 %v2407
    %v2446 = vunpack.c.l.b16 %v2408
    %v2447 = vunpack.c.l.b16 %v2409
    %v2448 = vunpack.c.l.b16 %v2410
    %v2449 = vunpack.c.l.b16 %v2411
    %v2450 = vunpack.c.l.b16 %v2412
    %v2451 = vunpack.c.l.b16 %v2413
    %v2452 = vunpack.c.l.b16 %v2414
    %v2453 = vunpack.c.l.b16 %v2415
    %v2454 = vunpack.c.l.b16 %v2416
    %v2455 = vunpack.c.l.b16 %v2417
    %v2456 = vpack.c.b16 %v2441, %v2440
    %v2457 = vpack.c.b16 %v2443, %v2442
    %v2458 = vpack.c.b16 %v2445, %v2444
    %v2459 = vpack.c.b16 %v2447, %v2446
    %v2460 = vpack.c.b16 %v2449, %v2448
    %v2461 = vpack.c.b16 %v2451, %v2450
    %v2462 = vpack.c.b16 %v2453, %v2452
    %v2463 = vpack.c.b16 %v2455, %v2454
    %2472 = vmatprep.subr.bf16.mxu0 0
    %2473 = vmatpush1.bf16.msra.mxu0 %v2456
    %2474 = vmatprep.subr.bf16.mxu0 0
    %2475 = vmatpush1.bf16.msra.mxu0 %v2457
    %2476 = vmatprep.subr.bf16.mxu0 0
    %2477 = vmatpush1.bf16.msra.mxu0 %v2458
    %2478 = vmatprep.subr.bf16.mxu0 0
    %2479 = vmatpush1.bf16.msra.mxu0 %v2459
    %2480 = vmatprep.subr.bf16.mxu0 0
    %2481 = vmatpush1.bf16.msra.mxu0 %v2460
    %2482 = vmatprep.subr.bf16.mxu0 0
    %2483 = vmatpush1.bf16.msra.mxu0 %v2461
    %2484 = vmatprep.subr.bf16.mxu0 0
    %2485 = vmatpush1.bf16.msra.mxu0 %v2462
    %2486 = vmatprep.subr.bf16.mxu0 0
    %2487 = vmatpush1.bf16.msra.mxu0 %v2463
    %2488 = vmatprep.subr.bf16.mxu0 0
    %2489 = vmatpush1.bf16.msra.mxu0 0
    %2490 = vmatprep.subr.bf16.mxu0 0
    %2491 = vmatpush1.bf16.msra.mxu0 0
    %2492 = vmatprep.subr.bf16.mxu0 0
    %2493 = vmatpush1.bf16.msra.mxu0 0
    %2494 = vmatprep.subr.bf16.mxu0 0
    %2495 = vmatpush1.bf16.msra.mxu0 0
    %2496 = vmatprep.subr.bf16.mxu0 0
    %2497 = vmatpush1.bf16.msra.mxu0 0
    %2498 = vmatprep.subr.bf16.mxu0 0
    %2499 = vmatpush1.bf16.msra.mxu0 0
    %2500 = vmatprep.subr.bf16.mxu0 0
    %2501 = vmatpush1.bf16.msra.mxu0 0
    %2502 = vmatprep.subr.bf16.mxu0 0
    %2503 = vmatpush1.bf16.msra.mxu0 0
    %2504 = vmatprep.mubr.bf16.mxu0 0
    %2505 = vmatmul.mubr.bf16.gmra.mrb[0].mxu0 %v2400
    %v2506 = vpop.f32.mrb[0].mxu0
    %v2507 = vadd.f32 %v2422, %v2506
    %v2508 = vpop.f32.mrb[0].mxu0
    %v2509 = vpop.f32.mrb[0].mxu0
    %v2510 = vpop.f32.mrb[0].mxu0
    %2511 = vdwg.mxu0
    %v2512 = vpack.c.bf16 %v2317, %v2316
    %s2513 = scalar_lea.vmem [#allocation10], 256
    %v2514 = vld [vmem:[%s2513] sm:$0xff]
    %v2515 = vld [vmem:[%s2513 + $0x8] sm:$0xff]
    %v2516 = vld [vmem:[%s2513 + $0x10] sm:$0xff]
    %v2517 = vld [vmem:[%s2513 + $0x18] sm:$0xff]
    %v2518 = vld [vmem:[%s2513 + $0x20] sm:$0xff]
    %v2519 = vld [vmem:[%s2513 + $0x28] sm:$0xff]
    %v2520 = vld [vmem:[%s2513 + $0x30] sm:$0xff]
    %v2521 = vld [vmem:[%s2513 + $0x38] sm:$0xff]
    %v2522 = vld [vmem:[%s2513 + $0x40] sm:$0xff]
    %v2523 = vld [vmem:[%s2513 + $0x48] sm:$0xff]
    %v2524 = vld [vmem:[%s2513 + $0x50] sm:$0xff]
    %v2525 = vld [vmem:[%s2513 + $0x58] sm:$0xff]
    %v2526 = vld [vmem:[%s2513 + $0x60] sm:$0xff]
    %v2527 = vld [vmem:[%s2513 + $0x68] sm:$0xff]
    %v2528 = vld [vmem:[%s2513 + $0x70] sm:$0xff]
    %v2529 = vld [vmem:[%s2513 + $0x78] sm:$0xff]
    %s2530 = scalar_lea.vmem [#allocation13], 4
    %v2531 = vld [vmem:[%s2530] sm:$0x3]
    %v2533 = vlaneseq
    %v2534 = vshrl.u32 %v2533, 7
    %v2535 = vsub.s32 0, %v2534
    %v2536 = vrot.slane %v2531, %v2535
    %v2537 = vlaneseq
    %v2538 = vshrl.u32 %v2537, 7
    %v2539 = vsub.s32 1, %v2538
    %v2540 = vrot.slane %v2531, %v2539
    %v2559 = vunpack.c.l.b16 %v2514
    %v2560 = vunpack.c.h.b16 %v2514
    %v2561 = vunpack.c.l.b16 %v2515
    %v2562 = vunpack.c.h.b16 %v2515
    %v2563 = vunpack.c.l.b16 %v2516
    %v2564 = vunpack.c.h.b16 %v2516
    %v2565 = vunpack.c.l.b16 %v2517
    %v2566 = vunpack.c.h.b16 %v2517
    %v2567 = vunpack.c.l.b16 %v2518
    %v2568 = vunpack.c.h.b16 %v2518
    %v2569 = vunpack.c.l.b16 %v2519
    %v2570 = vunpack.c.h.b16 %v2519
    %v2571 = vunpack.c.l.b16 %v2520
    %v2572 = vunpack.c.h.b16 %v2520
    %v2573 = vunpack.c.l.b16 %v2521
    %v2574 = vunpack.c.h.b16 %v2521
    %v2575 = vunpack.c.l.b16 %v2522
    %v2576 = vunpack.c.h.b16 %v2522
    %v2577 = vunpack.c.l.b16 %v2523
    %v2578 = vunpack.c.h.b16 %v2523
    %v2579 = vunpack.c.l.b16 %v2524
    %v2580 = vunpack.c.h.b16 %v2524
    %v2581 = vunpack.c.l.b16 %v2525
    %v2582 = vunpack.c.h.b16 %v2525
    %v2583 = vunpack.c.l.b16 %v2526
    %v2584 = vunpack.c.h.b16 %v2526
    %v2585 = vunpack.c.l.b16 %v2527
    %v2586 = vunpack.c.h.b16 %v2527
    %v2587 = vunpack.c.l.b16 %v2528
    %v2588 = vunpack.c.h.b16 %v2528
    %v2589 = vunpack.c.l.b16 %v2529
    %v2590 = vunpack.c.h.b16 %v2529
    %v2591 = vpack.c.b16 %v2561, %v2559
    %v2592 = vpack.c.b16 %v2562, %v2560
    %v2593 = vpack.c.b16 %v2565, %v2563
    %v2594 = vpack.c.b16 %v2566, %v2564
    %v2595 = vpack.c.b16 %v2569, %v2567
    %v2596 = vpack.c.b16 %v2570, %v2568
    %v2597 = vpack.c.b16 %v2573, %v2571
    %v2598 = vpack.c.b16 %v2574, %v2572
    %v2599 = vpack.c.b16 %v2577, %v2575
    %v2600 = vpack.c.b16 %v2578, %v2576
    %v2601 = vpack.c.b16 %v2581, %v2579
    %v2602 = vpack.c.b16 %v2582, %v2580
    %v2603 = vpack.c.b16 %v2585, %v2583
    %v2604 = vpack.c.b16 %v2586, %v2584
    %v2605 = vpack.c.b16 %v2589, %v2587
    %v2606 = vpack.c.b16 %v2590, %v2588
    %2623 = vmatprep.subr.bf16.mxu0 %v2592
    %2624 = vmatpush1.bf16.msra.mxu0 %v2591
    %2625 = vmatprep.subr.bf16.mxu0 %v2594
    %2626 = vmatpush1.bf16.msra.mxu0 %v2593
    %2627 = vmatprep.subr.bf16.mxu0 %v2596
    %2628 = vmatpush1.bf16.msra.mxu0 %v2595
    %2629 = vmatprep.subr.bf16.mxu0 %v2598
    %2630 = vmatpush1.bf16.msra.mxu0 %v2597
    %2631 = vmatprep.subr.bf16.mxu0 %v2600
    %2632 = vmatpush1.bf16.msra.mxu0 %v2599
    %2633 = vmatprep.subr.bf16.mxu0 %v2602
    %2634 = vmatpush1.bf16.msra.mxu0 %v2601
    %2635 = vmatprep.subr.bf16.mxu0 %v2604
    %2636 = vmatpush1.bf16.msra.mxu0 %v2603
    %2637 = vmatprep.subr.bf16.mxu0 %v2606
    %2638 = vmatpush1.bf16.msra.mxu0 %v2605
    %2639 = vmatprep.subr.bf16.mxu0 0
    %2640 = vmatpush1.bf16.msra.mxu0 0
    %2641 = vmatprep.subr.bf16.mxu0 0
    %2642 = vmatpush1.bf16.msra.mxu0 0
    %2643 = vmatprep.subr.bf16.mxu0 0
    %2644 = vmatpush1.bf16.msra.mxu0 0
    %2645 = vmatprep.subr.bf16.mxu0 0
    %2646 = vmatpush1.bf16.msra.mxu0 0
    %2647 = vmatprep.subr.bf16.mxu0 0
    %2648 = vmatpush1.bf16.msra.mxu0 0
    %2649 = vmatprep.subr.bf16.mxu0 0
    %2650 = vmatpush1.bf16.msra.mxu0 0
    %2651 = vmatprep.subr.bf16.mxu0 0
    %2652 = vmatpush1.bf16.msra.mxu0 0
    %2653 = vmatprep.subr.bf16.mxu0 0
    %2654 = vmatpush1.bf16.msra.mxu0 0
    %2655 = vmatprep.mubr.bf16.mxu0 0
    %2656 = vmatmul.mubr.bf16.gmra.mrb[0].mxu0 %v2512
    %v2657 = vpop.f32.mrb[0].mxu0
    %v2658 = vadd.f32 %v2536, %v2657
    %v2659 = vpop.f32.mrb[0].mxu0
    %v2660 = vadd.f32 %v2540, %v2659
    %v2661 = vpop.f32.mrb[0].mxu0
    %v2662 = vadd.f32 %v2536, %v2661
    %v2663 = vpop.f32.mrb[0].mxu0
    %v2664 = vadd.f32 %v2540, %v2663
    %2665 = vdwg.mxu0
    %v2666 = vpack.c.bf16 %v2662, %v2658
    %v2667 = vpack.c.bf16 %v2664, %v2660
    %v2668 = vmul.f32 %v2507, %v1188
    %v2669 = vmul.f32 %v2507, %v1195
    %v2670 = vmul.f32 %v2507, %v1202
    %v2671 = vmul.f32 %v2507, %v1209
    %v2672 = vpack.c.bf16 %v2669, %v2668
    %v2673 = vpack.c.bf16 %v2671, %v2670
    %2674 = vmatprep.subr.bf16.mxu0 0
    %2675 = vmatpush1.bf16.xpose.msra.mxu0 %v2666
    %2676 = vmatprep.subr.bf16.mxu0 0
    %2677 = vmatpush1.bf16.xpose.msra.mxu0 0
    %2678 = vmatprep.subr.bf16.mxu0 0
    %2679 = vmatpush1.bf16.xpose.msra.mxu0 0
    %2680 = vmatprep.subr.bf16.mxu0 0
    %2681 = vmatpush1.bf16.xpose.msra.mxu0 0
    %2682 = vmatprep.subr.bf16.mxu0 0
    %2683 = vmatpush1.bf16.xpose.msra.mxu0 0
    %2684 = vmatprep.subr.bf16.mxu0 0
    %2685 = vmatpush1.bf16.xpose.msra.mxu0 0
    %2686 = vmatprep.subr.bf16.mxu0 0
    %2687 = vmatpush1.bf16.xpose.msra.mxu0 0
    %2688 = vmatprep.subr.bf16.mxu0 0
    %2689 = vmatpush1.bf16.xpose.msra.mxu0 0
    %2690 = vmatprep.subr.bf16.mxu0 0
    %2691 = vmatpush1.bf16.xpose.msra.mxu0 0
    %2692 = vmatprep.subr.bf16.mxu0 0
    %2693 = vmatpush1.bf16.xpose.msra.mxu0 0
    %2694 = vmatprep.subr.bf16.mxu0 0
    %2695 = vmatpush1.bf16.xpose.msra.mxu0 0
    %2696 = vmatprep.subr.bf16.mxu0 0
    %2697 = vmatpush1.bf16.xpose.msra.mxu0 0
    %2698 = vmatprep.subr.bf16.mxu0 0
    %2699 = vmatpush1.bf16.xpose.msra.mxu0 0
    %2700 = vmatprep.subr.bf16.mxu0 0
    %2701 = vmatpush1.bf16.xpose.msra.mxu0 0
    %2702 = vmatprep.subr.bf16.mxu0 0
    %2703 = vmatpush1.bf16.xpose.msra.mxu0 0
    %2704 = vmatprep.subr.bf16.mxu0 0
    %2705 = vmatpush1.bf16.xpose.msra.mxu0 0
    %2706 = vmatprep.mubr.bf16.mxu0 0
    %2707 = vmatmul.mubr.bf16.gmra.mrb[0].mxu0 %v2672
    %v2708 = vpop.f32.mrb[0].mxu0
    %v2709 = vadd.f32 0.0, %v2708
    %v2710 = vpop.f32.mrb[0].mxu0
    %v2711 = vpop.f32.mrb[0].mxu0
    %v2712 = vadd.f32 0.0, %v2711
    %v2713 = vpop.f32.mrb[0].mxu0
    %2714 = vmatprep.mubr.bf16.mxu0 0
    %2715 = vmatmul.mubr.bf16.gmra.mrb[0].mxu0 %v2673
    %v2716 = vpop.f32.mrb[0].mxu0
    %v2717 = vadd.f32 0.0, %v2716
    %v2718 = vpop.f32.mrb[0].mxu0
    %v2719 = vpop.f32.mrb[0].mxu0
    %v2720 = vadd.f32 0.0, %v2719
    %v2721 = vpop.f32.mrb[0].mxu0
    %2722 = vdwg.mxu0
    %v2723 = vmul.f32 %v2709, 0.17677669
    %v2724 = vmul.f32 %v2712, 0.17677669
    %v2725 = vmul.f32 %v2717, 0.17677669
    %v2726 = vmul.f32 %v2720, 0.17677669
    %v2727 = vsel %vm1267, %v2723, -1e+30
    %v2728 = vsel %vm1267, %v2724, -1e+30
    %v2729 = vsel %vm1267, %v2725, -1e+30
    %v2730 = vsel %vm1267, %v2726, -1e+30
    %v2731 = vsel %vm558, %v2727, -inf
    %2732 = vmax.xlane.f32.xlu0 %v2731
    %v2733 = vpop.xlane.xlu0 %2732
    %v2734 = vsel %vm558, %v2728, -inf
    %2735 = vmax.xlane.f32.xlu0 %v2734
    %v2736 = vpop.xlane.xlu0 %2735
    %v2737 = vsel %vm558, %v2729, -inf
    %2738 = vmax.xlane.f32.xlu0 %v2737
    %v2739 = vpop.xlane.xlu0 %2738
    %v2740 = vsel %vm558, %v2730, -inf
    %2741 = vmax.xlane.f32.xlu0 %v2740
    %v2742 = vpop.xlane.xlu0 %2741
    %v2743 = vsub.f32 %v2727, %v2733
    %v2744 = vsub.f32 %v2728, %v2736
    %v2745 = vsub.f32 %v2729, %v2739
    %v2746 = vsub.f32 %v2730, %v2742
    %v2747 = vmul.f32 %v2743, 1.442695
    %v2748 = vpow.pop %v2747
    %v2749 = vmul.f32 %v2744, 1.442695
    %v2750 = vpow.pop %v2749
    %v2751 = vmul.f32 %v2745, 1.442695
    %v2752 = vpow.pop %v2751
    %v2753 = vmul.f32 %v2746, 1.442695
    %v2754 = vpow.pop %v2753
    %v2755 = vsel %vm558, %v2748, 0.0
    %2756 = vadd.xlane.f32.xlu0 %v2755
    %v2757 = vpop.xlane.xlu0 %2756
    %v2758 = vsel %vm558, %v2750, 0.0
    %2759 = vadd.xlane.f32.xlu0 %v2758
    %v2760 = vpop.xlane.xlu0 %2759
    %v2761 = vsel %vm558, %v2752, 0.0
    %2762 = vadd.xlane.f32.xlu0 %v2761
    %v2763 = vpop.xlane.xlu0 %2762
    %v2764 = vsel %vm558, %v2754, 0.0
    %2765 = vadd.xlane.f32.xlu0 %v2764
    %v2766 = vpop.xlane.xlu0 %2765
    %v2767 = vrcp.pop %v2757
    %v2768 = vmul.f32 %v2748, %v2767
    %v2769 = vrcp.pop %v2760
    %v2770 = vmul.f32 %v2750, %v2769
    %v2771 = vrcp.pop %v2763
    %v2772 = vmul.f32 %v2752, %v2771
    %v2773 = vrcp.pop %v2766
    %v2774 = vmul.f32 %v2754, %v2773
    %v2775 = vpack.c.bf16 %v2770, %v2768
    %v2776 = vpack.c.bf16 %v2774, %v2772
    %v2778 = vsel %vm558, %v2775, 0
    %v2781 = vsel %vm558, %v2776, 0
    %2783 = vmatprep.subr.bf16.mxu0 0
    %2784 = vmatpush1.bf16.msra.mxu0 %v2667
    %2785 = vmatprep.subr.bf16.mxu0 0
    %2786 = vmatpush1.bf16.msra.mxu0 0
    %2787 = vmatprep.subr.bf16.mxu0 0
    %2788 = vmatpush1.bf16.msra.mxu0 0
    %2789 = vmatprep.subr.bf16.mxu0 0
    %2790 = vmatpush1.bf16.msra.mxu0 0
    %2791 = vmatprep.subr.bf16.mxu0 0
    %2792 = vmatpush1.bf16.msra.mxu0 0
    %2793 = vmatprep.subr.bf16.mxu0 0
    %2794 = vmatpush1.bf16.msra.mxu0 0
    %2795 = vmatprep.subr.bf16.mxu0 0
    %2796 = vmatpush1.bf16.msra.mxu0 0
    %2797 = vmatprep.subr.bf16.mxu0 0
    %2798 = vmatpush1.bf16.msra.mxu0 0
    %2799 = vmatprep.subr.bf16.mxu0 0
    %2800 = vmatpush1.bf16.msra.mxu0 0
    %2801 = vmatprep.subr.bf16.mxu0 0
    %2802 = vmatpush1.bf16.msra.mxu0 0
    %2803 = vmatprep.subr.bf16.mxu0 0
    %2804 = vmatpush1.bf16.msra.mxu0 0
    %2805 = vmatprep.subr.bf16.mxu0 0
    %2806 = vmatpush1.bf16.msra.mxu0 0
    %2807 = vmatprep.subr.bf16.mxu0 0
    %2808 = vmatpush1.bf16.msra.mxu0 0
    %2809 = vmatprep.subr.bf16.mxu0 0
    %2810 = vmatpush1.bf16.msra.mxu0 0
    %2811 = vmatprep.subr.bf16.mxu0 0
    %2812 = vmatpush1.bf16.msra.mxu0 0
    %2813 = vmatprep.subr.bf16.mxu0 0
    %2814 = vmatpush1.bf16.msra.mxu0 0
    %2815 = vmatprep.mubr.bf16.mxu0 0
    %2816 = vmatmul.mubr.bf16.gmra.mrb[0].mxu0 %v2778
    %v2817 = vpop.f32.mrb[0].mxu0
    %v2818 = vadd.f32 0.0, %v2817
    %v2819 = vpop.f32.mrb[0].mxu0
    %v2820 = vpop.f32.mrb[0].mxu0
    %v2821 = vadd.f32 0.0, %v2820
    %v2822 = vpop.f32.mrb[0].mxu0
    %2823 = vmatprep.mubr.bf16.mxu0 0
    %2824 = vmatmul.mubr.bf16.gmra.mrb[0].mxu0 %v2781
    %v2825 = vpop.f32.mrb[0].mxu0
    %v2826 = vadd.f32 0.0, %v2825
    %v2827 = vpop.f32.mrb[0].mxu0
    %v2828 = vpop.f32.mrb[0].mxu0
    %v2829 = vadd.f32 0.0, %v2828
    %v2830 = vpop.f32.mrb[0].mxu0
    %2831 = vdwg.mxu0
    %v2832 = vmul.f32 %v2818, %v1188
    %v2833 = vmul.f32 %v2821, %v1195
    %v2834 = vadd.f32 %v2832, %v2833
    %v2835 = vmul.f32 %v2826, %v1202
    %v2836 = vadd.f32 %v2834, %v2835
    %v2837 = vmul.f32 %v2829, %v1209
    %v2838 = vadd.f32 %v2836, %v2837
    %v2839 = vadd.f32 %v2507, %v2838
    %v2840 = vmul.f32 %v2839, %v1385
    %2841 = vadd.xlane.f32.xlu0 %v2840
    %v2842 = vpop.xlane.xlu0 %2841
    %v2843 = vmul.f32 %v2842, 0.03125
    %v2844 = vsub.f32 %v2839, %v2843
    %v2845 = vmul.f32 %v2844, %v1385
    %v2846 = vmul.f32 %v2845, %v2845
    %2847 = vadd.xlane.f32.xlu0 %v2846
    %v2848 = vpop.xlane.xlu0 %2847
    %v2849 = vmul.f32 %v2848, 0.03125
    %v2850 = vadd.f32 %v2849, 1e-05
    %v2851 = vrsqrt.pop %v2850
    %v2852 = vmul.f32 %v2844, %v2851
    %v2854 = vlaneseq
    %v2855 = vshrl.u32 %v2854, 7
    %v2856 = vsub.s32 0, %v2855
    %v2857 = vrot.slane %v2393, %v2856
    %v2859 = vmul.f32 %v2852, %v2857
    %v2861 = vlaneseq
    %v2862 = vshrl.u32 %v2861, 7
    %v2863 = vsub.s32 0, %v2862
    %v2864 = vrot.slane %v2395, %v2863
    %v2866 = vadd.f32 %v2859, %v2864
    %v2867 = vpack.c.bf16 %v2866, %v2866
    %s2868 = scalar_lea.vmem [#allocation12], 128
    %v2869 = vld [vmem:[%s2868] sm:$0xf]
    %v2870 = vld [vmem:[%s2868 + $0x4] sm:$0xf]
    %v2871 = vld [vmem:[%s2868 + $0x8] sm:$0xf]
    %v2872 = vld [vmem:[%s2868 + $0xc] sm:$0xf]
    %v2873 = vld [vmem:[%s2868 + $0x10] sm:$0xf]
    %v2874 = vld [vmem:[%s2868 + $0x14] sm:$0xf]
    %v2875 = vld [vmem:[%s2868 + $0x18] sm:$0xf]
    %v2876 = vld [vmem:[%s2868 + $0x1c] sm:$0xf]
    %v2877 = vld [vmem:[%s2868 + $0x20] sm:$0xf]
    %v2878 = vld [vmem:[%s2868 + $0x24] sm:$0xf]
    %v2879 = vld [vmem:[%s2868 + $0x28] sm:$0xf]
    %v2880 = vld [vmem:[%s2868 + $0x2c] sm:$0xf]
    %v2881 = vld [vmem:[%s2868 + $0x30] sm:$0xf]
    %v2882 = vld [vmem:[%s2868 + $0x34] sm:$0xf]
    %v2883 = vld [vmem:[%s2868 + $0x38] sm:$0xf]
    %v2884 = vld [vmem:[%s2868 + $0x3c] sm:$0xf]
    %v2886 = vlaneseq
    %v2887 = vshrl.u32 %v2886, 7
    %v2888 = vsub.s32 0, %v2887
    %v2889 = vrot.slane %v2391, %v2888
    %v2907 = vunpack.c.l.b16 %v2869
    %v2908 = vunpack.c.l.b16 %v2870
    %v2909 = vunpack.c.l.b16 %v2871
    %v2910 = vunpack.c.l.b16 %v2872
    %v2911 = vunpack.c.l.b16 %v2873
    %v2912 = vunpack.c.l.b16 %v2874
    %v2913 = vunpack.c.l.b16 %v2875
    %v2914 = vunpack.c.l.b16 %v2876
    %v2915 = vunpack.c.l.b16 %v2877
    %v2916 = vunpack.c.l.b16 %v2878
    %v2917 = vunpack.c.l.b16 %v2879
    %v2918 = vunpack.c.l.b16 %v2880
    %v2919 = vunpack.c.l.b16 %v2881
    %v2920 = vunpack.c.l.b16 %v2882
    %v2921 = vunpack.c.l.b16 %v2883
    %v2922 = vunpack.c.l.b16 %v2884
    %v2923 = vpack.c.b16 %v2908, %v2907
    %v2924 = vpack.c.b16 %v2910, %v2909
    %v2925 = vpack.c.b16 %v2912, %v2911
    %v2926 = vpack.c.b16 %v2914, %v2913
    %v2927 = vpack.c.b16 %v2916, %v2915
    %v2928 = vpack.c.b16 %v2918, %v2917
    %v2929 = vpack.c.b16 %v2920, %v2919
    %v2930 = vpack.c.b16 %v2922, %v2921
    %2939 = vmatprep.subr.bf16.mxu0 0
    %2940 = vmatpush1.bf16.msra.mxu0 %v2923
    %2941 = vmatprep.subr.bf16.mxu0 0
    %2942 = vmatpush1.bf16.msra.mxu0 %v2924
    %2943 = vmatprep.subr.bf16.mxu0 0
    %2944 = vmatpush1.bf16.msra.mxu0 %v2925
    %2945 = vmatprep.subr.bf16.mxu0 0
    %2946 = vmatpush1.bf16.msra.mxu0 %v2926
    %2947 = vmatprep.subr.bf16.mxu0 0
    %2948 = vmatpush1.bf16.msra.mxu0 %v2927
    %2949 = vmatprep.subr.bf16.mxu0 0
    %2950 = vmatpush1.bf16.msra.mxu0 %v2928
    %2951 = vmatprep.subr.bf16.mxu0 0
    %2952 = vmatpush1.bf16.msra.mxu0 %v2929
    %2953 = vmatprep.subr.bf16.mxu0 0
    %2954 = vmatpush1.bf16.msra.mxu0 %v2930
    %2955 = vmatprep.subr.bf16.mxu0 0
    %2956 = vmatpush1.bf16.msra.mxu0 0
    %2957 = vmatprep.subr.bf16.mxu0 0
    %2958 = vmatpush1.bf16.msra.mxu0 0
    %2959 = vmatprep.subr.bf16.mxu0 0
    %2960 = vmatpush1.bf16.msra.mxu0 0
    %2961 = vmatprep.subr.bf16.mxu0 0
    %2962 = vmatpush1.bf16.msra.mxu0 0
    %2963 = vmatprep.subr.bf16.mxu0 0
    %2964 = vmatpush1.bf16.msra.mxu0 0
    %2965 = vmatprep.subr.bf16.mxu0 0
    %2966 = vmatpush1.bf16.msra.mxu0 0
    %2967 = vmatprep.subr.bf16.mxu0 0
    %2968 = vmatpush1.bf16.msra.mxu0 0
    %2969 = vmatprep.subr.bf16.mxu0 0
    %2970 = vmatpush1.bf16.msra.mxu0 0
    %2971 = vmatprep.mubr.bf16.mxu0 0
    %2972 = vmatmul.mubr.bf16.gmra.mrb[0].mxu0 %v2867
    %v2973 = vpop.f32.mrb[0].mxu0
    %v2974 = vadd.f32 %v2889, %v2973
    %v2975 = vpop.f32.mrb[0].mxu0
    %v2976 = vpop.f32.mrb[0].mxu0
    %v2977 = vpop.f32.mrb[0].mxu0
    %2978 = vdwg.mxu0
    %v2979 = vmax.f32 %v2974, 0.0
    %v2980 = vadd.f32 %v2866, %v2979
    %v2981 = vmul.f32 %v2980, %v1385
    %2982 = vadd.xlane.f32.xlu0 %v2981
    %v2983 = vpop.xlane.xlu0 %2982
    %v2984 = vmul.f32 %v2983, 0.03125
    %v2985 = vsub.f32 %v2980, %v2984
    %v2986 = vmul.f32 %v2985, %v1385
    %v2987 = vmul.f32 %v2986, %v2986
    %2988 = vadd.xlane.f32.xlu0 %v2987
    %v2989 = vpop.xlane.xlu0 %2988
    %v2990 = vmul.f32 %v2989, 0.03125
    %v2991 = vadd.f32 %v2990, 1e-05
    %v2992 = vrsqrt.pop %v2991
    %v2993 = vmul.f32 %v2985, %v2992
    %v2995 = vlaneseq
    %v2996 = vshrl.u32 %v2995, 7
    %v2997 = vsub.s32 0, %v2996
    %v2998 = vrot.slane %v2397, %v2997
    %v3000 = vmul.f32 %v2993, %v2998
    %v3002 = vlaneseq
    %v3003 = vshrl.u32 %v3002, 7
    %v3004 = vsub.s32 0, %v3003
    %v3005 = vrot.slane %v2399, %v3004
    %v3007 = vadd.f32 %v3000, %v3005
    %s3008 = scalar_lea.vmem %s15, 18
    %v3009 = vld [vmem:[%s3008] sm:$0x1]
    %s3010 = scalar_lea.vmem %s15, 19
    %v3011 = vld [vmem:[%s3010] sm:$0x1]
    %s3012 = scalar_lea.vmem %s15, 20
    %v3013 = vld [vmem:[%s3012] sm:$0x1]
    %s3014 = scalar_lea.vmem %s15, 21
    %v3015 = vld [vmem:[%s3014] sm:$0x1]
    %s3016 = scalar_lea.vmem %s15, 22
    %v3017 = vld [vmem:[%s3016] sm:$0x1]
    %s3018 = scalar_lea.vmem %s15, 23
    %v3019 = vld [vmem:[%s3018] sm:$0x1]
    %s3020 = scalar_lea.vmem %s11, 192
    %v3021 = vld [vmem:[%s3020] sm:$0xf]
    %v3022 = vld [vmem:[%s3020 + $0x4] sm:$0xf]
    %v3023 = vld [vmem:[%s3020 + $0x8] sm:$0xf]
    %v3024 = vld [vmem:[%s3020 + $0xc] sm:$0xf]
    %v3025 = vld [vmem:[%s3020 + $0x10] sm:$0xf]
    %v3026 = vld [vmem:[%s3020 + $0x14] sm:$0xf]
    %v3027 = vld [vmem:[%s3020 + $0x18] sm:$0xf]
    %v3028 = vld [vmem:[%s3020 + $0x1c] sm:$0xf]
    %v3029 = vld [vmem:[%s3020 + $0x20] sm:$0xf]
    %v3030 = vld [vmem:[%s3020 + $0x24] sm:$0xf]
    %v3031 = vld [vmem:[%s3020 + $0x28] sm:$0xf]
    %v3032 = vld [vmem:[%s3020 + $0x2c] sm:$0xf]
    %v3033 = vld [vmem:[%s3020 + $0x30] sm:$0xf]
    %v3034 = vld [vmem:[%s3020 + $0x34] sm:$0xf]
    %v3035 = vld [vmem:[%s3020 + $0x38] sm:$0xf]
    %v3036 = vld [vmem:[%s3020 + $0x3c] sm:$0xf]
    %v3038 = vlaneseq
    %v3039 = vshrl.u32 %v3038, 7
    %v3040 = vsub.s32 0, %v3039
    %v3041 = vrot.slane %v3009, %v3040
    %v3059 = vunpack.c.l.b16 %v3021
    %v3060 = vunpack.c.l.b16 %v3022
    %v3061 = vunpack.c.l.b16 %v3023
    %v3062 = vunpack.c.l.b16 %v3024
    %v3063 = vunpack.c.l.b16 %v3025
    %v3064 = vunpack.c.l.b16 %v3026
    %v3065 = vunpack.c.l.b16 %v3027
    %v3066 = vunpack.c.l.b16 %v3028
    %v3067 = vunpack.c.l.b16 %v3029
    %v3068 = vunpack.c.l.b16 %v3030
    %v3069 = vunpack.c.l.b16 %v3031
    %v3070 = vunpack.c.l.b16 %v3032
    %v3071 = vunpack.c.l.b16 %v3033
    %v3072 = vunpack.c.l.b16 %v3034
    %v3073 = vunpack.c.l.b16 %v3035
    %v3074 = vunpack.c.l.b16 %v3036
    %v3075 = vpack.c.b16 %v3060, %v3059
    %v3076 = vpack.c.b16 %v3062, %v3061
    %v3077 = vpack.c.b16 %v3064, %v3063
    %v3078 = vpack.c.b16 %v3066, %v3065
    %v3079 = vpack.c.b16 %v3068, %v3067
    %v3080 = vpack.c.b16 %v3070, %v3069
    %v3081 = vpack.c.b16 %v3072, %v3071
    %v3082 = vpack.c.b16 %v3074, %v3073
    %3091 = vmatprep.subr.bf16.mxu0 0
    %3092 = vmatpush1.bf16.msra.mxu0 %v3075
    %3093 = vmatprep.subr.bf16.mxu0 0
    %3094 = vmatpush1.bf16.msra.mxu0 %v3076
    %3095 = vmatprep.subr.bf16.mxu0 0
    %3096 = vmatpush1.bf16.msra.mxu0 %v3077
    %3097 = vmatprep.subr.bf16.mxu0 0
    %3098 = vmatpush1.bf16.msra.mxu0 %v3078
    %3099 = vmatprep.subr.bf16.mxu0 0
    %3100 = vmatpush1.bf16.msra.mxu0 %v3079
    %3101 = vmatprep.subr.bf16.mxu0 0
    %3102 = vmatpush1.bf16.msra.mxu0 %v3080
    %3103 = vmatprep.subr.bf16.mxu0 0
    %3104 = vmatpush1.bf16.msra.mxu0 %v3081
    %3105 = vmatprep.subr.bf16.mxu0 0
    %3106 = vmatpush1.bf16.msra.mxu0 %v3082
    %3107 = vmatprep.subr.bf16.mxu0 0
    %3108 = vmatpush1.bf16.msra.mxu0 0
    %3109 = vmatprep.subr.bf16.mxu0 0
    %3110 = vmatpush1.bf16.msra.mxu0 0
    %3111 = vmatprep.subr.bf16.mxu0 0
    %3112 = vmatpush1.bf16.msra.mxu0 0
    %3113 = vmatprep.subr.bf16.mxu0 0
    %3114 = vmatpush1.bf16.msra.mxu0 0
    %3115 = vmatprep.subr.bf16.mxu0 0
    %3116 = vmatpush1.bf16.msra.mxu0 0
    %3117 = vmatprep.subr.bf16.mxu0 0
    %3118 = vmatpush1.bf16.msra.mxu0 0
    %3119 = vmatprep.subr.bf16.mxu0 0
    %3120 = vmatpush1.bf16.msra.mxu0 0
    %3121 = vmatprep.subr.bf16.mxu0 0
    %3122 = vmatpush1.bf16.msra.mxu0 0
    %3123 = vmatprep.mubr.bf16.mxu0 0
    %3124 = vmatmul.mubr.bf16.gmra.mrb[0].mxu0 %v2512
    %v3125 = vpop.f32.mrb[0].mxu0
    %v3126 = vadd.f32 %v3041, %v3125
    %v3127 = vpop.f32.mrb[0].mxu0
    %v3128 = vpop.f32.mrb[0].mxu0
    %v3129 = vadd.f32 %v3041, %v3128
    %v3130 = vpop.f32.mrb[0].mxu0
    %3131 = vdwg.mxu0
    %v3132 = vpack.c.bf16 %v3007, %v3007
    %s3133 = scalar_lea.vmem [#allocation10], 384
    %v3134 = vld [vmem:[%s3133] sm:$0xff]
    %v3135 = vld [vmem:[%s3133 + $0x8] sm:$0xff]
    %v3136 = vld [vmem:[%s3133 + $0x10] sm:$0xff]
    %v3137 = vld [vmem:[%s3133 + $0x18] sm:$0xff]
    %v3138 = vld [vmem:[%s3133 + $0x20] sm:$0xff]
    %v3139 = vld [vmem:[%s3133 + $0x28] sm:$0xff]
    %v3140 = vld [vmem:[%s3133 + $0x30] sm:$0xff]
    %v3141 = vld [vmem:[%s3133 + $0x38] sm:$0xff]
    %v3142 = vld [vmem:[%s3133 + $0x40] sm:$0xff]
    %v3143 = vld [vmem:[%s3133 + $0x48] sm:$0xff]
    %v3144 = vld [vmem:[%s3133 + $0x50] sm:$0xff]
    %v3145 = vld [vmem:[%s3133 + $0x58] sm:$0xff]
    %v3146 = vld [vmem:[%s3133 + $0x60] sm:$0xff]
    %v3147 = vld [vmem:[%s3133 + $0x68] sm:$0xff]
    %v3148 = vld [vmem:[%s3133 + $0x70] sm:$0xff]
    %v3149 = vld [vmem:[%s3133 + $0x78] sm:$0xff]
    %s3150 = scalar_lea.vmem [#allocation13], 6
    %v3151 = vld [vmem:[%s3150] sm:$0x3]
    %v3153 = vlaneseq
    %v3154 = vshrl.u32 %v3153, 7
    %v3155 = vsub.s32 0, %v3154
    %v3156 = vrot.slane %v3151, %v3155
    %v3157 = vlaneseq
    %v3158 = vshrl.u32 %v3157, 7
    %v3159 = vsub.s32 1, %v3158
    %v3160 = vrot.slane %v3151, %v3159
    %v3179 = vunpack.c.l.b16 %v3134
    %v3180 = vunpack.c.h.b16 %v3134
    %v3181 = vunpack.c.l.b16 %v3135
    %v3182 = vunpack.c.h.b16 %v3135
    %v3183 = vunpack.c.l.b16 %v3136
    %v3184 = vunpack.c.h.b16 %v3136
    %v3185 = vunpack.c.l.b16 %v3137
    %v3186 = vunpack.c.h.b16 %v3137
    %v3187 = vunpack.c.l.b16 %v3138
    %v3188 = vunpack.c.h.b16 %v3138
    %v3189 = vunpack.c.l.b16 %v3139
    %v3190 = vunpack.c.h.b16 %v3139
    %v3191 = vunpack.c.l.b16 %v3140
    %v3192 = vunpack.c.h.b16 %v3140
    %v3193 = vunpack.c.l.b16 %v3141
    %v3194 = vunpack.c.h.b16 %v3141
    %v3195 = vunpack.c.l.b16 %v3142
    %v3196 = vunpack.c.h.b16 %v3142
    %v3197 = vunpack.c.l.b16 %v3143
    %v3198 = vunpack.c.h.b16 %v3143
    %v3199 = vunpack.c.l.b16 %v3144
    %v3200 = vunpack.c.h.b16 %v3144
    %v3201 = vunpack.c.l.b16 %v3145
    %v3202 = vunpack.c.h.b16 %v3145
    %v3203 = vunpack.c.l.b16 %v3146
    %v3204 = vunpack.c.h.b16 %v3146
    %v3205 = vunpack.c.l.b16 %v3147
    %v3206 = vunpack.c.h.b16 %v3147
    %v3207 = vunpack.c.l.b16 %v3148
    %v3208 = vunpack.c.h.b16 %v3148
    %v3209 = vunpack.c.l.b16 %v3149
    %v3210 = vunpack.c.h.b16 %v3149
    %v3211 = vpack.c.b16 %v3181, %v3179
    %v3212 = vpack.c.b16 %v3182, %v3180
    %v3213 = vpack.c.b16 %v3185, %v3183
    %v3214 = vpack.c.b16 %v3186, %v3184
    %v3215 = vpack.c.b16 %v3189, %v3187
    %v3216 = vpack.c.b16 %v3190, %v3188
    %v3217 = vpack.c.b16 %v3193, %v3191
    %v3218 = vpack.c.b16 %v3194, %v3192
    %v3219 = vpack.c.b16 %v3197, %v3195
    %v3220 = vpack.c.b16 %v3198, %v3196
    %v3221 = vpack.c.b16 %v3201, %v3199
    %v3222 = vpack.c.b16 %v3202, %v3200
    %v3223 = vpack.c.b16 %v3205, %v3203
    %v3224 = vpack.c.b16 %v3206, %v3204
    %v3225 = vpack.c.b16 %v3209, %v3207
    %v3226 = vpack.c.b16 %v3210, %v3208
    %3243 = vmatprep.subr.bf16.mxu0 %v3212
    %3244 = vmatpush1.bf16.msra.mxu0 %v3211
    %3245 = vmatprep.subr.bf16.mxu0 %v3214
    %3246 = vmatpush1.bf16.msra.mxu0 %v3213
    %3247 = vmatprep.subr.bf16.mxu0 %v3216
    %3248 = vmatpush1.bf16.msra.mxu0 %v3215
    %3249 = vmatprep.subr.bf16.mxu0 %v3218
    %3250 = vmatpush1.bf16.msra.mxu0 %v3217
    %3251 = vmatprep.subr.bf16.mxu0 %v3220
    %3252 = vmatpush1.bf16.msra.mxu0 %v3219
    %3253 = vmatprep.subr.bf16.mxu0 %v3222
    %3254 = vmatpush1.bf16.msra.mxu0 %v3221
    %3255 = vmatprep.subr.bf16.mxu0 %v3224
    %3256 = vmatpush1.bf16.msra.mxu0 %v3223
    %3257 = vmatprep.subr.bf16.mxu0 %v3226
    %3258 = vmatpush1.bf16.msra.mxu0 %v3225
    %3259 = vmatprep.subr.bf16.mxu0 0
    %3260 = vmatpush1.bf16.msra.mxu0 0
    %3261 = vmatprep.subr.bf16.mxu0 0
    %3262 = vmatpush1.bf16.msra.mxu0 0
    %3263 = vmatprep.subr.bf16.mxu0 0
    %3264 = vmatpush1.bf16.msra.mxu0 0
    %3265 = vmatprep.subr.bf16.mxu0 0
    %3266 = vmatpush1.bf16.msra.mxu0 0
    %3267 = vmatprep.subr.bf16.mxu0 0
    %3268 = vmatpush1.bf16.msra.mxu0 0
    %3269 = vmatprep.subr.bf16.mxu0 0
    %3270 = vmatpush1.bf16.msra.mxu0 0
    %3271 = vmatprep.subr.bf16.mxu0 0
    %3272 = vmatpush1.bf16.msra.mxu0 0
    %3273 = vmatprep.subr.bf16.mxu0 0
    %3274 = vmatpush1.bf16.msra.mxu0 0
    %3275 = vmatprep.mubr.bf16.mxu0 0
    %3276 = vmatmul.mubr.bf16.gmra.mrb[0].mxu0 %v3132
    %v3277 = vpop.f32.mrb[0].mxu0
    %v3278 = vadd.f32 %v3156, %v3277
    %v3279 = vpop.f32.mrb[0].mxu0
    %v3280 = vadd.f32 %v3160, %v3279
    %v3281 = vpop.f32.mrb[0].mxu0
    %v3282 = vpop.f32.mrb[0].mxu0
    %3283 = vdwg.mxu0
    %v3284 = vpack.c.bf16 %v3278, %v3278
    %v3285 = vpack.c.bf16 %v3280, %v3280
    %v3286 = vmul.f32 %v3126, %v1188
    %v3287 = vmul.f32 %v3129, %v1188
    %v3288 = vmul.f32 %v3126, %v1195
    %v3289 = vmul.f32 %v3129, %v1195
    %v3290 = vmul.f32 %v3126, %v1202
    %v3291 = vmul.f32 %v3129, %v1202
    %v3292 = vmul.f32 %v3126, %v1209
    %v3293 = vmul.f32 %v3129, %v1209
    %v3294 = vpack.c.bf16 %v3287, %v3286
    %v3295 = vpack.c.bf16 %v3289, %v3288
    %v3296 = vpack.c.bf16 %v3291, %v3290
    %v3297 = vpack.c.bf16 %v3293, %v3292
    %3298 = vmatprep.subr.bf16.mxu0 0
    %3299 = vmatpush1.bf16.xpose.msra.mxu0 %v3284
    %3300 = vmatprep.subr.bf16.mxu0 0
    %3301 = vmatpush1.bf16.xpose.msra.mxu0 0
    %3302 = vmatprep.subr.bf16.mxu0 0
    %3303 = vmatpush1.bf16.xpose.msra.mxu0 0
    %3304 = vmatprep.subr.bf16.mxu0 0
    %3305 = vmatpush1.bf16.xpose.msra.mxu0 0
    %3306 = vmatprep.subr.bf16.mxu0 0
    %3307 = vmatpush1.bf16.xpose.msra.mxu0 0
    %3308 = vmatprep.subr.bf16.mxu0 0
    %3309 = vmatpush1.bf16.xpose.msra.mxu0 0
    %3310 = vmatprep.subr.bf16.mxu0 0
    %3311 = vmatpush1.bf16.xpose.msra.mxu0 0
    %3312 = vmatprep.subr.bf16.mxu0 0
    %3313 = vmatpush1.bf16.xpose.msra.mxu0 0
    %3314 = vmatprep.subr.bf16.mxu0 0
    %3315 = vmatpush1.bf16.xpose.msra.mxu0 0
    %3316 = vmatprep.subr.bf16.mxu0 0
    %3317 = vmatpush1.bf16.xpose.msra.mxu0 0
    %3318 = vmatprep.subr.bf16.mxu0 0
    %3319 = vmatpush1.bf16.xpose.msra.mxu0 0
    %3320 = vmatprep.subr.bf16.mxu0 0
    %3321 = vmatpush1.bf16.xpose.msra.mxu0 0
    %3322 = vmatprep.subr.bf16.mxu0 0
    %3323 = vmatpush1.bf16.xpose.msra.mxu0 0
    %3324 = vmatprep.subr.bf16.mxu0 0
    %3325 = vmatpush1.bf16.xpose.msra.mxu0 0
    %3326 = vmatprep.subr.bf16.mxu0 0
    %3327 = vmatpush1.bf16.xpose.msra.mxu0 0
    %3328 = vmatprep.subr.bf16.mxu0 0
    %3329 = vmatpush1.bf16.xpose.msra.mxu0 0
    %3330 = vmatprep.mubr.bf16.mxu0 0
    %3331 = vmatmul.mubr.bf16.gmra.mrb[0].mxu0 %v3294
    %v3332 = vpop.f32.mrb[0].mxu0
    %v3333 = vadd.f32 0.0, %v3332
    %v3334 = vpop.f32.mrb[0].mxu0
    %v3335 = vpop.f32.mrb[0].mxu0
    %v3336 = vadd.f32 0.0, %v3335
    %v3337 = vpop.f32.mrb[0].mxu0
    %3338 = vmatprep.mubr.bf16.mxu0 0
    %3339 = vmatmul.mubr.bf16.gmra.mrb[0].mxu0 %v3295
    %v3340 = vpop.f32.mrb[0].mxu0
    %v3341 = vadd.f32 0.0, %v3340
    %v3342 = vpop.f32.mrb[0].mxu0
    %v3343 = vpop.f32.mrb[0].mxu0
    %v3344 = vadd.f32 0.0, %v3343
    %v3345 = vpop.f32.mrb[0].mxu0
    %3346 = vmatprep.mubr.bf16.mxu0 0
    %3347 = vmatmul.mubr.bf16.gmra.mrb[0].mxu0 %v3296
    %v3348 = vpop.f32.mrb[0].mxu0
    %v3349 = vadd.f32 0.0, %v3348
    %v3350 = vpop.f32.mrb[0].mxu0
    %v3351 = vpop.f32.mrb[0].mxu0
    %v3352 = vadd.f32 0.0, %v3351
    %v3353 = vpop.f32.mrb[0].mxu0
    %3354 = vmatprep.mubr.bf16.mxu0 0
    %3355 = vmatmul.mubr.bf16.gmra.mrb[0].mxu0 %v3297
    %v3356 = vpop.f32.mrb[0].mxu0
    %v3357 = vadd.f32 0.0, %v3356
    %v3358 = vpop.f32.mrb[0].mxu0
    %v3359 = vpop.f32.mrb[0].mxu0
    %v3360 = vadd.f32 0.0, %v3359
    %v3361 = vpop.f32.mrb[0].mxu0
    %3362 = vdwg.mxu0
    %v3363 = vmul.f32 %v3333, 0.17677669
    %v3364 = vmul.f32 %v3336, 0.17677669
    %v3365 = vmul.f32 %v3341, 0.17677669
    %v3366 = vmul.f32 %v3344, 0.17677669
    %v3367 = vmul.f32 %v3349, 0.17677669
    %v3368 = vmul.f32 %v3352, 0.17677669
    %v3369 = vmul.f32 %v3357, 0.17677669
    %v3370 = vmul.f32 %v3360, 0.17677669
    %v3371 = vsel %vm1917, %v3363, -1e+30
    %v3372 = vsel %vm1918, %v3364, -1e+30
    %v3373 = vsel %vm1917, %v3365, -1e+30
    %v3374 = vsel %vm1918, %v3366, -1e+30
    %v3375 = vsel %vm1917, %v3367, -1e+30
    %v3376 = vsel %vm1918, %v3368, -1e+30
    %v3377 = vsel %vm1917, %v3369, -1e+30
    %v3378 = vsel %vm1918, %v3370, -1e+30
    %v3379 = vsel %vm1927, %v3371, -inf
    %3380 = vmax.xlane.f32.xlu0 %v3379
    %v3381 = vpop.xlane.xlu0 %3380
    %v3382 = vsel %vm1927, %v3372, -inf
    %3383 = vmax.xlane.f32.xlu0 %v3382
    %v3384 = vpop.xlane.xlu0 %3383
    %v3385 = vsel %vm1927, %v3373, -inf
    %3386 = vmax.xlane.f32.xlu0 %v3385
    %v3387 = vpop.xlane.xlu0 %3386
    %v3388 = vsel %vm1927, %v3374, -inf
    %3389 = vmax.xlane.f32.xlu0 %v3388
    %v3390 = vpop.xlane.xlu0 %3389
    %v3391 = vsel %vm1927, %v3375, -inf
    %3392 = vmax.xlane.f32.xlu0 %v3391
    %v3393 = vpop.xlane.xlu0 %3392
    %v3394 = vsel %vm1927, %v3376, -inf
    %3395 = vmax.xlane.f32.xlu0 %v3394
    %v3396 = vpop.xlane.xlu0 %3395
    %v3397 = vsel %vm1927, %v3377, -inf
    %3398 = vmax.xlane.f32.xlu0 %v3397
    %v3399 = vpop.xlane.xlu0 %3398
    %v3400 = vsel %vm1927, %v3378, -inf
    %3401 = vmax.xlane.f32.xlu0 %v3400
    %v3402 = vpop.xlane.xlu0 %3401
    %v3403 = vsub.f32 %v3371, %v3381
    %v3404 = vsub.f32 %v3372, %v3384
    %v3405 = vsub.f32 %v3373, %v3387
    %v3406 = vsub.f32 %v3374, %v3390
    %v3407 = vsub.f32 %v3375, %v3393
    %v3408 = vsub.f32 %v3376, %v3396
    %v3409 = vsub.f32 %v3377, %v3399
    %v3410 = vsub.f32 %v3378, %v3402
    %v3411 = vmul.f32 %v3403, 1.442695
    %v3412 = vpow.pop %v3411
    %v3413 = vmul.f32 %v3404, 1.442695
    %v3414 = vpow.pop %v3413
    %v3415 = vmul.f32 %v3405, 1.442695
    %v3416 = vpow.pop %v3415
    %v3417 = vmul.f32 %v3406, 1.442695
    %v3418 = vpow.pop %v3417
    %v3419 = vmul.f32 %v3407, 1.442695
    %v3420 = vpow.pop %v3419
    %v3421 = vmul.f32 %v3408, 1.442695
    %v3422 = vpow.pop %v3421
    %v3423 = vmul.f32 %v3409, 1.442695
    %v3424 = vpow.pop %v3423
    %v3425 = vmul.f32 %v3410, 1.442695
    %v3426 = vpow.pop %v3425
    %v3427 = vsel %vm1927, %v3412, 0.0
    %3428 = vadd.xlane.f32.xlu0 %v3427
    %v3429 = vpop.xlane.xlu0 %3428
    %v3430 = vsel %vm1927, %v3414, 0.0
    %3431 = vadd.xlane.f32.xlu0 %v3430
    %v3432 = vpop.xlane.xlu0 %3431
    %v3433 = vsel %vm1927, %v3416, 0.0
    %3434 = vadd.xlane.f32.xlu0 %v3433
    %v3435 = vpop.xlane.xlu0 %3434
    %v3436 = vsel %vm1927, %v3418, 0.0
    %3437 = vadd.xlane.f32.xlu0 %v3436
    %v3438 = vpop.xlane.xlu0 %3437
    %v3439 = vsel %vm1927, %v3420, 0.0
    %3440 = vadd.xlane.f32.xlu0 %v3439
    %v3441 = vpop.xlane.xlu0 %3440
    %v3442 = vsel %vm1927, %v3422, 0.0
    %3443 = vadd.xlane.f32.xlu0 %v3442
    %v3444 = vpop.xlane.xlu0 %3443
    %v3445 = vsel %vm1927, %v3424, 0.0
    %3446 = vadd.xlane.f32.xlu0 %v3445
    %v3447 = vpop.xlane.xlu0 %3446
    %v3448 = vsel %vm1927, %v3426, 0.0
    %3449 = vadd.xlane.f32.xlu0 %v3448
    %v3450 = vpop.xlane.xlu0 %3449
    %v3451 = vrcp.pop %v3429
    %v3452 = vmul.f32 %v3412, %v3451
    %v3453 = vrcp.pop %v3432
    %v3454 = vmul.f32 %v3414, %v3453
    %v3455 = vrcp.pop %v3435
    %v3456 = vmul.f32 %v3416, %v3455
    %v3457 = vrcp.pop %v3438
    %v3458 = vmul.f32 %v3418, %v3457
    %v3459 = vrcp.pop %v3441
    %v3460 = vmul.f32 %v3420, %v3459
    %v3461 = vrcp.pop %v3444
    %v3462 = vmul.f32 %v3422, %v3461
    %v3463 = vrcp.pop %v3447
    %v3464 = vmul.f32 %v3424, %v3463
    %v3465 = vrcp.pop %v3450
    %v3466 = vmul.f32 %v3426, %v3465
    %v3467 = vpack.c.bf16 %v3454, %v3452
    %v3468 = vpack.c.bf16 %v3458, %v3456
    %v3469 = vpack.c.bf16 %v3462, %v3460
    %v3470 = vpack.c.bf16 %v3466, %v3464
    %v3472 = vsel %vm1927, %v3467, 0
    %v3475 = vsel %vm1927, %v3468, 0
    %v3478 = vsel %vm1927, %v3469, 0
    %v3481 = vsel %vm1927, %v3470, 0
    %v3484 = vsel %vm2032, %v3285, 0
    %3486 = vmatprep.subr.bf16.mxu0 0
    %3487 = vmatpush1.bf16.msra.mxu0 %v3484
    %3488 = vmatprep.subr.bf16.mxu0 0
    %3489 = vmatpush1.bf16.msra.mxu0 0
    %3490 = vmatprep.subr.bf16.mxu0 0
    %3491 = vmatpush1.bf16.msra.mxu0 0
    %3492 = vmatprep.subr.bf16.mxu0 0
    %3493 = vmatpush1.bf16.msra.mxu0 0
    %3494 = vmatprep.subr.bf16.mxu0 0
    %3495 = vmatpush1.bf16.msra.mxu0 0
    %3496 = vmatprep.subr.bf16.mxu0 0
    %3497 = vmatpush1.bf16.msra.mxu0 0
    %3498 = vmatprep.subr.bf16.mxu0 0
    %3499 = vmatpush1.bf16.msra.mxu0 0
    %3500 = vmatprep.subr.bf16.mxu0 0
    %3501 = vmatpush1.bf16.msra.mxu0 0
    %3502 = vmatprep.subr.bf16.mxu0 0
    %3503 = vmatpush1.bf16.msra.mxu0 0
    %3504 = vmatprep.subr.bf16.mxu0 0
    %3505 = vmatpush1.bf16.msra.mxu0 0
    %3506 = vmatprep.subr.bf16.mxu0 0
    %3507 = vmatpush1.bf16.msra.mxu0 0
    %3508 = vmatprep.subr.bf16.mxu0 0
    %3509 = vmatpush1.bf16.msra.mxu0 0
    %3510 = vmatprep.subr.bf16.mxu0 0
    %3511 = vmatpush1.bf16.msra.mxu0 0
    %3512 = vmatprep.subr.bf16.mxu0 0
    %3513 = vmatpush1.bf16.msra.mxu0 0
    %3514 = vmatprep.subr.bf16.mxu0 0
    %3515 = vmatpush1.bf16.msra.mxu0 0
    %3516 = vmatprep.subr.bf16.mxu0 0
    %3517 = vmatpush1.bf16.msra.mxu0 0
    %3518 = vmatprep.mubr.bf16.mxu0 0
    %3519 = vmatmul.mubr.bf16.gmra.mrb[0].mxu0 %v3472
    %v3520 = vpop.f32.mrb[0].mxu0
    %v3521 = vadd.f32 0.0, %v3520
    %v3522 = vpop.f32.mrb[0].mxu0
    %v3523 = vpop.f32.mrb[0].mxu0
    %v3524 = vadd.f32 0.0, %v3523
    %v3525 = vpop.f32.mrb[0].mxu0
    %3526 = vmatprep.mubr.bf16.mxu0 0
    %3527 = vmatmul.mubr.bf16.gmra.mrb[0].mxu0 %v3475
    %v3528 = vpop.f32.mrb[0].mxu0
    %v3529 = vadd.f32 0.0, %v3528
    %v3530 = vpop.f32.mrb[0].mxu0
    %v3531 = vpop.f32.mrb[0].mxu0
    %v3532 = vadd.f32 0.0, %v3531
    %v3533 = vpop.f32.mrb[0].mxu0
    %3534 = vmatprep.mubr.bf16.mxu0 0
    %3535 = vmatmul.mubr.bf16.gmra.mrb[0].mxu0 %v3478
    %v3536 = vpop.f32.mrb[0].mxu0
    %v3537 = vadd.f32 0.0, %v3536
    %v3538 = vpop.f32.mrb[0].mxu0
    %v3539 = vpop.f32.mrb[0].mxu0
    %v3540 = vadd.f32 0.0, %v3539
    %v3541 = vpop.f32.mrb[0].mxu0
    %3542 = vmatprep.mubr.bf16.mxu0 0
    %3543 = vmatmul.mubr.bf16.gmra.mrb[0].mxu0 %v3481
    %v3544 = vpop.f32.mrb[0].mxu0
    %v3545 = vadd.f32 0.0, %v3544
    %v3546 = vpop.f32.mrb[0].mxu0
    %v3547 = vpop.f32.mrb[0].mxu0
    %v3548 = vadd.f32 0.0, %v3547
    %v3549 = vpop.f32.mrb[0].mxu0
    %3550 = vdwg.mxu0
    %v3551 = vmul.f32 %v3521, %v1188
    %v3552 = vmul.f32 %v3524, %v1188
    %v3553 = vmul.f32 %v3529, %v1195
    %v3554 = vmul.f32 %v3532, %v1195
    %v3555 = vadd.f32 %v3551, %v3553
    %v3556 = vadd.f32 %v3552, %v3554
    %v3557 = vmul.f32 %v3537, %v1202
    %v3558 = vmul.f32 %v3540, %v1202
    %v3559 = vadd.f32 %v3555, %v3557
    %v3560 = vadd.f32 %v3556, %v3558
    %v3561 = vmul.f32 %v3545, %v1209
    %v3562 = vmul.f32 %v3548, %v1209
    %v3563 = vadd.f32 %v3559, %v3561
    %v3564 = vadd.f32 %v3560, %v3562
    %v3565 = vadd.f32 %v3126, %v3563
    %v3566 = vadd.f32 %v3129, %v3564
    %v3567 = vmul.f32 %v3565, %v1385
    %v3568 = vmul.f32 %v3566, %v1385
    %3569 = vadd.xlane.f32.xlu0 %v3567
    %v3570 = vpop.xlane.xlu0 %3569
    %3571 = vadd.xlane.f32.xlu0 %v3568
    %v3572 = vpop.xlane.xlu0 %3571
    %v3573 = vmul.f32 %v3570, 0.03125
    %v3574 = vmul.f32 %v3572, 0.03125
    %v3575 = vsub.f32 %v3565, %v3573
    %v3576 = vsub.f32 %v3566, %v3574
    %v3577 = vmul.f32 %v3575, %v1385
    %v3578 = vmul.f32 %v3576, %v1385
    %v3579 = vmul.f32 %v3577, %v3577
    %v3580 = vmul.f32 %v3578, %v3578
    %3581 = vadd.xlane.f32.xlu0 %v3579
    %v3582 = vpop.xlane.xlu0 %3581
    %3583 = vadd.xlane.f32.xlu0 %v3580
    %v3584 = vpop.xlane.xlu0 %3583
    %v3585 = vmul.f32 %v3582, 0.03125
    %v3586 = vmul.f32 %v3584, 0.03125
    %v3587 = vadd.f32 %v3585, 1e-05
    %v3588 = vadd.f32 %v3586, 1e-05
    %v3589 = vrsqrt.pop %v3587
    %v3590 = vrsqrt.pop %v3588
    %v3591 = vmul.f32 %v3575, %v3589
    %v3592 = vmul.f32 %v3576, %v3590
    %v3594 = vlaneseq
    %v3595 = vshrl.u32 %v3594, 7
    %v3596 = vsub.s32 0, %v3595
    %v3597 = vrot.slane %v3013, %v3596
    %v3599 = vmul.f32 %v3591, %v3597
    %v3600 = vmul.f32 %v3592, %v3597
    %v3602 = vlaneseq
    %v3603 = vshrl.u32 %v3602, 7
    %v3604 = vsub.s32 0, %v3603
    %v3605 = vrot.slane %v3015, %v3604
    %v3607 = vadd.f32 %v3599, %v3605
    %v3608 = vadd.f32 %v3600, %v3605
    %v3609 = vpack.c.bf16 %v3608, %v3607
    %s3610 = scalar_lea.vmem [#allocation12], 192
    %v3611 = vld [vmem:[%s3610] sm:$0xf]
    %v3612 = vld [vmem:[%s3610 + $0x4] sm:$0xf]
    %v3613 = vld [vmem:[%s3610 + $0x8] sm:$0xf]
    %v3614 = vld [vmem:[%s3610 + $0xc] sm:$0xf]
    %v3615 = vld [vmem:[%s3610 + $0x10] sm:$0xf]
    %v3616 = vld [vmem:[%s3610 + $0x14] sm:$0xf]
    %v3617 = vld [vmem:[%s3610 + $0x18] sm:$0xf]
    %v3618 = vld [vmem:[%s3610 + $0x1c] sm:$0xf]
    %v3619 = vld [vmem:[%s3610 + $0x20] sm:$0xf]
    %v3620 = vld [vmem:[%s3610 + $0x24] sm:$0xf]
    %v3621 = vld [vmem:[%s3610 + $0x28] sm:$0xf]
    %v3622 = vld [vmem:[%s3610 + $0x2c] sm:$0xf]
    %v3623 = vld [vmem:[%s3610 + $0x30] sm:$0xf]
    %v3624 = vld [vmem:[%s3610 + $0x34] sm:$0xf]
    %v3625 = vld [vmem:[%s3610 + $0x38] sm:$0xf]
    %v3626 = vld [vmem:[%s3610 + $0x3c] sm:$0xf]
    %v3628 = vlaneseq
    %v3629 = vshrl.u32 %v3628, 7
    %v3630 = vsub.s32 0, %v3629
    %v3631 = vrot.slane %v3011, %v3630
    %v3649 = vunpack.c.l.b16 %v3611
    %v3650 = vunpack.c.l.b16 %v3612
    %v3651 = vunpack.c.l.b16 %v3613
    %v3652 = vunpack.c.l.b16 %v3614
    %v3653 = vunpack.c.l.b16 %v3615
    %v3654 = vunpack.c.l.b16 %v3616
    %v3655 = vunpack.c.l.b16 %v3617
    %v3656 = vunpack.c.l.b16 %v3618
    %v3657 = vunpack.c.l.b16 %v3619
    %v3658 = vunpack.c.l.b16 %v3620
    %v3659 = vunpack.c.l.b16 %v3621
    %v3660 = vunpack.c.l.b16 %v3622
    %v3661 = vunpack.c.l.b16 %v3623
    %v3662 = vunpack.c.l.b16 %v3624
    %v3663 = vunpack.c.l.b16 %v3625
    %v3664 = vunpack.c.l.b16 %v3626
    %v3665 = vpack.c.b16 %v3650, %v3649
    %v3666 = vpack.c.b16 %v3652, %v3651
    %v3667 = vpack.c.b16 %v3654, %v3653
    %v3668 = vpack.c.b16 %v3656, %v3655
    %v3669 = vpack.c.b16 %v3658, %v3657
    %v3670 = vpack.c.b16 %v3660, %v3659
    %v3671 = vpack.c.b16 %v3662, %v3661
    %v3672 = vpack.c.b16 %v3664, %v3663
    %3681 = vmatprep.subr.bf16.mxu0 0
    %3682 = vmatpush1.bf16.msra.mxu0 %v3665
    %3683 = vmatprep.subr.bf16.mxu0 0
    %3684 = vmatpush1.bf16.msra.mxu0 %v3666
    %3685 = vmatprep.subr.bf16.mxu0 0
    %3686 = vmatpush1.bf16.msra.mxu0 %v3667
    %3687 = vmatprep.subr.bf16.mxu0 0
    %3688 = vmatpush1.bf16.msra.mxu0 %v3668
    %3689 = vmatprep.subr.bf16.mxu0 0
    %3690 = vmatpush1.bf16.msra.mxu0 %v3669
    %3691 = vmatprep.subr.bf16.mxu0 0
    %3692 = vmatpush1.bf16.msra.mxu0 %v3670
    %3693 = vmatprep.subr.bf16.mxu0 0
    %3694 = vmatpush1.bf16.msra.mxu0 %v3671
    %3695 = vmatprep.subr.bf16.mxu0 0
    %3696 = vmatpush1.bf16.msra.mxu0 %v3672
    %3697 = vmatprep.subr.bf16.mxu0 0
    %3698 = vmatpush1.bf16.msra.mxu0 0
    %3699 = vmatprep.subr.bf16.mxu0 0
    %3700 = vmatpush1.bf16.msra.mxu0 0
    %3701 = vmatprep.subr.bf16.mxu0 0
    %3702 = vmatpush1.bf16.msra.mxu0 0
    %3703 = vmatprep.subr.bf16.mxu0 0
    %3704 = vmatpush1.bf16.msra.mxu0 0
    %3705 = vmatprep.subr.bf16.mxu0 0
    %3706 = vmatpush1.bf16.msra.mxu0 0
    %3707 = vmatprep.subr.bf16.mxu0 0
    %3708 = vmatpush1.bf16.msra.mxu0 0
    %3709 = vmatprep.subr.bf16.mxu0 0
    %3710 = vmatpush1.bf16.msra.mxu0 0
    %3711 = vmatprep.subr.bf16.mxu0 0
    %3712 = vmatpush1.bf16.msra.mxu0 0
    %3713 = vmatprep.mubr.bf16.mxu0 0
    %3714 = vmatmul.mubr.bf16.gmra.mrb[0].mxu0 %v3609
    %v3715 = vpop.f32.mrb[0].mxu0
    %v3716 = vadd.f32 %v3631, %v3715
    %v3717 = vpop.f32.mrb[0].mxu0
    %v3718 = vpop.f32.mrb[0].mxu0
    %v3719 = vadd.f32 %v3631, %v3718
    %v3720 = vpop.f32.mrb[0].mxu0
    %3721 = vdwg.mxu0
    %v3722 = vmax.f32 %v3716, 0.0
    %v3723 = vmax.f32 %v3719, 0.0
    %v3724 = vadd.f32 %v3607, %v3722
    %v3725 = vadd.f32 %v3608, %v3723
    %v3726 = vmul.f32 %v3724, %v1385
    %v3727 = vmul.f32 %v3725, %v1385
    %3728 = vadd.xlane.f32.xlu0 %v3726
    %v3729 = vpop.xlane.xlu0 %3728
    %3730 = vadd.xlane.f32.xlu0 %v3727
    %v3731 = vpop.xlane.xlu0 %3730
    %v3732 = vmul.f32 %v3729, 0.03125
    %v3733 = vmul.f32 %v3731, 0.03125
    %v3734 = vsub.f32 %v3724, %v3732
    %v3735 = vsub.f32 %v3725, %v3733
    %v3736 = vmul.f32 %v3734, %v1385
    %v3737 = vmul.f32 %v3735, %v1385
    %v3738 = vmul.f32 %v3736, %v3736
    %v3739 = vmul.f32 %v3737, %v3737
    %3740 = vadd.xlane.f32.xlu0 %v3738
    %v3741 = vpop.xlane.xlu0 %3740
    %3742 = vadd.xlane.f32.xlu0 %v3739
    %v3743 = vpop.xlane.xlu0 %3742
    %v3744 = vmul.f32 %v3741, 0.03125
    %v3745 = vmul.f32 %v3743, 0.03125
    %v3746 = vadd.f32 %v3744, 1e-05
    %v3747 = vadd.f32 %v3745, 1e-05
    %v3748 = vrsqrt.pop %v3746
    %v3749 = vrsqrt.pop %v3747
    %v3750 = vmul.f32 %v3734, %v3748
    %v3751 = vmul.f32 %v3735, %v3749
    %v3753 = vlaneseq
    %v3754 = vshrl.u32 %v3753, 7
    %v3755 = vsub.s32 0, %v3754
    %v3756 = vrot.slane %v3017, %v3755
    %v3758 = vmul.f32 %v3750, %v3756
    %v3759 = vmul.f32 %v3751, %v3756
    %v3761 = vlaneseq
    %v3762 = vshrl.u32 %v3761, 7
    %v3763 = vsub.s32 0, %v3762
    %v3764 = vrot.slane %v3019, %v3763
    %v3766 = vadd.f32 %v3758, %v3764
    %v3767 = vadd.f32 %v3759, %v3764
    %3768 = vmatprep.subr.mxu0 0.0
    %3769 = vmatpush1.msra.mxu0 %v3766
    %3770 = vmatprep.subr.mxu0 0.0
    %3771 = vmatpush1.msra.mxu0 %v3767
    %3772 = vmatprep.subr.mxu0 0.0
    %3773 = vmatpush1.msra.mxu0 0.0
    %3774 = vmatprep.subr.mxu0 0.0
    %3775 = vmatpush1.msra.mxu0 0.0
    %3776 = vmatprep.subr.mxu0 0.0
    %3777 = vmatpush1.msra.mxu0 0.0
    %3778 = vmatprep.subr.mxu0 0.0
    %3779 = vmatpush1.msra.mxu0 0.0
    %3780 = vmatprep.subr.mxu0 0.0
    %3781 = vmatpush1.msra.mxu0 0.0
    %3782 = vmatprep.subr.mxu0 0.0
    %3783 = vmatpush1.msra.mxu0 0.0
    %3784 = vmatprep.subr.mxu0 0.0
    %3785 = vmatpush1.msra.mxu0 0.0
    %3786 = vmatprep.subr.mxu0 0.0
    %3787 = vmatpush1.msra.mxu0 0.0
    %3788 = vmatprep.subr.mxu0 0.0
    %3789 = vmatpush1.msra.mxu0 0.0
    %3790 = vmatprep.subr.mxu0 0.0
    %3791 = vmatpush1.msra.mxu0 0.0
    %3792 = vmatprep.subr.mxu0 0.0
    %3793 = vmatpush1.msra.mxu0 0.0
    %3794 = vmatprep.subr.mxu0 0.0
    %3795 = vmatpush1.msra.mxu0 0.0
    %3796 = vmatprep.subr.mxu0 0.0
    %3797 = vmatpush1.msra.mxu0 0.0
    %3798 = vmatprep.subr.mxu0 0.0
    %3799 = vmatpush1.msra.mxu0 0.0
    %3800 = vmatprep.subr.mxu0 0.0
    %3801 = vmatpush1.msra.mxu0 0.0
    %3802 = vmatprep.subr.mxu0 0.0
    %3803 = vmatpush1.msra.mxu0 0.0
    %3804 = vmatprep.subr.mxu0 0.0
    %3805 = vmatpush1.msra.mxu0 0.0
    %3806 = vmatprep.subr.mxu0 0.0
    %3807 = vmatpush1.msra.mxu0 0.0
    %3808 = vmatprep.subr.mxu0 0.0
    %3809 = vmatpush1.msra.mxu0 0.0
    %3810 = vmatprep.subr.mxu0 0.0
    %3811 = vmatpush1.msra.mxu0 0.0
    %3812 = vmatprep.subr.mxu0 0.0
    %3813 = vmatpush1.msra.mxu0 0.0
    %3814 = vmatprep.subr.mxu0 0.0
    %3815 = vmatpush1.msra.mxu0 0.0
    %3816 = vmatprep.subr.mxu0 0.0
    %3817 = vmatpush1.msra.mxu0 0.0
    %3818 = vmatprep.subr.mxu0 0.0
    %3819 = vmatpush1.msra.mxu0 0.0
    %3820 = vmatprep.subr.mxu0 0.0
    %3821 = vmatpush1.msra.mxu0 0.0
    %3822 = vmatprep.subr.mxu0 0.0
    %3823 = vmatpush1.msra.mxu0 0.0
    %3824 = vmatprep.subr.mxu0 0.0
    %3825 = vmatpush1.msra.mxu0 0.0
    %3826 = vmatprep.subr.mxu0 0.0
    %3827 = vmatpush1.msra.mxu0 0.0
    %3828 = vmatprep.subr.mxu0 0.0
    %3829 = vmatpush1.msra.mxu0 0.0
    %3830 = vmatprep.subr.mxu0 0.0
    %3831 = vmatpush1.msra.mxu0 0.0
    %3832 = vmatprep.mubr.f32.mxu0 0.0
    %3833 = vmatmul.mubr.f32.gmra.mrb[0].mxu0 %v836
    %v3834 = vpop.f32.mrb[0].mxu0
    %v3835 = vadd.f32 0.0, %v3834
    %v3836 = vpop.f32.mrb[0].mxu0
    %3837 = vdwg.mxu0
    %s3838 = scalar_lea.vmem %s15, 24
    %v3839 = vld [vmem:[%s3838] sm:$0x1]
    %s3840 = scalar_lea.vmem %s15, 25
    %v3841 = vld [vmem:[%s3840] sm:$0x1]
    %s3842 = scalar_lea.vmem %s15, 26
    %v3843 = vld [vmem:[%s3842] sm:$0x1]
    %s3844 = scalar_lea.vmem %s15, 27
    %v3845 = vld [vmem:[%s3844] sm:$0x1]
    %s3846 = scalar_lea.vmem %s15, 28
    %v3847 = vld [vmem:[%s3846] sm:$0x1]
    %s3848 = scalar_lea.vmem %s15, 29
    %v3849 = vld [vmem:[%s3848] sm:$0x1]
    %v3850 = vpack.c.bf16 %v3835, %v3835
    %s3851 = scalar_lea.vmem %s11, 256
    %v3852 = vld [vmem:[%s3851] sm:$0xf]
    %v3853 = vld [vmem:[%s3851 + $0x4] sm:$0xf]
    %v3854 = vld [vmem:[%s3851 + $0x8] sm:$0xf]
    %v3855 = vld [vmem:[%s3851 + $0xc] sm:$0xf]
    %v3856 = vld [vmem:[%s3851 + $0x10] sm:$0xf]
    %v3857 = vld [vmem:[%s3851 + $0x14] sm:$0xf]
    %v3858 = vld [vmem:[%s3851 + $0x18] sm:$0xf]
    %v3859 = vld [vmem:[%s3851 + $0x1c] sm:$0xf]
    %v3860 = vld [vmem:[%s3851 + $0x20] sm:$0xf]
    %v3861 = vld [vmem:[%s3851 + $0x24] sm:$0xf]
    %v3862 = vld [vmem:[%s3851 + $0x28] sm:$0xf]
    %v3863 = vld [vmem:[%s3851 + $0x2c] sm:$0xf]
    %v3864 = vld [vmem:[%s3851 + $0x30] sm:$0xf]
    %v3865 = vld [vmem:[%s3851 + $0x34] sm:$0xf]
    %v3866 = vld [vmem:[%s3851 + $0x38] sm:$0xf]
    %v3867 = vld [vmem:[%s3851 + $0x3c] sm:$0xf]
    %v3869 = vlaneseq
    %v3870 = vshrl.u32 %v3869, 7
    %v3871 = vsub.s32 0, %v3870
    %v3872 = vrot.slane %v3839, %v3871
    %v3890 = vunpack.c.l.b16 %v3852
    %v3891 = vunpack.c.l.b16 %v3853
    %v3892 = vunpack.c.l.b16 %v3854
    %v3893 = vunpack.c.l.b16 %v3855
    %v3894 = vunpack.c.l.b16 %v3856
    %v3895 = vunpack.c.l.b16 %v3857
    %v3896 = vunpack.c.l.b16 %v3858
    %v3897 = vunpack.c.l.b16 %v3859
    %v3898 = vunpack.c.l.b16 %v3860
    %v3899 = vunpack.c.l.b16 %v3861
    %v3900 = vunpack.c.l.b16 %v3862
    %v3901 = vunpack.c.l.b16 %v3863
    %v3902 = vunpack.c.l.b16 %v3864
    %v3903 = vunpack.c.l.b16 %v3865
    %v3904 = vunpack.c.l.b16 %v3866
    %v3905 = vunpack.c.l.b16 %v3867
    %v3906 = vpack.c.b16 %v3891, %v3890
    %v3907 = vpack.c.b16 %v3893, %v3892
    %v3908 = vpack.c.b16 %v3895, %v3894
    %v3909 = vpack.c.b16 %v3897, %v3896
    %v3910 = vpack.c.b16 %v3899, %v3898
    %v3911 = vpack.c.b16 %v3901, %v3900
    %v3912 = vpack.c.b16 %v3903, %v3902
    %v3913 = vpack.c.b16 %v3905, %v3904
    %3922 = vmatprep.subr.bf16.mxu0 0
    %3923 = vmatpush1.bf16.msra.mxu0 %v3906
    %3924 = vmatprep.subr.bf16.mxu0 0
    %3925 = vmatpush1.bf16.msra.mxu0 %v3907
    %3926 = vmatprep.subr.bf16.mxu0 0
    %3927 = vmatpush1.bf16.msra.mxu0 %v3908
    %3928 = vmatprep.subr.bf16.mxu0 0
    %3929 = vmatpush1.bf16.msra.mxu0 %v3909
    %3930 = vmatprep.subr.bf16.mxu0 0
    %3931 = vmatpush1.bf16.msra.mxu0 %v3910
    %3932 = vmatprep.subr.bf16.mxu0 0
    %3933 = vmatpush1.bf16.msra.mxu0 %v3911
    %3934 = vmatprep.subr.bf16.mxu0 0
    %3935 = vmatpush1.bf16.msra.mxu0 %v3912
    %3936 = vmatprep.subr.bf16.mxu0 0
    %3937 = vmatpush1.bf16.msra.mxu0 %v3913
    %3938 = vmatprep.subr.bf16.mxu0 0
    %3939 = vmatpush1.bf16.msra.mxu0 0
    %3940 = vmatprep.subr.bf16.mxu0 0
    %3941 = vmatpush1.bf16.msra.mxu0 0
    %3942 = vmatprep.subr.bf16.mxu0 0
    %3943 = vmatpush1.bf16.msra.mxu0 0
    %3944 = vmatprep.subr.bf16.mxu0 0
    %3945 = vmatpush1.bf16.msra.mxu0 0
    %3946 = vmatprep.subr.bf16.mxu0 0
    %3947 = vmatpush1.bf16.msra.mxu0 0
    %3948 = vmatprep.subr.bf16.mxu0 0
    %3949 = vmatpush1.bf16.msra.mxu0 0
    %3950 = vmatprep.subr.bf16.mxu0 0
    %3951 = vmatpush1.bf16.msra.mxu0 0
    %3952 = vmatprep.subr.bf16.mxu0 0
    %3953 = vmatpush1.bf16.msra.mxu0 0
    %3954 = vmatprep.mubr.bf16.mxu0 0
    %3955 = vmatmul.mubr.bf16.gmra.mrb[0].mxu0 %v3850
    %v3956 = vpop.f32.mrb[0].mxu0
    %v3957 = vadd.f32 %v3872, %v3956
    %v3958 = vpop.f32.mrb[0].mxu0
    %v3959 = vpop.f32.mrb[0].mxu0
    %v3960 = vpop.f32.mrb[0].mxu0
    %3961 = vdwg.mxu0
    %v3962 = vpack.c.bf16 %v3767, %v3766
    %s3963 = scalar_lea.vmem [#allocation10], 512
    %v3964 = vld [vmem:[%s3963] sm:$0xff]
    %v3965 = vld [vmem:[%s3963 + $0x8] sm:$0xff]
    %v3966 = vld [vmem:[%s3963 + $0x10] sm:$0xff]
    %v3967 = vld [vmem:[%s3963 + $0x18] sm:$0xff]
    %v3968 = vld [vmem:[%s3963 + $0x20] sm:$0xff]
    %v3969 = vld [vmem:[%s3963 + $0x28] sm:$0xff]
    %v3970 = vld [vmem:[%s3963 + $0x30] sm:$0xff]
    %v3971 = vld [vmem:[%s3963 + $0x38] sm:$0xff]
    %v3972 = vld [vmem:[%s3963 + $0x40] sm:$0xff]
    %v3973 = vld [vmem:[%s3963 + $0x48] sm:$0xff]
    %v3974 = vld [vmem:[%s3963 + $0x50] sm:$0xff]
    %v3975 = vld [vmem:[%s3963 + $0x58] sm:$0xff]
    %v3976 = vld [vmem:[%s3963 + $0x60] sm:$0xff]
    %v3977 = vld [vmem:[%s3963 + $0x68] sm:$0xff]
    %v3978 = vld [vmem:[%s3963 + $0x70] sm:$0xff]
    %v3979 = vld [vmem:[%s3963 + $0x78] sm:$0xff]
    %s3980 = scalar_lea.vmem [#allocation13], 8
    %v3981 = vld [vmem:[%s3980] sm:$0x3]
    %v3983 = vlaneseq
    %v3984 = vshrl.u32 %v3983, 7
    %v3985 = vsub.s32 0, %v3984
    %v3986 = vrot.slane %v3981, %v3985
    %v3987 = vlaneseq
    %v3988 = vshrl.u32 %v3987, 7
    %v3989 = vsub.s32 1, %v3988
    %v3990 = vrot.slane %v3981, %v3989
    %v4009 = vunpack.c.l.b16 %v3964
    %v4010 = vunpack.c.h.b16 %v3964
    %v4011 = vunpack.c.l.b16 %v3965
    %v4012 = vunpack.c.h.b16 %v3965
    %v4013 = vunpack.c.l.b16 %v3966
    %v4014 = vunpack.c.h.b16 %v3966
    %v4015 = vunpack.c.l.b16 %v3967
    %v4016 = vunpack.c.h.b16 %v3967
    %v4017 = vunpack.c.l.b16 %v3968
    %v4018 = vunpack.c.h.b16 %v3968
    %v4019 = vunpack.c.l.b16 %v3969
    %v4020 = vunpack.c.h.b16 %v3969
    %v4021 = vunpack.c.l.b16 %v3970
    %v4022 = vunpack.c.h.b16 %v3970
    %v4023 = vunpack.c.l.b16 %v3971
    %v4024 = vunpack.c.h.b16 %v3971
    %v4025 = vunpack.c.l.b16 %v3972
    %v4026 = vunpack.c.h.b16 %v3972
    %v4027 = vunpack.c.l.b16 %v3973
    %v4028 = vunpack.c.h.b16 %v3973
    %v4029 = vunpack.c.l.b16 %v3974
    %v4030 = vunpack.c.h.b16 %v3974
    %v4031 = vunpack.c.l.b16 %v3975
    %v4032 = vunpack.c.h.b16 %v3975
    %v4033 = vunpack.c.l.b16 %v3976
    %v4034 = vunpack.c.h.b16 %v3976
    %v4035 = vunpack.c.l.b16 %v3977
    %v4036 = vunpack.c.h.b16 %v3977
    %v4037 = vunpack.c.l.b16 %v3978
    %v4038 = vunpack.c.h.b16 %v3978
    %v4039 = vunpack.c.l.b16 %v3979
    %v4040 = vunpack.c.h.b16 %v3979
    %v4041 = vpack.c.b16 %v4011, %v4009
    %v4042 = vpack.c.b16 %v4012, %v4010
    %v4043 = vpack.c.b16 %v4015, %v4013
    %v4044 = vpack.c.b16 %v4016, %v4014
    %v4045 = vpack.c.b16 %v4019, %v4017
    %v4046 = vpack.c.b16 %v4020, %v4018
    %v4047 = vpack.c.b16 %v4023, %v4021
    %v4048 = vpack.c.b16 %v4024, %v4022
    %v4049 = vpack.c.b16 %v4027, %v4025
    %v4050 = vpack.c.b16 %v4028, %v4026
    %v4051 = vpack.c.b16 %v4031, %v4029
    %v4052 = vpack.c.b16 %v4032, %v4030
    %v4053 = vpack.c.b16 %v4035, %v4033
    %v4054 = vpack.c.b16 %v4036, %v4034
    %v4055 = vpack.c.b16 %v4039, %v4037
    %v4056 = vpack.c.b16 %v4040, %v4038
    %4073 = vmatprep.subr.bf16.mxu0 %v4042
    %4074 = vmatpush1.bf16.msra.mxu0 %v4041
    %4075 = vmatprep.subr.bf16.mxu0 %v4044
    %4076 = vmatpush1.bf16.msra.mxu0 %v4043
    %4077 = vmatprep.subr.bf16.mxu0 %v4046
    %4078 = vmatpush1.bf16.msra.mxu0 %v4045
    %4079 = vmatprep.subr.bf16.mxu0 %v4048
    %4080 = vmatpush1.bf16.msra.mxu0 %v4047
    %4081 = vmatprep.subr.bf16.mxu0 %v4050
    %4082 = vmatpush1.bf16.msra.mxu0 %v4049
    %4083 = vmatprep.subr.bf16.mxu0 %v4052
    %4084 = vmatpush1.bf16.msra.mxu0 %v4051
    %4085 = vmatprep.subr.bf16.mxu0 %v4054
    %4086 = vmatpush1.bf16.msra.mxu0 %v4053
    %4087 = vmatprep.subr.bf16.mxu0 %v4056
    %4088 = vmatpush1.bf16.msra.mxu0 %v4055
    %4089 = vmatprep.subr.bf16.mxu0 0
    %4090 = vmatpush1.bf16.msra.mxu0 0
    %4091 = vmatprep.subr.bf16.mxu0 0
    %4092 = vmatpush1.bf16.msra.mxu0 0
    %4093 = vmatprep.subr.bf16.mxu0 0
    %4094 = vmatpush1.bf16.msra.mxu0 0
    %4095 = vmatprep.subr.bf16.mxu0 0
    %4096 = vmatpush1.bf16.msra.mxu0 0
    %4097 = vmatprep.subr.bf16.mxu0 0
    %4098 = vmatpush1.bf16.msra.mxu0 0
    %4099 = vmatprep.subr.bf16.mxu0 0
    %4100 = vmatpush1.bf16.msra.mxu0 0
    %4101 = vmatprep.subr.bf16.mxu0 0
    %4102 = vmatpush1.bf16.msra.mxu0 0
    %4103 = vmatprep.subr.bf16.mxu0 0
    %4104 = vmatpush1.bf16.msra.mxu0 0
    %4105 = vmatprep.mubr.bf16.mxu0 0
    %4106 = vmatmul.mubr.bf16.gmra.mrb[0].mxu0 %v3962
    %v4107 = vpop.f32.mrb[0].mxu0
    %v4108 = vadd.f32 %v3986, %v4107
    %v4109 = vpop.f32.mrb[0].mxu0
    %v4110 = vadd.f32 %v3990, %v4109
    %v4111 = vpop.f32.mrb[0].mxu0
    %v4112 = vadd.f32 %v3986, %v4111
    %v4113 = vpop.f32.mrb[0].mxu0
    %v4114 = vadd.f32 %v3990, %v4113
    %4115 = vdwg.mxu0
    %v4116 = vpack.c.bf16 %v4112, %v4108
    %v4117 = vpack.c.bf16 %v4114, %v4110
    %v4118 = vmul.f32 %v3957, %v1188
    %v4119 = vmul.f32 %v3957, %v1195
    %v4120 = vmul.f32 %v3957, %v1202
    %v4121 = vmul.f32 %v3957, %v1209
    %v4122 = vpack.c.bf16 %v4119, %v4118
    %v4123 = vpack.c.bf16 %v4121, %v4120
    %4124 = vmatprep.subr.bf16.mxu0 0
    %4125 = vmatpush1.bf16.xpose.msra.mxu0 %v4116
    %4126 = vmatprep.subr.bf16.mxu0 0
    %4127 = vmatpush1.bf16.xpose.msra.mxu0 0
    %4128 = vmatprep.subr.bf16.mxu0 0
    %4129 = vmatpush1.bf16.xpose.msra.mxu0 0
    %4130 = vmatprep.subr.bf16.mxu0 0
    %4131 = vmatpush1.bf16.xpose.msra.mxu0 0
    %4132 = vmatprep.subr.bf16.mxu0 0
    %4133 = vmatpush1.bf16.xpose.msra.mxu0 0
    %4134 = vmatprep.subr.bf16.mxu0 0
    %4135 = vmatpush1.bf16.xpose.msra.mxu0 0
    %4136 = vmatprep.subr.bf16.mxu0 0
    %4137 = vmatpush1.bf16.xpose.msra.mxu0 0
    %4138 = vmatprep.subr.bf16.mxu0 0
    %4139 = vmatpush1.bf16.xpose.msra.mxu0 0
    %4140 = vmatprep.subr.bf16.mxu0 0
    %4141 = vmatpush1.bf16.xpose.msra.mxu0 0
    %4142 = vmatprep.subr.bf16.mxu0 0
    %4143 = vmatpush1.bf16.xpose.msra.mxu0 0
    %4144 = vmatprep.subr.bf16.mxu0 0
    %4145 = vmatpush1.bf16.xpose.msra.mxu0 0
    %4146 = vmatprep.subr.bf16.mxu0 0
    %4147 = vmatpush1.bf16.xpose.msra.mxu0 0
    %4148 = vmatprep.subr.bf16.mxu0 0
    %4149 = vmatpush1.bf16.xpose.msra.mxu0 0
    %4150 = vmatprep.subr.bf16.mxu0 0
    %4151 = vmatpush1.bf16.xpose.msra.mxu0 0
    %4152 = vmatprep.subr.bf16.mxu0 0
    %4153 = vmatpush1.bf16.xpose.msra.mxu0 0
    %4154 = vmatprep.subr.bf16.mxu0 0
    %4155 = vmatpush1.bf16.xpose.msra.mxu0 0
    %4156 = vmatprep.mubr.bf16.mxu0 0
    %4157 = vmatmul.mubr.bf16.gmra.mrb[0].mxu0 %v4122
    %v4158 = vpop.f32.mrb[0].mxu0
    %v4159 = vadd.f32 0.0, %v4158
    %v4160 = vpop.f32.mrb[0].mxu0
    %v4161 = vpop.f32.mrb[0].mxu0
    %v4162 = vadd.f32 0.0, %v4161
    %v4163 = vpop.f32.mrb[0].mxu0
    %4164 = vmatprep.mubr.bf16.mxu0 0
    %4165 = vmatmul.mubr.bf16.gmra.mrb[0].mxu0 %v4123
    %v4166 = vpop.f32.mrb[0].mxu0
    %v4167 = vadd.f32 0.0, %v4166
    %v4168 = vpop.f32.mrb[0].mxu0
    %v4169 = vpop.f32.mrb[0].mxu0
    %v4170 = vadd.f32 0.0, %v4169
    %v4171 = vpop.f32.mrb[0].mxu0
    %4172 = vdwg.mxu0
    %v4173 = vmul.f32 %v4159, 0.17677669
    %v4174 = vmul.f32 %v4162, 0.17677669
    %v4175 = vmul.f32 %v4167, 0.17677669
    %v4176 = vmul.f32 %v4170, 0.17677669
    %v4177 = vsel %vm1267, %v4173, -1e+30
    %v4178 = vsel %vm1267, %v4174, -1e+30
    %v4179 = vsel %vm1267, %v4175, -1e+30
    %v4180 = vsel %vm1267, %v4176, -1e+30
    %v4181 = vsel %vm558, %v4177, -inf
    %4182 = vmax.xlane.f32.xlu0 %v4181
    %v4183 = vpop.xlane.xlu0 %4182
    %v4184 = vsel %vm558, %v4178, -inf
    %4185 = vmax.xlane.f32.xlu0 %v4184
    %v4186 = vpop.xlane.xlu0 %4185
    %v4187 = vsel %vm558, %v4179, -inf
    %4188 = vmax.xlane.f32.xlu0 %v4187
    %v4189 = vpop.xlane.xlu0 %4188
    %v4190 = vsel %vm558, %v4180, -inf
    %4191 = vmax.xlane.f32.xlu0 %v4190
    %v4192 = vpop.xlane.xlu0 %4191
    %v4193 = vsub.f32 %v4177, %v4183
    %v4194 = vsub.f32 %v4178, %v4186
    %v4195 = vsub.f32 %v4179, %v4189
    %v4196 = vsub.f32 %v4180, %v4192
    %v4197 = vmul.f32 %v4193, 1.442695
    %v4198 = vpow.pop %v4197
    %v4199 = vmul.f32 %v4194, 1.442695
    %v4200 = vpow.pop %v4199
    %v4201 = vmul.f32 %v4195, 1.442695
    %v4202 = vpow.pop %v4201
    %v4203 = vmul.f32 %v4196, 1.442695
    %v4204 = vpow.pop %v4203
    %v4205 = vsel %vm558, %v4198, 0.0
    %4206 = vadd.xlane.f32.xlu0 %v4205
    %v4207 = vpop.xlane.xlu0 %4206
    %v4208 = vsel %vm558, %v4200, 0.0
    %4209 = vadd.xlane.f32.xlu0 %v4208
    %v4210 = vpop.xlane.xlu0 %4209
    %v4211 = vsel %vm558, %v4202, 0.0
    %4212 = vadd.xlane.f32.xlu0 %v4211
    %v4213 = vpop.xlane.xlu0 %4212
    %v4214 = vsel %vm558, %v4204, 0.0
    %4215 = vadd.xlane.f32.xlu0 %v4214
    %v4216 = vpop.xlane.xlu0 %4215
    %v4217 = vrcp.pop %v4207
    %v4218 = vmul.f32 %v4198, %v4217
    %v4219 = vrcp.pop %v4210
    %v4220 = vmul.f32 %v4200, %v4219
    %v4221 = vrcp.pop %v4213
    %v4222 = vmul.f32 %v4202, %v4221
    %v4223 = vrcp.pop %v4216
    %v4224 = vmul.f32 %v4204, %v4223
    %v4225 = vpack.c.bf16 %v4220, %v4218
    %v4226 = vpack.c.bf16 %v4224, %v4222
    %v4228 = vsel %vm558, %v4225, 0
    %v4231 = vsel %vm558, %v4226, 0
    %4233 = vmatprep.subr.bf16.mxu0 0
    %4234 = vmatpush1.bf16.msra.mxu0 %v4117
    %4235 = vmatprep.subr.bf16.mxu0 0
    %4236 = vmatpush1.bf16.msra.mxu0 0
    %4237 = vmatprep.subr.bf16.mxu0 0
    %4238 = vmatpush1.bf16.msra.mxu0 0
    %4239 = vmatprep.subr.bf16.mxu0 0
    %4240 = vmatpush1.bf16.msra.mxu0 0
    %4241 = vmatprep.subr.bf16.mxu0 0
    %4242 = vmatpush1.bf16.msra.mxu0 0
    %4243 = vmatprep.subr.bf16.mxu0 0
    %4244 = vmatpush1.bf16.msra.mxu0 0
    %4245 = vmatprep.subr.bf16.mxu0 0
    %4246 = vmatpush1.bf16.msra.mxu0 0
    %4247 = vmatprep.subr.bf16.mxu0 0
    %4248 = vmatpush1.bf16.msra.mxu0 0
    %4249 = vmatprep.subr.bf16.mxu0 0
    %4250 = vmatpush1.bf16.msra.mxu0 0
    %4251 = vmatprep.subr.bf16.mxu0 0
    %4252 = vmatpush1.bf16.msra.mxu0 0
    %4253 = vmatprep.subr.bf16.mxu0 0
    %4254 = vmatpush1.bf16.msra.mxu0 0
    %4255 = vmatprep.subr.bf16.mxu0 0
    %4256 = vmatpush1.bf16.msra.mxu0 0
    %4257 = vmatprep.subr.bf16.mxu0 0
    %4258 = vmatpush1.bf16.msra.mxu0 0
    %4259 = vmatprep.subr.bf16.mxu0 0
    %4260 = vmatpush1.bf16.msra.mxu0 0
    %4261 = vmatprep.subr.bf16.mxu0 0
    %4262 = vmatpush1.bf16.msra.mxu0 0
    %4263 = vmatprep.subr.bf16.mxu0 0
    %4264 = vmatpush1.bf16.msra.mxu0 0
    %4265 = vmatprep.mubr.bf16.mxu0 0
    %4266 = vmatmul.mubr.bf16.gmra.mrb[0].mxu0 %v4228
    %v4267 = vpop.f32.mrb[0].mxu0
    %v4268 = vadd.f32 0.0, %v4267
    %v4269 = vpop.f32.mrb[0].mxu0
    %v4270 = vpop.f32.mrb[0].mxu0
    %v4271 = vadd.f32 0.0, %v4270
    %v4272 = vpop.f32.mrb[0].mxu0
    %4273 = vmatprep.mubr.bf16.mxu0 0
    %4274 = vmatmul.mubr.bf16.gmra.mrb[0].mxu0 %v4231
    %v4275 = vpop.f32.mrb[0].mxu0
    %v4276 = vadd.f32 0.0, %v4275
    %v4277 = vpop.f32.mrb[0].mxu0
    %v4278 = vpop.f32.mrb[0].mxu0
    %v4279 = vadd.f32 0.0, %v4278
    %v4280 = vpop.f32.mrb[0].mxu0
    %4281 = vdwg.mxu0
    %v4282 = vmul.f32 %v4268, %v1188
    %v4283 = vmul.f32 %v4271, %v1195
    %v4284 = vadd.f32 %v4282, %v4283
    %v4285 = vmul.f32 %v4276, %v1202
    %v4286 = vadd.f32 %v4284, %v4285
    %v4287 = vmul.f32 %v4279, %v1209
    %v4288 = vadd.f32 %v4286, %v4287
    %v4289 = vadd.f32 %v3957, %v4288
    %v4290 = vmul.f32 %v4289, %v1385
    %4291 = vadd.xlane.f32.xlu0 %v4290
    %v4292 = vpop.xlane.xlu0 %4291
    %v4293 = vmul.f32 %v4292, 0.03125
    %v4294 = vsub.f32 %v4289, %v4293
    %v4295 = vmul.f32 %v4294, %v1385
    %v4296 = vmul.f32 %v4295, %v4295
    %4297 = vadd.xlane.f32.xlu0 %v4296
    %v4298 = vpop.xlane.xlu0 %4297
    %v4299 = vmul.f32 %v4298, 0.03125
    %v4300 = vadd.f32 %v4299, 1e-05
    %v4301 = vrsqrt.pop %v4300
    %v4302 = vmul.f32 %v4294, %v4301
    %v4304 = vlaneseq
    %v4305 = vshrl.u32 %v4304, 7
    %v4306 = vsub.s32 0, %v4305
    %v4307 = vrot.slane %v3843, %v4306
    %v4309 = vmul.f32 %v4302, %v4307
    %v4311 = vlaneseq
    %v4312 = vshrl.u32 %v4311, 7
    %v4313 = vsub.s32 0, %v4312
    %v4314 = vrot.slane %v3845, %v4313
    %v4316 = vadd.f32 %v4309, %v4314
    %v4317 = vpack.c.bf16 %v4316, %v4316
    %s4318 = scalar_lea.vmem [#allocation12], 256
    %v4319 = vld [vmem:[%s4318] sm:$0xf]
    %v4320 = vld [vmem:[%s4318 + $0x4] sm:$0xf]
    %v4321 = vld [vmem:[%s4318 + $0x8] sm:$0xf]
    %v4322 = vld [vmem:[%s4318 + $0xc] sm:$0xf]
    %v4323 = vld [vmem:[%s4318 + $0x10] sm:$0xf]
    %v4324 = vld [vmem:[%s4318 + $0x14] sm:$0xf]
    %v4325 = vld [vmem:[%s4318 + $0x18] sm:$0xf]
    %v4326 = vld [vmem:[%s4318 + $0x1c] sm:$0xf]
    %v4327 = vld [vmem:[%s4318 + $0x20] sm:$0xf]
    %v4328 = vld [vmem:[%s4318 + $0x24] sm:$0xf]
    %v4329 = vld [vmem:[%s4318 + $0x28] sm:$0xf]
    %v4330 = vld [vmem:[%s4318 + $0x2c] sm:$0xf]
    %v4331 = vld [vmem:[%s4318 + $0x30] sm:$0xf]
    %v4332 = vld [vmem:[%s4318 + $0x34] sm:$0xf]
    %v4333 = vld [vmem:[%s4318 + $0x38] sm:$0xf]
    %v4334 = vld [vmem:[%s4318 + $0x3c] sm:$0xf]
    %v4336 = vlaneseq
    %v4337 = vshrl.u32 %v4336, 7
    %v4338 = vsub.s32 0, %v4337
    %v4339 = vrot.slane %v3841, %v4338
    %v4357 = vunpack.c.l.b16 %v4319
    %v4358 = vunpack.c.l.b16 %v4320
    %v4359 = vunpack.c.l.b16 %v4321
    %v4360 = vunpack.c.l.b16 %v4322
    %v4361 = vunpack.c.l.b16 %v4323
    %v4362 = vunpack.c.l.b16 %v4324
    %v4363 = vunpack.c.l.b16 %v4325
    %v4364 = vunpack.c.l.b16 %v4326
    %v4365 = vunpack.c.l.b16 %v4327
    %v4366 = vunpack.c.l.b16 %v4328
    %v4367 = vunpack.c.l.b16 %v4329
    %v4368 = vunpack.c.l.b16 %v4330
    %v4369 = vunpack.c.l.b16 %v4331
    %v4370 = vunpack.c.l.b16 %v4332
    %v4371 = vunpack.c.l.b16 %v4333
    %v4372 = vunpack.c.l.b16 %v4334
    %v4373 = vpack.c.b16 %v4358, %v4357
    %v4374 = vpack.c.b16 %v4360, %v4359
    %v4375 = vpack.c.b16 %v4362, %v4361
    %v4376 = vpack.c.b16 %v4364, %v4363
    %v4377 = vpack.c.b16 %v4366, %v4365
    %v4378 = vpack.c.b16 %v4368, %v4367
    %v4379 = vpack.c.b16 %v4370, %v4369
    %v4380 = vpack.c.b16 %v4372, %v4371
    %4389 = vmatprep.subr.bf16.mxu0 0
    %4390 = vmatpush1.bf16.msra.mxu0 %v4373
    %4391 = vmatprep.subr.bf16.mxu0 0
    %4392 = vmatpush1.bf16.msra.mxu0 %v4374
    %4393 = vmatprep.subr.bf16.mxu0 0
    %4394 = vmatpush1.bf16.msra.mxu0 %v4375
    %4395 = vmatprep.subr.bf16.mxu0 0
    %4396 = vmatpush1.bf16.msra.mxu0 %v4376
    %4397 = vmatprep.subr.bf16.mxu0 0
    %4398 = vmatpush1.bf16.msra.mxu0 %v4377
    %4399 = vmatprep.subr.bf16.mxu0 0
    %4400 = vmatpush1.bf16.msra.mxu0 %v4378
    %4401 = vmatprep.subr.bf16.mxu0 0
    %4402 = vmatpush1.bf16.msra.mxu0 %v4379
    %4403 = vmatprep.subr.bf16.mxu0 0
    %4404 = vmatpush1.bf16.msra.mxu0 %v4380
    %4405 = vmatprep.subr.bf16.mxu0 0
    %4406 = vmatpush1.bf16.msra.mxu0 0
    %4407 = vmatprep.subr.bf16.mxu0 0
    %4408 = vmatpush1.bf16.msra.mxu0 0
    %4409 = vmatprep.subr.bf16.mxu0 0
    %4410 = vmatpush1.bf16.msra.mxu0 0
    %4411 = vmatprep.subr.bf16.mxu0 0
    %4412 = vmatpush1.bf16.msra.mxu0 0
    %4413 = vmatprep.subr.bf16.mxu0 0
    %4414 = vmatpush1.bf16.msra.mxu0 0
    %4415 = vmatprep.subr.bf16.mxu0 0
    %4416 = vmatpush1.bf16.msra.mxu0 0
    %4417 = vmatprep.subr.bf16.mxu0 0
    %4418 = vmatpush1.bf16.msra.mxu0 0
    %4419 = vmatprep.subr.bf16.mxu0 0
    %4420 = vmatpush1.bf16.msra.mxu0 0
    %4421 = vmatprep.mubr.bf16.mxu0 0
    %4422 = vmatmul.mubr.bf16.gmra.mrb[0].mxu0 %v4317
    %v4423 = vpop.f32.mrb[0].mxu0
    %v4424 = vadd.f32 %v4339, %v4423
    %v4425 = vpop.f32.mrb[0].mxu0
    %v4426 = vpop.f32.mrb[0].mxu0
    %v4427 = vpop.f32.mrb[0].mxu0
    %4428 = vdwg.mxu0
    %v4429 = vmax.f32 %v4424, 0.0
    %v4430 = vadd.f32 %v4316, %v4429
    %v4431 = vmul.f32 %v4430, %v1385
    %4432 = vadd.xlane.f32.xlu0 %v4431
    %v4433 = vpop.xlane.xlu0 %4432
    %v4434 = vmul.f32 %v4433, 0.03125
    %v4435 = vsub.f32 %v4430, %v4434
    %v4436 = vmul.f32 %v4435, %v1385
    %v4437 = vmul.f32 %v4436, %v4436
    %4438 = vadd.xlane.f32.xlu0 %v4437
    %v4439 = vpop.xlane.xlu0 %4438
    %v4440 = vmul.f32 %v4439, 0.03125
    %v4441 = vadd.f32 %v4440, 1e-05
    %v4442 = vrsqrt.pop %v4441
    %v4443 = vmul.f32 %v4435, %v4442
    %v4445 = vlaneseq
    %v4446 = vshrl.u32 %v4445, 7
    %v4447 = vsub.s32 0, %v4446
    %v4448 = vrot.slane %v3847, %v4447
    %v4450 = vmul.f32 %v4443, %v4448
    %v4452 = vlaneseq
    %v4453 = vshrl.u32 %v4452, 7
    %v4454 = vsub.s32 0, %v4453
    %v4455 = vrot.slane %v3849, %v4454
    %v4457 = vadd.f32 %v4450, %v4455
    %s4458 = scalar_lea.vmem %s15, 30
    %v4459 = vld [vmem:[%s4458] sm:$0x1]
    %s4460 = scalar_lea.vmem %s15, 31
    %v4461 = vld [vmem:[%s4460] sm:$0x1]
    %s4462 = scalar_lea.vmem %s15, 32
    %v4463 = vld [vmem:[%s4462] sm:$0x1]
    %s4464 = scalar_lea.vmem %s15, 33
    %v4465 = vld [vmem:[%s4464] sm:$0x1]
    %s4466 = scalar_lea.vmem %s15, 34
    %v4467 = vld [vmem:[%s4466] sm:$0x1]
    %s4468 = scalar_lea.vmem %s15, 35
    %v4469 = vld [vmem:[%s4468] sm:$0x1]
    %s4470 = scalar_lea.vmem %s11, 320
    %v4471 = vld [vmem:[%s4470] sm:$0xf]
    %v4472 = vld [vmem:[%s4470 + $0x4] sm:$0xf]
    %v4473 = vld [vmem:[%s4470 + $0x8] sm:$0xf]
    %v4474 = vld [vmem:[%s4470 + $0xc] sm:$0xf]
    %v4475 = vld [vmem:[%s4470 + $0x10] sm:$0xf]
    %v4476 = vld [vmem:[%s4470 + $0x14] sm:$0xf]
    %v4477 = vld [vmem:[%s4470 + $0x18] sm:$0xf]
    %v4478 = vld [vmem:[%s4470 + $0x1c] sm:$0xf]
    %v4479 = vld [vmem:[%s4470 + $0x20] sm:$0xf]
    %v4480 = vld [vmem:[%s4470 + $0x24] sm:$0xf]
    %v4481 = vld [vmem:[%s4470 + $0x28] sm:$0xf]
    %v4482 = vld [vmem:[%s4470 + $0x2c] sm:$0xf]
    %v4483 = vld [vmem:[%s4470 + $0x30] sm:$0xf]
    %v4484 = vld [vmem:[%s4470 + $0x34] sm:$0xf]
    %v4485 = vld [vmem:[%s4470 + $0x38] sm:$0xf]
    %v4486 = vld [vmem:[%s4470 + $0x3c] sm:$0xf]
    %v4488 = vlaneseq
    %v4489 = vshrl.u32 %v4488, 7
    %v4490 = vsub.s32 0, %v4489
    %v4491 = vrot.slane %v4459, %v4490
    %v4509 = vunpack.c.l.b16 %v4471
    %v4510 = vunpack.c.l.b16 %v4472
    %v4511 = vunpack.c.l.b16 %v4473
    %v4512 = vunpack.c.l.b16 %v4474
    %v4513 = vunpack.c.l.b16 %v4475
    %v4514 = vunpack.c.l.b16 %v4476
    %v4515 = vunpack.c.l.b16 %v4477
    %v4516 = vunpack.c.l.b16 %v4478
    %v4517 = vunpack.c.l.b16 %v4479
    %v4518 = vunpack.c.l.b16 %v4480
    %v4519 = vunpack.c.l.b16 %v4481
    %v4520 = vunpack.c.l.b16 %v4482
    %v4521 = vunpack.c.l.b16 %v4483
    %v4522 = vunpack.c.l.b16 %v4484
    %v4523 = vunpack.c.l.b16 %v4485
    %v4524 = vunpack.c.l.b16 %v4486
    %v4525 = vpack.c.b16 %v4510, %v4509
    %v4526 = vpack.c.b16 %v4512, %v4511
    %v4527 = vpack.c.b16 %v4514, %v4513
    %v4528 = vpack.c.b16 %v4516, %v4515
    %v4529 = vpack.c.b16 %v4518, %v4517
    %v4530 = vpack.c.b16 %v4520, %v4519
    %v4531 = vpack.c.b16 %v4522, %v4521
    %v4532 = vpack.c.b16 %v4524, %v4523
    %4541 = vmatprep.subr.bf16.mxu0 0
    %4542 = vmatpush1.bf16.msra.mxu0 %v4525
    %4543 = vmatprep.subr.bf16.mxu0 0
    %4544 = vmatpush1.bf16.msra.mxu0 %v4526
    %4545 = vmatprep.subr.bf16.mxu0 0
    %4546 = vmatpush1.bf16.msra.mxu0 %v4527
    %4547 = vmatprep.subr.bf16.mxu0 0
    %4548 = vmatpush1.bf16.msra.mxu0 %v4528
    %4549 = vmatprep.subr.bf16.mxu0 0
    %4550 = vmatpush1.bf16.msra.mxu0 %v4529
    %4551 = vmatprep.subr.bf16.mxu0 0
    %4552 = vmatpush1.bf16.msra.mxu0 %v4530
    %4553 = vmatprep.subr.bf16.mxu0 0
    %4554 = vmatpush1.bf16.msra.mxu0 %v4531
    %4555 = vmatprep.subr.bf16.mxu0 0
    %4556 = vmatpush1.bf16.msra.mxu0 %v4532
    %4557 = vmatprep.subr.bf16.mxu0 0
    %4558 = vmatpush1.bf16.msra.mxu0 0
    %4559 = vmatprep.subr.bf16.mxu0 0
    %4560 = vmatpush1.bf16.msra.mxu0 0
    %4561 = vmatprep.subr.bf16.mxu0 0
    %4562 = vmatpush1.bf16.msra.mxu0 0
    %4563 = vmatprep.subr.bf16.mxu0 0
    %4564 = vmatpush1.bf16.msra.mxu0 0
    %4565 = vmatprep.subr.bf16.mxu0 0
    %4566 = vmatpush1.bf16.msra.mxu0 0
    %4567 = vmatprep.subr.bf16.mxu0 0
    %4568 = vmatpush1.bf16.msra.mxu0 0
    %4569 = vmatprep.subr.bf16.mxu0 0
    %4570 = vmatpush1.bf16.msra.mxu0 0
    %4571 = vmatprep.subr.bf16.mxu0 0
    %4572 = vmatpush1.bf16.msra.mxu0 0
    %4573 = vmatprep.mubr.bf16.mxu0 0
    %4574 = vmatmul.mubr.bf16.gmra.mrb[0].mxu0 %v3962
    %v4575 = vpop.f32.mrb[0].mxu0
    %v4576 = vadd.f32 %v4491, %v4575
    %v4577 = vpop.f32.mrb[0].mxu0
    %v4578 = vpop.f32.mrb[0].mxu0
    %v4579 = vadd.f32 %v4491, %v4578
    %v4580 = vpop.f32.mrb[0].mxu0
    %4581 = vdwg.mxu0
    %v4582 = vpack.c.bf16 %v4457, %v4457
    %s4583 = scalar_lea.vmem [#allocation10], 640
    %v4584 = vld [vmem:[%s4583] sm:$0xff]
    %v4585 = vld [vmem:[%s4583 + $0x8] sm:$0xff]
    %v4586 = vld [vmem:[%s4583 + $0x10] sm:$0xff]
    %v4587 = vld [vmem:[%s4583 + $0x18] sm:$0xff]
    %v4588 = vld [vmem:[%s4583 + $0x20] sm:$0xff]
    %v4589 = vld [vmem:[%s4583 + $0x28] sm:$0xff]
    %v4590 = vld [vmem:[%s4583 + $0x30] sm:$0xff]
    %v4591 = vld [vmem:[%s4583 + $0x38] sm:$0xff]
    %v4592 = vld [vmem:[%s4583 + $0x40] sm:$0xff]
    %v4593 = vld [vmem:[%s4583 + $0x48] sm:$0xff]
    %v4594 = vld [vmem:[%s4583 + $0x50] sm:$0xff]
    %v4595 = vld [vmem:[%s4583 + $0x58] sm:$0xff]
    %v4596 = vld [vmem:[%s4583 + $0x60] sm:$0xff]
    %v4597 = vld [vmem:[%s4583 + $0x68] sm:$0xff]
    %v4598 = vld [vmem:[%s4583 + $0x70] sm:$0xff]
    %v4599 = vld [vmem:[%s4583 + $0x78] sm:$0xff]
    %s4600 = scalar_lea.vmem [#allocation13], 10
    %v4601 = vld [vmem:[%s4600] sm:$0x3]
    %v4603 = vlaneseq
    %v4604 = vshrl.u32 %v4603, 7
    %v4605 = vsub.s32 0, %v4604
    %v4606 = vrot.slane %v4601, %v4605
    %v4607 = vlaneseq
    %v4608 = vshrl.u32 %v4607, 7
    %v4609 = vsub.s32 1, %v4608
    %v4610 = vrot.slane %v4601, %v4609
    %v4629 = vunpack.c.l.b16 %v4584
    %v4630 = vunpack.c.h.b16 %v4584
    %v4631 = vunpack.c.l.b16 %v4585
    %v4632 = vunpack.c.h.b16 %v4585
    %v4633 = vunpack.c.l.b16 %v4586
    %v4634 = vunpack.c.h.b16 %v4586
    %v4635 = vunpack.c.l.b16 %v4587
    %v4636 = vunpack.c.h.b16 %v4587
    %v4637 = vunpack.c.l.b16 %v4588
    %v4638 = vunpack.c.h.b16 %v4588
    %v4639 = vunpack.c.l.b16 %v4589
    %v4640 = vunpack.c.h.b16 %v4589
    %v4641 = vunpack.c.l.b16 %v4590
    %v4642 = vunpack.c.h.b16 %v4590
    %v4643 = vunpack.c.l.b16 %v4591
    %v4644 = vunpack.c.h.b16 %v4591
    %v4645 = vunpack.c.l.b16 %v4592
    %v4646 = vunpack.c.h.b16 %v4592
    %v4647 = vunpack.c.l.b16 %v4593
    %v4648 = vunpack.c.h.b16 %v4593
    %v4649 = vunpack.c.l.b16 %v4594
    %v4650 = vunpack.c.h.b16 %v4594
    %v4651 = vunpack.c.l.b16 %v4595
    %v4652 = vunpack.c.h.b16 %v4595
    %v4653 = vunpack.c.l.b16 %v4596
    %v4654 = vunpack.c.h.b16 %v4596
    %v4655 = vunpack.c.l.b16 %v4597
    %v4656 = vunpack.c.h.b16 %v4597
    %v4657 = vunpack.c.l.b16 %v4598
    %v4658 = vunpack.c.h.b16 %v4598
    %v4659 = vunpack.c.l.b16 %v4599
    %v4660 = vunpack.c.h.b16 %v4599
    %v4661 = vpack.c.b16 %v4631, %v4629
    %v4662 = vpack.c.b16 %v4632, %v4630
    %v4663 = vpack.c.b16 %v4635, %v4633
    %v4664 = vpack.c.b16 %v4636, %v4634
    %v4665 = vpack.c.b16 %v4639, %v4637
    %v4666 = vpack.c.b16 %v4640, %v4638
    %v4667 = vpack.c.b16 %v4643, %v4641
    %v4668 = vpack.c.b16 %v4644, %v4642
    %v4669 = vpack.c.b16 %v4647, %v4645
    %v4670 = vpack.c.b16 %v4648, %v4646
    %v4671 = vpack.c.b16 %v4651, %v4649
    %v4672 = vpack.c.b16 %v4652, %v4650
    %v4673 = vpack.c.b16 %v4655, %v4653
    %v4674 = vpack.c.b16 %v4656, %v4654
    %v4675 = vpack.c.b16 %v4659, %v4657
    %v4676 = vpack.c.b16 %v4660, %v4658
    %4693 = vmatprep.subr.bf16.mxu0 %v4662
    %4694 = vmatpush1.bf16.msra.mxu0 %v4661
    %4695 = vmatprep.subr.bf16.mxu0 %v4664
    %4696 = vmatpush1.bf16.msra.mxu0 %v4663
    %4697 = vmatprep.subr.bf16.mxu0 %v4666
    %4698 = vmatpush1.bf16.msra.mxu0 %v4665
    %4699 = vmatprep.subr.bf16.mxu0 %v4668
    %4700 = vmatpush1.bf16.msra.mxu0 %v4667
    %4701 = vmatprep.subr.bf16.mxu0 %v4670
    %4702 = vmatpush1.bf16.msra.mxu0 %v4669
    %4703 = vmatprep.subr.bf16.mxu0 %v4672
    %4704 = vmatpush1.bf16.msra.mxu0 %v4671
    %4705 = vmatprep.subr.bf16.mxu0 %v4674
    %4706 = vmatpush1.bf16.msra.mxu0 %v4673
    %4707 = vmatprep.subr.bf16.mxu0 %v4676
    %4708 = vmatpush1.bf16.msra.mxu0 %v4675
    %4709 = vmatprep.subr.bf16.mxu0 0
    %4710 = vmatpush1.bf16.msra.mxu0 0
    %4711 = vmatprep.subr.bf16.mxu0 0
    %4712 = vmatpush1.bf16.msra.mxu0 0
    %4713 = vmatprep.subr.bf16.mxu0 0
    %4714 = vmatpush1.bf16.msra.mxu0 0
    %4715 = vmatprep.subr.bf16.mxu0 0
    %4716 = vmatpush1.bf16.msra.mxu0 0
    %4717 = vmatprep.subr.bf16.mxu0 0
    %4718 = vmatpush1.bf16.msra.mxu0 0
    %4719 = vmatprep.subr.bf16.mxu0 0
    %4720 = vmatpush1.bf16.msra.mxu0 0
    %4721 = vmatprep.subr.bf16.mxu0 0
    %4722 = vmatpush1.bf16.msra.mxu0 0
    %4723 = vmatprep.subr.bf16.mxu0 0
    %4724 = vmatpush1.bf16.msra.mxu0 0
    %4725 = vmatprep.mubr.bf16.mxu0 0
    %4726 = vmatmul.mubr.bf16.gmra.mrb[0].mxu0 %v4582
    %v4727 = vpop.f32.mrb[0].mxu0
    %v4728 = vadd.f32 %v4606, %v4727
    %v4729 = vpop.f32.mrb[0].mxu0
    %v4730 = vadd.f32 %v4610, %v4729
    %v4731 = vpop.f32.mrb[0].mxu0
    %v4732 = vpop.f32.mrb[0].mxu0
    %4733 = vdwg.mxu0
    %v4734 = vpack.c.bf16 %v4728, %v4728
    %v4735 = vpack.c.bf16 %v4730, %v4730
    %v4736 = vmul.f32 %v4576, %v1188
    %v4737 = vmul.f32 %v4579, %v1188
    %v4738 = vmul.f32 %v4576, %v1195
    %v4739 = vmul.f32 %v4579, %v1195
    %v4740 = vmul.f32 %v4576, %v1202
    %v4741 = vmul.f32 %v4579, %v1202
    %v4742 = vmul.f32 %v4576, %v1209
    %v4743 = vmul.f32 %v4579, %v1209
    %v4744 = vpack.c.bf16 %v4737, %v4736
    %v4745 = vpack.c.bf16 %v4739, %v4738
    %v4746 = vpack.c.bf16 %v4741, %v4740
    %v4747 = vpack.c.bf16 %v4743, %v4742
    %4748 = vmatprep.subr.bf16.mxu0 0
    %4749 = vmatpush1.bf16.xpose.msra.mxu0 %v4734
    %4750 = vmatprep.subr.bf16.mxu0 0
    %4751 = vmatpush1.bf16.xpose.msra.mxu0 0
    %4752 = vmatprep.subr.bf16.mxu0 0
    %4753 = vmatpush1.bf16.xpose.msra.mxu0 0
    %4754 = vmatprep.subr.bf16.mxu0 0
    %4755 = vmatpush1.bf16.xpose.msra.mxu0 0
    %4756 = vmatprep.subr.bf16.mxu0 0
    %4757 = vmatpush1.bf16.xpose.msra.mxu0 0
    %4758 = vmatprep.subr.bf16.mxu0 0
    %4759 = vmatpush1.bf16.xpose.msra.mxu0 0
    %4760 = vmatprep.subr.bf16.mxu0 0
    %4761 = vmatpush1.bf16.xpose.msra.mxu0 0
    %4762 = vmatprep.subr.bf16.mxu0 0
    %4763 = vmatpush1.bf16.xpose.msra.mxu0 0
    %4764 = vmatprep.subr.bf16.mxu0 0
    %4765 = vmatpush1.bf16.xpose.msra.mxu0 0
    %4766 = vmatprep.subr.bf16.mxu0 0
    %4767 = vmatpush1.bf16.xpose.msra.mxu0 0
    %4768 = vmatprep.subr.bf16.mxu0 0
    %4769 = vmatpush1.bf16.xpose.msra.mxu0 0
    %4770 = vmatprep.subr.bf16.mxu0 0
    %4771 = vmatpush1.bf16.xpose.msra.mxu0 0
    %4772 = vmatprep.subr.bf16.mxu0 0
    %4773 = vmatpush1.bf16.xpose.msra.mxu0 0
    %4774 = vmatprep.subr.bf16.mxu0 0
    %4775 = vmatpush1.bf16.xpose.msra.mxu0 0
    %4776 = vmatprep.subr.bf16.mxu0 0
    %4777 = vmatpush1.bf16.xpose.msra.mxu0 0
    %4778 = vmatprep.subr.bf16.mxu0 0
    %4779 = vmatpush1.bf16.xpose.msra.mxu0 0
    %4780 = vmatprep.mubr.bf16.mxu0 0
    %4781 = vmatmul.mubr.bf16.gmra.mrb[0].mxu0 %v4744
    %v4782 = vpop.f32.mrb[0].mxu0
    %v4783 = vadd.f32 0.0, %v4782
    %v4784 = vpop.f32.mrb[0].mxu0
    %v4785 = vpop.f32.mrb[0].mxu0
    %v4786 = vadd.f32 0.0, %v4785
    %v4787 = vpop.f32.mrb[0].mxu0
    %4788 = vmatprep.mubr.bf16.mxu0 0
    %4789 = vmatmul.mubr.bf16.gmra.mrb[0].mxu0 %v4745
    %v4790 = vpop.f32.mrb[0].mxu0
    %v4791 = vadd.f32 0.0, %v4790
    %v4792 = vpop.f32.mrb[0].mxu0
    %v4793 = vpop.f32.mrb[0].mxu0
    %v4794 = vadd.f32 0.0, %v4793
    %v4795 = vpop.f32.mrb[0].mxu0
    %4796 = vmatprep.mubr.bf16.mxu0 0
    %4797 = vmatmul.mubr.bf16.gmra.mrb[0].mxu0 %v4746
    %v4798 = vpop.f32.mrb[0].mxu0
    %v4799 = vadd.f32 0.0, %v4798
    %v4800 = vpop.f32.mrb[0].mxu0
    %v4801 = vpop.f32.mrb[0].mxu0
    %v4802 = vadd.f32 0.0, %v4801
    %v4803 = vpop.f32.mrb[0].mxu0
    %4804 = vmatprep.mubr.bf16.mxu0 0
    %4805 = vmatmul.mubr.bf16.gmra.mrb[0].mxu0 %v4747
    %v4806 = vpop.f32.mrb[0].mxu0
    %v4807 = vadd.f32 0.0, %v4806
    %v4808 = vpop.f32.mrb[0].mxu0
    %v4809 = vpop.f32.mrb[0].mxu0
    %v4810 = vadd.f32 0.0, %v4809
    %v4811 = vpop.f32.mrb[0].mxu0
    %4812 = vdwg.mxu0
    %v4813 = vmul.f32 %v4783, 0.17677669
    %v4814 = vmul.f32 %v4786, 0.17677669
    %v4815 = vmul.f32 %v4791, 0.17677669
    %v4816 = vmul.f32 %v4794, 0.17677669
    %v4817 = vmul.f32 %v4799, 0.17677669
    %v4818 = vmul.f32 %v4802, 0.17677669
    %v4819 = vmul.f32 %v4807, 0.17677669
    %v4820 = vmul.f32 %v4810, 0.17677669
    %v4821 = vsel %vm1917, %v4813, -1e+30
    %v4822 = vsel %vm1918, %v4814, -1e+30
    %v4823 = vsel %vm1917, %v4815, -1e+30
    %v4824 = vsel %vm1918, %v4816, -1e+30
    %v4825 = vsel %vm1917, %v4817, -1e+30
    %v4826 = vsel %vm1918, %v4818, -1e+30
    %v4827 = vsel %vm1917, %v4819, -1e+30
    %v4828 = vsel %vm1918, %v4820, -1e+30
    %v4829 = vsel %vm1927, %v4821, -inf
    %4830 = vmax.xlane.f32.xlu0 %v4829
    %v4831 = vpop.xlane.xlu0 %4830
    %v4832 = vsel %vm1927, %v4822, -inf
    %4833 = vmax.xlane.f32.xlu0 %v4832
    %v4834 = vpop.xlane.xlu0 %4833
    %v4835 = vsel %vm1927, %v4823, -inf
    %4836 = vmax.xlane.f32.xlu0 %v4835
    %v4837 = vpop.xlane.xlu0 %4836
    %v4838 = vsel %vm1927, %v4824, -inf
    %4839 = vmax.xlane.f32.xlu0 %v4838
    %v4840 = vpop.xlane.xlu0 %4839
    %v4841 = vsel %vm1927, %v4825, -inf
    %4842 = vmax.xlane.f32.xlu0 %v4841
    %v4843 = vpop.xlane.xlu0 %4842
    %v4844 = vsel %vm1927, %v4826, -inf
    %4845 = vmax.xlane.f32.xlu0 %v4844
    %v4846 = vpop.xlane.xlu0 %4845
    %v4847 = vsel %vm1927, %v4827, -inf
    %4848 = vmax.xlane.f32.xlu0 %v4847
    %v4849 = vpop.xlane.xlu0 %4848
    %v4850 = vsel %vm1927, %v4828, -inf
    %4851 = vmax.xlane.f32.xlu0 %v4850
    %v4852 = vpop.xlane.xlu0 %4851
    %v4853 = vsub.f32 %v4821, %v4831
    %v4854 = vsub.f32 %v4822, %v4834
    %v4855 = vsub.f32 %v4823, %v4837
    %v4856 = vsub.f32 %v4824, %v4840
    %v4857 = vsub.f32 %v4825, %v4843
    %v4858 = vsub.f32 %v4826, %v4846
    %v4859 = vsub.f32 %v4827, %v4849
    %v4860 = vsub.f32 %v4828, %v4852
    %v4861 = vmul.f32 %v4853, 1.442695
    %v4862 = vpow.pop %v4861
    %v4863 = vmul.f32 %v4854, 1.442695
    %v4864 = vpow.pop %v4863
    %v4865 = vmul.f32 %v4855, 1.442695
    %v4866 = vpow.pop %v4865
    %v4867 = vmul.f32 %v4856, 1.442695
    %v4868 = vpow.pop %v4867
    %v4869 = vmul.f32 %v4857, 1.442695
    %v4870 = vpow.pop %v4869
    %v4871 = vmul.f32 %v4858, 1.442695
    %v4872 = vpow.pop %v4871
    %v4873 = vmul.f32 %v4859, 1.442695
    %v4874 = vpow.pop %v4873
    %v4875 = vmul.f32 %v4860, 1.442695
    %v4876 = vpow.pop %v4875
    %v4877 = vsel %vm1927, %v4862, 0.0
    %4878 = vadd.xlane.f32.xlu0 %v4877
    %v4879 = vpop.xlane.xlu0 %4878
    %v4880 = vsel %vm1927, %v4864, 0.0
    %4881 = vadd.xlane.f32.xlu0 %v4880
    %v4882 = vpop.xlane.xlu0 %4881
    %v4883 = vsel %vm1927, %v4866, 0.0
    %4884 = vadd.xlane.f32.xlu0 %v4883
    %v4885 = vpop.xlane.xlu0 %4884
    %v4886 = vsel %vm1927, %v4868, 0.0
    %4887 = vadd.xlane.f32.xlu0 %v4886
    %v4888 = vpop.xlane.xlu0 %4887
    %v4889 = vsel %vm1927, %v4870, 0.0
    %4890 = vadd.xlane.f32.xlu0 %v4889
    %v4891 = vpop.xlane.xlu0 %4890
    %v4892 = vsel %vm1927, %v4872, 0.0
    %4893 = vadd.xlane.f32.xlu0 %v4892
    %v4894 = vpop.xlane.xlu0 %4893
    %v4895 = vsel %vm1927, %v4874, 0.0
    %4896 = vadd.xlane.f32.xlu0 %v4895
    %v4897 = vpop.xlane.xlu0 %4896
    %v4898 = vsel %vm1927, %v4876, 0.0
    %4899 = vadd.xlane.f32.xlu0 %v4898
    %v4900 = vpop.xlane.xlu0 %4899
    %v4901 = vrcp.pop %v4879
    %v4902 = vmul.f32 %v4862, %v4901
    %v4903 = vrcp.pop %v4882
    %v4904 = vmul.f32 %v4864, %v4903
    %v4905 = vrcp.pop %v4885
    %v4906 = vmul.f32 %v4866, %v4905
    %v4907 = vrcp.pop %v4888
    %v4908 = vmul.f32 %v4868, %v4907
    %v4909 = vrcp.pop %v4891
    %v4910 = vmul.f32 %v4870, %v4909
    %v4911 = vrcp.pop %v4894
    %v4912 = vmul.f32 %v4872, %v4911
    %v4913 = vrcp.pop %v4897
    %v4914 = vmul.f32 %v4874, %v4913
    %v4915 = vrcp.pop %v4900
    %v4916 = vmul.f32 %v4876, %v4915
    %v4917 = vpack.c.bf16 %v4904, %v4902
    %v4918 = vpack.c.bf16 %v4908, %v4906
    %v4919 = vpack.c.bf16 %v4912, %v4910
    %v4920 = vpack.c.bf16 %v4916, %v4914
    %v4922 = vsel %vm1927, %v4917, 0
    %v4925 = vsel %vm1927, %v4918, 0
    %v4928 = vsel %vm1927, %v4919, 0
    %v4931 = vsel %vm1927, %v4920, 0
    %v4934 = vsel %vm2032, %v4735, 0
    %4936 = vmatprep.subr.bf16.mxu0 0
    %4937 = vmatpush1.bf16.msra.mxu0 %v4934
    %4938 = vmatprep.subr.bf16.mxu0 0
    %4939 = vmatpush1.bf16.msra.mxu0 0
    %4940 = vmatprep.subr.bf16.mxu0 0
    %4941 = vmatpush1.bf16.msra.mxu0 0
    %4942 = vmatprep.subr.bf16.mxu0 0
    %4943 = vmatpush1.bf16.msra.mxu0 0
    %4944 = vmatprep.subr.bf16.mxu0 0
    %4945 = vmatpush1.bf16.msra.mxu0 0
    %4946 = vmatprep.subr.bf16.mxu0 0
    %4947 = vmatpush1.bf16.msra.mxu0 0
    %4948 = vmatprep.subr.bf16.mxu0 0
    %4949 = vmatpush1.bf16.msra.mxu0 0
    %4950 = vmatprep.subr.bf16.mxu0 0
    %4951 = vmatpush1.bf16.msra.mxu0 0
    %4952 = vmatprep.subr.bf16.mxu0 0
    %4953 = vmatpush1.bf16.msra.mxu0 0
    %4954 = vmatprep.subr.bf16.mxu0 0
    %4955 = vmatpush1.bf16.msra.mxu0 0
    %4956 = vmatprep.subr.bf16.mxu0 0
    %4957 = vmatpush1.bf16.msra.mxu0 0
    %4958 = vmatprep.subr.bf16.mxu0 0
    %4959 = vmatpush1.bf16.msra.mxu0 0
    %4960 = vmatprep.subr.bf16.mxu0 0
    %4961 = vmatpush1.bf16.msra.mxu0 0
    %4962 = vmatprep.subr.bf16.mxu0 0
    %4963 = vmatpush1.bf16.msra.mxu0 0
    %4964 = vmatprep.subr.bf16.mxu0 0
    %4965 = vmatpush1.bf16.msra.mxu0 0
    %4966 = vmatprep.subr.bf16.mxu0 0
    %4967 = vmatpush1.bf16.msra.mxu0 0
    %4968 = vmatprep.mubr.bf16.mxu0 0
    %4969 = vmatmul.mubr.bf16.gmra.mrb[0].mxu0 %v4922
    %v4970 = vpop.f32.mrb[0].mxu0
    %v4971 = vadd.f32 0.0, %v4970
    %v4972 = vpop.f32.mrb[0].mxu0
    %v4973 = vpop.f32.mrb[0].mxu0
    %v4974 = vadd.f32 0.0, %v4973
    %v4975 = vpop.f32.mrb[0].mxu0
    %4976 = vmatprep.mubr.bf16.mxu0 0
    %4977 = vmatmul.mubr.bf16.gmra.mrb[0].mxu0 %v4925
    %v4978 = vpop.f32.mrb[0].mxu0
    %v4979 = vadd.f32 0.0, %v4978
    %v4980 = vpop.f32.mrb[0].mxu0
    %v4981 = vpop.f32.mrb[0].mxu0
    %v4982 = vadd.f32 0.0, %v4981
    %v4983 = vpop.f32.mrb[0].mxu0
    %4984 = vmatprep.mubr.bf16.mxu0 0
    %4985 = vmatmul.mubr.bf16.gmra.mrb[0].mxu0 %v4928
    %v4986 = vpop.f32.mrb[0].mxu0
    %v4987 = vadd.f32 0.0, %v4986
    %v4988 = vpop.f32.mrb[0].mxu0
    %v4989 = vpop.f32.mrb[0].mxu0
    %v4990 = vadd.f32 0.0, %v4989
    %v4991 = vpop.f32.mrb[0].mxu0
    %4992 = vmatprep.mubr.bf16.mxu0 0
    %4993 = vmatmul.mubr.bf16.gmra.mrb[0].mxu0 %v4931
    %v4994 = vpop.f32.mrb[0].mxu0
    %v4995 = vadd.f32 0.0, %v4994
    %v4996 = vpop.f32.mrb[0].mxu0
    %v4997 = vpop.f32.mrb[0].mxu0
    %v4998 = vadd.f32 0.0, %v4997
    %v4999 = vpop.f32.mrb[0].mxu0
    %5000 = vdwg.mxu0
    %v5001 = vmul.f32 %v4971, %v1188
    %v5002 = vmul.f32 %v4974, %v1188
    %v5003 = vmul.f32 %v4979, %v1195
    %v5004 = vmul.f32 %v4982, %v1195
    %v5005 = vadd.f32 %v5001, %v5003
    %v5006 = vadd.f32 %v5002, %v5004
    %v5007 = vmul.f32 %v4987, %v1202
    %v5008 = vmul.f32 %v4990, %v1202
    %v5009 = vadd.f32 %v5005, %v5007
    %v5010 = vadd.f32 %v5006, %v5008
    %v5011 = vmul.f32 %v4995, %v1209
    %v5012 = vmul.f32 %v4998, %v1209
    %v5013 = vadd.f32 %v5009, %v5011
    %v5014 = vadd.f32 %v5010, %v5012
    %v5015 = vadd.f32 %v4576, %v5013
    %v5016 = vadd.f32 %v4579, %v5014
    %v5017 = vmul.f32 %v5015, %v1385
    %v5018 = vmul.f32 %v5016, %v1385
    %5019 = vadd.xlane.f32.xlu0 %v5017
    %v5020 = vpop.xlane.xlu0 %5019
    %5021 = vadd.xlane.f32.xlu0 %v5018
    %v5022 = vpop.xlane.xlu0 %5021
    %v5023 = vmul.f32 %v5020, 0.03125
    %v5024 = vmul.f32 %v5022, 0.03125
    %v5025 = vsub.f32 %v5015, %v5023
    %v5026 = vsub.f32 %v5016, %v5024
    %v5027 = vmul.f32 %v5025, %v1385
    %v5028 = vmul.f32 %v5026, %v1385
    %v5029 = vmul.f32 %v5027, %v5027
    %v5030 = vmul.f32 %v5028, %v5028
    %5031 = vadd.xlane.f32.xlu0 %v5029
    %v5032 = vpop.xlane.xlu0 %5031
    %5033 = vadd.xlane.f32.xlu0 %v5030
    %v5034 = vpop.xlane.xlu0 %5033
    %v5035 = vmul.f32 %v5032, 0.03125
    %v5036 = vmul.f32 %v5034, 0.03125
    %v5037 = vadd.f32 %v5035, 1e-05
    %v5038 = vadd.f32 %v5036, 1e-05
    %v5039 = vrsqrt.pop %v5037
    %v5040 = vrsqrt.pop %v5038
    %v5041 = vmul.f32 %v5025, %v5039
    %v5042 = vmul.f32 %v5026, %v5040
    %v5044 = vlaneseq
    %v5045 = vshrl.u32 %v5044, 7
    %v5046 = vsub.s32 0, %v5045
    %v5047 = vrot.slane %v4463, %v5046
    %v5049 = vmul.f32 %v5041, %v5047
    %v5050 = vmul.f32 %v5042, %v5047
    %v5052 = vlaneseq
    %v5053 = vshrl.u32 %v5052, 7
    %v5054 = vsub.s32 0, %v5053
    %v5055 = vrot.slane %v4465, %v5054
    %v5057 = vadd.f32 %v5049, %v5055
    %v5058 = vadd.f32 %v5050, %v5055
    %v5059 = vpack.c.bf16 %v5058, %v5057
    %s5060 = scalar_lea.vmem [#allocation12], 320
    %v5061 = vld [vmem:[%s5060] sm:$0xf]
    %v5062 = vld [vmem:[%s5060 + $0x4] sm:$0xf]
    %v5063 = vld [vmem:[%s5060 + $0x8] sm:$0xf]
    %v5064 = vld [vmem:[%s5060 + $0xc] sm:$0xf]
    %v5065 = vld [vmem:[%s5060 + $0x10] sm:$0xf]
    %v5066 = vld [vmem:[%s5060 + $0x14] sm:$0xf]
    %v5067 = vld [vmem:[%s5060 + $0x18] sm:$0xf]
    %v5068 = vld [vmem:[%s5060 + $0x1c] sm:$0xf]
    %v5069 = vld [vmem:[%s5060 + $0x20] sm:$0xf]
    %v5070 = vld [vmem:[%s5060 + $0x24] sm:$0xf]
    %v5071 = vld [vmem:[%s5060 + $0x28] sm:$0xf]
    %v5072 = vld [vmem:[%s5060 + $0x2c] sm:$0xf]
    %v5073 = vld [vmem:[%s5060 + $0x30] sm:$0xf]
    %v5074 = vld [vmem:[%s5060 + $0x34] sm:$0xf]
    %v5075 = vld [vmem:[%s5060 + $0x38] sm:$0xf]
    %v5076 = vld [vmem:[%s5060 + $0x3c] sm:$0xf]
    %v5078 = vlaneseq
    %v5079 = vshrl.u32 %v5078, 7
    %v5080 = vsub.s32 0, %v5079
    %v5081 = vrot.slane %v4461, %v5080
    %v5099 = vunpack.c.l.b16 %v5061
    %v5100 = vunpack.c.l.b16 %v5062
    %v5101 = vunpack.c.l.b16 %v5063
    %v5102 = vunpack.c.l.b16 %v5064
    %v5103 = vunpack.c.l.b16 %v5065
    %v5104 = vunpack.c.l.b16 %v5066
    %v5105 = vunpack.c.l.b16 %v5067
    %v5106 = vunpack.c.l.b16 %v5068
    %v5107 = vunpack.c.l.b16 %v5069
    %v5108 = vunpack.c.l.b16 %v5070
    %v5109 = vunpack.c.l.b16 %v5071
    %v5110 = vunpack.c.l.b16 %v5072
    %v5111 = vunpack.c.l.b16 %v5073
    %v5112 = vunpack.c.l.b16 %v5074
    %v5113 = vunpack.c.l.b16 %v5075
    %v5114 = vunpack.c.l.b16 %v5076
    %v5115 = vpack.c.b16 %v5100, %v5099
    %v5116 = vpack.c.b16 %v5102, %v5101
    %v5117 = vpack.c.b16 %v5104, %v5103
    %v5118 = vpack.c.b16 %v5106, %v5105
    %v5119 = vpack.c.b16 %v5108, %v5107
    %v5120 = vpack.c.b16 %v5110, %v5109
    %v5121 = vpack.c.b16 %v5112, %v5111
    %v5122 = vpack.c.b16 %v5114, %v5113
    %5131 = vmatprep.subr.bf16.mxu0 0
    %5132 = vmatpush1.bf16.msra.mxu0 %v5115
    %5133 = vmatprep.subr.bf16.mxu0 0
    %5134 = vmatpush1.bf16.msra.mxu0 %v5116
    %5135 = vmatprep.subr.bf16.mxu0 0
    %5136 = vmatpush1.bf16.msra.mxu0 %v5117
    %5137 = vmatprep.subr.bf16.mxu0 0
    %5138 = vmatpush1.bf16.msra.mxu0 %v5118
    %5139 = vmatprep.subr.bf16.mxu0 0
    %5140 = vmatpush1.bf16.msra.mxu0 %v5119
    %5141 = vmatprep.subr.bf16.mxu0 0
    %5142 = vmatpush1.bf16.msra.mxu0 %v5120
    %5143 = vmatprep.subr.bf16.mxu0 0
    %5144 = vmatpush1.bf16.msra.mxu0 %v5121
    %5145 = vmatprep.subr.bf16.mxu0 0
    %5146 = vmatpush1.bf16.msra.mxu0 %v5122
    %5147 = vmatprep.subr.bf16.mxu0 0
    %5148 = vmatpush1.bf16.msra.mxu0 0
    %5149 = vmatprep.subr.bf16.mxu0 0
    %5150 = vmatpush1.bf16.msra.mxu0 0
    %5151 = vmatprep.subr.bf16.mxu0 0
    %5152 = vmatpush1.bf16.msra.mxu0 0
    %5153 = vmatprep.subr.bf16.mxu0 0
    %5154 = vmatpush1.bf16.msra.mxu0 0
    %5155 = vmatprep.subr.bf16.mxu0 0
    %5156 = vmatpush1.bf16.msra.mxu0 0
    %5157 = vmatprep.subr.bf16.mxu0 0
    %5158 = vmatpush1.bf16.msra.mxu0 0
    %5159 = vmatprep.subr.bf16.mxu0 0
    %5160 = vmatpush1.bf16.msra.mxu0 0
    %5161 = vmatprep.subr.bf16.mxu0 0
    %5162 = vmatpush1.bf16.msra.mxu0 0
    %5163 = vmatprep.mubr.bf16.mxu0 0
    %5164 = vmatmul.mubr.bf16.gmra.mrb[0].mxu0 %v5059
    %v5165 = vpop.f32.mrb[0].mxu0
    %v5166 = vadd.f32 %v5081, %v5165
    %v5167 = vpop.f32.mrb[0].mxu0
    %v5168 = vpop.f32.mrb[0].mxu0
    %v5169 = vadd.f32 %v5081, %v5168
    %v5170 = vpop.f32.mrb[0].mxu0
    %5171 = vdwg.mxu0
    %v5172 = vmax.f32 %v5166, 0.0
    %v5173 = vmax.f32 %v5169, 0.0
    %v5174 = vadd.f32 %v5057, %v5172
    %v5175 = vadd.f32 %v5058, %v5173
    %v5176 = vmul.f32 %v5174, %v1385
    %v5177 = vmul.f32 %v5175, %v1385
    %5178 = vadd.xlane.f32.xlu0 %v5176
    %v5179 = vpop.xlane.xlu0 %5178
    %5180 = vadd.xlane.f32.xlu0 %v5177
    %v5181 = vpop.xlane.xlu0 %5180
    %v5182 = vmul.f32 %v5179, 0.03125
    %v5183 = vmul.f32 %v5181, 0.03125
    %v5184 = vsub.f32 %v5174, %v5182
    %v5185 = vsub.f32 %v5175, %v5183
    %v5186 = vmul.f32 %v5184, %v1385
    %v5187 = vmul.f32 %v5185, %v1385
    %v5188 = vmul.f32 %v5186, %v5186
    %v5189 = vmul.f32 %v5187, %v5187
    %5190 = vadd.xlane.f32.xlu0 %v5188
    %v5191 = vpop.xlane.xlu0 %5190
    %5192 = vadd.xlane.f32.xlu0 %v5189
    %v5193 = vpop.xlane.xlu0 %5192
    %v5194 = vmul.f32 %v5191, 0.03125
    %v5195 = vmul.f32 %v5193, 0.03125
    %v5196 = vadd.f32 %v5194, 1e-05
    %v5197 = vadd.f32 %v5195, 1e-05
    %v5198 = vrsqrt.pop %v5196
    %v5199 = vrsqrt.pop %v5197
    %v5200 = vmul.f32 %v5184, %v5198
    %v5201 = vmul.f32 %v5185, %v5199
    %v5203 = vlaneseq
    %v5204 = vshrl.u32 %v5203, 7
    %v5205 = vsub.s32 0, %v5204
    %v5206 = vrot.slane %v4467, %v5205
    %v5208 = vmul.f32 %v5200, %v5206
    %v5209 = vmul.f32 %v5201, %v5206
    %v5211 = vlaneseq
    %v5212 = vshrl.u32 %v5211, 7
    %v5213 = vsub.s32 0, %v5212
    %v5214 = vrot.slane %v4469, %v5213
    %v5216 = vadd.f32 %v5208, %v5214
    %v5217 = vadd.f32 %v5209, %v5214
    %v5218 = vpack.c.bf16 %v5217, %v5216
    %v5219 = vld [vmem:[#allocation15] sm:$0xf]
    %v5220 = vld [vmem:[#allocation15 + $0x4] sm:$0xf]
    %v5221 = vld [vmem:[#allocation15 + $0x8] sm:$0xf]
    %v5222 = vld [vmem:[#allocation15 + $0xc] sm:$0xf]
    %v5223 = vld [vmem:[#allocation15 + $0x10] sm:$0xf]
    %v5224 = vld [vmem:[#allocation15 + $0x14] sm:$0xf]
    %v5225 = vld [vmem:[#allocation15 + $0x18] sm:$0xf]
    %v5226 = vld [vmem:[#allocation15 + $0x1c] sm:$0xf]
    %v5227 = vld [vmem:[#allocation15 + $0x20] sm:$0xf]
    %v5228 = vld [vmem:[#allocation15 + $0x24] sm:$0xf]
    %v5229 = vld [vmem:[#allocation15 + $0x28] sm:$0xf]
    %v5230 = vld [vmem:[#allocation15 + $0x2c] sm:$0xf]
    %v5231 = vld [vmem:[#allocation15 + $0x30] sm:$0xf]
    %v5232 = vld [vmem:[#allocation15 + $0x34] sm:$0xf]
    %v5233 = vld [vmem:[#allocation15 + $0x38] sm:$0xf]
    %v5234 = vld [vmem:[#allocation15 + $0x3c] sm:$0xf]
    %v5235 = vld [vmem:[#allocation16] sm:$0x1]
    %v5237 = vlaneseq
    %v5238 = vshrl.u32 %v5237, 7
    %v5239 = vsub.s32 0, %v5238
    %v5240 = vrot.slane %v5235, %v5239
    %v5258 = vunpack.c.l.b16 %v5219
    %v5259 = vunpack.c.l.b16 %v5220
    %v5260 = vunpack.c.l.b16 %v5221
    %v5261 = vunpack.c.l.b16 %v5222
    %v5262 = vunpack.c.l.b16 %v5223
    %v5263 = vunpack.c.l.b16 %v5224
    %v5264 = vunpack.c.l.b16 %v5225
    %v5265 = vunpack.c.l.b16 %v5226
    %v5266 = vunpack.c.l.b16 %v5227
    %v5267 = vunpack.c.l.b16 %v5228
    %v5268 = vunpack.c.l.b16 %v5229
    %v5269 = vunpack.c.l.b16 %v5230
    %v5270 = vunpack.c.l.b16 %v5231
    %v5271 = vunpack.c.l.b16 %v5232
    %v5272 = vunpack.c.l.b16 %v5233
    %v5273 = vunpack.c.l.b16 %v5234
    %v5274 = vpack.c.b16 %v5259, %v5258
    %v5275 = vpack.c.b16 %v5261, %v5260
    %v5276 = vpack.c.b16 %v5263, %v5262
    %v5277 = vpack.c.b16 %v5265, %v5264
    %v5278 = vpack.c.b16 %v5267, %v5266
    %v5279 = vpack.c.b16 %v5269, %v5268
    %v5280 = vpack.c.b16 %v5271, %v5270
    %v5281 = vpack.c.b16 %v5273, %v5272
    %5290 = vmatprep.subr.bf16.mxu0 0
    %5291 = vmatpush1.bf16.msra.mxu0 %v5274
    %5292 = vmatprep.subr.bf16.mxu0 0
    %5293 = vmatpush1.bf16.msra.mxu0 %v5275
    %5294 = vmatprep.subr.bf16.mxu0 0
    %5295 = vmatpush1.bf16.msra.mxu0 %v5276
    %5296 = vmatprep.subr.bf16.mxu0 0
    %5297 = vmatpush1.bf16.msra.mxu0 %v5277
    %5298 = vmatprep.subr.bf16.mxu0 0
    %5299 = vmatpush1.bf16.msra.mxu0 %v5278
    %5300 = vmatprep.subr.bf16.mxu0 0
    %5301 = vmatpush1.bf16.msra.mxu0 %v5279
    %5302 = vmatprep.subr.bf16.mxu0 0
    %5303 = vmatpush1.bf16.msra.mxu0 %v5280
    %5304 = vmatprep.subr.bf16.mxu0 0
    %5305 = vmatpush1.bf16.msra.mxu0 %v5281
    %5306 = vmatprep.subr.bf16.mxu0 0
    %5307 = vmatpush1.bf16.msra.mxu0 0
    %5308 = vmatprep.subr.bf16.mxu0 0
    %5309 = vmatpush1.bf16.msra.mxu0 0
    %5310 = vmatprep.subr.bf16.mxu0 0
    %5311 = vmatpush1.bf16.msra.mxu0 0
    %5312 = vmatprep.subr.bf16.mxu0 0
    %5313 = vmatpush1.bf16.msra.mxu0 0
    %5314 = vmatprep.subr.bf16.mxu0 0
    %5315 = vmatpush1.bf16.msra.mxu0 0
    %5316 = vmatprep.subr.bf16.mxu0 0
    %5317 = vmatpush1.bf16.msra.mxu0 0
    %5318 = vmatprep.subr.bf16.mxu0 0
    %5319 = vmatpush1.bf16.msra.mxu0 0
    %5320 = vmatprep.subr.bf16.mxu0 0
    %5321 = vmatpush1.bf16.msra.mxu0 0
    %5322 = vmatprep.mubr.bf16.mxu0 0
    %5323 = vmatmul.mubr.bf16.gmra.mrb[0].mxu0 %v5218
    %v5324 = vpop.f32.mrb[0].mxu0
    %v5325 = vadd.f32 %v5240, %v5324
    %v5326 = vpop.f32.mrb[0].mxu0
    %v5327 = vpop.f32.mrb[0].mxu0
    %v5328 = vadd.f32 %v5240, %v5327
    %v5329 = vpop.f32.mrb[0].mxu0
    %5330 = vdwg.mxu0
    %5331 = vst [vmem:[%s18] sm:$0xff] %v5325
    %5332 = vst [vmem:[%s18 + $0x8] sm:$0xff] %v5328
    // Predicated region
    $region114: #{gatfpsst_forward.1} parent=1 // pred_check
      _
    $region115: #{gatfpsst_forward.1} parent=1 // pred_check_branch
      %5334 = sbr.rel (0) target = $region117
    $region116: #{gatfpsst_forward.1} parent=1 // pred_region
      _
    $region117: #{gatfpsst_forward.1} parent=1 // pred_fallthru
      _
    // Predicated region
    $region118: #{gatfpsst_forward.1} parent=1 // pred_check
      _
    $region119: #{gatfpsst_forward.1} parent=1 // pred_check_branch
      %5336 = sbr.rel (0) target = $region121
    $region120: #{gatfpsst_forward.1} parent=1 // pred_region
      _
    $region121: #{gatfpsst_forward.1} parent=1 // pred_fallthru
      _
    %5337 = vsyncpa [#allocation3], 1
    %5338 = vsyncpa [#allocation5], 1
    %5339 = vsyncpa [#allocation8], 1
    %5340 = vsyncpa [#allocation11], 1
    %5341 = vsyncpa [#allocation14], 1
    %5342 = vsyncpa [#allocation17], 1

</llo_original>
